<compile_context>
chip_gen: v7x
topology: tpu7x:2x2x1
jax: 0.10.0
libtpu: 0.0.40
codegen_flags: <defaults>
</compile_context>

<pallas_src>
import functools

import jax
import jax.numpy as jnp
from jax import lax
from jax.experimental import pallas as pl
from jax.experimental.pallas import tpu as pltpu


def encoder_layer_kernel(mask_ref, xq_ref, xkv_ref,
                         g1_ref, be1_ref, g2_ref, be2_ref,
                         wq_ref, bq_ref, wkv_ref, bkv_ref,
                         wo_ref, bo_ref,
                         w1_ref, bf1_ref, w2_ref, bf2_ref,
                         o_ref,
                         q_sc, m_sc, l_sc, acc_sc,
                         *, n_head):
    ki = pl.program_id(2)
    nk = pl.num_programs(2)

    D = xq_ref.shape[-1]
    dk = D // n_head
    eps = jnp.float32(1e-12)
    neg = jnp.float32(-1e30)          # large finite "masked" value (avoids inf-inf NaN)

    def layernorm(v, g, b):
        mu = jnp.mean(v, axis=-1, keepdims=True)
        var = jnp.mean((v - mu) ** 2, axis=-1, keepdims=True)   # biased, like torch
        return (v - mu) * lax.rsqrt(var + eps) * g + b

    # ---------- per-query-tile init: scaled Q + online-softmax state ----------
    @pl.when(ki == 0)
    def _():
        xq = xq_ref[0]                                          # (TQ, D) f32
        xn = layernorm(xq, g1_ref[...], be1_ref[...])
        q = jnp.dot(xn.astype(jnp.bfloat16), wq_ref[...],
                    preferred_element_type=jnp.float32) + bq_ref[...]
        q = (q * lax.rsqrt(jnp.float32(dk))).astype(jnp.bfloat16)   # fold 1/sqrt(dk)
        for h in range(n_head):                                 # head-split once / q tile
            q_sc[h] = q[:, h * dk:(h + 1) * dk]
        m_sc[...] = jnp.full(m_sc.shape, neg, jnp.float32)
        l_sc[...] = jnp.zeros(l_sc.shape, jnp.float32)
        acc_sc[...] = jnp.zeros(acc_sc.shape, jnp.float32)

    # ---------- stream this KV tile: fused K/V projection + online softmax ----------
    xkv = xkv_ref[0]                                            # (TK, D) f32
    xnk = layernorm(xkv, g1_ref[...], be1_ref[...])
    kv = jnp.dot(xnk.astype(jnp.bfloat16), wkv_ref[...],        # fused [Wk | Wv]
                 preferred_element_type=jnp.float32) + bkv_ref[...]
    kv = kv.astype(jnp.bfloat16)                                # (TK, 2D)
    valid = mask_ref[0] > 0.0                                   # (1, TK) key mask

    for h in range(n_head):
        kh = kv[:, h * dk:(h + 1) * dk]                         # (TK, dk)
        vh = kv[:, D + h * dk:D + (h + 1) * dk]                 # (TK, dk)
        # contract last dims of both operands -> no explicit transpose of K
        s = lax.dot_general(q_sc[h], kh, (((1,), (1,)), ((), ())),
                            preferred_element_type=jnp.float32)  # (TQ, TK)
        s = jnp.where(valid, s, neg)
        m_prev = m_sc[h]                                        # (TQ, 1)
        m_new = jnp.maximum(m_prev, jnp.max(s, axis=-1, keepdims=True))
        alpha = jnp.exp(m_prev - m_new)
        p = jnp.where(valid, jnp.exp(s - m_new), 0.0)           # masked_fill(., 0.0)
        l_sc[h] = alpha * l_sc[h] + jnp.sum(p, axis=-1, keepdims=True)
        acc_sc[h] = alpha * acc_sc[h] + jnp.dot(
            p.astype(jnp.bfloat16), vh, preferred_element_type=jnp.float32)
        m_sc[h] = m_new

    # ---------- finalize: output projection, residual, pre-norm FFN ----------
    @pl.when(ki == nk - 1)
    def _():
        xq = xq_ref[0]                                          # residual, f32
        tiny = jnp.float32(1e-30)
        attn = jnp.broadcast_to(bo_ref[...], xq.shape)          # start from bias
        for h in range(n_head):
            inv_l = pl.reciprocal(jnp.maximum(l_sc[h], tiny), approx=True)
            ctx_h = (acc_sc[h] * inv_l).astype(jnp.bfloat16)    # (TQ, dk)
            attn = attn + jnp.dot(ctx_h, wo_ref[h],             # accumulate through Wo
                                  preferred_element_type=jnp.float32)
        x1 = xq + attn                                          # dropout == identity

        xn2 = layernorm(x1, g2_ref[...], be2_ref[...])
        h1 = jnp.dot(xn2.astype(jnp.bfloat16), w1_ref[...],
                     preferred_element_type=jnp.float32) + bf1_ref[...]
        h1 = jnp.maximum(h1, 0.0).astype(jnp.bfloat16)          # ReLU
        ff = jnp.dot(h1, w2_ref[...],
                     preferred_element_type=jnp.float32) + bf2_ref[...]
        o_ref[0] = (x1 + ff).astype(o_ref.dtype)


def transformer_encoder_layer(x, mask, pos_emb, params, n_head, *, tq=128, tk=128):
    """Matches TransformerEncoderLayer.forward (normalize_before=True,
    concat_after=False, eval-mode dropout). Returns (x_out, mask, fake_cnn_cache)."""
    # pos_emb is unused by the vanilla MultiHeadedAttention self_attn (the PyTorch
    # module never passes it to self_attn).
    del pos_emb
    B, T, D = x.shape
    assert D % n_head == 0
    tq = min(tq, T)
    tk = min(tk, T)
    assert T % tq == 0 and T % tk == 0
    dk = D // n_head
    dff = params["w1"].shape[1]

    # One-time param packing: fused K/V weight, per-head Wo slabs, bf16 MXU weights.
    bf16 = jnp.bfloat16
    wq = params["wq"].astype(bf16)
    wkv = jnp.concatenate([params["wk"], params["wv"]], axis=1).astype(bf16)  # (D, 2D)
    bkv = jnp.concatenate([params["bk"], params["bv"]], axis=1)               # (1, 2D)
    wo_h = params["wo"].reshape(n_head, dk, D).astype(bf16)                   # (H, dk, D)
    w1 = params["w1"].astype(bf16)
    w2 = params["w2"].astype(bf16)

    def rep(shape):                    # weight/bias stays resident across the grid
        nd = len(shape)
        return pl.BlockSpec(shape, lambda *_: (0,) * nd)

    in_specs = [
        pl.BlockSpec((1, 1, tk), lambda b, qi, ki: (b, 0, ki)),   # key-mask tile
        pl.BlockSpec((1, tq, D), lambda b, qi, ki: (b, qi, 0)),   # query rows
        pl.BlockSpec((1, tk, D), lambda b, qi, ki: (b, ki, 0)),   # key/value rows
        rep((1, D)), rep((1, D)),                                 # norm1 gamma/beta
        rep((1, D)), rep((1, D)),                                 # norm2 gamma/beta
        rep((D, D)), rep((1, D)),                                 # Wq, bq
        rep((D, 2 * D)), rep((1, 2 * D)),                         # fused Wk|Wv, bk|bv
        rep((n_head, dk, D)), rep((1, D)),                        # per-head Wo, bo
        rep((D, dff)), rep((1, dff)),                             # FF W1, b1
        rep((dff, D)), rep((1, D)),                               # FF W2, b2
    ]

    out = pl.pallas_call(
        functools.partial(encoder_layer_kernel, n_head=n_head),
        out_shape=jax.ShapeDtypeStruct((B, T, D), x.dtype),
        grid=(B, T // tq, T // tk),
        in_specs=in_specs,
        out_specs=pl.BlockSpec((1, tq, D), lambda b, qi, ki: (b, qi, 0)),
        scratch_shapes=[
            pltpu.VMEM((n_head, tq, dk), jnp.bfloat16),   # scaled, head-split Q
            pltpu.VMEM((n_head, tq, 1), jnp.float32),     # running row max
            pltpu.VMEM((n_head, tq, 1), jnp.float32),     # running denominator
            pltpu.VMEM((n_head, tq, dk), jnp.float32),    # unnormalized context
        ],
        compiler_params=pltpu.CompilerParams(
            dimension_semantics=("parallel", "parallel", "arbitrary"),
            vmem_limit_bytes=48 * 1024 * 1024),
    )(mask, x, x,
      params["g1"], params["be1"], params["g2"], params["be2"],
      wq, params["bq"], wkv, bkv, wo_h, params["bo"],
      w1, params["bf1"], w2, params["bf2"])

    fake_cnn_cache = jnp.zeros((1,), dtype=x.dtype)
    return out, mask, fake_cnn_cache
    # TODO(synk): concat_after=True path (concat_linear) and the
    # output_cache / cnn_cache streaming path are not exercised here.


def init_params(key, D, DFF):
    ks = jax.random.split(key, 10)
    s = 0.05
    return {
        "g1": jnp.ones((1, D), jnp.float32),
        "be1": jnp.zeros((1, D), jnp.float32),
        "g2": jnp.ones((1, D), jnp.float32),
        "be2": jnp.zeros((1, D), jnp.float32),
        "wq": s * jax.random.normal(ks[0], (D, D), jnp.float32),
        "bq": s * jax.random.normal(ks[1], (1, D), jnp.float32),
        "wk": s * jax.random.normal(ks[2], (D, D), jnp.float32),
        "bk": s * jax.random.normal(ks[3], (1, D), jnp.float32),
        "wv": s * jax.random.normal(ks[4], (D, D), jnp.float32),
        "bv": s * jax.random.normal(ks[5], (1, D), jnp.float32),
        "wo": s * jax.random.normal(ks[6], (D, D), jnp.float32),
        "bo": s * jax.random.normal(ks[7], (1, D), jnp.float32),
        "w1": s * jax.random.normal(ks[8], (D, DFF), jnp.float32),
        "bf1": jnp.zeros((1, DFF), jnp.float32),
        "w2": s * jax.random.normal(ks[9], (DFF, D), jnp.float32),
        "bf2": jnp.zeros((1, D), jnp.float32),
    }


def reference_layer(x, mask, params, n_head):
    """Pure-JAX f32 reference matching the PyTorch module (eval mode)."""
    eps = 1e-12

    def ln(v, g, b):
        mu = v.mean(-1, keepdims=True)
        var = ((v - mu) ** 2).mean(-1, keepdims=True)
        return (v - mu) / jnp.sqrt(var + eps) * g + b

    B, T, D = x.shape
    dk = D // n_head
    xn = ln(x, params["g1"], params["be1"])
    q = xn @ params["wq"] + params["bq"]
    k = xn @ params["wk"] + params["bk"]
    v = xn @ params["wv"] + params["bv"]

    def split(t):
        return t.reshape(B, T, n_head, dk).transpose(0, 2, 1, 3)   # (B, H, T, dk)

    qh, kh, vh = split(q), split(k), split(v)
    scores = jnp.einsum("bhqd,bhkd->bhqk", qh, kh) / jnp.sqrt(jnp.float32(dk))
    valid = mask[:, None, :, :] > 0                                 # (B, 1, 1, T)
    scores = jnp.where(valid, scores, -jnp.inf)
    attn = jax.nn.softmax(scores, axis=-1)
    attn = jnp.where(valid, attn, 0.0)
    ctx = jnp.einsum("bhqk,bhkd->bhqd", attn, vh)
    ctx = ctx.transpose(0, 2, 1, 3).reshape(B, T, D)
    x1 = x + ctx @ params["wo"] + params["bo"]
    xn2 = ln(x1, params["g2"], params["be2"])
    ff = jnp.maximum(xn2 @ params["w1"] + params["bf1"], 0.0) @ params["w2"] + params["bf2"]
    return x1 + ff


if __name__ == "__main__":
    B, T, D, H, DFF = 2, 256, 128, 4, 256
    key = jax.random.PRNGKey(0)
    kx, kp = jax.random.split(key)

    x = jax.random.normal(kx, (B, T, D), jnp.float32)
    mask = jnp.ones((B, 1, T), jnp.float32)
    mask = mask.at[1, 0, 200:].set(0.0)            # second item padded at t >= 200
    pos_emb = jnp.zeros((1, T, D), jnp.float32)    # unused by vanilla MHA

    params = init_params(kp, D, DFF)

    out, mask_out, fake_cnn_cache = transformer_encoder_layer(
        x, mask, pos_emb, params, H, tq=128, tk=128)
    jax.block_until_ready(out)

    assert out.shape == (B, T, D) and fake_cnn_cache.shape == (1,)
    assert bool(jnp.all(jnp.isfinite(out)))

    ref = reference_layer(x, mask, params, H)
    max_err = float(jnp.max(jnp.abs(out - ref)))
    assert max_err < 0.1, f"max |err| vs f32 reference too large: {max_err}"

    print("KERNEL_OK")
</pallas_src>

<mosaic_0001>
module attributes {stable_mosaic.version = 11 : i64} {
  func.func @encoder_layer_kernel(%arg0: i32, %arg1: i32, %arg2: i32, %arg3: memref<1x1x128xf32, #tpu.memory_space<vmem>>, %arg4: memref<1x128x128xf32, #tpu.memory_space<vmem>>, %arg5: memref<1x128x128xf32, #tpu.memory_space<vmem>>, %arg6: memref<1x128xf32, #tpu.memory_space<vmem>>, %arg7: memref<1x128xf32, #tpu.memory_space<vmem>>, %arg8: memref<1x128xf32, #tpu.memory_space<vmem>>, %arg9: memref<1x128xf32, #tpu.memory_space<vmem>>, %arg10: memref<128x128xbf16, #tpu.memory_space<vmem>>, %arg11: memref<1x128xf32, #tpu.memory_space<vmem>>, %arg12: memref<128x256xbf16, #tpu.memory_space<vmem>>, %arg13: memref<1x256xf32, #tpu.memory_space<vmem>>, %arg14: memref<4x32x128xbf16, #tpu.memory_space<vmem>>, %arg15: memref<1x128xf32, #tpu.memory_space<vmem>>, %arg16: memref<128x256xbf16, #tpu.memory_space<vmem>>, %arg17: memref<1x256xf32, #tpu.memory_space<vmem>>, %arg18: memref<256x128xbf16, #tpu.memory_space<vmem>>, %arg19: memref<1x128xf32, #tpu.memory_space<vmem>>, %arg20: memref<1x128x128xf32, #tpu.memory_space<vmem>>, %arg21: memref<4x128x32xbf16, #tpu.memory_space<vmem>>, %arg22: memref<4x128x1xf32, #tpu.memory_space<vmem>>, %arg23: memref<4x128x1xf32, #tpu.memory_space<vmem>>, %arg24: memref<4x128x32xf32, #tpu.memory_space<vmem>>) attributes {dimension_semantics = [#tpu.dimension_semantics<parallel>, #tpu.dimension_semantics<parallel>, #tpu.dimension_semantics<arbitrary>], iteration_bounds = array<i64: 2, 2, 2>, scalar_prefetch = 0 : i64, scratch_operands = 4 : i64, tpu.core_type = #tpu.core_type<tc>, window_params = [{transform_indices = @transform_0, window_bounds = array<i64: 1, 1, 128>}, {transform_indices = @transform_1, window_bounds = array<i64: 1, 128, 128>}, {transform_indices = @transform_2, window_bounds = array<i64: 1, 128, 128>}, {pipeline_mode = #tpu.pipeline_mode<synchronous>, transform_indices = @transform_3, window_bounds = array<i64: 1, 128>}, {pipeline_mode = #tpu.pipeline_mode<synchronous>, transform_indices = @transform_4, window_bounds = array<i64: 1, 128>}, {pipeline_mode = #tpu.pipeline_mode<synchronous>, transform_indices = @transform_5, window_bounds = array<i64: 1, 128>}, {pipeline_mode = #tpu.pipeline_mode<synchronous>, transform_indices = @transform_6, window_bounds = array<i64: 1, 128>}, {pipeline_mode = #tpu.pipeline_mode<synchronous>, transform_indices = @transform_7, window_bounds = array<i64: 128, 128>}, {pipeline_mode = #tpu.pipeline_mode<synchronous>, transform_indices = @transform_8, window_bounds = array<i64: 1, 128>}, {pipeline_mode = #tpu.pipeline_mode<synchronous>, transform_indices = @transform_9, window_bounds = array<i64: 128, 256>}, {pipeline_mode = #tpu.pipeline_mode<synchronous>, transform_indices = @transform_10, window_bounds = array<i64: 1, 256>}, {pipeline_mode = #tpu.pipeline_mode<synchronous>, transform_indices = @transform_11, window_bounds = array<i64: 4, 32, 128>}, {pipeline_mode = #tpu.pipeline_mode<synchronous>, transform_indices = @transform_12, window_bounds = array<i64: 1, 128>}, {pipeline_mode = #tpu.pipeline_mode<synchronous>, transform_indices = @transform_13, window_bounds = array<i64: 128, 256>}, {pipeline_mode = #tpu.pipeline_mode<synchronous>, transform_indices = @transform_14, window_bounds = array<i64: 1, 256>}, {pipeline_mode = #tpu.pipeline_mode<synchronous>, transform_indices = @transform_15, window_bounds = array<i64: 256, 128>}, {pipeline_mode = #tpu.pipeline_mode<synchronous>, transform_indices = @transform_16, window_bounds = array<i64: 1, 128>}, {transform_indices = @transform_17, window_bounds = array<i64: 1, 128, 128>}]} {
    %c0_i32 = arith.constant 0 : i32
    %0 = arith.cmpi eq, %arg2, %c0_i32 : i32
    %1 = arith.extui %0 : i1 to i32
    %cst = arith.constant 9.99999996E-13 : f32
    %cst_0 = arith.constant -1.000000e+30 : f32
    %c0_i32_1 = arith.constant 0 : i32
    %2 = arith.cmpi ne, %1, %c0_i32_1 : i32
    scf.if %2 {
      %c0_129 = arith.constant 0 : index
      %c0_130 = arith.constant 0 : index
      %c0_131 = arith.constant 0 : index
      %223 = vector.load %arg4[%c0_129, %c0_130, %c0_131] : memref<1x128x128xf32, #tpu.memory_space<vmem>>, vector<1x128x128xf32>
      %224 = vector.shape_cast %223 : vector<1x128x128xf32> to vector<128x128xf32>
      %c0_132 = arith.constant 0 : index
      %c0_133 = arith.constant 0 : index
      %225 = vector.load %arg6[%c0_132, %c0_133] : memref<1x128xf32, #tpu.memory_space<vmem>>, vector<1x128xf32>
      %c0_134 = arith.constant 0 : index
      %c0_135 = arith.constant 0 : index
      %226 = vector.load %arg7[%c0_134, %c0_135] : memref<1x128xf32, #tpu.memory_space<vmem>>, vector<1x128xf32>
      %cst_136 = arith.constant dense<0.000000e+00> : vector<128xf32>
      %227 = vector.multi_reduction <add>, %224, %cst_136 [1] : vector<128x128xf32> to vector<128xf32>
      %228 = vector.shape_cast %227 : vector<128xf32> to vector<128x1xf32>
      %cst_137 = arith.constant 1.280000e+02 : f32
      %229 = vector.broadcast %cst_137 : f32 to vector<128x1xf32>
      %230 = arith.divf %228, %229 : vector<128x1xf32>
      %231 = vector.broadcast %230 : vector<128x1xf32> to vector<128x128xf32>
      %232 = arith.subf %224, %231 : vector<128x128xf32>
      %233 = arith.mulf %232, %232 : vector<128x128xf32>
      %cst_138 = arith.constant dense<0.000000e+00> : vector<128xf32>
      %234 = vector.multi_reduction <add>, %233, %cst_138 [1] : vector<128x128xf32> to vector<128xf32>
      %235 = vector.shape_cast %234 : vector<128xf32> to vector<128x1xf32>
      %cst_139 = arith.constant 1.280000e+02 : f32
      %236 = vector.broadcast %cst_139 : f32 to vector<128x1xf32>
      %237 = arith.divf %235, %236 : vector<128x1xf32>
      %238 = vector.broadcast %230 : vector<128x1xf32> to vector<128x128xf32>
      %239 = arith.subf %224, %238 : vector<128x128xf32>
      %240 = vector.broadcast %cst : f32 to vector<128x1xf32>
      %241 = arith.addf %237, %240 : vector<128x1xf32>
      %242 = math.rsqrt %241 : vector<128x1xf32>
      %243 = vector.broadcast %242 : vector<128x1xf32> to vector<128x128xf32>
      %244 = arith.mulf %239, %243 : vector<128x128xf32>
      %245 = vector.broadcast %225 : vector<1x128xf32> to vector<128x128xf32>
      %246 = arith.mulf %244, %245 : vector<128x128xf32>
      %247 = vector.broadcast %226 : vector<1x128xf32> to vector<128x128xf32>
      %248 = arith.addf %246, %247 : vector<128x128xf32>
      %249 = arith.truncf %248 : vector<128x128xf32> to vector<128x128xbf16>
      %c0_140 = arith.constant 0 : index
      %c0_141 = arith.constant 0 : index
      %250 = vector.load %arg10[%c0_140, %c0_141] : memref<128x128xbf16, #tpu.memory_space<vmem>>, vector<128x128xbf16>
      %cst_142 = arith.constant dense<0.000000e+00> : vector<128x128xf32>
      %251 = tpu.matmul %249, %250, %cst_142 {dimension_numbers = #tpu.dot_dimension_numbers<[1], [0], [0], [1], [0, 0, 1, 1], [], []>} : vector<128x128xbf16>, vector<128x128xbf16>, vector<128x128xf32> -> vector<128x128xf32>
      %c0_143 = arith.constant 0 : index
      %c0_144 = arith.constant 0 : index
      %252 = vector.load %arg11[%c0_143, %c0_144] : memref<1x128xf32, #tpu.memory_space<vmem>>, vector<1x128xf32>
      %253 = vector.broadcast %252 : vector<1x128xf32> to vector<128x128xf32>
      %254 = arith.addf %251, %253 : vector<128x128xf32>
      %cst_145 = arith.constant 3.200000e+01 : f32
      %255 = math.rsqrt %cst_145 : f32
      %256 = vector.broadcast %255 : f32 to vector<128x128xf32>
      %257 = arith.mulf %254, %256 : vector<128x128xf32>
      %258 = arith.truncf %257 : vector<128x128xf32> to vector<128x128xbf16>
      %259 = vector.extract_strided_slice %258 {offsets = [0, 0], sizes = [128, 32], strides = [1, 1]} : vector<128x128xbf16> to vector<128x32xbf16>
      %c0_146 = arith.constant 0 : index
      %c0_147 = arith.constant 0 : index
      %c0_148 = arith.constant 0 : index
      %260 = vector.load %arg21[%c0_146, %c0_147, %c0_148] : memref<4x128x32xbf16, #tpu.memory_space<vmem>>, vector<1x128x32xbf16>
      %261 = vector.shape_cast %260 : vector<1x128x32xbf16> to vector<128x32xbf16>
      %262 = vector.shape_cast %259 : vector<128x32xbf16> to vector<1x128x32xbf16>
      tpu.vector_store %arg21[%c0_146, %c0_147, %c0_148], %262 {strides = array<i32>} : memref<4x128x32xbf16, #tpu.memory_space<vmem>>, vector<1x128x32xbf16>,
      %263 = vector.extract_strided_slice %258 {offsets = [0, 32], sizes = [128, 32], strides = [1, 1]} : vector<128x128xbf16> to vector<128x32xbf16>
      %c1_149 = arith.constant 1 : index
      %c0_150 = arith.constant 0 : index
      %c0_151 = arith.constant 0 : index
      %264 = vector.load %arg21[%c1_149, %c0_150, %c0_151] : memref<4x128x32xbf16, #tpu.memory_space<vmem>>, vector<1x128x32xbf16>
      %265 = vector.shape_cast %264 : vector<1x128x32xbf16> to vector<128x32xbf16>
      %266 = vector.shape_cast %263 : vector<128x32xbf16> to vector<1x128x32xbf16>
      tpu.vector_store %arg21[%c1_149, %c0_150, %c0_151], %266 {strides = array<i32>} : memref<4x128x32xbf16, #tpu.memory_space<vmem>>, vector<1x128x32xbf16>,
      %267 = vector.extract_strided_slice %258 {offsets = [0, 64], sizes = [128, 32], strides = [1, 1]} : vector<128x128xbf16> to vector<128x32xbf16>
      %c2_152 = arith.constant 2 : index
      %c0_153 = arith.constant 0 : index
      %c0_154 = arith.constant 0 : index
      %268 = vector.load %arg21[%c2_152, %c0_153, %c0_154] : memref<4x128x32xbf16, #tpu.memory_space<vmem>>, vector<1x128x32xbf16>
      %269 = vector.shape_cast %268 : vector<1x128x32xbf16> to vector<128x32xbf16>
      %270 = vector.shape_cast %267 : vector<128x32xbf16> to vector<1x128x32xbf16>
      tpu.vector_store %arg21[%c2_152, %c0_153, %c0_154], %270 {strides = array<i32>} : memref<4x128x32xbf16, #tpu.memory_space<vmem>>, vector<1x128x32xbf16>,
      %271 = vector.extract_strided_slice %258 {offsets = [0, 96], sizes = [128, 32], strides = [1, 1]} : vector<128x128xbf16> to vector<128x32xbf16>
      %c3_155 = arith.constant 3 : index
      %c0_156 = arith.constant 0 : index
      %c0_157 = arith.constant 0 : index
      %272 = vector.load %arg21[%c3_155, %c0_156, %c0_157] : memref<4x128x32xbf16, #tpu.memory_space<vmem>>, vector<1x128x32xbf16>
      %273 = vector.shape_cast %272 : vector<1x128x32xbf16> to vector<128x32xbf16>
      %274 = vector.shape_cast %271 : vector<128x32xbf16> to vector<1x128x32xbf16>
      tpu.vector_store %arg21[%c3_155, %c0_156, %c0_157], %274 {strides = array<i32>} : memref<4x128x32xbf16, #tpu.memory_space<vmem>>, vector<1x128x32xbf16>,
      %275 = vector.broadcast %cst_0 : f32 to vector<4x128x1xf32>
      %c0_158 = arith.constant 0 : index
      %c0_159 = arith.constant 0 : index
      %c0_160 = arith.constant 0 : index
      %276 = vector.load %arg22[%c0_158, %c0_159, %c0_160] : memref<4x128x1xf32, #tpu.memory_space<vmem>>, vector<4x128x1xf32>
      tpu.vector_store %arg22[%c0_158, %c0_159, %c0_160], %275 {strides = array<i32>} : memref<4x128x1xf32, #tpu.memory_space<vmem>>, vector<4x128x1xf32>,
      %cst_161 = arith.constant 0.000000e+00 : f32
      %277 = vector.broadcast %cst_161 : f32 to vector<4x128x1xf32>
      %c0_162 = arith.constant 0 : index
      %c0_163 = arith.constant 0 : index
      %c0_164 = arith.constant 0 : index
      %278 = vector.load %arg23[%c0_162, %c0_163, %c0_164] : memref<4x128x1xf32, #tpu.memory_space<vmem>>, vector<4x128x1xf32>
      tpu.vector_store %arg23[%c0_162, %c0_163, %c0_164], %277 {strides = array<i32>} : memref<4x128x1xf32, #tpu.memory_space<vmem>>, vector<4x128x1xf32>,
      %cst_165 = arith.constant 0.000000e+00 : f32
      %279 = vector.broadcast %cst_165 : f32 to vector<4x128x32xf32>
      %c0_166 = arith.constant 0 : index
      %c0_167 = arith.constant 0 : index
      %c0_168 = arith.constant 0 : index
      %280 = vector.load %arg24[%c0_166, %c0_167, %c0_168] : memref<4x128x32xf32, #tpu.memory_space<vmem>>, vector<4x128x32xf32>
      tpu.vector_store %arg24[%c0_166, %c0_167, %c0_168], %279 {strides = array<i32>} : memref<4x128x32xf32, #tpu.memory_space<vmem>>, vector<4x128x32xf32>,
    } else {
    }
    %c0 = arith.constant 0 : index
    %c0_2 = arith.constant 0 : index
    %c0_3 = arith.constant 0 : index
    %3 = vector.load %arg5[%c0, %c0_2, %c0_3] : memref<1x128x128xf32, #tpu.memory_space<vmem>>, vector<1x128x128xf32>
    %4 = vector.shape_cast %3 : vector<1x128x128xf32> to vector<128x128xf32>
    %c0_4 = arith.constant 0 : index
    %c0_5 = arith.constant 0 : index
    %5 = vector.load %arg6[%c0_4, %c0_5] : memref<1x128xf32, #tpu.memory_space<vmem>>, vector<1x128xf32>
    %c0_6 = arith.constant 0 : index
    %c0_7 = arith.constant 0 : index
    %6 = vector.load %arg7[%c0_6, %c0_7] : memref<1x128xf32, #tpu.memory_space<vmem>>, vector<1x128xf32>
    %cst_8 = arith.constant dense<0.000000e+00> : vector<128xf32>
    %7 = vector.multi_reduction <add>, %4, %cst_8 [1] : vector<128x128xf32> to vector<128xf32>
    %8 = vector.shape_cast %7 : vector<128xf32> to vector<128x1xf32>
    %cst_9 = arith.constant 1.280000e+02 : f32
    %9 = vector.broadcast %cst_9 : f32 to vector<128x1xf32>
    %10 = arith.divf %8, %9 : vector<128x1xf32>
    %11 = vector.broadcast %10 : vector<128x1xf32> to vector<128x128xf32>
    %12 = arith.subf %4, %11 : vector<128x128xf32>
    %13 = arith.mulf %12, %12 : vector<128x128xf32>
    %cst_10 = arith.constant dense<0.000000e+00> : vector<128xf32>
    %14 = vector.multi_reduction <add>, %13, %cst_10 [1] : vector<128x128xf32> to vector<128xf32>
    %15 = vector.shape_cast %14 : vector<128xf32> to vector<128x1xf32>
    %cst_11 = arith.constant 1.280000e+02 : f32
    %16 = vector.broadcast %cst_11 : f32 to vector<128x1xf32>
    %17 = arith.divf %15, %16 : vector<128x1xf32>
    %18 = vector.broadcast %10 : vector<128x1xf32> to vector<128x128xf32>
    %19 = arith.subf %4, %18 : vector<128x128xf32>
    %cst_12 = arith.constant 9.99999996E-13 : f32
    %20 = vector.broadcast %cst_12 : f32 to vector<128x1xf32>
    %21 = arith.addf %17, %20 : vector<128x1xf32>
    %22 = math.rsqrt %21 : vector<128x1xf32>
    %23 = vector.broadcast %22 : vector<128x1xf32> to vector<128x128xf32>
    %24 = arith.mulf %19, %23 : vector<128x128xf32>
    %25 = vector.broadcast %5 : vector<1x128xf32> to vector<128x128xf32>
    %26 = arith.mulf %24, %25 : vector<128x128xf32>
    %27 = vector.broadcast %6 : vector<1x128xf32> to vector<128x128xf32>
    %28 = arith.addf %26, %27 : vector<128x128xf32>
    %29 = arith.truncf %28 : vector<128x128xf32> to vector<128x128xbf16>
    %c0_13 = arith.constant 0 : index
    %c0_14 = arith.constant 0 : index
    %30 = vector.load %arg12[%c0_13, %c0_14] : memref<128x256xbf16, #tpu.memory_space<vmem>>, vector<128x256xbf16>
    %cst_15 = arith.constant dense<0.000000e+00> : vector<128x256xf32>
    %31 = tpu.matmul %29, %30, %cst_15 {dimension_numbers = #tpu.dot_dimension_numbers<[1], [0], [0], [1], [0, 0, 1, 1], [], []>} : vector<128x128xbf16>, vector<128x256xbf16>, vector<128x256xf32> -> vector<128x256xf32>
    %c0_16 = arith.constant 0 : index
    %c0_17 = arith.constant 0 : index
    %32 = vector.load %arg13[%c0_16, %c0_17] : memref<1x256xf32, #tpu.memory_space<vmem>>, vector<1x256xf32>
    %33 = vector.broadcast %32 : vector<1x256xf32> to vector<128x256xf32>
    %34 = arith.addf %31, %33 : vector<128x256xf32>
    %35 = arith.truncf %34 : vector<128x256xf32> to vector<128x256xbf16>
    %c0_18 = arith.constant 0 : index
    %c0_19 = arith.constant 0 : index
    %c0_20 = arith.constant 0 : index
    %36 = vector.load %arg3[%c0_18, %c0_19, %c0_20] : memref<1x1x128xf32, #tpu.memory_space<vmem>>, vector<1x1x128xf32>
    %37 = vector.shape_cast %36 : vector<1x1x128xf32> to vector<1x128xf32>
    %cst_21 = arith.constant 0.000000e+00 : f32
    %38 = vector.broadcast %cst_21 : f32 to vector<1x128xf32>
    %39 = arith.cmpf ogt, %37, %38 : vector<1x128xf32>
    %40 = vector.extract_strided_slice %35 {offsets = [0, 0], sizes = [128, 32], strides = [1, 1]} : vector<128x256xbf16> to vector<128x32xbf16>
    %41 = vector.extract_strided_slice %35 {offsets = [0, 128], sizes = [128, 32], strides = [1, 1]} : vector<128x256xbf16> to vector<128x32xbf16>
    %c0_22 = arith.constant 0 : index
    %c0_23 = arith.constant 0 : index
    %c0_24 = arith.constant 0 : index
    %42 = vector.load %arg21[%c0_22, %c0_23, %c0_24] : memref<4x128x32xbf16, #tpu.memory_space<vmem>>, vector<1x128x32xbf16>
    %43 = vector.shape_cast %42 : vector<1x128x32xbf16> to vector<128x32xbf16>
    %cst_25 = arith.constant dense<0.000000e+00> : vector<128x128xf32>
    %44 = tpu.matmul %43, %40, %cst_25 {dimension_numbers = #tpu.dot_dimension_numbers<[1], [1], [0], [0], [0, 0, 1, 0], [], []>} : vector<128x32xbf16>, vector<128x32xbf16>, vector<128x128xf32> -> vector<128x128xf32>
    %cst_26 = arith.constant -1.000000e+30 : f32
    %45 = vector.shape_cast %39 : vector<1x128xi1> to vector<1x128xi1>
    %46 = vector.broadcast %45 : vector<1x128xi1> to vector<128x128xi1>
    %47 = vector.broadcast %cst_26 : f32 to vector<128x128xf32>
    %48 = arith.select %46, %44, %47 : vector<128x128xi1>, vector<128x128xf32>
    %c0_27 = arith.constant 0 : index
    %c0_28 = arith.constant 0 : index
    %c0_29 = arith.constant 0 : index
    %49 = vector.load %arg22[%c0_27, %c0_28, %c0_29] : memref<4x128x1xf32, #tpu.memory_space<vmem>>, vector<1x128x1xf32>
    %50 = vector.shape_cast %49 : vector<1x128x1xf32> to vector<128x1xf32>
    %cst_30 = arith.constant dense<0xFF800000> : vector<128xf32>
    %51 = vector.multi_reduction <maximumf>, %48, %cst_30 [1] : vector<128x128xf32> to vector<128xf32>
    %52 = vector.shape_cast %51 : vector<128xf32> to vector<128x1xf32>
    %53 = arith.maximumf %50, %52 : vector<128x1xf32>
    %54 = arith.subf %50, %53 : vector<128x1xf32>
    %55 = math.exp %54 : vector<128x1xf32>
    %56 = vector.broadcast %53 : vector<128x1xf32> to vector<128x128xf32>
    %57 = arith.subf %48, %56 : vector<128x128xf32>
    %58 = math.exp %57 : vector<128x128xf32>
    %cst_31 = arith.constant 0.000000e+00 : f32
    %59 = vector.shape_cast %39 : vector<1x128xi1> to vector<1x128xi1>
    %60 = vector.broadcast %59 : vector<1x128xi1> to vector<128x128xi1>
    %61 = vector.broadcast %cst_31 : f32 to vector<128x128xf32>
    %62 = arith.select %60, %58, %61 : vector<128x128xi1>, vector<128x128xf32>
    %c0_32 = arith.constant 0 : index
    %c0_33 = arith.constant 0 : index
    %c0_34 = arith.constant 0 : index
    %63 = vector.load %arg23[%c0_32, %c0_33, %c0_34] : memref<4x128x1xf32, #tpu.memory_space<vmem>>, vector<1x128x1xf32>
    %64 = vector.shape_cast %63 : vector<1x128x1xf32> to vector<128x1xf32>
    %65 = arith.mulf %55, %64 : vector<128x1xf32>
    %cst_35 = arith.constant dense<0.000000e+00> : vector<128xf32>
    %66 = vector.multi_reduction <add>, %62, %cst_35 [1] : vector<128x128xf32> to vector<128xf32>
    %67 = vector.shape_cast %66 : vector<128xf32> to vector<128x1xf32>
    %68 = arith.addf %65, %67 : vector<128x1xf32>
    %c0_36 = arith.constant 0 : index
    %c0_37 = arith.constant 0 : index
    %c0_38 = arith.constant 0 : index
    %69 = vector.load %arg23[%c0_36, %c0_37, %c0_38] : memref<4x128x1xf32, #tpu.memory_space<vmem>>, vector<1x128x1xf32>
    %70 = vector.shape_cast %69 : vector<1x128x1xf32> to vector<128x1xf32>
    %71 = vector.shape_cast %68 : vector<128x1xf32> to vector<1x128x1xf32>
    tpu.vector_store %arg23[%c0_36, %c0_37, %c0_38], %71 {strides = array<i32>} : memref<4x128x1xf32, #tpu.memory_space<vmem>>, vector<1x128x1xf32>,
    %c0_39 = arith.constant 0 : index
    %c0_40 = arith.constant 0 : index
    %c0_41 = arith.constant 0 : index
    %72 = vector.load %arg24[%c0_39, %c0_40, %c0_41] : memref<4x128x32xf32, #tpu.memory_space<vmem>>, vector<1x128x32xf32>
    %73 = vector.shape_cast %72 : vector<1x128x32xf32> to vector<128x32xf32>
    %74 = vector.broadcast %55 : vector<128x1xf32> to vector<128x32xf32>
    %75 = arith.mulf %74, %73 : vector<128x32xf32>
    %76 = arith.truncf %62 : vector<128x128xf32> to vector<128x128xbf16>
    %cst_42 = arith.constant dense<0.000000e+00> : vector<128x32xf32>
    %77 = tpu.matmul %76, %41, %cst_42 {dimension_numbers = #tpu.dot_dimension_numbers<[1], [0], [0], [1], [0, 0, 1, 1], [], []>} : vector<128x128xbf16>, vector<128x32xbf16>, vector<128x32xf32> -> vector<128x32xf32>
    %78 = arith.addf %75, %77 : vector<128x32xf32>
    %c0_43 = arith.constant 0 : index
    %c0_44 = arith.constant 0 : index
    %c0_45 = arith.constant 0 : index
    %79 = vector.load %arg24[%c0_43, %c0_44, %c0_45] : memref<4x128x32xf32, #tpu.memory_space<vmem>>, vector<1x128x32xf32>
    %80 = vector.shape_cast %79 : vector<1x128x32xf32> to vector<128x32xf32>
    %81 = vector.shape_cast %78 : vector<128x32xf32> to vector<1x128x32xf32>
    tpu.vector_store %arg24[%c0_43, %c0_44, %c0_45], %81 {strides = array<i32>} : memref<4x128x32xf32, #tpu.memory_space<vmem>>, vector<1x128x32xf32>,
    %c0_46 = arith.constant 0 : index
    %c0_47 = arith.constant 0 : index
    %c0_48 = arith.constant 0 : index
    %82 = vector.load %arg22[%c0_46, %c0_47, %c0_48] : memref<4x128x1xf32, #tpu.memory_space<vmem>>, vector<1x128x1xf32>
    %83 = vector.shape_cast %82 : vector<1x128x1xf32> to vector<128x1xf32>
    %84 = vector.shape_cast %53 : vector<128x1xf32> to vector<1x128x1xf32>
    tpu.vector_store %arg22[%c0_46, %c0_47, %c0_48], %84 {strides = array<i32>} : memref<4x128x1xf32, #tpu.memory_space<vmem>>, vector<1x128x1xf32>,
    %85 = vector.extract_strided_slice %35 {offsets = [0, 32], sizes = [128, 32], strides = [1, 1]} : vector<128x256xbf16> to vector<128x32xbf16>
    %86 = vector.extract_strided_slice %35 {offsets = [0, 160], sizes = [128, 32], strides = [1, 1]} : vector<128x256xbf16> to vector<128x32xbf16>
    %c1 = arith.constant 1 : index
    %c0_49 = arith.constant 0 : index
    %c0_50 = arith.constant 0 : index
    %87 = vector.load %arg21[%c1, %c0_49, %c0_50] : memref<4x128x32xbf16, #tpu.memory_space<vmem>>, vector<1x128x32xbf16>
    %88 = vector.shape_cast %87 : vector<1x128x32xbf16> to vector<128x32xbf16>
    %cst_51 = arith.constant dense<0.000000e+00> : vector<128x128xf32>
    %89 = tpu.matmul %88, %85, %cst_51 {dimension_numbers = #tpu.dot_dimension_numbers<[1], [1], [0], [0], [0, 0, 1, 0], [], []>} : vector<128x32xbf16>, vector<128x32xbf16>, vector<128x128xf32> -> vector<128x128xf32>
    %cst_52 = arith.constant -1.000000e+30 : f32
    %90 = vector.shape_cast %39 : vector<1x128xi1> to vector<1x128xi1>
    %91 = vector.broadcast %90 : vector<1x128xi1> to vector<128x128xi1>
    %92 = vector.broadcast %cst_52 : f32 to vector<128x128xf32>
    %93 = arith.select %91, %89, %92 : vector<128x128xi1>, vector<128x128xf32>
    %c1_53 = arith.constant 1 : index
    %c0_54 = arith.constant 0 : index
    %c0_55 = arith.constant 0 : index
    %94 = vector.load %arg22[%c1_53, %c0_54, %c0_55] : memref<4x128x1xf32, #tpu.memory_space<vmem>>, vector<1x128x1xf32>
    %95 = vector.shape_cast %94 : vector<1x128x1xf32> to vector<128x1xf32>
    %cst_56 = arith.constant dense<0xFF800000> : vector<128xf32>
    %96 = vector.multi_reduction <maximumf>, %93, %cst_56 [1] : vector<128x128xf32> to vector<128xf32>
    %97 = vector.shape_cast %96 : vector<128xf32> to vector<128x1xf32>
    %98 = arith.maximumf %95, %97 : vector<128x1xf32>
    %99 = arith.subf %95, %98 : vector<128x1xf32>
    %100 = math.exp %99 : vector<128x1xf32>
    %101 = vector.broadcast %98 : vector<128x1xf32> to vector<128x128xf32>
    %102 = arith.subf %93, %101 : vector<128x128xf32>
    %103 = math.exp %102 : vector<128x128xf32>
    %cst_57 = arith.constant 0.000000e+00 : f32
    %104 = vector.shape_cast %39 : vector<1x128xi1> to vector<1x128xi1>
    %105 = vector.broadcast %104 : vector<1x128xi1> to vector<128x128xi1>
    %106 = vector.broadcast %cst_57 : f32 to vector<128x128xf32>
    %107 = arith.select %105, %103, %106 : vector<128x128xi1>, vector<128x128xf32>
    %c1_58 = arith.constant 1 : index
    %c0_59 = arith.constant 0 : index
    %c0_60 = arith.constant 0 : index
    %108 = vector.load %arg23[%c1_58, %c0_59, %c0_60] : memref<4x128x1xf32, #tpu.memory_space<vmem>>, vector<1x128x1xf32>
    %109 = vector.shape_cast %108 : vector<1x128x1xf32> to vector<128x1xf32>
    %110 = arith.mulf %100, %109 : vector<128x1xf32>
    %cst_61 = arith.constant dense<0.000000e+00> : vector<128xf32>
    %111 = vector.multi_reduction <add>, %107, %cst_61 [1] : vector<128x128xf32> to vector<128xf32>
    %112 = vector.shape_cast %111 : vector<128xf32> to vector<128x1xf32>
    %113 = arith.addf %110, %112 : vector<128x1xf32>
    %c1_62 = arith.constant 1 : index
    %c0_63 = arith.constant 0 : index
    %c0_64 = arith.constant 0 : index
    %114 = vector.load %arg23[%c1_62, %c0_63, %c0_64] : memref<4x128x1xf32, #tpu.memory_space<vmem>>, vector<1x128x1xf32>
    %115 = vector.shape_cast %114 : vector<1x128x1xf32> to vector<128x1xf32>
    %116 = vector.shape_cast %113 : vector<128x1xf32> to vector<1x128x1xf32>
    tpu.vector_store %arg23[%c1_62, %c0_63, %c0_64], %116 {strides = array<i32>} : memref<4x128x1xf32, #tpu.memory_space<vmem>>, vector<1x128x1xf32>,
    %c1_65 = arith.constant 1 : index
    %c0_66 = arith.constant 0 : index
    %c0_67 = arith.constant 0 : index
    %117 = vector.load %arg24[%c1_65, %c0_66, %c0_67] : memref<4x128x32xf32, #tpu.memory_space<vmem>>, vector<1x128x32xf32>
    %118 = vector.shape_cast %117 : vector<1x128x32xf32> to vector<128x32xf32>
    %119 = vector.broadcast %100 : vector<128x1xf32> to vector<128x32xf32>
    %120 = arith.mulf %119, %118 : vector<128x32xf32>
    %121 = arith.truncf %107 : vector<128x128xf32> to vector<128x128xbf16>
    %cst_68 = arith.constant dense<0.000000e+00> : vector<128x32xf32>
    %122 = tpu.matmul %121, %86, %cst_68 {dimension_numbers = #tpu.dot_dimension_numbers<[1], [0], [0], [1], [0, 0, 1, 1], [], []>} : vector<128x128xbf16>, vector<128x32xbf16>, vector<128x32xf32> -> vector<128x32xf32>
    %123 = arith.addf %120, %122 : vector<128x32xf32>
    %c1_69 = arith.constant 1 : index
    %c0_70 = arith.constant 0 : index
    %c0_71 = arith.constant 0 : index
    %124 = vector.load %arg24[%c1_69, %c0_70, %c0_71] : memref<4x128x32xf32, #tpu.memory_space<vmem>>, vector<1x128x32xf32>
    %125 = vector.shape_cast %124 : vector<1x128x32xf32> to vector<128x32xf32>
    %126 = vector.shape_cast %123 : vector<128x32xf32> to vector<1x128x32xf32>
    tpu.vector_store %arg24[%c1_69, %c0_70, %c0_71], %126 {strides = array<i32>} : memref<4x128x32xf32, #tpu.memory_space<vmem>>, vector<1x128x32xf32>,
    %c1_72 = arith.constant 1 : index
    %c0_73 = arith.constant 0 : index
    %c0_74 = arith.constant 0 : index
    %127 = vector.load %arg22[%c1_72, %c0_73, %c0_74] : memref<4x128x1xf32, #tpu.memory_space<vmem>>, vector<1x128x1xf32>
    %128 = vector.shape_cast %127 : vector<1x128x1xf32> to vector<128x1xf32>
    %129 = vector.shape_cast %98 : vector<128x1xf32> to vector<1x128x1xf32>
    tpu.vector_store %arg22[%c1_72, %c0_73, %c0_74], %129 {strides = array<i32>} : memref<4x128x1xf32, #tpu.memory_space<vmem>>, vector<1x128x1xf32>,
    %130 = vector.extract_strided_slice %35 {offsets = [0, 64], sizes = [128, 32], strides = [1, 1]} : vector<128x256xbf16> to vector<128x32xbf16>
    %131 = vector.extract_strided_slice %35 {offsets = [0, 192], sizes = [128, 32], strides = [1, 1]} : vector<128x256xbf16> to vector<128x32xbf16>
    %c2 = arith.constant 2 : index
    %c0_75 = arith.constant 0 : index
    %c0_76 = arith.constant 0 : index
    %132 = vector.load %arg21[%c2, %c0_75, %c0_76] : memref<4x128x32xbf16, #tpu.memory_space<vmem>>, vector<1x128x32xbf16>
    %133 = vector.shape_cast %132 : vector<1x128x32xbf16> to vector<128x32xbf16>
    %cst_77 = arith.constant dense<0.000000e+00> : vector<128x128xf32>
    %134 = tpu.matmul %133, %130, %cst_77 {dimension_numbers = #tpu.dot_dimension_numbers<[1], [1], [0], [0], [0, 0, 1, 0], [], []>} : vector<128x32xbf16>, vector<128x32xbf16>, vector<128x128xf32> -> vector<128x128xf32>
    %cst_78 = arith.constant -1.000000e+30 : f32
    %135 = vector.shape_cast %39 : vector<1x128xi1> to vector<1x128xi1>
    %136 = vector.broadcast %135 : vector<1x128xi1> to vector<128x128xi1>
    %137 = vector.broadcast %cst_78 : f32 to vector<128x128xf32>
    %138 = arith.select %136, %134, %137 : vector<128x128xi1>, vector<128x128xf32>
    %c2_79 = arith.constant 2 : index
    %c0_80 = arith.constant 0 : index
    %c0_81 = arith.constant 0 : index
    %139 = vector.load %arg22[%c2_79, %c0_80, %c0_81] : memref<4x128x1xf32, #tpu.memory_space<vmem>>, vector<1x128x1xf32>
    %140 = vector.shape_cast %139 : vector<1x128x1xf32> to vector<128x1xf32>
    %cst_82 = arith.constant dense<0xFF800000> : vector<128xf32>
    %141 = vector.multi_reduction <maximumf>, %138, %cst_82 [1] : vector<128x128xf32> to vector<128xf32>
    %142 = vector.shape_cast %141 : vector<128xf32> to vector<128x1xf32>
    %143 = arith.maximumf %140, %142 : vector<128x1xf32>
    %144 = arith.subf %140, %143 : vector<128x1xf32>
    %145 = math.exp %144 : vector<128x1xf32>
    %146 = vector.broadcast %143 : vector<128x1xf32> to vector<128x128xf32>
    %147 = arith.subf %138, %146 : vector<128x128xf32>
    %148 = math.exp %147 : vector<128x128xf32>
    %cst_83 = arith.constant 0.000000e+00 : f32
    %149 = vector.shape_cast %39 : vector<1x128xi1> to vector<1x128xi1>
    %150 = vector.broadcast %149 : vector<1x128xi1> to vector<128x128xi1>
    %151 = vector.broadcast %cst_83 : f32 to vector<128x128xf32>
    %152 = arith.select %150, %148, %151 : vector<128x128xi1>, vector<128x128xf32>
    %c2_84 = arith.constant 2 : index
    %c0_85 = arith.constant 0 : index
    %c0_86 = arith.constant 0 : index
    %153 = vector.load %arg23[%c2_84, %c0_85, %c0_86] : memref<4x128x1xf32, #tpu.memory_space<vmem>>, vector<1x128x1xf32>
    %154 = vector.shape_cast %153 : vector<1x128x1xf32> to vector<128x1xf32>
    %155 = arith.mulf %145, %154 : vector<128x1xf32>
    %cst_87 = arith.constant dense<0.000000e+00> : vector<128xf32>
    %156 = vector.multi_reduction <add>, %152, %cst_87 [1] : vector<128x128xf32> to vector<128xf32>
    %157 = vector.shape_cast %156 : vector<128xf32> to vector<128x1xf32>
    %158 = arith.addf %155, %157 : vector<128x1xf32>
    %c2_88 = arith.constant 2 : index
    %c0_89 = arith.constant 0 : index
    %c0_90 = arith.constant 0 : index
    %159 = vector.load %arg23[%c2_88, %c0_89, %c0_90] : memref<4x128x1xf32, #tpu.memory_space<vmem>>, vector<1x128x1xf32>
    %160 = vector.shape_cast %159 : vector<1x128x1xf32> to vector<128x1xf32>
    %161 = vector.shape_cast %158 : vector<128x1xf32> to vector<1x128x1xf32>
    tpu.vector_store %arg23[%c2_88, %c0_89, %c0_90], %161 {strides = array<i32>} : memref<4x128x1xf32, #tpu.memory_space<vmem>>, vector<1x128x1xf32>,
    %c2_91 = arith.constant 2 : index
    %c0_92 = arith.constant 0 : index
    %c0_93 = arith.constant 0 : index
    %162 = vector.load %arg24[%c2_91, %c0_92, %c0_93] : memref<4x128x32xf32, #tpu.memory_space<vmem>>, vector<1x128x32xf32>
    %163 = vector.shape_cast %162 : vector<1x128x32xf32> to vector<128x32xf32>
    %164 = vector.broadcast %145 : vector<128x1xf32> to vector<128x32xf32>
    %165 = arith.mulf %164, %163 : vector<128x32xf32>
    %166 = arith.truncf %152 : vector<128x128xf32> to vector<128x128xbf16>
    %cst_94 = arith.constant dense<0.000000e+00> : vector<128x32xf32>
    %167 = tpu.matmul %166, %131, %cst_94 {dimension_numbers = #tpu.dot_dimension_numbers<[1], [0], [0], [1], [0, 0, 1, 1], [], []>} : vector<128x128xbf16>, vector<128x32xbf16>, vector<128x32xf32> -> vector<128x32xf32>
    %168 = arith.addf %165, %167 : vector<128x32xf32>
    %c2_95 = arith.constant 2 : index
    %c0_96 = arith.constant 0 : index
    %c0_97 = arith.constant 0 : index
    %169 = vector.load %arg24[%c2_95, %c0_96, %c0_97] : memref<4x128x32xf32, #tpu.memory_space<vmem>>, vector<1x128x32xf32>
    %170 = vector.shape_cast %169 : vector<1x128x32xf32> to vector<128x32xf32>
    %171 = vector.shape_cast %168 : vector<128x32xf32> to vector<1x128x32xf32>
    tpu.vector_store %arg24[%c2_95, %c0_96, %c0_97], %171 {strides = array<i32>} : memref<4x128x32xf32, #tpu.memory_space<vmem>>, vector<1x128x32xf32>,
    %c2_98 = arith.constant 2 : index
    %c0_99 = arith.constant 0 : index
    %c0_100 = arith.constant 0 : index
    %172 = vector.load %arg22[%c2_98, %c0_99, %c0_100] : memref<4x128x1xf32, #tpu.memory_space<vmem>>, vector<1x128x1xf32>
    %173 = vector.shape_cast %172 : vector<1x128x1xf32> to vector<128x1xf32>
    %174 = vector.shape_cast %143 : vector<128x1xf32> to vector<1x128x1xf32>
    tpu.vector_store %arg22[%c2_98, %c0_99, %c0_100], %174 {strides = array<i32>} : memref<4x128x1xf32, #tpu.memory_space<vmem>>, vector<1x128x1xf32>,
    %175 = vector.extract_strided_slice %35 {offsets = [0, 96], sizes = [128, 32], strides = [1, 1]} : vector<128x256xbf16> to vector<128x32xbf16>
    %176 = vector.extract_strided_slice %35 {offsets = [0, 224], sizes = [128, 32], strides = [1, 1]} : vector<128x256xbf16> to vector<128x32xbf16>
    %c3 = arith.constant 3 : index
    %c0_101 = arith.constant 0 : index
    %c0_102 = arith.constant 0 : index
    %177 = vector.load %arg21[%c3, %c0_101, %c0_102] : memref<4x128x32xbf16, #tpu.memory_space<vmem>>, vector<1x128x32xbf16>
    %178 = vector.shape_cast %177 : vector<1x128x32xbf16> to vector<128x32xbf16>
    %cst_103 = arith.constant dense<0.000000e+00> : vector<128x128xf32>
    %179 = tpu.matmul %178, %175, %cst_103 {dimension_numbers = #tpu.dot_dimension_numbers<[1], [1], [0], [0], [0, 0, 1, 0], [], []>} : vector<128x32xbf16>, vector<128x32xbf16>, vector<128x128xf32> -> vector<128x128xf32>
    %cst_104 = arith.constant -1.000000e+30 : f32
    %180 = vector.shape_cast %39 : vector<1x128xi1> to vector<1x128xi1>
    %181 = vector.broadcast %180 : vector<1x128xi1> to vector<128x128xi1>
    %182 = vector.broadcast %cst_104 : f32 to vector<128x128xf32>
    %183 = arith.select %181, %179, %182 : vector<128x128xi1>, vector<128x128xf32>
    %c3_105 = arith.constant 3 : index
    %c0_106 = arith.constant 0 : index
    %c0_107 = arith.constant 0 : index
    %184 = vector.load %arg22[%c3_105, %c0_106, %c0_107] : memref<4x128x1xf32, #tpu.memory_space<vmem>>, vector<1x128x1xf32>
    %185 = vector.shape_cast %184 : vector<1x128x1xf32> to vector<128x1xf32>
    %cst_108 = arith.constant dense<0xFF800000> : vector<128xf32>
    %186 = vector.multi_reduction <maximumf>, %183, %cst_108 [1] : vector<128x128xf32> to vector<128xf32>
    %187 = vector.shape_cast %186 : vector<128xf32> to vector<128x1xf32>
    %188 = arith.maximumf %185, %187 : vector<128x1xf32>
    %189 = arith.subf %185, %188 : vector<128x1xf32>
    %190 = math.exp %189 : vector<128x1xf32>
    %191 = vector.broadcast %188 : vector<128x1xf32> to vector<128x128xf32>
    %192 = arith.subf %183, %191 : vector<128x128xf32>
    %193 = math.exp %192 : vector<128x128xf32>
    %cst_109 = arith.constant 0.000000e+00 : f32
    %194 = vector.shape_cast %39 : vector<1x128xi1> to vector<1x128xi1>
    %195 = vector.broadcast %194 : vector<1x128xi1> to vector<128x128xi1>
    %196 = vector.broadcast %cst_109 : f32 to vector<128x128xf32>
    %197 = arith.select %195, %193, %196 : vector<128x128xi1>, vector<128x128xf32>
    %c3_110 = arith.constant 3 : index
    %c0_111 = arith.constant 0 : index
    %c0_112 = arith.constant 0 : index
    %198 = vector.load %arg23[%c3_110, %c0_111, %c0_112] : memref<4x128x1xf32, #tpu.memory_space<vmem>>, vector<1x128x1xf32>
    %199 = vector.shape_cast %198 : vector<1x128x1xf32> to vector<128x1xf32>
    %200 = arith.mulf %190, %199 : vector<128x1xf32>
    %cst_113 = arith.constant dense<0.000000e+00> : vector<128xf32>
    %201 = vector.multi_reduction <add>, %197, %cst_113 [1] : vector<128x128xf32> to vector<128xf32>
    %202 = vector.shape_cast %201 : vector<128xf32> to vector<128x1xf32>
    %203 = arith.addf %200, %202 : vector<128x1xf32>
    %c3_114 = arith.constant 3 : index
    %c0_115 = arith.constant 0 : index
    %c0_116 = arith.constant 0 : index
    %204 = vector.load %arg23[%c3_114, %c0_115, %c0_116] : memref<4x128x1xf32, #tpu.memory_space<vmem>>, vector<1x128x1xf32>
    %205 = vector.shape_cast %204 : vector<1x128x1xf32> to vector<128x1xf32>
    %206 = vector.shape_cast %203 : vector<128x1xf32> to vector<1x128x1xf32>
    tpu.vector_store %arg23[%c3_114, %c0_115, %c0_116], %206 {strides = array<i32>} : memref<4x128x1xf32, #tpu.memory_space<vmem>>, vector<1x128x1xf32>,
    %c3_117 = arith.constant 3 : index
    %c0_118 = arith.constant 0 : index
    %c0_119 = arith.constant 0 : index
    %207 = vector.load %arg24[%c3_117, %c0_118, %c0_119] : memref<4x128x32xf32, #tpu.memory_space<vmem>>, vector<1x128x32xf32>
    %208 = vector.shape_cast %207 : vector<1x128x32xf32> to vector<128x32xf32>
    %209 = vector.broadcast %190 : vector<128x1xf32> to vector<128x32xf32>
    %210 = arith.mulf %209, %208 : vector<128x32xf32>
    %211 = arith.truncf %197 : vector<128x128xf32> to vector<128x128xbf16>
    %cst_120 = arith.constant dense<0.000000e+00> : vector<128x32xf32>
    %212 = tpu.matmul %211, %176, %cst_120 {dimension_numbers = #tpu.dot_dimension_numbers<[1], [0], [0], [1], [0, 0, 1, 1], [], []>} : vector<128x128xbf16>, vector<128x32xbf16>, vector<128x32xf32> -> vector<128x32xf32>
    %213 = arith.addf %210, %212 : vector<128x32xf32>
    %c3_121 = arith.constant 3 : index
    %c0_122 = arith.constant 0 : index
    %c0_123 = arith.constant 0 : index
    %214 = vector.load %arg24[%c3_121, %c0_122, %c0_123] : memref<4x128x32xf32, #tpu.memory_space<vmem>>, vector<1x128x32xf32>
    %215 = vector.shape_cast %214 : vector<1x128x32xf32> to vector<128x32xf32>
    %216 = vector.shape_cast %213 : vector<128x32xf32> to vector<1x128x32xf32>
    tpu.vector_store %arg24[%c3_121, %c0_122, %c0_123], %216 {strides = array<i32>} : memref<4x128x32xf32, #tpu.memory_space<vmem>>, vector<1x128x32xf32>,
    %c3_124 = arith.constant 3 : index
    %c0_125 = arith.constant 0 : index
    %c0_126 = arith.constant 0 : index
    %217 = vector.load %arg22[%c3_124, %c0_125, %c0_126] : memref<4x128x1xf32, #tpu.memory_space<vmem>>, vector<1x128x1xf32>
    %218 = vector.shape_cast %217 : vector<1x128x1xf32> to vector<128x1xf32>
    %219 = vector.shape_cast %188 : vector<128x1xf32> to vector<1x128x1xf32>
    tpu.vector_store %arg22[%c3_124, %c0_125, %c0_126], %219 {strides = array<i32>} : memref<4x128x1xf32, #tpu.memory_space<vmem>>, vector<1x128x1xf32>,
    %c1_i32 = arith.constant 1 : i32
    %220 = arith.cmpi eq, %arg2, %c1_i32 : i32
    %221 = arith.extui %220 : i1 to i32
    %cst_127 = arith.constant 9.99999996E-13 : f32
    %c0_i32_128 = arith.constant 0 : i32
    %222 = arith.cmpi ne, %221, %c0_i32_128 : i32
    scf.if %222 {
      %c0_129 = arith.constant 0 : index
      %c0_130 = arith.constant 0 : index
      %c0_131 = arith.constant 0 : index
      %223 = vector.load %arg4[%c0_129, %c0_130, %c0_131] : memref<1x128x128xf32, #tpu.memory_space<vmem>>, vector<1x128x128xf32>
      %224 = vector.shape_cast %223 : vector<1x128x128xf32> to vector<128x128xf32>
      %c0_132 = arith.constant 0 : index
      %c0_133 = arith.constant 0 : index
      %225 = vector.load %arg15[%c0_132, %c0_133] : memref<1x128xf32, #tpu.memory_space<vmem>>, vector<1x128xf32>
      %226 = vector.shape_cast %225 : vector<1x128xf32> to vector<1x128xf32>
      %227 = vector.broadcast %226 : vector<1x128xf32> to vector<128x128xf32>
      %c0_134 = arith.constant 0 : index
      %c0_135 = arith.constant 0 : index
      %c0_136 = arith.constant 0 : index
      %228 = vector.load %arg23[%c0_134, %c0_135, %c0_136] : memref<4x128x1xf32, #tpu.memory_space<vmem>>, vector<1x128x1xf32>
      %229 = vector.shape_cast %228 : vector<1x128x1xf32> to vector<128x1xf32>
      %cst_137 = arith.constant 1.000000e-30 : f32
      %230 = vector.broadcast %cst_137 : f32 to vector<128x1xf32>
      %231 = arith.maximumf %229, %230 : vector<128x1xf32>
      %232 = tpu.reciprocal %231 {approx = true} : vector<128x1xf32> -> vector<128x1xf32>
      %c0_138 = arith.constant 0 : index
      %c0_139 = arith.constant 0 : index
      %c0_140 = arith.constant 0 : index
      %233 = vector.load %arg24[%c0_138, %c0_139, %c0_140] : memref<4x128x32xf32, #tpu.memory_space<vmem>>, vector<1x128x32xf32>
      %234 = vector.shape_cast %233 : vector<1x128x32xf32> to vector<128x32xf32>
      %235 = vector.broadcast %232 : vector<128x1xf32> to vector<128x32xf32>
      %236 = arith.mulf %234, %235 : vector<128x32xf32>
      %237 = arith.truncf %236 : vector<128x32xf32> to vector<128x32xbf16>
      %c0_141 = arith.constant 0 : index
      %c0_142 = arith.constant 0 : index
      %c0_143 = arith.constant 0 : index
      %238 = vector.load %arg14[%c0_141, %c0_142, %c0_143] : memref<4x32x128xbf16, #tpu.memory_space<vmem>>, vector<1x32x128xbf16>
      %239 = vector.shape_cast %238 : vector<1x32x128xbf16> to vector<32x128xbf16>
      %cst_144 = arith.constant dense<0.000000e+00> : vector<128x128xf32>
      %240 = tpu.matmul %237, %239, %cst_144 {dimension_numbers = #tpu.dot_dimension_numbers<[1], [0], [0], [1], [0, 0, 1, 1], [], []>} : vector<128x32xbf16>, vector<32x128xbf16>, vector<128x128xf32> -> vector<128x128xf32>
      %241 = arith.addf %227, %240 : vector<128x128xf32>
      %c1_145 = arith.constant 1 : index
      %c0_146 = arith.constant 0 : index
      %c0_147 = arith.constant 0 : index
      %242 = vector.load %arg23[%c1_145, %c0_146, %c0_147] : memref<4x128x1xf32, #tpu.memory_space<vmem>>, vector<1x128x1xf32>
      %243 = vector.shape_cast %242 : vector<1x128x1xf32> to vector<128x1xf32>
      %cst_148 = arith.constant 1.000000e-30 : f32
      %244 = vector.broadcast %cst_148 : f32 to vector<128x1xf32>
      %245 = arith.maximumf %243, %244 : vector<128x1xf32>
      %246 = tpu.reciprocal %245 {approx = true} : vector<128x1xf32> -> vector<128x1xf32>
      %c1_149 = arith.constant 1 : index
      %c0_150 = arith.constant 0 : index
      %c0_151 = arith.constant 0 : index
      %247 = vector.load %arg24[%c1_149, %c0_150, %c0_151] : memref<4x128x32xf32, #tpu.memory_space<vmem>>, vector<1x128x32xf32>
      %248 = vector.shape_cast %247 : vector<1x128x32xf32> to vector<128x32xf32>
      %249 = vector.broadcast %246 : vector<128x1xf32> to vector<128x32xf32>
      %250 = arith.mulf %248, %249 : vector<128x32xf32>
      %251 = arith.truncf %250 : vector<128x32xf32> to vector<128x32xbf16>
      %c1_152 = arith.constant 1 : index
      %c0_153 = arith.constant 0 : index
      %c0_154 = arith.constant 0 : index
      %252 = vector.load %arg14[%c1_152, %c0_153, %c0_154] : memref<4x32x128xbf16, #tpu.memory_space<vmem>>, vector<1x32x128xbf16>
      %253 = vector.shape_cast %252 : vector<1x32x128xbf16> to vector<32x128xbf16>
      %cst_155 = arith.constant dense<0.000000e+00> : vector<128x128xf32>
      %254 = tpu.matmul %251, %253, %cst_155 {dimension_numbers = #tpu.dot_dimension_numbers<[1], [0], [0], [1], [0, 0, 1, 1], [], []>} : vector<128x32xbf16>, vector<32x128xbf16>, vector<128x128xf32> -> vector<128x128xf32>
      %255 = arith.addf %241, %254 : vector<128x128xf32>
      %c2_156 = arith.constant 2 : index
      %c0_157 = arith.constant 0 : index
      %c0_158 = arith.constant 0 : index
      %256 = vector.load %arg23[%c2_156, %c0_157, %c0_158] : memref<4x128x1xf32, #tpu.memory_space<vmem>>, vector<1x128x1xf32>
      %257 = vector.shape_cast %256 : vector<1x128x1xf32> to vector<128x1xf32>
      %cst_159 = arith.constant 1.000000e-30 : f32
      %258 = vector.broadcast %cst_159 : f32 to vector<128x1xf32>
      %259 = arith.maximumf %257, %258 : vector<128x1xf32>
      %260 = tpu.reciprocal %259 {approx = true} : vector<128x1xf32> -> vector<128x1xf32>
      %c2_160 = arith.constant 2 : index
      %c0_161 = arith.constant 0 : index
      %c0_162 = arith.constant 0 : index
      %261 = vector.load %arg24[%c2_160, %c0_161, %c0_162] : memref<4x128x32xf32, #tpu.memory_space<vmem>>, vector<1x128x32xf32>
      %262 = vector.shape_cast %261 : vector<1x128x32xf32> to vector<128x32xf32>
      %263 = vector.broadcast %260 : vector<128x1xf32> to vector<128x32xf32>
      %264 = arith.mulf %262, %263 : vector<128x32xf32>
      %265 = arith.truncf %264 : vector<128x32xf32> to vector<128x32xbf16>
      %c2_163 = arith.constant 2 : index
      %c0_164 = arith.constant 0 : index
      %c0_165 = arith.constant 0 : index
      %266 = vector.load %arg14[%c2_163, %c0_164, %c0_165] : memref<4x32x128xbf16, #tpu.memory_space<vmem>>, vector<1x32x128xbf16>
      %267 = vector.shape_cast %266 : vector<1x32x128xbf16> to vector<32x128xbf16>
      %cst_166 = arith.constant dense<0.000000e+00> : vector<128x128xf32>
      %268 = tpu.matmul %265, %267, %cst_166 {dimension_numbers = #tpu.dot_dimension_numbers<[1], [0], [0], [1], [0, 0, 1, 1], [], []>} : vector<128x32xbf16>, vector<32x128xbf16>, vector<128x128xf32> -> vector<128x128xf32>
      %269 = arith.addf %255, %268 : vector<128x128xf32>
      %c3_167 = arith.constant 3 : index
      %c0_168 = arith.constant 0 : index
      %c0_169 = arith.constant 0 : index
      %270 = vector.load %arg23[%c3_167, %c0_168, %c0_169] : memref<4x128x1xf32, #tpu.memory_space<vmem>>, vector<1x128x1xf32>
      %271 = vector.shape_cast %270 : vector<1x128x1xf32> to vector<128x1xf32>
      %cst_170 = arith.constant 1.000000e-30 : f32
      %272 = vector.broadcast %cst_170 : f32 to vector<128x1xf32>
      %273 = arith.maximumf %271, %272 : vector<128x1xf32>
      %274 = tpu.reciprocal %273 {approx = true} : vector<128x1xf32> -> vector<128x1xf32>
      %c3_171 = arith.constant 3 : index
      %c0_172 = arith.constant 0 : index
      %c0_173 = arith.constant 0 : index
      %275 = vector.load %arg24[%c3_171, %c0_172, %c0_173] : memref<4x128x32xf32, #tpu.memory_space<vmem>>, vector<1x128x32xf32>
      %276 = vector.shape_cast %275 : vector<1x128x32xf32> to vector<128x32xf32>
      %277 = vector.broadcast %274 : vector<128x1xf32> to vector<128x32xf32>
      %278 = arith.mulf %276, %277 : vector<128x32xf32>
      %279 = arith.truncf %278 : vector<128x32xf32> to vector<128x32xbf16>
      %c3_174 = arith.constant 3 : index
      %c0_175 = arith.constant 0 : index
      %c0_176 = arith.constant 0 : index
      %280 = vector.load %arg14[%c3_174, %c0_175, %c0_176] : memref<4x32x128xbf16, #tpu.memory_space<vmem>>, vector<1x32x128xbf16>
      %281 = vector.shape_cast %280 : vector<1x32x128xbf16> to vector<32x128xbf16>
      %cst_177 = arith.constant dense<0.000000e+00> : vector<128x128xf32>
      %282 = tpu.matmul %279, %281, %cst_177 {dimension_numbers = #tpu.dot_dimension_numbers<[1], [0], [0], [1], [0, 0, 1, 1], [], []>} : vector<128x32xbf16>, vector<32x128xbf16>, vector<128x128xf32> -> vector<128x128xf32>
      %283 = arith.addf %269, %282 : vector<128x128xf32>
      %284 = arith.addf %224, %283 : vector<128x128xf32>
      %c0_178 = arith.constant 0 : index
      %c0_179 = arith.constant 0 : index
      %285 = vector.load %arg8[%c0_178, %c0_179] : memref<1x128xf32, #tpu.memory_space<vmem>>, vector<1x128xf32>
      %c0_180 = arith.constant 0 : index
      %c0_181 = arith.constant 0 : index
      %286 = vector.load %arg9[%c0_180, %c0_181] : memref<1x128xf32, #tpu.memory_space<vmem>>, vector<1x128xf32>
      %cst_182 = arith.constant dense<0.000000e+00> : vector<128xf32>
      %287 = vector.multi_reduction <add>, %284, %cst_182 [1] : vector<128x128xf32> to vector<128xf32>
      %288 = vector.shape_cast %287 : vector<128xf32> to vector<128x1xf32>
      %cst_183 = arith.constant 1.280000e+02 : f32
      %289 = vector.broadcast %cst_183 : f32 to vector<128x1xf32>
      %290 = arith.divf %288, %289 : vector<128x1xf32>
      %291 = vector.broadcast %290 : vector<128x1xf32> to vector<128x128xf32>
      %292 = arith.subf %284, %291 : vector<128x128xf32>
      %293 = arith.mulf %292, %292 : vector<128x128xf32>
      %cst_184 = arith.constant dense<0.000000e+00> : vector<128xf32>
      %294 = vector.multi_reduction <add>, %293, %cst_184 [1] : vector<128x128xf32> to vector<128xf32>
      %295 = vector.shape_cast %294 : vector<128xf32> to vector<128x1xf32>
      %cst_185 = arith.constant 1.280000e+02 : f32
      %296 = vector.broadcast %cst_185 : f32 to vector<128x1xf32>
      %297 = arith.divf %295, %296 : vector<128x1xf32>
      %298 = vector.broadcast %290 : vector<128x1xf32> to vector<128x128xf32>
      %299 = arith.subf %284, %298 : vector<128x128xf32>
      %300 = vector.broadcast %cst_127 : f32 to vector<128x1xf32>
      %301 = arith.addf %297, %300 : vector<128x1xf32>
      %302 = math.rsqrt %301 : vector<128x1xf32>
      %303 = vector.broadcast %302 : vector<128x1xf32> to vector<128x128xf32>
      %304 = arith.mulf %299, %303 : vector<128x128xf32>
      %305 = vector.broadcast %285 : vector<1x128xf32> to vector<128x128xf32>
      %306 = arith.mulf %304, %305 : vector<128x128xf32>
      %307 = vector.broadcast %286 : vector<1x128xf32> to vector<128x128xf32>
      %308 = arith.addf %306, %307 : vector<128x128xf32>
      %309 = arith.truncf %308 : vector<128x128xf32> to vector<128x128xbf16>
      %c0_186 = arith.constant 0 : index
      %c0_187 = arith.constant 0 : index
      %310 = vector.load %arg16[%c0_186, %c0_187] : memref<128x256xbf16, #tpu.memory_space<vmem>>, vector<128x256xbf16>
      %cst_188 = arith.constant dense<0.000000e+00> : vector<128x256xf32>
      %311 = tpu.matmul %309, %310, %cst_188 {dimension_numbers = #tpu.dot_dimension_numbers<[1], [0], [0], [1], [0, 0, 1, 1], [], []>} : vector<128x128xbf16>, vector<128x256xbf16>, vector<128x256xf32> -> vector<128x256xf32>
      %c0_189 = arith.constant 0 : index
      %c0_190 = arith.constant 0 : index
      %312 = vector.load %arg17[%c0_189, %c0_190] : memref<1x256xf32, #tpu.memory_space<vmem>>, vector<1x256xf32>
      %313 = vector.broadcast %312 : vector<1x256xf32> to vector<128x256xf32>
      %314 = arith.addf %311, %313 : vector<128x256xf32>
      %cst_191 = arith.constant 0.000000e+00 : f32
      %315 = vector.broadcast %cst_191 : f32 to vector<128x256xf32>
      %316 = arith.maximumf %314, %315 : vector<128x256xf32>
      %317 = arith.truncf %316 : vector<128x256xf32> to vector<128x256xbf16>
      %c0_192 = arith.constant 0 : index
      %c0_193 = arith.constant 0 : index
      %318 = vector.load %arg18[%c0_192, %c0_193] : memref<256x128xbf16, #tpu.memory_space<vmem>>, vector<256x128xbf16>
      %cst_194 = arith.constant dense<0.000000e+00> : vector<128x128xf32>
      %319 = tpu.matmul %317, %318, %cst_194 {dimension_numbers = #tpu.dot_dimension_numbers<[1], [0], [0], [1], [0, 0, 1, 1], [], []>} : vector<128x256xbf16>, vector<256x128xbf16>, vector<128x128xf32> -> vector<128x128xf32>
      %c0_195 = arith.constant 0 : index
      %c0_196 = arith.constant 0 : index
      %320 = vector.load %arg19[%c0_195, %c0_196] : memref<1x128xf32, #tpu.memory_space<vmem>>, vector<1x128xf32>
      %321 = vector.broadcast %320 : vector<1x128xf32> to vector<128x128xf32>
      %322 = arith.addf %319, %321 : vector<128x128xf32>
      %323 = arith.addf %284, %322 : vector<128x128xf32>
      %c0_197 = arith.constant 0 : index
      %c0_198 = arith.constant 0 : index
      %c0_199 = arith.constant 0 : index
      %324 = vector.load %arg20[%c0_197, %c0_198, %c0_199] : memref<1x128x128xf32, #tpu.memory_space<vmem>>, vector<1x128x128xf32>
      %325 = vector.shape_cast %324 : vector<1x128x128xf32> to vector<128x128xf32>
      %326 = vector.shape_cast %323 : vector<128x128xf32> to vector<1x128x128xf32>
      tpu.vector_store %arg20[%c0_197, %c0_198, %c0_199], %326 {strides = array<i32>} : memref<1x128x128xf32, #tpu.memory_space<vmem>>, vector<1x128x128xf32>,
    } else {
    }
    return
  }
  func.func @transform_0(%arg0: i32, %arg1: i32, %arg2: i32) -> (i32, i32, i32) {
    %c0_i32 = arith.constant 0 : i32
    %c0_i32_0 = arith.constant 0 : i32
    return %arg0, %c0_i32, %arg2 : i32, i32, i32
  }
  func.func @transform_1(%arg0: i32, %arg1: i32, %arg2: i32) -> (i32, i32, i32) {
    %c0_i32 = arith.constant 0 : i32
    %c0_i32_0 = arith.constant 0 : i32
    return %arg0, %arg1, %c0_i32 : i32, i32, i32
  }
  func.func @transform_2(%arg0: i32, %arg1: i32, %arg2: i32) -> (i32, i32, i32) {
    %c0_i32 = arith.constant 0 : i32
    %c0_i32_0 = arith.constant 0 : i32
    return %arg0, %arg2, %c0_i32 : i32, i32, i32
  }
  func.func @transform_3(%arg0: i32, %arg1: i32, %arg2: i32) -> (i32, i32) {
    %c0_i32 = arith.constant 0 : i32
    %c0_i32_0 = arith.constant 0 : i32
    %c0_i32_1 = arith.constant 0 : i32
    return %c0_i32, %c0_i32_0 : i32, i32
  }
  func.func @transform_4(%arg0: i32, %arg1: i32, %arg2: i32) -> (i32, i32) {
    %c0_i32 = arith.constant 0 : i32
    %c0_i32_0 = arith.constant 0 : i32
    %c0_i32_1 = arith.constant 0 : i32
    return %c0_i32, %c0_i32_0 : i32, i32
  }
  func.func @transform_5(%arg0: i32, %arg1: i32, %arg2: i32) -> (i32, i32) {
    %c0_i32 = arith.constant 0 : i32
    %c0_i32_0 = arith.constant 0 : i32
    %c0_i32_1 = arith.constant 0 : i32
    return %c0_i32, %c0_i32_0 : i32, i32
  }
  func.func @transform_6(%arg0: i32, %arg1: i32, %arg2: i32) -> (i32, i32) {
    %c0_i32 = arith.constant 0 : i32
    %c0_i32_0 = arith.constant 0 : i32
    %c0_i32_1 = arith.constant 0 : i32
    return %c0_i32, %c0_i32_0 : i32, i32
  }
  func.func @transform_7(%arg0: i32, %arg1: i32, %arg2: i32) -> (i32, i32) {
    %c0_i32 = arith.constant 0 : i32
    %c0_i32_0 = arith.constant 0 : i32
    %c0_i32_1 = arith.constant 0 : i32
    return %c0_i32, %c0_i32_0 : i32, i32
  }
  func.func @transform_8(%arg0: i32, %arg1: i32, %arg2: i32) -> (i32, i32) {
    %c0_i32 = arith.constant 0 : i32
    %c0_i32_0 = arith.constant 0 : i32
    %c0_i32_1 = arith.constant 0 : i32
    return %c0_i32, %c0_i32_0 : i32, i32
  }
  func.func @transform_9(%arg0: i32, %arg1: i32, %arg2: i32) -> (i32, i32) {
    %c0_i32 = arith.constant 0 : i32
    %c0_i32_0 = arith.constant 0 : i32
    %c0_i32_1 = arith.constant 0 : i32
    return %c0_i32, %c0_i32_0 : i32, i32
  }
  func.func @transform_10(%arg0: i32, %arg1: i32, %arg2: i32) -> (i32, i32) {
    %c0_i32 = arith.constant 0 : i32
    %c0_i32_0 = arith.constant 0 : i32
    %c0_i32_1 = arith.constant 0 : i32
    return %c0_i32, %c0_i32_0 : i32, i32
  }
  func.func @transform_11(%arg0: i32, %arg1: i32, %arg2: i32) -> (i32, i32, i32) {
    %c0_i32 = arith.constant 0 : i32
    %c0_i32_0 = arith.constant 0 : i32
    %c0_i32_1 = arith.constant 0 : i32
    %c0_i32_2 = arith.constant 0 : i32
    return %c0_i32, %c0_i32_0, %c0_i32_1 : i32, i32, i32
  }
  func.func @transform_12(%arg0: i32, %arg1: i32, %arg2: i32) -> (i32, i32) {
    %c0_i32 = arith.constant 0 : i32
    %c0_i32_0 = arith.constant 0 : i32
    %c0_i32_1 = arith.constant 0 : i32
    return %c0_i32, %c0_i32_0 : i32, i32
  }
  func.func @transform_13(%arg0: i32, %arg1: i32, %arg2: i32) -> (i32, i32) {
    %c0_i32 = arith.constant 0 : i32
    %c0_i32_0 = arith.constant 0 : i32
    %c0_i32_1 = arith.constant 0 : i32
    return %c0_i32, %c0_i32_0 : i32, i32
  }
  func.func @transform_14(%arg0: i32, %arg1: i32, %arg2: i32) -> (i32, i32) {
    %c0_i32 = arith.constant 0 : i32
    %c0_i32_0 = arith.constant 0 : i32
    %c0_i32_1 = arith.constant 0 : i32
    return %c0_i32, %c0_i32_0 : i32, i32
  }
  func.func @transform_15(%arg0: i32, %arg1: i32, %arg2: i32) -> (i32, i32) {
    %c0_i32 = arith.constant 0 : i32
    %c0_i32_0 = arith.constant 0 : i32
    %c0_i32_1 = arith.constant 0 : i32
    return %c0_i32, %c0_i32_0 : i32, i32
  }
  func.func @transform_16(%arg0: i32, %arg1: i32, %arg2: i32) -> (i32, i32) {
    %c0_i32 = arith.constant 0 : i32
    %c0_i32_0 = arith.constant 0 : i32
    %c0_i32_1 = arith.constant 0 : i32
    return %c0_i32, %c0_i32_0 : i32, i32
  }
  func.func @transform_17(%arg0: i32, %arg1: i32, %arg2: i32) -> (i32, i32, i32) {
    %c0_i32 = arith.constant 0 : i32
    %c0_i32_0 = arith.constant 0 : i32
    return %arg0, %arg1, %c0_i32 : i32, i32, i32
  }
}

</mosaic_0001>

<llo_original>
// kernel: tpu_custom_call.1
$region0: #{tpu_custom_call.1}
  #allocation0 [shape = 'u32[]', space=smem, size = 0x4, offset = 0x4, fixed_abs, tag = 'smem constant byte address 0x4 - core index']
  #allocation1 [shape = 'u32[144,128]{1,0:T(1,128)}', space=vmem, size = 0x12000, scoped, tag = 'internal scratch']
  #allocation2 [shape = 'bf16[4,128,32]{2,1,0:T(16,128)(2,1)}', space=vmem, size = 0x20000, scoped, tag = 'scratch operand']
  #allocation3 [shape = 'f32[4,128,1]{2,1,0:T(8,128)}', space=vmem, size = 0x40000, scoped, tag = 'scratch operand']
  #allocation4 [shape = 'f32[4,128,1]{2,1,0:T(8,128)}', space=vmem, size = 0x40000, scoped, tag = 'scratch operand']
  #allocation5 [shape = 'f32[4,128,32]{2,1,0:T(8,128)}', space=vmem, size = 0x40000, scoped, tag = 'scratch operand']
  %s0 = inlined_call_operand.hbm [shape: f32[2,1,256], index: 0, kind: input, shape index: {}]
  %s1 = inlined_call_operand.hbm [shape: f32[2,256,128], index: 1, kind: input, shape index: {}]
  %s2 = inlined_call_operand.hbm [shape: f32[2,256,128], index: 2, kind: input, shape index: {}]
  %s3 = inlined_call_operand.vmem [shape: f32[1,128], index: 3, kind: input, shape index: {}]
  %s4 = inlined_call_operand.vmem [shape: f32[1,128], index: 4, kind: input, shape index: {}]
  %s5 = inlined_call_operand.vmem [shape: f32[1,128], index: 5, kind: input, shape index: {}]
  %s6 = inlined_call_operand.vmem [shape: f32[1,128], index: 6, kind: input, shape index: {}]
  %s7 = inlined_call_operand.hbm [shape: bf16[128,128], index: 7, kind: input, shape index: {}]
  %s8 = inlined_call_operand.vmem [shape: f32[1,128], index: 8, kind: input, shape index: {}]
  %s9 = inlined_call_operand.hbm [shape: bf16[128,256], index: 9, kind: input, shape index: {}]
  %s10 = inlined_call_operand.vmem [shape: f32[1,256], index: 10, kind: input, shape index: {}]
  %s11 = inlined_call_operand.hbm [shape: bf16[4,32,128], index: 11, kind: input, shape index: {}]
  %s12 = inlined_call_operand.vmem [shape: f32[1,128], index: 12, kind: input, shape index: {}]
  %s13 = inlined_call_operand.hbm [shape: bf16[128,256], index: 13, kind: input, shape index: {}]
  %s14 = inlined_call_operand.vmem [shape: f32[1,256], index: 14, kind: input, shape index: {}]
  %s15 = inlined_call_operand.hbm [shape: bf16[256,128], index: 15, kind: input, shape index: {}]
  %s16 = inlined_call_operand.vmem [shape: f32[1,128], index: 16, kind: input, shape index: {}]
  %s17 = inlined_call_operand.hbm [shape: f32[2,256,128], index: 17, kind: output, shape index: {}]
  %s18 = sld [smem:[#allocation0]]
  $region141: #{tpu_custom_call.1} parent=0
    _
  %s20 = ssub.s32 1, %s18
  %s21 = scalar_select 0, %s20, %s18
  $region1: #{tpu_custom_call.1} parent=0
    #allocation6 [shape = 'u8[1024]{0}', space=vmem, size = 0x400, scoped, tag = 'input window, operand 0']
    #allocation7 [shape = 's32[2]{0}', space=sflag, size = 0x8, scoped, tag = 'scoped memory for tpu_custom_call.1']
    #allocation8 [shape = 's32[2]{0}', space=sflag, size = 0x8, scoped, tag = 'scoped memory for tpu_custom_call.1']
    #allocation9 [shape = 'u8[131072]{0}', space=vmem, size = 0x20000, scoped, tag = 'input window, operand 1']
    #allocation10 [shape = 's32[2]{0}', space=sflag, size = 0x8, scoped, tag = 'scoped memory for tpu_custom_call.1']
    #allocation11 [shape = 'u8[131072]{0}', space=vmem, size = 0x20000, scoped, tag = 'input window, operand 2']
    #allocation12 [shape = 'u8[32768]{0}', space=vmem, size = 0x8000, scoped, tag = 'input window, operand 7, single buffered']
    #allocation13 [shape = 's32[1]{0}', space=sflag, size = 0x4, scoped, tag = 'scoped memory for tpu_custom_call.1']
    #allocation14 [shape = 'u8[65536]{0}', space=vmem, size = 0x10000, scoped, tag = 'input window, operand 9, single buffered']
    #allocation15 [shape = 'u8[32768]{0}', space=vmem, size = 0x8000, scoped, tag = 'input window, operand 11, single buffered']
    #allocation16 [shape = 's32[1]{0}', space=sflag, size = 0x4, scoped, tag = 'scoped memory for tpu_custom_call.1']
    #allocation17 [shape = 'u8[65536]{0}', space=vmem, size = 0x10000, scoped, tag = 'input window, operand 13, single buffered']
    #allocation18 [shape = 'u8[65536]{0}', space=vmem, size = 0x10000, scoped, tag = 'input window, operand 15, single buffered']
    #allocation19 [shape = 's32[1]{0}', space=sflag, size = 0x4, scoped, tag = 'scoped memory for tpu_custom_call.1']
    #allocation20 [shape = 'u8[131072]{0}', space=vmem, size = 0x20000, scoped, tag = 'output window, operand 0']
    %22 = vsyncpa [#allocation7], 0
    %s23 = scalar_lea.sflag [#allocation7], 1
    %24 = vsyncpa %s23, 0
    %25 = vsyncpa [#allocation10], 0
    %s26 = scalar_lea.sflag [#allocation10], 1
    %27 = vsyncpa %s26, 0
    %28 = vsyncpa [#allocation13], 0
    %29 = vsyncpa [#allocation16], 0
    %30 = vsyncpa [#allocation19], 0
    %31 = vsyncpa [#allocation8], 0
    %s32 = scalar_lea.sflag [#allocation8], 1
    %33 = vsyncpa %s32, 0
    loop: start=0, step=1, limit=10
    $region2: #{tpu_custom_call.1} parent=1 // loop_pre_header
      _
    $region3: #{tpu_custom_call.1} parent=1 // loop_header
      %s35 = sphi 0, %s39
      %p36 = scmp.ge.s32.totalorder %s35, 10
      %s42 = sphi 0, %s61
      %s43 = sphi 0, %s57
      %s44 = sphi 0, %s53
      %s45 = sphi 0, %s42
      %s46 = sphi 0, %s43
      %s47 = sphi 0, %s44
      %s48 = sphi 0, %s45
      %s49 = sphi 0, %s46
      %s50 = sphi 0, %s47
      %s66 = sphi 0, %s68
      %s69 = sphi 0, %s66
      %s70 = sphi 0, %s69
      %s86 = sphi 0, %s70
      %s94 = sphi 0, %s96
      %s97 = sphi 0, %s94
      %s98 = sphi 0, %s97
      %s114 = sphi 0, %s98
      %s122 = sphi 0, %s124
      %s125 = sphi 0, %s122
      %s126 = sphi 0, %s125
      %s142 = sphi 0, %s126
      %s146 = sphi 0, %s146
      %s148 = sphi 0, %s146
      %s149 = sphi 0, %s148
      %s163 = sphi 0, %s149
      %s167 = sphi 0, %s167
      %s169 = sphi 0, %s167
      %s170 = sphi 0, %s169
      %s184 = sphi 0, %s170
      %s188 = sphi 0, %s188
      %s190 = sphi 0, %s188
      %s191 = sphi 0, %s190
      %s205 = sphi 0, %s191
      %s209 = sphi 0, %s209
      %s211 = sphi 0, %s209
      %s212 = sphi 0, %s211
      %s226 = sphi 0, %s212
      %s230 = sphi 0, %s230
      %s232 = sphi 0, %s230
      %s233 = sphi 0, %s232
      %s247 = sphi 0, %s233
      %s251 = sphi 0, %s251
      %s253 = sphi 0, %s251
      %s254 = sphi 0, %s253
      %s268 = sphi 0, %s254
      %s272 = sphi 0, %s272
      %s274 = sphi 0, %s272
      %s275 = sphi 0, %s274
      %s289 = sphi 0, %s275
      %s293 = sphi 0, %s293
      %s295 = sphi 0, %s293
      %s296 = sphi 0, %s295
      %s310 = sphi 0, %s296
      %s314 = sphi 0, %s314
      %s316 = sphi 0, %s314
      %s317 = sphi 0, %s316
      %s331 = sphi 0, %s317
      %s335 = sphi 0, %s335
      %s337 = sphi 0, %s335
      %s338 = sphi 0, %s337
      %s352 = sphi 0, %s338
      %s356 = sphi 0, %s356
      %s358 = sphi 0, %s356
      %s359 = sphi 0, %s358
      %s373 = sphi 0, %s359
      %s377 = sphi 0, %s377
      %s379 = sphi 0, %s377
      %s380 = sphi 0, %s379
      %s394 = sphi 0, %s380
      %s398 = sphi 0, %s398
      %s400 = sphi 0, %s398
      %s401 = sphi 0, %s400
      %s415 = sphi 0, %s401
      %s419 = sphi 0, %s419
      %s421 = sphi 0, %s419
      %s422 = sphi 0, %s421
      %s436 = sphi 0, %s422
      %s444 = sphi 0, %s446
      %s447 = sphi 0, %s444
      %s448 = sphi 0, %s447
      %s464 = sphi 0, %s448
    $region4: #{tpu_custom_call.1} parent=1 // loop_header_branch
      %38 = sbr.rel (%p36) target = $region8
    $region5: #{tpu_custom_call.1} parent=1 // loop_body
      %s40 = ssub.s32 %s35, 1
      %s41 = ssub.s32 %s35, 2
      %s51 = sadd.s32 1, %s44
      %p52 = scmp.ge.s32.totalorder %s51, 2
      %s53 = scalar_select %p52, 0, %s51
      %s54 = sadd.s32 1, %s43
      %s55 = scalar_select %p52, %s54, %s43
      %p56 = scmp.ge.s32.totalorder %s55, 2
      %s57 = scalar_select %p56, 0, %s55
      %s58 = sadd.s32 1, %s42
      %s59 = scalar_select %p56, %s58, %s42
      %p60 = scmp.ge.s32.totalorder %s59, 2
      %s61 = scalar_select %p60, 0, %s59
      %s62 = ssub.s32 %s42, %s61
      %s63 = ssub.s32 %s44, %s53
      %s64 = sor.u32 %s62, %s63
      %p65 = scmp.eq.s32.totalorder %s64, 0
      %s67 = sadd.s32 %s66, 1
      %s68 = scalar_select %p65, %s66, %s67
      %p71 = pneg %p65
      %p72 = scmp.eq.s32.totalorder %s35, 7
      %p73 = por %p71, %p72
      %p74 = scmp.ne.s32.totalorder %s66, %s69
      %p75 = scmp.eq.s32.totalorder %s35, 0
      %p76 = por %p74, %p75
      %p77 = scmp.ne.s32.totalorder %s66, %s69
      %p78 = scmp.eq.s32.totalorder %s40, 7
      %p79 = por %p77, %p78
      %p80 = scmp.ne.s32.totalorder %s69, %s70
      %p81 = scmp.eq.s32.totalorder %s40, 0
      %p82 = por %p80, %p81
      %p83 = scmp.ne.s32.totalorder %s69, %s70
      %p84 = scmp.eq.s32.totalorder %s41, 7
      %p85 = por %p83, %p84
      %p87 = scmp.ne.s32.totalorder %s70, %s86
      %p88 = scmp.eq.s32.totalorder %s41, 0
      %p89 = por %p87, %p88
      %s90 = ssub.s32 %s42, %s61
      %s91 = ssub.s32 %s43, %s57
      %s92 = sor.u32 %s90, %s91
      %p93 = scmp.eq.s32.totalorder %s92, 0
      %s95 = sadd.s32 %s94, 1
      %s96 = scalar_select %p93, %s94, %s95
      %p99 = pneg %p93
      %p100 = scmp.eq.s32.totalorder %s35, 7
      %p101 = por %p99, %p100
      %p102 = scmp.ne.s32.totalorder %s94, %s97
      %p103 = scmp.eq.s32.totalorder %s35, 0
      %p104 = por %p102, %p103
      %p105 = scmp.ne.s32.totalorder %s94, %s97
      %p106 = scmp.eq.s32.totalorder %s40, 7
      %p107 = por %p105, %p106
      %p108 = scmp.ne.s32.totalorder %s97, %s98
      %p109 = scmp.eq.s32.totalorder %s40, 0
      %p110 = por %p108, %p109
      %p111 = scmp.ne.s32.totalorder %s97, %s98
      %p112 = scmp.eq.s32.totalorder %s41, 7
      %p113 = por %p111, %p112
      %p115 = scmp.ne.s32.totalorder %s98, %s114
      %p116 = scmp.eq.s32.totalorder %s41, 0
      %p117 = por %p115, %p116
      %s118 = ssub.s32 %s42, %s61
      %s119 = ssub.s32 %s44, %s53
      %s120 = sor.u32 %s118, %s119
      %p121 = scmp.eq.s32.totalorder %s120, 0
      %s123 = sadd.s32 %s122, 1
      %s124 = scalar_select %p121, %s122, %s123
      %p127 = pneg %p121
      %p128 = scmp.eq.s32.totalorder %s35, 7
      %p129 = por %p127, %p128
      %p130 = scmp.ne.s32.totalorder %s122, %s125
      %p131 = scmp.eq.s32.totalorder %s35, 0
      %p132 = por %p130, %p131
      %p133 = scmp.ne.s32.totalorder %s122, %s125
      %p134 = scmp.eq.s32.totalorder %s40, 7
      %p135 = por %p133, %p134
      %p136 = scmp.ne.s32.totalorder %s125, %s126
      %p137 = scmp.eq.s32.totalorder %s40, 0
      %p138 = por %p136, %p137
      %p139 = scmp.ne.s32.totalorder %s125, %s126
      %p140 = scmp.eq.s32.totalorder %s41, 7
      %p141 = por %p139, %p140
      %p143 = scmp.ne.s32.totalorder %s126, %s142
      %p144 = scmp.eq.s32.totalorder %s41, 0
      %p145 = por %p143, %p144
      %s147 = sadd.s32 %s146, 1
      %p150 = scmp.eq.s32.totalorder %s35, 7
      %p151 = scmp.ne.s32.totalorder %s146, %s148
      %p152 = scmp.eq.s32.totalorder %s35, 0
      %p153 = por %p151, %p152
      %p154 = scmp.ne.s32.totalorder %s146, %s148
      %p155 = scmp.eq.s32.totalorder %s40, 7
      %p156 = por %p154, %p155
      %p157 = scmp.ne.s32.totalorder %s148, %s149
      %p158 = scmp.eq.s32.totalorder %s40, 0
      %p159 = por %p157, %p158
      %p160 = scmp.ne.s32.totalorder %s148, %s149
      %p161 = scmp.eq.s32.totalorder %s41, 7
      %p162 = por %p160, %p161
      %p164 = scmp.ne.s32.totalorder %s149, %s163
      %p165 = scmp.eq.s32.totalorder %s41, 0
      %p166 = por %p164, %p165
      %s168 = sadd.s32 %s167, 1
      %p171 = scmp.eq.s32.totalorder %s35, 7
      %p172 = scmp.ne.s32.totalorder %s167, %s169
      %p173 = scmp.eq.s32.totalorder %s35, 0
      %p174 = por %p172, %p173
      %p175 = scmp.ne.s32.totalorder %s167, %s169
      %p176 = scmp.eq.s32.totalorder %s40, 7
      %p177 = por %p175, %p176
      %p178 = scmp.ne.s32.totalorder %s169, %s170
      %p179 = scmp.eq.s32.totalorder %s40, 0
      %p180 = por %p178, %p179
      %p181 = scmp.ne.s32.totalorder %s169, %s170
      %p182 = scmp.eq.s32.totalorder %s41, 7
      %p183 = por %p181, %p182
      %p185 = scmp.ne.s32.totalorder %s170, %s184
      %p186 = scmp.eq.s32.totalorder %s41, 0
      %p187 = por %p185, %p186
      %s189 = sadd.s32 %s188, 1
      %p192 = scmp.eq.s32.totalorder %s35, 7
      %p193 = scmp.ne.s32.totalorder %s188, %s190
      %p194 = scmp.eq.s32.totalorder %s35, 0
      %p195 = por %p193, %p194
      %p196 = scmp.ne.s32.totalorder %s188, %s190
      %p197 = scmp.eq.s32.totalorder %s40, 7
      %p198 = por %p196, %p197
      %p199 = scmp.ne.s32.totalorder %s190, %s191
      %p200 = scmp.eq.s32.totalorder %s40, 0
      %p201 = por %p199, %p200
      %p202 = scmp.ne.s32.totalorder %s190, %s191
      %p203 = scmp.eq.s32.totalorder %s41, 7
      %p204 = por %p202, %p203
      %p206 = scmp.ne.s32.totalorder %s191, %s205
      %p207 = scmp.eq.s32.totalorder %s41, 0
      %p208 = por %p206, %p207
      %s210 = sadd.s32 %s209, 1
      %p213 = scmp.eq.s32.totalorder %s35, 7
      %p214 = scmp.ne.s32.totalorder %s209, %s211
      %p215 = scmp.eq.s32.totalorder %s35, 0
      %p216 = por %p214, %p215
      %p217 = scmp.ne.s32.totalorder %s209, %s211
      %p218 = scmp.eq.s32.totalorder %s40, 7
      %p219 = por %p217, %p218
      %p220 = scmp.ne.s32.totalorder %s211, %s212
      %p221 = scmp.eq.s32.totalorder %s40, 0
      %p222 = por %p220, %p221
      %p223 = scmp.ne.s32.totalorder %s211, %s212
      %p224 = scmp.eq.s32.totalorder %s41, 7
      %p225 = por %p223, %p224
      %p227 = scmp.ne.s32.totalorder %s212, %s226
      %p228 = scmp.eq.s32.totalorder %s41, 0
      %p229 = por %p227, %p228
      %s231 = sadd.s32 %s230, 1
      %p234 = scmp.eq.s32.totalorder %s35, 7
      %p235 = scmp.ne.s32.totalorder %s230, %s232
      %p236 = scmp.eq.s32.totalorder %s35, 0
      %p237 = por %p235, %p236
      %p238 = scmp.ne.s32.totalorder %s230, %s232
      %p239 = scmp.eq.s32.totalorder %s40, 7
      %p240 = por %p238, %p239
      %p241 = scmp.ne.s32.totalorder %s232, %s233
      %p242 = scmp.eq.s32.totalorder %s40, 0
      %p243 = por %p241, %p242
      %p244 = scmp.ne.s32.totalorder %s232, %s233
      %p245 = scmp.eq.s32.totalorder %s41, 7
      %p246 = por %p244, %p245
      %p248 = scmp.ne.s32.totalorder %s233, %s247
      %p249 = scmp.eq.s32.totalorder %s41, 0
      %p250 = por %p248, %p249
      %s252 = sadd.s32 %s251, 1
      %p255 = scmp.eq.s32.totalorder %s35, 7
      %p256 = scmp.ne.s32.totalorder %s251, %s253
      %p257 = scmp.eq.s32.totalorder %s35, 0
      %p258 = por %p256, %p257
      %p259 = scmp.ne.s32.totalorder %s251, %s253
      %p260 = scmp.eq.s32.totalorder %s40, 7
      %p261 = por %p259, %p260
      %p262 = scmp.ne.s32.totalorder %s253, %s254
      %p263 = scmp.eq.s32.totalorder %s40, 0
      %p264 = por %p262, %p263
      %p265 = scmp.ne.s32.totalorder %s253, %s254
      %p266 = scmp.eq.s32.totalorder %s41, 7
      %p267 = por %p265, %p266
      %p269 = scmp.ne.s32.totalorder %s254, %s268
      %p270 = scmp.eq.s32.totalorder %s41, 0
      %p271 = por %p269, %p270
      %s273 = sadd.s32 %s272, 1
      %p276 = scmp.eq.s32.totalorder %s35, 7
      %p277 = scmp.ne.s32.totalorder %s272, %s274
      %p278 = scmp.eq.s32.totalorder %s35, 0
      %p279 = por %p277, %p278
      %p280 = scmp.ne.s32.totalorder %s272, %s274
      %p281 = scmp.eq.s32.totalorder %s40, 7
      %p282 = por %p280, %p281
      %p283 = scmp.ne.s32.totalorder %s274, %s275
      %p284 = scmp.eq.s32.totalorder %s40, 0
      %p285 = por %p283, %p284
      %p286 = scmp.ne.s32.totalorder %s274, %s275
      %p287 = scmp.eq.s32.totalorder %s41, 7
      %p288 = por %p286, %p287
      %p290 = scmp.ne.s32.totalorder %s275, %s289
      %p291 = scmp.eq.s32.totalorder %s41, 0
      %p292 = por %p290, %p291
      %s294 = sadd.s32 %s293, 1
      %p297 = scmp.eq.s32.totalorder %s35, 7
      %p298 = scmp.ne.s32.totalorder %s293, %s295
      %p299 = scmp.eq.s32.totalorder %s35, 0
      %p300 = por %p298, %p299
      %p301 = scmp.ne.s32.totalorder %s293, %s295
      %p302 = scmp.eq.s32.totalorder %s40, 7
      %p303 = por %p301, %p302
      %p304 = scmp.ne.s32.totalorder %s295, %s296
      %p305 = scmp.eq.s32.totalorder %s40, 0
      %p306 = por %p304, %p305
      %p307 = scmp.ne.s32.totalorder %s295, %s296
      %p308 = scmp.eq.s32.totalorder %s41, 7
      %p309 = por %p307, %p308
      %p311 = scmp.ne.s32.totalorder %s296, %s310
      %p312 = scmp.eq.s32.totalorder %s41, 0
      %p313 = por %p311, %p312
      %s315 = sadd.s32 %s314, 1
      %p318 = scmp.eq.s32.totalorder %s35, 7
      %p319 = scmp.ne.s32.totalorder %s314, %s316
      %p320 = scmp.eq.s32.totalorder %s35, 0
      %p321 = por %p319, %p320
      %p322 = scmp.ne.s32.totalorder %s314, %s316
      %p323 = scmp.eq.s32.totalorder %s40, 7
      %p324 = por %p322, %p323
      %p325 = scmp.ne.s32.totalorder %s316, %s317
      %p326 = scmp.eq.s32.totalorder %s40, 0
      %p327 = por %p325, %p326
      %p328 = scmp.ne.s32.totalorder %s316, %s317
      %p329 = scmp.eq.s32.totalorder %s41, 7
      %p330 = por %p328, %p329
      %p332 = scmp.ne.s32.totalorder %s317, %s331
      %p333 = scmp.eq.s32.totalorder %s41, 0
      %p334 = por %p332, %p333
      %s336 = sadd.s32 %s335, 1
      %p339 = scmp.eq.s32.totalorder %s35, 7
      %p340 = scmp.ne.s32.totalorder %s335, %s337
      %p341 = scmp.eq.s32.totalorder %s35, 0
      %p342 = por %p340, %p341
      %p343 = scmp.ne.s32.totalorder %s335, %s337
      %p344 = scmp.eq.s32.totalorder %s40, 7
      %p345 = por %p343, %p344
      %p346 = scmp.ne.s32.totalorder %s337, %s338
      %p347 = scmp.eq.s32.totalorder %s40, 0
      %p348 = por %p346, %p347
      %p349 = scmp.ne.s32.totalorder %s337, %s338
      %p350 = scmp.eq.s32.totalorder %s41, 7
      %p351 = por %p349, %p350
      %p353 = scmp.ne.s32.totalorder %s338, %s352
      %p354 = scmp.eq.s32.totalorder %s41, 0
      %p355 = por %p353, %p354
      %s357 = sadd.s32 %s356, 1
      %p360 = scmp.eq.s32.totalorder %s35, 7
      %p361 = scmp.ne.s32.totalorder %s356, %s358
      %p362 = scmp.eq.s32.totalorder %s35, 0
      %p363 = por %p361, %p362
      %p364 = scmp.ne.s32.totalorder %s356, %s358
      %p365 = scmp.eq.s32.totalorder %s40, 7
      %p366 = por %p364, %p365
      %p367 = scmp.ne.s32.totalorder %s358, %s359
      %p368 = scmp.eq.s32.totalorder %s40, 0
      %p369 = por %p367, %p368
      %p370 = scmp.ne.s32.totalorder %s358, %s359
      %p371 = scmp.eq.s32.totalorder %s41, 7
      %p372 = por %p370, %p371
      %p374 = scmp.ne.s32.totalorder %s359, %s373
      %p375 = scmp.eq.s32.totalorder %s41, 0
      %p376 = por %p374, %p375
      %s378 = sadd.s32 %s377, 1
      %p381 = scmp.eq.s32.totalorder %s35, 7
      %p382 = scmp.ne.s32.totalorder %s377, %s379
      %p383 = scmp.eq.s32.totalorder %s35, 0
      %p384 = por %p382, %p383
      %p385 = scmp.ne.s32.totalorder %s377, %s379
      %p386 = scmp.eq.s32.totalorder %s40, 7
      %p387 = por %p385, %p386
      %p388 = scmp.ne.s32.totalorder %s379, %s380
      %p389 = scmp.eq.s32.totalorder %s40, 0
      %p390 = por %p388, %p389
      %p391 = scmp.ne.s32.totalorder %s379, %s380
      %p392 = scmp.eq.s32.totalorder %s41, 7
      %p393 = por %p391, %p392
      %p395 = scmp.ne.s32.totalorder %s380, %s394
      %p396 = scmp.eq.s32.totalorder %s41, 0
      %p397 = por %p395, %p396
      %s399 = sadd.s32 %s398, 1
      %p402 = scmp.eq.s32.totalorder %s35, 7
      %p403 = scmp.ne.s32.totalorder %s398, %s400
      %p404 = scmp.eq.s32.totalorder %s35, 0
      %p405 = por %p403, %p404
      %p406 = scmp.ne.s32.totalorder %s398, %s400
      %p407 = scmp.eq.s32.totalorder %s40, 7
      %p408 = por %p406, %p407
      %p409 = scmp.ne.s32.totalorder %s400, %s401
      %p410 = scmp.eq.s32.totalorder %s40, 0
      %p411 = por %p409, %p410
      %p412 = scmp.ne.s32.totalorder %s400, %s401
      %p413 = scmp.eq.s32.totalorder %s41, 7
      %p414 = por %p412, %p413
      %p416 = scmp.ne.s32.totalorder %s401, %s415
      %p417 = scmp.eq.s32.totalorder %s41, 0
      %p418 = por %p416, %p417
      %s420 = sadd.s32 %s419, 1
      %p423 = scmp.eq.s32.totalorder %s35, 7
      %p424 = scmp.ne.s32.totalorder %s419, %s421
      %p425 = scmp.eq.s32.totalorder %s35, 0
      %p426 = por %p424, %p425
      %p427 = scmp.ne.s32.totalorder %s419, %s421
      %p428 = scmp.eq.s32.totalorder %s40, 7
      %p429 = por %p427, %p428
      %p430 = scmp.ne.s32.totalorder %s421, %s422
      %p431 = scmp.eq.s32.totalorder %s40, 0
      %p432 = por %p430, %p431
      %p433 = scmp.ne.s32.totalorder %s421, %s422
      %p434 = scmp.eq.s32.totalorder %s41, 7
      %p435 = por %p433, %p434
      %p437 = scmp.ne.s32.totalorder %s422, %s436
      %p438 = scmp.eq.s32.totalorder %s41, 0
      %p439 = por %p437, %p438
      %s440 = ssub.s32 %s42, %s61
      %s441 = ssub.s32 %s43, %s57
      %s442 = sor.u32 %s440, %s441
      %p443 = scmp.eq.s32.totalorder %s442, 0
      %s445 = sadd.s32 %s444, 1
      %s446 = scalar_select %p443, %s444, %s445
      %p449 = pneg %p443
      %p450 = scmp.eq.s32.totalorder %s35, 7
      %p451 = por %p449, %p450
      %p452 = scmp.ne.s32.totalorder %s444, %s447
      %p453 = scmp.eq.s32.totalorder %s35, 0
      %p454 = por %p452, %p453
      %p455 = scmp.ne.s32.totalorder %s444, %s447
      %p456 = scmp.eq.s32.totalorder %s40, 7
      %p457 = por %p455, %p456
      %p458 = scmp.ne.s32.totalorder %s447, %s448
      %p459 = scmp.eq.s32.totalorder %s40, 0
      %p460 = por %p458, %p459
      %p461 = scmp.ne.s32.totalorder %s447, %s448
      %p462 = scmp.eq.s32.totalorder %s41, 7
      %p463 = por %p461, %p462
      %p465 = scmp.ne.s32.totalorder %s448, %s464
      %p466 = scmp.eq.s32.totalorder %s41, 0
      %p467 = por %p465, %p466
      %p468 = scmp.le.s32.totalorder 1, %s35
      %p469 = scmp.lt.s32.totalorder %s35, 9
      %p470 = pnand %p468, %p469
      %p471 = pneg %p470
      // Predicated region
      $region9: #{tpu_custom_call.1} parent=5 // pred_check
        _
      $region10: #{tpu_custom_call.1} parent=5 // pred_check_branch
        %473 = sbr.rel (%p470) target = $region12
      $region11: #{tpu_custom_call.1} parent=5 // pred_region
        %s474 = ssub.s32 %s35, 1
        // Predicated region
        $region13: #{tpu_custom_call.1} parent=11 // pred_check
          %p475 = pneg %p159
        $region14: #{tpu_custom_call.1} parent=11 // pred_check_branch
          %477 = sbr.rel (%p475) target = $region16
        $region15: #{tpu_custom_call.1} parent=11 // pred_region
          _
        $region16: #{tpu_custom_call.1} parent=11 // pred_fallthru
          _
        // Predicated region
        $region17: #{tpu_custom_call.1} parent=11 // pred_check
          %p478 = pneg %p180
        $region18: #{tpu_custom_call.1} parent=11 // pred_check_branch
          %480 = sbr.rel (%p478) target = $region20
        $region19: #{tpu_custom_call.1} parent=11 // pred_region
          _
        $region20: #{tpu_custom_call.1} parent=11 // pred_fallthru
          _
        // Predicated region
        $region21: #{tpu_custom_call.1} parent=11 // pred_check
          %p481 = pneg %p201
        $region22: #{tpu_custom_call.1} parent=11 // pred_check_branch
          %483 = sbr.rel (%p481) target = $region24
        $region23: #{tpu_custom_call.1} parent=11 // pred_region
          _
        $region24: #{tpu_custom_call.1} parent=11 // pred_fallthru
          _
        // Predicated region
        $region25: #{tpu_custom_call.1} parent=11 // pred_check
          %p484 = pneg %p222
        $region26: #{tpu_custom_call.1} parent=11 // pred_check_branch
          %486 = sbr.rel (%p484) target = $region28
        $region27: #{tpu_custom_call.1} parent=11 // pred_region
          _
        $region28: #{tpu_custom_call.1} parent=11 // pred_fallthru
          _
        // Predicated region
        $region29: #{tpu_custom_call.1} parent=11 // pred_check
          %p487 = pneg %p243
        $region30: #{tpu_custom_call.1} parent=11 // pred_check_branch
          %489 = sbr.rel (%p487) target = $region32
        $region31: #{tpu_custom_call.1} parent=11 // pred_region
          %s491 = ssub.s32 1024, 1024
          %492 = vsyncadd [#allocation13], %s491
          %s493 = sshll.u32 [#allocation12], 4
          %s494 = int_to_ptr.vmem [resolvable:$true] %s493
          %499 = dma.hbm_to_vmem [thread:$0]  %s7, 1024, %s494, [#allocation13], 64, 64, 4
        $region32: #{tpu_custom_call.1} parent=11 // pred_fallthru
          _
        // Predicated region
        $region33: #{tpu_custom_call.1} parent=11 // pred_check
          %p500 = pneg %p264
        $region34: #{tpu_custom_call.1} parent=11 // pred_check_branch
          %502 = sbr.rel (%p500) target = $region36
        $region35: #{tpu_custom_call.1} parent=11 // pred_region
          _
        $region36: #{tpu_custom_call.1} parent=11 // pred_fallthru
          _
        // Predicated region
        $region37: #{tpu_custom_call.1} parent=11 // pred_check
          %p503 = pneg %p285
        $region38: #{tpu_custom_call.1} parent=11 // pred_check_branch
          %505 = sbr.rel (%p503) target = $region40
        $region39: #{tpu_custom_call.1} parent=11 // pred_region
          %s507 = ssub.s32 2048, 2048
          %508 = vsyncadd [#allocation13], %s507
          %s509 = sshll.u32 [#allocation14], 4
          %s510 = int_to_ptr.vmem [resolvable:$true] %s509
          %515 = dma.hbm_to_vmem [thread:$0]  %s9, 2048, %s510, [#allocation13], 128, 128, 8
        $region40: #{tpu_custom_call.1} parent=11 // pred_fallthru
          _
        // Predicated region
        $region41: #{tpu_custom_call.1} parent=11 // pred_check
          %p516 = pneg %p306
        $region42: #{tpu_custom_call.1} parent=11 // pred_check_branch
          %518 = sbr.rel (%p516) target = $region44
        $region43: #{tpu_custom_call.1} parent=11 // pred_region
          _
        $region44: #{tpu_custom_call.1} parent=11 // pred_fallthru
          _
        // Predicated region
        $region45: #{tpu_custom_call.1} parent=11 // pred_check
          %p519 = pneg %p327
        $region46: #{tpu_custom_call.1} parent=11 // pred_check_branch
          %521 = sbr.rel (%p519) target = $region48
        $region47: #{tpu_custom_call.1} parent=11 // pred_region
          %s523 = ssub.s32 1024, 1024
          %524 = vsyncadd [#allocation16], %s523
          %s525 = sshll.u32 [#allocation15], 4
          %s526 = int_to_ptr.vmem [resolvable:$true] %s525
          %531 = dma.hbm_to_vmem [thread:$0]  %s11, 1024, %s526, [#allocation16], 64, 64, 4
        $region48: #{tpu_custom_call.1} parent=11 // pred_fallthru
          _
        // Predicated region
        $region49: #{tpu_custom_call.1} parent=11 // pred_check
          %p532 = pneg %p348
        $region50: #{tpu_custom_call.1} parent=11 // pred_check_branch
          %534 = sbr.rel (%p532) target = $region52
        $region51: #{tpu_custom_call.1} parent=11 // pred_region
          _
        $region52: #{tpu_custom_call.1} parent=11 // pred_fallthru
          _
        // Predicated region
        $region53: #{tpu_custom_call.1} parent=11 // pred_check
          %p535 = pneg %p369
        $region54: #{tpu_custom_call.1} parent=11 // pred_check_branch
          %537 = sbr.rel (%p535) target = $region56
        $region55: #{tpu_custom_call.1} parent=11 // pred_region
          %s539 = ssub.s32 2048, 2048
          %540 = vsyncadd [#allocation16], %s539
          %s541 = sshll.u32 [#allocation17], 4
          %s542 = int_to_ptr.vmem [resolvable:$true] %s541
          %547 = dma.hbm_to_vmem [thread:$0]  %s13, 2048, %s542, [#allocation16], 128, 128, 8
        $region56: #{tpu_custom_call.1} parent=11 // pred_fallthru
          _
        // Predicated region
        $region57: #{tpu_custom_call.1} parent=11 // pred_check
          %p548 = pneg %p390
        $region58: #{tpu_custom_call.1} parent=11 // pred_check_branch
          %550 = sbr.rel (%p548) target = $region60
        $region59: #{tpu_custom_call.1} parent=11 // pred_region
          _
        $region60: #{tpu_custom_call.1} parent=11 // pred_fallthru
          _
        // Predicated region
        $region61: #{tpu_custom_call.1} parent=11 // pred_check
          %p551 = pneg %p411
        $region62: #{tpu_custom_call.1} parent=11 // pred_check_branch
          %553 = sbr.rel (%p551) target = $region64
        $region63: #{tpu_custom_call.1} parent=11 // pred_region
          %s555 = ssub.s32 2048, 2048
          %556 = vsyncadd [#allocation19], %s555
          %s557 = sshll.u32 [#allocation18], 4
          %s558 = int_to_ptr.vmem [resolvable:$true] %s557
          %563 = dma.hbm_to_vmem [thread:$0]  %s15, 2048, %s558, [#allocation19], 64, 64, 4
        $region64: #{tpu_custom_call.1} parent=11 // pred_fallthru
          _
        // Predicated region
        $region65: #{tpu_custom_call.1} parent=11 // pred_check
          %p564 = pneg %p432
        $region66: #{tpu_custom_call.1} parent=11 // pred_check_branch
          %566 = sbr.rel (%p564) target = $region68
        $region67: #{tpu_custom_call.1} parent=11 // pred_region
          _
        $region68: #{tpu_custom_call.1} parent=11 // pred_fallthru
          _
      $region12: #{tpu_custom_call.1} parent=5 // pred_fallthru
        _
      %p567 = scmp.lt.s32.totalorder %s35, 8
      // Predicated region
      $region69: #{tpu_custom_call.1} parent=5 // pred_check
        %p568 = pneg %p567
      $region70: #{tpu_custom_call.1} parent=5 // pred_check_branch
        %570 = sbr.rel (%p568) target = $region72
      $region71: #{tpu_custom_call.1} parent=5 // pred_region
        // Predicated region
        $region73: #{tpu_custom_call.1} parent=71 // pred_check
          %p571 = pneg %p76
        $region74: #{tpu_custom_call.1} parent=71 // pred_check_branch
          %573 = sbr.rel (%p571) target = $region76
        $region75: #{tpu_custom_call.1} parent=71 // pred_region
          %s574 = sand.u32 %s66, 1
          %s575 = scalar_lea.sflag [#allocation7], %s574
          %s576 = sand.u32 %s66, 1
          %s577 = scalar_lea.vmem [#allocation6], %s576
          %s579 = ssub.s32 16, 16
          %580 = vsyncadd %s575, %s579
          %s581 = smul.addr %s42, 2
          %s582 = sadd.s32 %s44, %s581
          %s583 = smul.addr %s582, 16
          %s584 = scalar_lea.hbm %s0, %s583
          %s586 = sshll.u32 %s577, 4
          %s587 = int_to_ptr.vmem [resolvable:$true] %s586
          %589 = dma.hbm_to_vmem [thread:$0]  %s584, 16, %s587, %s575
        $region76: #{tpu_custom_call.1} parent=71 // pred_fallthru
          _
        // Predicated region
        $region77: #{tpu_custom_call.1} parent=71 // pred_check
          %p590 = pneg %p104
        $region78: #{tpu_custom_call.1} parent=71 // pred_check_branch
          %592 = sbr.rel (%p590) target = $region80
        $region79: #{tpu_custom_call.1} parent=71 // pred_region
          %s593 = sand.u32 %s35, 1
          %s594 = scalar_lea.sflag [#allocation10], %s593
          %s595 = sand.u32 %s94, 1
          %s596 = smul.addr %s595, 128
          %s597 = scalar_lea.vmem [#allocation9], %s596
          %s598 = smul.u32 16, %s43
          %s600 = ssub.s32 2048, 2048
          %601 = vsyncadd %s594, %s600
          %s602 = smul.addr %s42, 32
          %s603 = sadd.s32 %s598, %s602
          %s604 = smul.addr %s603, 128
          %s605 = scalar_lea.hbm %s1, %s604
          %s606 = sshll.u32 %s597, 4
          %s607 = int_to_ptr.vmem [resolvable:$true] %s606
          %612 = dma.hbm_to_vmem [thread:$0]  %s605, 2048, %s607, %s594, 128, 128, 8
        $region80: #{tpu_custom_call.1} parent=71 // pred_fallthru
          _
        // Predicated region
        $region81: #{tpu_custom_call.1} parent=71 // pred_check
          %p613 = pneg %p132
        $region82: #{tpu_custom_call.1} parent=71 // pred_check_branch
          %615 = sbr.rel (%p613) target = $region84
        $region83: #{tpu_custom_call.1} parent=71 // pred_region
          %s616 = sand.u32 %s35, 1
          %s617 = scalar_lea.sflag [#allocation10], %s616
          %s618 = sand.u32 %s122, 1
          %s619 = smul.addr %s618, 128
          %s620 = scalar_lea.vmem [#allocation11], %s619
          %s621 = smul.u32 16, %s44
          %s623 = ssub.s32 2048, 2048
          %624 = vsyncadd %s617, %s623
          %s625 = smul.addr %s42, 32
          %s626 = sadd.s32 %s621, %s625
          %s627 = smul.addr %s626, 128
          %s628 = scalar_lea.hbm %s2, %s627
          %s629 = sshll.u32 %s620, 4
          %s630 = int_to_ptr.vmem [resolvable:$true] %s629
          %635 = dma.hbm_to_vmem [thread:$0]  %s628, 2048, %s630, %s617, 128, 128, 8
        $region84: #{tpu_custom_call.1} parent=71 // pred_fallthru
          _
      $region72: #{tpu_custom_call.1} parent=5 // pred_fallthru
        _
      %p636 = scmp.le.s32.totalorder 1, %s35
      %p637 = scmp.lt.s32.totalorder %s35, 9
      %p638 = pnand %p636, %p637
      %p639 = pneg %p638
      // Predicated region
      $region85: #{tpu_custom_call.1} parent=5 // pred_check
        _
      $region86: #{tpu_custom_call.1} parent=5 // pred_check_branch
        %641 = sbr.rel (%p638) target = $region88
      $region87: #{tpu_custom_call.1} parent=5 // pred_region
        %s642 = ssub.s32 %s35, 1
        %s643 = sand.u32 %s69, 1
        %s644 = scalar_lea.sflag [#allocation7], %s643
        %s645 = sand.u32 %s69, 1
        %s646 = scalar_lea.vmem [#allocation6], %s645
        // Predicated region
        $region89: #{tpu_custom_call.1} parent=87 // pred_check
          %p647 = pneg %p82
        $region90: #{tpu_custom_call.1} parent=87 // pred_check_branch
          %649 = sbr.rel (%p647) target = $region92
        $region91: #{tpu_custom_call.1} parent=87 // pred_region
          %650 = dma.done %s644, 16
        $region92: #{tpu_custom_call.1} parent=87 // pred_fallthru
          _
        %s651 = sand.u32 %s40, 1
        %s652 = scalar_lea.sflag [#allocation10], %s651
        %s653 = sand.u32 %s97, 1
        %s654 = smul.addr %s653, 128
        %s655 = scalar_lea.vmem [#allocation9], %s654
        // Predicated region
        $region93: #{tpu_custom_call.1} parent=87 // pred_check
          %p656 = pneg %p110
        $region94: #{tpu_custom_call.1} parent=87 // pred_check_branch
          %658 = sbr.rel (%p656) target = $region96
        $region95: #{tpu_custom_call.1} parent=87 // pred_region
          %659 = dma.done %s652, 2048
        $region96: #{tpu_custom_call.1} parent=87 // pred_fallthru
          _
        %s660 = sand.u32 %s40, 1
        %s661 = scalar_lea.sflag [#allocation10], %s660
        %s662 = sand.u32 %s125, 1
        %s663 = smul.addr %s662, 128
        %s664 = scalar_lea.vmem [#allocation11], %s663
        // Predicated region
        $region97: #{tpu_custom_call.1} parent=87 // pred_check
          %p665 = pneg %p138
        $region98: #{tpu_custom_call.1} parent=87 // pred_check_branch
          %667 = sbr.rel (%p665) target = $region100
        $region99: #{tpu_custom_call.1} parent=87 // pred_region
          %668 = dma.done %s661, 2048
        $region100: #{tpu_custom_call.1} parent=87 // pred_fallthru
          _
        // Predicated region
        $region101: #{tpu_custom_call.1} parent=87 // pred_check
          %p669 = pneg %p243
        $region102: #{tpu_custom_call.1} parent=87 // pred_check_branch
          %671 = sbr.rel (%p669) target = $region104
        $region103: #{tpu_custom_call.1} parent=87 // pred_region
          %672 = dma.done [#allocation13], 1024
        $region104: #{tpu_custom_call.1} parent=87 // pred_fallthru
          _
        // Predicated region
        $region105: #{tpu_custom_call.1} parent=87 // pred_check
          %p673 = pneg %p285
        $region106: #{tpu_custom_call.1} parent=87 // pred_check_branch
          %675 = sbr.rel (%p673) target = $region108
        $region107: #{tpu_custom_call.1} parent=87 // pred_region
          %676 = dma.done [#allocation13], 2048
        $region108: #{tpu_custom_call.1} parent=87 // pred_fallthru
          _
        // Predicated region
        $region109: #{tpu_custom_call.1} parent=87 // pred_check
          %p677 = pneg %p327
        $region110: #{tpu_custom_call.1} parent=87 // pred_check_branch
          %679 = sbr.rel (%p677) target = $region112
        $region111: #{tpu_custom_call.1} parent=87 // pred_region
          %680 = dma.done [#allocation16], 1024
        $region112: #{tpu_custom_call.1} parent=87 // pred_fallthru
          _
        // Predicated region
        $region113: #{tpu_custom_call.1} parent=87 // pred_check
          %p681 = pneg %p369
        $region114: #{tpu_custom_call.1} parent=87 // pred_check_branch
          %683 = sbr.rel (%p681) target = $region116
        $region115: #{tpu_custom_call.1} parent=87 // pred_region
          %684 = dma.done [#allocation16], 2048
        $region116: #{tpu_custom_call.1} parent=87 // pred_fallthru
          _
        // Predicated region
        $region117: #{tpu_custom_call.1} parent=87 // pred_check
          %p685 = pneg %p411
        $region118: #{tpu_custom_call.1} parent=87 // pred_check_branch
          %687 = sbr.rel (%p685) target = $region120
        $region119: #{tpu_custom_call.1} parent=87 // pred_region
          %688 = dma.done [#allocation19], 2048
        $region120: #{tpu_custom_call.1} parent=87 // pred_fallthru
          _
        %s689 = sand.u32 %s69, 1
        %s690 = scalar_lea.sflag [#allocation7], %s689
        %s691 = sand.u32 %s69, 1
        %s692 = scalar_lea.vmem [#allocation6], %s691
        %p693 = pneg %p82
        %p694 = pneg %p79
        %s695 = sand.u32 %s40, 1
        %s696 = scalar_lea.sflag [#allocation10], %s695
        %s697 = sand.u32 %s97, 1
        %s698 = smul.addr %s697, 128
        %s699 = scalar_lea.vmem [#allocation9], %s698
        %p700 = pneg %p110
        %p701 = pneg %p107
        %s702 = sand.u32 %s40, 1
        %s703 = scalar_lea.sflag [#allocation10], %s702
        %s704 = sand.u32 %s125, 1
        %s705 = smul.addr %s704, 128
        %s706 = scalar_lea.vmem [#allocation11], %s705
        %p707 = pneg %p138
        %p708 = pneg %p135
        %p709 = pneg %p159
        %p710 = pneg %p156
        %p711 = pneg %p180
        %p712 = pneg %p177
        %p713 = pneg %p201
        %p714 = pneg %p198
        %p715 = pneg %p222
        %p716 = pneg %p219
        %p717 = pneg %p243
        %p718 = pneg %p240
        %p719 = pneg %p264
        %p720 = pneg %p261
        %p721 = pneg %p285
        %p722 = pneg %p282
        %p723 = pneg %p306
        %p724 = pneg %p303
        %p725 = pneg %p327
        %p726 = pneg %p324
        %p727 = pneg %p348
        %p728 = pneg %p345
        %p729 = pneg %p369
        %p730 = pneg %p366
        %p731 = pneg %p390
        %p732 = pneg %p387
        %p733 = pneg %p411
        %p734 = pneg %p408
        %p735 = pneg %p432
        %p736 = pneg %p429
        %p737 = pneg %p460
        %p738 = pneg %p457
        %s739 = sand.u32 %s447, 1
        %s740 = scalar_lea.sflag [#allocation8], %s739
        %s741 = sand.u32 %s447, 1
        %s742 = smul.addr %s741, 128
        %s743 = scalar_lea.vmem [#allocation20], %s742
        %s744 = smul.u32 16, %s46
        %s745 = smul.u32 16, %s47
        %s746 = smul.u32 16, %s46
        %p748 = scmp.eq.s32.totalorder %s47, 0
        // Predicated region
        $region121: #{tpu_custom_call.1} parent=87 // pred_check
          %p749 = pneg %p748
        $region122: #{tpu_custom_call.1} parent=87 // pred_check_branch
          %751 = sbr.rel (%p749) target = $region124
        $region123: #{tpu_custom_call.1} parent=87 // pred_region
          %v752 = vld [vmem:[%s655] sm:$0xff]
          %v753 = vld [vmem:[%s655 + $0x8] sm:$0xff]
          %v754 = vld [vmem:[%s655 + $0x10] sm:$0xff]
          %v755 = vld [vmem:[%s655 + $0x18] sm:$0xff]
          %v756 = vld [vmem:[%s655 + $0x20] sm:$0xff]
          %v757 = vld [vmem:[%s655 + $0x28] sm:$0xff]
          %v758 = vld [vmem:[%s655 + $0x30] sm:$0xff]
          %v759 = vld [vmem:[%s655 + $0x38] sm:$0xff]
          %v760 = vld [vmem:[%s655 + $0x40] sm:$0xff]
          %v761 = vld [vmem:[%s655 + $0x48] sm:$0xff]
          %v762 = vld [vmem:[%s655 + $0x50] sm:$0xff]
          %v763 = vld [vmem:[%s655 + $0x58] sm:$0xff]
          %v764 = vld [vmem:[%s655 + $0x60] sm:$0xff]
          %v765 = vld [vmem:[%s655 + $0x68] sm:$0xff]
          %v766 = vld [vmem:[%s655 + $0x70] sm:$0xff]
          %v767 = vld [vmem:[%s655 + $0x78] sm:$0xff]
          %v768 = vld [vmem:[%s3] sm:$0x1]
          %v769 = vld [vmem:[%s4] sm:$0x1]
          %770 = vadd.xlane.f32.xlu0 %v752
          %v771 = vpop.xlane.xlu0 %770
          %772 = vadd.xlane.f32.xlu0 %v753
          %v773 = vpop.xlane.xlu0 %772
          %774 = vadd.xlane.f32.xlu0 %v754
          %v775 = vpop.xlane.xlu0 %774
          %776 = vadd.xlane.f32.xlu0 %v755
          %v777 = vpop.xlane.xlu0 %776
          %778 = vadd.xlane.f32.xlu0 %v756
          %v779 = vpop.xlane.xlu0 %778
          %780 = vadd.xlane.f32.xlu0 %v757
          %v781 = vpop.xlane.xlu0 %780
          %782 = vadd.xlane.f32.xlu0 %v758
          %v783 = vpop.xlane.xlu0 %782
          %784 = vadd.xlane.f32.xlu0 %v759
          %v785 = vpop.xlane.xlu0 %784
          %786 = vadd.xlane.f32.xlu0 %v760
          %v787 = vpop.xlane.xlu0 %786
          %788 = vadd.xlane.f32.xlu0 %v761
          %v789 = vpop.xlane.xlu0 %788
          %790 = vadd.xlane.f32.xlu0 %v762
          %v791 = vpop.xlane.xlu0 %790
          %792 = vadd.xlane.f32.xlu0 %v763
          %v793 = vpop.xlane.xlu0 %792
          %794 = vadd.xlane.f32.xlu0 %v764
          %v795 = vpop.xlane.xlu0 %794
          %796 = vadd.xlane.f32.xlu0 %v765
          %v797 = vpop.xlane.xlu0 %796
          %798 = vadd.xlane.f32.xlu0 %v766
          %v799 = vpop.xlane.xlu0 %798
          %800 = vadd.xlane.f32.xlu0 %v767
          %v801 = vpop.xlane.xlu0 %800
          %v802 = vrcp.pop 128.0
          %v803 = vmul.f32 %v771, %v802
          %v804 = vmul.f32 %v773, %v802
          %v805 = vmul.f32 %v775, %v802
          %v806 = vmul.f32 %v777, %v802
          %v807 = vmul.f32 %v779, %v802
          %v808 = vmul.f32 %v781, %v802
          %v809 = vmul.f32 %v783, %v802
          %v810 = vmul.f32 %v785, %v802
          %v811 = vmul.f32 %v787, %v802
          %v812 = vmul.f32 %v789, %v802
          %v813 = vmul.f32 %v791, %v802
          %v814 = vmul.f32 %v793, %v802
          %v815 = vmul.f32 %v795, %v802
          %v816 = vmul.f32 %v797, %v802
          %v817 = vmul.f32 %v799, %v802
          %v818 = vmul.f32 %v801, %v802
          %v819 = vsub.f32 %v752, %v803
          %v820 = vsub.f32 %v753, %v804
          %v821 = vsub.f32 %v754, %v805
          %v822 = vsub.f32 %v755, %v806
          %v823 = vsub.f32 %v756, %v807
          %v824 = vsub.f32 %v757, %v808
          %v825 = vsub.f32 %v758, %v809
          %v826 = vsub.f32 %v759, %v810
          %v827 = vsub.f32 %v760, %v811
          %v828 = vsub.f32 %v761, %v812
          %v829 = vsub.f32 %v762, %v813
          %v830 = vsub.f32 %v763, %v814
          %v831 = vsub.f32 %v764, %v815
          %v832 = vsub.f32 %v765, %v816
          %v833 = vsub.f32 %v766, %v817
          %v834 = vsub.f32 %v767, %v818
          %v835 = vmul.f32 %v819, %v819
          %v836 = vmul.f32 %v820, %v820
          %v837 = vmul.f32 %v821, %v821
          %v838 = vmul.f32 %v822, %v822
          %v839 = vmul.f32 %v823, %v823
          %v840 = vmul.f32 %v824, %v824
          %v841 = vmul.f32 %v825, %v825
          %v842 = vmul.f32 %v826, %v826
          %v843 = vmul.f32 %v827, %v827
          %v844 = vmul.f32 %v828, %v828
          %v845 = vmul.f32 %v829, %v829
          %v846 = vmul.f32 %v830, %v830
          %v847 = vmul.f32 %v831, %v831
          %v848 = vmul.f32 %v832, %v832
          %v849 = vmul.f32 %v833, %v833
          %v850 = vmul.f32 %v834, %v834
          %851 = vadd.xlane.f32.xlu0 %v835
          %v852 = vpop.xlane.xlu0 %851
          %853 = vadd.xlane.f32.xlu0 %v836
          %v854 = vpop.xlane.xlu0 %853
          %855 = vadd.xlane.f32.xlu0 %v837
          %v856 = vpop.xlane.xlu0 %855
          %857 = vadd.xlane.f32.xlu0 %v838
          %v858 = vpop.xlane.xlu0 %857
          %859 = vadd.xlane.f32.xlu0 %v839
          %v860 = vpop.xlane.xlu0 %859
          %861 = vadd.xlane.f32.xlu0 %v840
          %v862 = vpop.xlane.xlu0 %861
          %863 = vadd.xlane.f32.xlu0 %v841
          %v864 = vpop.xlane.xlu0 %863
          %865 = vadd.xlane.f32.xlu0 %v842
          %v866 = vpop.xlane.xlu0 %865
          %867 = vadd.xlane.f32.xlu0 %v843
          %v868 = vpop.xlane.xlu0 %867
          %869 = vadd.xlane.f32.xlu0 %v844
          %v870 = vpop.xlane.xlu0 %869
          %871 = vadd.xlane.f32.xlu0 %v845
          %v872 = vpop.xlane.xlu0 %871
          %873 = vadd.xlane.f32.xlu0 %v846
          %v874 = vpop.xlane.xlu0 %873
          %875 = vadd.xlane.f32.xlu0 %v847
          %v876 = vpop.xlane.xlu0 %875
          %877 = vadd.xlane.f32.xlu0 %v848
          %v878 = vpop.xlane.xlu0 %877
          %879 = vadd.xlane.f32.xlu0 %v849
          %v880 = vpop.xlane.xlu0 %879
          %881 = vadd.xlane.f32.xlu0 %v850
          %v882 = vpop.xlane.xlu0 %881
          %v883 = vmul.f32 %v852, %v802
          %v884 = vmul.f32 %v854, %v802
          %v885 = vmul.f32 %v856, %v802
          %v886 = vmul.f32 %v858, %v802
          %v887 = vmul.f32 %v860, %v802
          %v888 = vmul.f32 %v862, %v802
          %v889 = vmul.f32 %v864, %v802
          %v890 = vmul.f32 %v866, %v802
          %v891 = vmul.f32 %v868, %v802
          %v892 = vmul.f32 %v870, %v802
          %v893 = vmul.f32 %v872, %v802
          %v894 = vmul.f32 %v874, %v802
          %v895 = vmul.f32 %v876, %v802
          %v896 = vmul.f32 %v878, %v802
          %v897 = vmul.f32 %v880, %v802
          %v898 = vmul.f32 %v882, %v802
          %v899 = vadd.f32 %v883, 1e-12
          %v900 = vadd.f32 %v884, 1e-12
          %v901 = vadd.f32 %v885, 1e-12
          %v902 = vadd.f32 %v886, 1e-12
          %v903 = vadd.f32 %v887, 1e-12
          %v904 = vadd.f32 %v888, 1e-12
          %v905 = vadd.f32 %v889, 1e-12
          %v906 = vadd.f32 %v890, 1e-12
          %v907 = vadd.f32 %v891, 1e-12
          %v908 = vadd.f32 %v892, 1e-12
          %v909 = vadd.f32 %v893, 1e-12
          %v910 = vadd.f32 %v894, 1e-12
          %v911 = vadd.f32 %v895, 1e-12
          %v912 = vadd.f32 %v896, 1e-12
          %v913 = vadd.f32 %v897, 1e-12
          %v914 = vadd.f32 %v898, 1e-12
          %v915 = vrsqrt.pop %v899
          %v916 = vrsqrt.pop %v900
          %v917 = vrsqrt.pop %v901
          %v918 = vrsqrt.pop %v902
          %v919 = vrsqrt.pop %v903
          %v920 = vrsqrt.pop %v904
          %v921 = vrsqrt.pop %v905
          %v922 = vrsqrt.pop %v906
          %v923 = vrsqrt.pop %v907
          %v924 = vrsqrt.pop %v908
          %v925 = vrsqrt.pop %v909
          %v926 = vrsqrt.pop %v910
          %v927 = vrsqrt.pop %v911
          %v928 = vrsqrt.pop %v912
          %v929 = vrsqrt.pop %v913
          %v930 = vrsqrt.pop %v914
          %v931 = vmul.f32 %v819, %v915
          %v932 = vmul.f32 %v820, %v916
          %v933 = vmul.f32 %v821, %v917
          %v934 = vmul.f32 %v822, %v918
          %v935 = vmul.f32 %v823, %v919
          %v936 = vmul.f32 %v824, %v920
          %v937 = vmul.f32 %v825, %v921
          %v938 = vmul.f32 %v826, %v922
          %v939 = vmul.f32 %v827, %v923
          %v940 = vmul.f32 %v828, %v924
          %v941 = vmul.f32 %v829, %v925
          %v942 = vmul.f32 %v830, %v926
          %v943 = vmul.f32 %v831, %v927
          %v944 = vmul.f32 %v832, %v928
          %v945 = vmul.f32 %v833, %v929
          %v946 = vmul.f32 %v834, %v930
          %v948 = vlaneseq
          %v949 = vshrl.u32 %v948, 7
          %v950 = vsub.s32 0, %v949
          %v951 = vrot.slane %v768, %v950
          %v953 = vmul.f32 %v931, %v951
          %v954 = vmul.f32 %v932, %v951
          %v955 = vmul.f32 %v933, %v951
          %v956 = vmul.f32 %v934, %v951
          %v957 = vmul.f32 %v935, %v951
          %v958 = vmul.f32 %v936, %v951
          %v959 = vmul.f32 %v937, %v951
          %v960 = vmul.f32 %v938, %v951
          %v961 = vmul.f32 %v939, %v951
          %v962 = vmul.f32 %v940, %v951
          %v963 = vmul.f32 %v941, %v951
          %v964 = vmul.f32 %v942, %v951
          %v965 = vmul.f32 %v943, %v951
          %v966 = vmul.f32 %v944, %v951
          %v967 = vmul.f32 %v945, %v951
          %v968 = vmul.f32 %v946, %v951
          %v970 = vlaneseq
          %v971 = vshrl.u32 %v970, 7
          %v972 = vsub.s32 0, %v971
          %v973 = vrot.slane %v769, %v972
          %v975 = vadd.f32 %v953, %v973
          %v976 = vadd.f32 %v954, %v973
          %v977 = vadd.f32 %v955, %v973
          %v978 = vadd.f32 %v956, %v973
          %v979 = vadd.f32 %v957, %v973
          %v980 = vadd.f32 %v958, %v973
          %v981 = vadd.f32 %v959, %v973
          %v982 = vadd.f32 %v960, %v973
          %v983 = vadd.f32 %v961, %v973
          %v984 = vadd.f32 %v962, %v973
          %v985 = vadd.f32 %v963, %v973
          %v986 = vadd.f32 %v964, %v973
          %v987 = vadd.f32 %v965, %v973
          %v988 = vadd.f32 %v966, %v973
          %v989 = vadd.f32 %v967, %v973
          %v990 = vadd.f32 %v968, %v973
          %v991 = vpack.c.bf16 %v976, %v975
          %v992 = vpack.c.bf16 %v978, %v977
          %v993 = vpack.c.bf16 %v980, %v979
          %v994 = vpack.c.bf16 %v982, %v981
          %v995 = vpack.c.bf16 %v984, %v983
          %v996 = vpack.c.bf16 %v986, %v985
          %v997 = vpack.c.bf16 %v988, %v987
          %v998 = vpack.c.bf16 %v990, %v989
          %v999 = vld [vmem:[#allocation12] sm:$0xf]
          %v1000 = vld [vmem:[#allocation12 + $0x4] sm:$0xf]
          %v1001 = vld [vmem:[#allocation12 + $0x8] sm:$0xf]
          %v1002 = vld [vmem:[#allocation12 + $0xc] sm:$0xf]
          %v1003 = vld [vmem:[#allocation12 + $0x10] sm:$0xf]
          %v1004 = vld [vmem:[#allocation12 + $0x14] sm:$0xf]
          %v1005 = vld [vmem:[#allocation12 + $0x18] sm:$0xf]
          %v1006 = vld [vmem:[#allocation12 + $0x1c] sm:$0xf]
          %v1007 = vld [vmem:[#allocation12 + $0x20] sm:$0xf]
          %v1008 = vld [vmem:[#allocation12 + $0x24] sm:$0xf]
          %v1009 = vld [vmem:[#allocation12 + $0x28] sm:$0xf]
          %v1010 = vld [vmem:[#allocation12 + $0x2c] sm:$0xf]
          %v1011 = vld [vmem:[#allocation12 + $0x30] sm:$0xf]
          %v1012 = vld [vmem:[#allocation12 + $0x34] sm:$0xf]
          %v1013 = vld [vmem:[#allocation12 + $0x38] sm:$0xf]
          %v1014 = vld [vmem:[#allocation12 + $0x3c] sm:$0xf]
          %v1015 = vld [vmem:[%s8] sm:$0x1]
          %v1017 = vlaneseq
          %v1018 = vshrl.u32 %v1017, 7
          %v1019 = vsub.s32 0, %v1018
          %v1020 = vrot.slane %v1015, %v1019
          %v1038 = vunpack.c.l.b16 %v999
          %v1039 = vunpack.c.l.b16 %v1000
          %v1040 = vunpack.c.l.b16 %v1001
          %v1041 = vunpack.c.l.b16 %v1002
          %v1042 = vunpack.c.l.b16 %v1003
          %v1043 = vunpack.c.l.b16 %v1004
          %v1044 = vunpack.c.l.b16 %v1005
          %v1045 = vunpack.c.l.b16 %v1006
          %v1046 = vunpack.c.l.b16 %v1007
          %v1047 = vunpack.c.l.b16 %v1008
          %v1048 = vunpack.c.l.b16 %v1009
          %v1049 = vunpack.c.l.b16 %v1010
          %v1050 = vunpack.c.l.b16 %v1011
          %v1051 = vunpack.c.l.b16 %v1012
          %v1052 = vunpack.c.l.b16 %v1013
          %v1053 = vunpack.c.l.b16 %v1014
          %v1054 = vpack.c.b16 %v1039, %v1038
          %v1055 = vpack.c.b16 %v1041, %v1040
          %v1056 = vpack.c.b16 %v1043, %v1042
          %v1057 = vpack.c.b16 %v1045, %v1044
          %v1058 = vpack.c.b16 %v1047, %v1046
          %v1059 = vpack.c.b16 %v1049, %v1048
          %v1060 = vpack.c.b16 %v1051, %v1050
          %v1061 = vpack.c.b16 %v1053, %v1052
          %1070 = vmatprep.subr.bf16.mxu0 0
          %1071 = vmatpush1.bf16.msra.mxu0 %v1054
          %1072 = vmatprep.subr.bf16.mxu0 0
          %1073 = vmatpush1.bf16.msra.mxu0 %v1055
          %1074 = vmatprep.subr.bf16.mxu0 0
          %1075 = vmatpush1.bf16.msra.mxu0 %v1056
          %1076 = vmatprep.subr.bf16.mxu0 0
          %1077 = vmatpush1.bf16.msra.mxu0 %v1057
          %1078 = vmatprep.subr.bf16.mxu0 0
          %1079 = vmatpush1.bf16.msra.mxu0 %v1058
          %1080 = vmatprep.subr.bf16.mxu0 0
          %1081 = vmatpush1.bf16.msra.mxu0 %v1059
          %1082 = vmatprep.subr.bf16.mxu0 0
          %1083 = vmatpush1.bf16.msra.mxu0 %v1060
          %1084 = vmatprep.subr.bf16.mxu0 0
          %1085 = vmatpush1.bf16.msra.mxu0 %v1061
          %1086 = vmatprep.subr.bf16.mxu0 0
          %1087 = vmatpush1.bf16.msra.mxu0 0
          %1088 = vmatprep.subr.bf16.mxu0 0
          %1089 = vmatpush1.bf16.msra.mxu0 0
          %1090 = vmatprep.subr.bf16.mxu0 0
          %1091 = vmatpush1.bf16.msra.mxu0 0
          %1092 = vmatprep.subr.bf16.mxu0 0
          %1093 = vmatpush1.bf16.msra.mxu0 0
          %1094 = vmatprep.subr.bf16.mxu0 0
          %1095 = vmatpush1.bf16.msra.mxu0 0
          %1096 = vmatprep.subr.bf16.mxu0 0
          %1097 = vmatpush1.bf16.msra.mxu0 0
          %1098 = vmatprep.subr.bf16.mxu0 0
          %1099 = vmatpush1.bf16.msra.mxu0 0
          %1100 = vmatprep.subr.bf16.mxu0 0
          %1101 = vmatpush1.bf16.msra.mxu0 0
          %1102 = vmatprep.mubr.bf16.mxu0 0
          %1103 = vmatmul.mubr.bf16.gmra.mrb[0].mxu0 %v991
          %v1104 = vpop.f32.mrb[0].mxu0
          %v1105 = vadd.f32 %v1020, %v1104
          %v1106 = vpop.f32.mrb[0].mxu0
          %v1107 = vpop.f32.mrb[0].mxu0
          %v1108 = vadd.f32 %v1020, %v1107
          %v1109 = vpop.f32.mrb[0].mxu0
          %1110 = vmatprep.mubr.bf16.mxu0 0
          %1111 = vmatmul.mubr.bf16.gmra.mrb[0].mxu0 %v992
          %v1112 = vpop.f32.mrb[0].mxu0
          %v1113 = vadd.f32 %v1020, %v1112
          %v1114 = vpop.f32.mrb[0].mxu0
          %v1115 = vpop.f32.mrb[0].mxu0
          %v1116 = vadd.f32 %v1020, %v1115
          %v1117 = vpop.f32.mrb[0].mxu0
          %1118 = vmatprep.mubr.bf16.mxu0 0
          %1119 = vmatmul.mubr.bf16.gmra.mrb[0].mxu0 %v993
          %v1120 = vpop.f32.mrb[0].mxu0
          %v1121 = vadd.f32 %v1020, %v1120
          %v1122 = vpop.f32.mrb[0].mxu0
          %v1123 = vpop.f32.mrb[0].mxu0
          %v1124 = vadd.f32 %v1020, %v1123
          %v1125 = vpop.f32.mrb[0].mxu0
          %1126 = vmatprep.mubr.bf16.mxu0 0
          %1127 = vmatmul.mubr.bf16.gmra.mrb[0].mxu0 %v994
          %v1128 = vpop.f32.mrb[0].mxu0
          %v1129 = vadd.f32 %v1020, %v1128
          %v1130 = vpop.f32.mrb[0].mxu0
          %v1131 = vpop.f32.mrb[0].mxu0
          %v1132 = vadd.f32 %v1020, %v1131
          %v1133 = vpop.f32.mrb[0].mxu0
          %1134 = vmatprep.mubr.bf16.mxu0 0
          %1135 = vmatmul.mubr.bf16.gmra.mrb[0].mxu0 %v995
          %v1136 = vpop.f32.mrb[0].mxu0
          %v1137 = vadd.f32 %v1020, %v1136
          %v1138 = vpop.f32.mrb[0].mxu0
          %v1139 = vpop.f32.mrb[0].mxu0
          %v1140 = vadd.f32 %v1020, %v1139
          %v1141 = vpop.f32.mrb[0].mxu0
          %1142 = vmatprep.mubr.bf16.mxu0 0
          %1143 = vmatmul.mubr.bf16.gmra.mrb[0].mxu0 %v996
          %v1144 = vpop.f32.mrb[0].mxu0
          %v1145 = vadd.f32 %v1020, %v1144
          %v1146 = vpop.f32.mrb[0].mxu0
          %v1147 = vpop.f32.mrb[0].mxu0
          %v1148 = vadd.f32 %v1020, %v1147
          %v1149 = vpop.f32.mrb[0].mxu0
          %1150 = vmatprep.mubr.bf16.mxu0 0
          %1151 = vmatmul.mubr.bf16.gmra.mrb[0].mxu0 %v997
          %v1152 = vpop.f32.mrb[0].mxu0
          %v1153 = vadd.f32 %v1020, %v1152
          %v1154 = vpop.f32.mrb[0].mxu0
          %v1155 = vpop.f32.mrb[0].mxu0
          %v1156 = vadd.f32 %v1020, %v1155
          %v1157 = vpop.f32.mrb[0].mxu0
          %1158 = vmatprep.mubr.bf16.mxu0 0
          %1159 = vmatmul.mubr.bf16.gmra.mrb[0].mxu0 %v998
          %v1160 = vpop.f32.mrb[0].mxu0
          %v1161 = vadd.f32 %v1020, %v1160
          %v1162 = vpop.f32.mrb[0].mxu0
          %v1163 = vpop.f32.mrb[0].mxu0
          %v1164 = vadd.f32 %v1020, %v1163
          %v1165 = vpop.f32.mrb[0].mxu0
          %1166 = vdwg.mxu0
          %v1167 = vmul.f32 %v1105, 0.17677669
          %v1168 = vmul.f32 %v1108, 0.17677669
          %v1169 = vmul.f32 %v1113, 0.17677669
          %v1170 = vmul.f32 %v1116, 0.17677669
          %v1171 = vmul.f32 %v1121, 0.17677669
          %v1172 = vmul.f32 %v1124, 0.17677669
          %v1173 = vmul.f32 %v1129, 0.17677669
          %v1174 = vmul.f32 %v1132, 0.17677669
          %v1175 = vmul.f32 %v1137, 0.17677669
          %v1176 = vmul.f32 %v1140, 0.17677669
          %v1177 = vmul.f32 %v1145, 0.17677669
          %v1178 = vmul.f32 %v1148, 0.17677669
          %v1179 = vmul.f32 %v1153, 0.17677669
          %v1180 = vmul.f32 %v1156, 0.17677669
          %v1181 = vmul.f32 %v1161, 0.17677669
          %v1182 = vmul.f32 %v1164, 0.17677669
          %v1183 = vpack.c.bf16 %v1168, %v1167
          %v1184 = vpack.c.bf16 %v1170, %v1169
          %v1185 = vpack.c.bf16 %v1172, %v1171
          %v1186 = vpack.c.bf16 %v1174, %v1173
          %v1187 = vpack.c.bf16 %v1176, %v1175
          %v1188 = vpack.c.bf16 %v1178, %v1177
          %v1189 = vpack.c.bf16 %v1180, %v1179
          %v1190 = vpack.c.bf16 %v1182, %v1181
          %vm1191 = vcmask 261120
          %1192 = vst.msk [vmem:[#allocation2] sm:$0xff] %vm1191, %v1183
          %1193 = vst.msk [vmem:[#allocation2 + $0x8] sm:$0xff] %vm1191, %v1184
          %1194 = vst.msk [vmem:[#allocation2 + $0x10] sm:$0xff] %vm1191, %v1185
          %1195 = vst.msk [vmem:[#allocation2 + $0x18] sm:$0xff] %vm1191, %v1186
          %1196 = vst.msk [vmem:[#allocation2 + $0x20] sm:$0xff] %vm1191, %v1187
          %1197 = vst.msk [vmem:[#allocation2 + $0x28] sm:$0xff] %vm1191, %v1188
          %1198 = vst.msk [vmem:[#allocation2 + $0x30] sm:$0xff] %vm1191, %v1189
          %1199 = vst.msk [vmem:[#allocation2 + $0x38] sm:$0xff] %vm1191, %v1190
          %1208 = vrot.lane.b32.xlu0 %v1183, 96
          %v1209 = vpop.permute.xlu0 %1208
          %1210 = vrot.lane.b32.xlu0 %v1184, 96
          %v1211 = vpop.permute.xlu0 %1210
          %1212 = vrot.lane.b32.xlu0 %v1185, 96
          %v1213 = vpop.permute.xlu0 %1212
          %1214 = vrot.lane.b32.xlu0 %v1186, 96
          %v1215 = vpop.permute.xlu0 %1214
          %1216 = vrot.lane.b32.xlu0 %v1187, 96
          %v1217 = vpop.permute.xlu0 %1216
          %1218 = vrot.lane.b32.xlu0 %v1188, 96
          %v1219 = vpop.permute.xlu0 %1218
          %1220 = vrot.lane.b32.xlu0 %v1189, 96
          %v1221 = vpop.permute.xlu0 %1220
          %1222 = vrot.lane.b32.xlu0 %v1190, 96
          %v1223 = vpop.permute.xlu0 %1222
          %s1232 = scalar_lea.vmem [#allocation2], 64
          %1233 = vst.msk [vmem:[%s1232] sm:$0xff] %vm1191, %v1209
          %1234 = vst.msk [vmem:[%s1232 + $0x8] sm:$0xff] %vm1191, %v1211
          %1235 = vst.msk [vmem:[%s1232 + $0x10] sm:$0xff] %vm1191, %v1213
          %1236 = vst.msk [vmem:[%s1232 + $0x18] sm:$0xff] %vm1191, %v1215
          %1237 = vst.msk [vmem:[%s1232 + $0x20] sm:$0xff] %vm1191, %v1217
          %1238 = vst.msk [vmem:[%s1232 + $0x28] sm:$0xff] %vm1191, %v1219
          %1239 = vst.msk [vmem:[%s1232 + $0x30] sm:$0xff] %vm1191, %v1221
          %1240 = vst.msk [vmem:[%s1232 + $0x38] sm:$0xff] %vm1191, %v1223
          %1241 = vrot.lane.b32.xlu0 %v1183, 64
          %v1242 = vpop.permute.xlu0 %1241
          %1243 = vrot.lane.b32.xlu0 %v1184, 64
          %v1244 = vpop.permute.xlu0 %1243
          %1245 = vrot.lane.b32.xlu0 %v1185, 64
          %v1246 = vpop.permute.xlu0 %1245
          %1247 = vrot.lane.b32.xlu0 %v1186, 64
          %v1248 = vpop.permute.xlu0 %1247
          %1249 = vrot.lane.b32.xlu0 %v1187, 64
          %v1250 = vpop.permute.xlu0 %1249
          %1251 = vrot.lane.b32.xlu0 %v1188, 64
          %v1252 = vpop.permute.xlu0 %1251
          %1253 = vrot.lane.b32.xlu0 %v1189, 64
          %v1254 = vpop.permute.xlu0 %1253
          %1255 = vrot.lane.b32.xlu0 %v1190, 64
          %v1256 = vpop.permute.xlu0 %1255
          %s1265 = scalar_lea.vmem [#allocation2], 128
          %1266 = vst.msk [vmem:[%s1265] sm:$0xff] %vm1191, %v1242
          %1267 = vst.msk [vmem:[%s1265 + $0x8] sm:$0xff] %vm1191, %v1244
          %1268 = vst.msk [vmem:[%s1265 + $0x10] sm:$0xff] %vm1191, %v1246
          %1269 = vst.msk [vmem:[%s1265 + $0x18] sm:$0xff] %vm1191, %v1248
          %1270 = vst.msk [vmem:[%s1265 + $0x20] sm:$0xff] %vm1191, %v1250
          %1271 = vst.msk [vmem:[%s1265 + $0x28] sm:$0xff] %vm1191, %v1252
          %1272 = vst.msk [vmem:[%s1265 + $0x30] sm:$0xff] %vm1191, %v1254
          %1273 = vst.msk [vmem:[%s1265 + $0x38] sm:$0xff] %vm1191, %v1256
          %1274 = vrot.lane.b32.xlu0 %v1183, 32
          %v1275 = vpop.permute.xlu0 %1274
          %1276 = vrot.lane.b32.xlu0 %v1184, 32
          %v1277 = vpop.permute.xlu0 %1276
          %1278 = vrot.lane.b32.xlu0 %v1185, 32
          %v1279 = vpop.permute.xlu0 %1278
          %1280 = vrot.lane.b32.xlu0 %v1186, 32
          %v1281 = vpop.permute.xlu0 %1280
          %1282 = vrot.lane.b32.xlu0 %v1187, 32
          %v1283 = vpop.permute.xlu0 %1282
          %1284 = vrot.lane.b32.xlu0 %v1188, 32
          %v1285 = vpop.permute.xlu0 %1284
          %1286 = vrot.lane.b32.xlu0 %v1189, 32
          %v1287 = vpop.permute.xlu0 %1286
          %1288 = vrot.lane.b32.xlu0 %v1190, 32
          %v1289 = vpop.permute.xlu0 %1288
          %s1298 = scalar_lea.vmem [#allocation2], 192
          %1299 = vst.msk [vmem:[%s1298] sm:$0xff] %vm1191, %v1275
          %1300 = vst.msk [vmem:[%s1298 + $0x8] sm:$0xff] %vm1191, %v1277
          %1301 = vst.msk [vmem:[%s1298 + $0x10] sm:$0xff] %vm1191, %v1279
          %1302 = vst.msk [vmem:[%s1298 + $0x18] sm:$0xff] %vm1191, %v1281
          %1303 = vst.msk [vmem:[%s1298 + $0x20] sm:$0xff] %vm1191, %v1283
          %1304 = vst.msk [vmem:[%s1298 + $0x28] sm:$0xff] %vm1191, %v1285
          %1305 = vst.msk [vmem:[%s1298 + $0x30] sm:$0xff] %vm1191, %v1287
          %1306 = vst.msk [vmem:[%s1298 + $0x38] sm:$0xff] %vm1191, %v1289
          %vm1307 = vcmask 7168
          %1308 = vst.msk [vmem:[#allocation3] sm:$0xff] %vm1307, -1e+30
          %1309 = vst.msk [vmem:[#allocation3 + $0x8] sm:$0xff] %vm1307, -1e+30
          %1310 = vst.msk [vmem:[#allocation3 + $0x10] sm:$0xff] %vm1307, -1e+30
          %1311 = vst.msk [vmem:[#allocation3 + $0x18] sm:$0xff] %vm1307, -1e+30
          %1312 = vst.msk [vmem:[#allocation3 + $0x20] sm:$0xff] %vm1307, -1e+30
          %1313 = vst.msk [vmem:[#allocation3 + $0x28] sm:$0xff] %vm1307, -1e+30
          %1314 = vst.msk [vmem:[#allocation3 + $0x30] sm:$0xff] %vm1307, -1e+30
          %1315 = vst.msk [vmem:[#allocation3 + $0x38] sm:$0xff] %vm1307, -1e+30
          %1316 = vst.msk [vmem:[#allocation3 + $0x40] sm:$0xff] %vm1307, -1e+30
          %1317 = vst.msk [vmem:[#allocation3 + $0x48] sm:$0xff] %vm1307, -1e+30
          %1318 = vst.msk [vmem:[#allocation3 + $0x50] sm:$0xff] %vm1307, -1e+30
          %1319 = vst.msk [vmem:[#allocation3 + $0x58] sm:$0xff] %vm1307, -1e+30
          %1320 = vst.msk [vmem:[#allocation3 + $0x60] sm:$0xff] %vm1307, -1e+30
          %1321 = vst.msk [vmem:[#allocation3 + $0x68] sm:$0xff] %vm1307, -1e+30
          %1322 = vst.msk [vmem:[#allocation3 + $0x70] sm:$0xff] %vm1307, -1e+30
          %1323 = vst.msk [vmem:[#allocation3 + $0x78] sm:$0xff] %vm1307, -1e+30
          %1324 = vst.msk [vmem:[#allocation3 + $0x80] sm:$0xff] %vm1307, -1e+30
          %1325 = vst.msk [vmem:[#allocation3 + $0x88] sm:$0xff] %vm1307, -1e+30
          %1326 = vst.msk [vmem:[#allocation3 + $0x90] sm:$0xff] %vm1307, -1e+30
          %1327 = vst.msk [vmem:[#allocation3 + $0x98] sm:$0xff] %vm1307, -1e+30
          %1328 = vst.msk [vmem:[#allocation3 + $0xa0] sm:$0xff] %vm1307, -1e+30
          %1329 = vst.msk [vmem:[#allocation3 + $0xa8] sm:$0xff] %vm1307, -1e+30
          %1330 = vst.msk [vmem:[#allocation3 + $0xb0] sm:$0xff] %vm1307, -1e+30
          %1331 = vst.msk [vmem:[#allocation3 + $0xb8] sm:$0xff] %vm1307, -1e+30
          %1332 = vst.msk [vmem:[#allocation3 + $0xc0] sm:$0xff] %vm1307, -1e+30
          %1333 = vst.msk [vmem:[#allocation3 + $0xc8] sm:$0xff] %vm1307, -1e+30
          %1334 = vst.msk [vmem:[#allocation3 + $0xd0] sm:$0xff] %vm1307, -1e+30
          %1335 = vst.msk [vmem:[#allocation3 + $0xd8] sm:$0xff] %vm1307, -1e+30
          %1336 = vst.msk [vmem:[#allocation3 + $0xe0] sm:$0xff] %vm1307, -1e+30
          %1337 = vst.msk [vmem:[#allocation3 + $0xe8] sm:$0xff] %vm1307, -1e+30
          %1338 = vst.msk [vmem:[#allocation3 + $0xf0] sm:$0xff] %vm1307, -1e+30
          %1339 = vst.msk [vmem:[#allocation3 + $0xf8] sm:$0xff] %vm1307, -1e+30
          %1340 = vst.msk [vmem:[#allocation3 + $0x100] sm:$0xff] %vm1307, -1e+30
          %1341 = vst.msk [vmem:[#allocation3 + $0x108] sm:$0xff] %vm1307, -1e+30
          %1342 = vst.msk [vmem:[#allocation3 + $0x110] sm:$0xff] %vm1307, -1e+30
          %1343 = vst.msk [vmem:[#allocation3 + $0x118] sm:$0xff] %vm1307, -1e+30
          %1344 = vst.msk [vmem:[#allocation3 + $0x120] sm:$0xff] %vm1307, -1e+30
          %1345 = vst.msk [vmem:[#allocation3 + $0x128] sm:$0xff] %vm1307, -1e+30
          %1346 = vst.msk [vmem:[#allocation3 + $0x130] sm:$0xff] %vm1307, -1e+30
          %1347 = vst.msk [vmem:[#allocation3 + $0x138] sm:$0xff] %vm1307, -1e+30
          %1348 = vst.msk [vmem:[#allocation3 + $0x140] sm:$0xff] %vm1307, -1e+30
          %1349 = vst.msk [vmem:[#allocation3 + $0x148] sm:$0xff] %vm1307, -1e+30
          %1350 = vst.msk [vmem:[#allocation3 + $0x150] sm:$0xff] %vm1307, -1e+30
          %1351 = vst.msk [vmem:[#allocation3 + $0x158] sm:$0xff] %vm1307, -1e+30
          %1352 = vst.msk [vmem:[#allocation3 + $0x160] sm:$0xff] %vm1307, -1e+30
          %1353 = vst.msk [vmem:[#allocation3 + $0x168] sm:$0xff] %vm1307, -1e+30
          %1354 = vst.msk [vmem:[#allocation3 + $0x170] sm:$0xff] %vm1307, -1e+30
          %1355 = vst.msk [vmem:[#allocation3 + $0x178] sm:$0xff] %vm1307, -1e+30
          %1356 = vst.msk [vmem:[#allocation3 + $0x180] sm:$0xff] %vm1307, -1e+30
          %1357 = vst.msk [vmem:[#allocation3 + $0x188] sm:$0xff] %vm1307, -1e+30
          %1358 = vst.msk [vmem:[#allocation3 + $0x190] sm:$0xff] %vm1307, -1e+30
          %1359 = vst.msk [vmem:[#allocation3 + $0x198] sm:$0xff] %vm1307, -1e+30
          %1360 = vst.msk [vmem:[#allocation3 + $0x1a0] sm:$0xff] %vm1307, -1e+30
          %1361 = vst.msk [vmem:[#allocation3 + $0x1a8] sm:$0xff] %vm1307, -1e+30
          %1362 = vst.msk [vmem:[#allocation3 + $0x1b0] sm:$0xff] %vm1307, -1e+30
          %1363 = vst.msk [vmem:[#allocation3 + $0x1b8] sm:$0xff] %vm1307, -1e+30
          %1364 = vst.msk [vmem:[#allocation3 + $0x1c0] sm:$0xff] %vm1307, -1e+30
          %1365 = vst.msk [vmem:[#allocation3 + $0x1c8] sm:$0xff] %vm1307, -1e+30
          %1366 = vst.msk [vmem:[#allocation3 + $0x1d0] sm:$0xff] %vm1307, -1e+30
          %1367 = vst.msk [vmem:[#allocation3 + $0x1d8] sm:$0xff] %vm1307, -1e+30
          %1368 = vst.msk [vmem:[#allocation3 + $0x1e0] sm:$0xff] %vm1307, -1e+30
          %1369 = vst.msk [vmem:[#allocation3 + $0x1e8] sm:$0xff] %vm1307, -1e+30
          %1370 = vst.msk [vmem:[#allocation3 + $0x1f0] sm:$0xff] %vm1307, -1e+30
          %1371 = vst.msk [vmem:[#allocation3 + $0x1f8] sm:$0xff] %vm1307, -1e+30
          %1372 = vst.msk [vmem:[#allocation4] sm:$0xff] %vm1307, 0.0
          %1373 = vst.msk [vmem:[#allocation4 + $0x8] sm:$0xff] %vm1307, 0.0
          %1374 = vst.msk [vmem:[#allocation4 + $0x10] sm:$0xff] %vm1307, 0.0
          %1375 = vst.msk [vmem:[#allocation4 + $0x18] sm:$0xff] %vm1307, 0.0
          %1376 = vst.msk [vmem:[#allocation4 + $0x20] sm:$0xff] %vm1307, 0.0
          %1377 = vst.msk [vmem:[#allocation4 + $0x28] sm:$0xff] %vm1307, 0.0
          %1378 = vst.msk [vmem:[#allocation4 + $0x30] sm:$0xff] %vm1307, 0.0
          %1379 = vst.msk [vmem:[#allocation4 + $0x38] sm:$0xff] %vm1307, 0.0
          %1380 = vst.msk [vmem:[#allocation4 + $0x40] sm:$0xff] %vm1307, 0.0
          %1381 = vst.msk [vmem:[#allocation4 + $0x48] sm:$0xff] %vm1307, 0.0
          %1382 = vst.msk [vmem:[#allocation4 + $0x50] sm:$0xff] %vm1307, 0.0
          %1383 = vst.msk [vmem:[#allocation4 + $0x58] sm:$0xff] %vm1307, 0.0
          %1384 = vst.msk [vmem:[#allocation4 + $0x60] sm:$0xff] %vm1307, 0.0
          %1385 = vst.msk [vmem:[#allocation4 + $0x68] sm:$0xff] %vm1307, 0.0
          %1386 = vst.msk [vmem:[#allocation4 + $0x70] sm:$0xff] %vm1307, 0.0
          %1387 = vst.msk [vmem:[#allocation4 + $0x78] sm:$0xff] %vm1307, 0.0
          %1388 = vst.msk [vmem:[#allocation4 + $0x80] sm:$0xff] %vm1307, 0.0
          %1389 = vst.msk [vmem:[#allocation4 + $0x88] sm:$0xff] %vm1307, 0.0
          %1390 = vst.msk [vmem:[#allocation4 + $0x90] sm:$0xff] %vm1307, 0.0
          %1391 = vst.msk [vmem:[#allocation4 + $0x98] sm:$0xff] %vm1307, 0.0
          %1392 = vst.msk [vmem:[#allocation4 + $0xa0] sm:$0xff] %vm1307, 0.0
          %1393 = vst.msk [vmem:[#allocation4 + $0xa8] sm:$0xff] %vm1307, 0.0
          %1394 = vst.msk [vmem:[#allocation4 + $0xb0] sm:$0xff] %vm1307, 0.0
          %1395 = vst.msk [vmem:[#allocation4 + $0xb8] sm:$0xff] %vm1307, 0.0
          %1396 = vst.msk [vmem:[#allocation4 + $0xc0] sm:$0xff] %vm1307, 0.0
          %1397 = vst.msk [vmem:[#allocation4 + $0xc8] sm:$0xff] %vm1307, 0.0
          %1398 = vst.msk [vmem:[#allocation4 + $0xd0] sm:$0xff] %vm1307, 0.0
          %1399 = vst.msk [vmem:[#allocation4 + $0xd8] sm:$0xff] %vm1307, 0.0
          %1400 = vst.msk [vmem:[#allocation4 + $0xe0] sm:$0xff] %vm1307, 0.0
          %1401 = vst.msk [vmem:[#allocation4 + $0xe8] sm:$0xff] %vm1307, 0.0
          %1402 = vst.msk [vmem:[#allocation4 + $0xf0] sm:$0xff] %vm1307, 0.0
          %1403 = vst.msk [vmem:[#allocation4 + $0xf8] sm:$0xff] %vm1307, 0.0
          %1404 = vst.msk [vmem:[#allocation4 + $0x100] sm:$0xff] %vm1307, 0.0
          %1405 = vst.msk [vmem:[#allocation4 + $0x108] sm:$0xff] %vm1307, 0.0
          %1406 = vst.msk [vmem:[#allocation4 + $0x110] sm:$0xff] %vm1307, 0.0
          %1407 = vst.msk [vmem:[#allocation4 + $0x118] sm:$0xff] %vm1307, 0.0
          %1408 = vst.msk [vmem:[#allocation4 + $0x120] sm:$0xff] %vm1307, 0.0
          %1409 = vst.msk [vmem:[#allocation4 + $0x128] sm:$0xff] %vm1307, 0.0
          %1410 = vst.msk [vmem:[#allocation4 + $0x130] sm:$0xff] %vm1307, 0.0
          %1411 = vst.msk [vmem:[#allocation4 + $0x138] sm:$0xff] %vm1307, 0.0
          %1412 = vst.msk [vmem:[#allocation4 + $0x140] sm:$0xff] %vm1307, 0.0
          %1413 = vst.msk [vmem:[#allocation4 + $0x148] sm:$0xff] %vm1307, 0.0
          %1414 = vst.msk [vmem:[#allocation4 + $0x150] sm:$0xff] %vm1307, 0.0
          %1415 = vst.msk [vmem:[#allocation4 + $0x158] sm:$0xff] %vm1307, 0.0
          %1416 = vst.msk [vmem:[#allocation4 + $0x160] sm:$0xff] %vm1307, 0.0
          %1417 = vst.msk [vmem:[#allocation4 + $0x168] sm:$0xff] %vm1307, 0.0
          %1418 = vst.msk [vmem:[#allocation4 + $0x170] sm:$0xff] %vm1307, 0.0
          %1419 = vst.msk [vmem:[#allocation4 + $0x178] sm:$0xff] %vm1307, 0.0
          %1420 = vst.msk [vmem:[#allocation4 + $0x180] sm:$0xff] %vm1307, 0.0
          %1421 = vst.msk [vmem:[#allocation4 + $0x188] sm:$0xff] %vm1307, 0.0
          %1422 = vst.msk [vmem:[#allocation4 + $0x190] sm:$0xff] %vm1307, 0.0
          %1423 = vst.msk [vmem:[#allocation4 + $0x198] sm:$0xff] %vm1307, 0.0
          %1424 = vst.msk [vmem:[#allocation4 + $0x1a0] sm:$0xff] %vm1307, 0.0
          %1425 = vst.msk [vmem:[#allocation4 + $0x1a8] sm:$0xff] %vm1307, 0.0
          %1426 = vst.msk [vmem:[#allocation4 + $0x1b0] sm:$0xff] %vm1307, 0.0
          %1427 = vst.msk [vmem:[#allocation4 + $0x1b8] sm:$0xff] %vm1307, 0.0
          %1428 = vst.msk [vmem:[#allocation4 + $0x1c0] sm:$0xff] %vm1307, 0.0
          %1429 = vst.msk [vmem:[#allocation4 + $0x1c8] sm:$0xff] %vm1307, 0.0
          %1430 = vst.msk [vmem:[#allocation4 + $0x1d0] sm:$0xff] %vm1307, 0.0
          %1431 = vst.msk [vmem:[#allocation4 + $0x1d8] sm:$0xff] %vm1307, 0.0
          %1432 = vst.msk [vmem:[#allocation4 + $0x1e0] sm:$0xff] %vm1307, 0.0
          %1433 = vst.msk [vmem:[#allocation4 + $0x1e8] sm:$0xff] %vm1307, 0.0
          %1434 = vst.msk [vmem:[#allocation4 + $0x1f0] sm:$0xff] %vm1307, 0.0
          %1435 = vst.msk [vmem:[#allocation4 + $0x1f8] sm:$0xff] %vm1307, 0.0
          %1436 = vst.msk [vmem:[#allocation5] sm:$0xff] %vm1191, 0.0
          %1437 = vst.msk [vmem:[#allocation5 + $0x8] sm:$0xff] %vm1191, 0.0
          %1438 = vst.msk [vmem:[#allocation5 + $0x10] sm:$0xff] %vm1191, 0.0
          %1439 = vst.msk [vmem:[#allocation5 + $0x18] sm:$0xff] %vm1191, 0.0
          %1440 = vst.msk [vmem:[#allocation5 + $0x20] sm:$0xff] %vm1191, 0.0
          %1441 = vst.msk [vmem:[#allocation5 + $0x28] sm:$0xff] %vm1191, 0.0
          %1442 = vst.msk [vmem:[#allocation5 + $0x30] sm:$0xff] %vm1191, 0.0
          %1443 = vst.msk [vmem:[#allocation5 + $0x38] sm:$0xff] %vm1191, 0.0
          %1444 = vst.msk [vmem:[#allocation5 + $0x40] sm:$0xff] %vm1191, 0.0
          %1445 = vst.msk [vmem:[#allocation5 + $0x48] sm:$0xff] %vm1191, 0.0
          %1446 = vst.msk [vmem:[#allocation5 + $0x50] sm:$0xff] %vm1191, 0.0
          %1447 = vst.msk [vmem:[#allocation5 + $0x58] sm:$0xff] %vm1191, 0.0
          %1448 = vst.msk [vmem:[#allocation5 + $0x60] sm:$0xff] %vm1191, 0.0
          %1449 = vst.msk [vmem:[#allocation5 + $0x68] sm:$0xff] %vm1191, 0.0
          %1450 = vst.msk [vmem:[#allocation5 + $0x70] sm:$0xff] %vm1191, 0.0
          %1451 = vst.msk [vmem:[#allocation5 + $0x78] sm:$0xff] %vm1191, 0.0
          %1452 = vst.msk [vmem:[#allocation5 + $0x80] sm:$0xff] %vm1191, 0.0
          %1453 = vst.msk [vmem:[#allocation5 + $0x88] sm:$0xff] %vm1191, 0.0
          %1454 = vst.msk [vmem:[#allocation5 + $0x90] sm:$0xff] %vm1191, 0.0
          %1455 = vst.msk [vmem:[#allocation5 + $0x98] sm:$0xff] %vm1191, 0.0
          %1456 = vst.msk [vmem:[#allocation5 + $0xa0] sm:$0xff] %vm1191, 0.0
          %1457 = vst.msk [vmem:[#allocation5 + $0xa8] sm:$0xff] %vm1191, 0.0
          %1458 = vst.msk [vmem:[#allocation5 + $0xb0] sm:$0xff] %vm1191, 0.0
          %1459 = vst.msk [vmem:[#allocation5 + $0xb8] sm:$0xff] %vm1191, 0.0
          %1460 = vst.msk [vmem:[#allocation5 + $0xc0] sm:$0xff] %vm1191, 0.0
          %1461 = vst.msk [vmem:[#allocation5 + $0xc8] sm:$0xff] %vm1191, 0.0
          %1462 = vst.msk [vmem:[#allocation5 + $0xd0] sm:$0xff] %vm1191, 0.0
          %1463 = vst.msk [vmem:[#allocation5 + $0xd8] sm:$0xff] %vm1191, 0.0
          %1464 = vst.msk [vmem:[#allocation5 + $0xe0] sm:$0xff] %vm1191, 0.0
          %1465 = vst.msk [vmem:[#allocation5 + $0xe8] sm:$0xff] %vm1191, 0.0
          %1466 = vst.msk [vmem:[#allocation5 + $0xf0] sm:$0xff] %vm1191, 0.0
          %1467 = vst.msk [vmem:[#allocation5 + $0xf8] sm:$0xff] %vm1191, 0.0
          %1468 = vst.msk [vmem:[#allocation5 + $0x100] sm:$0xff] %vm1191, 0.0
          %1469 = vst.msk [vmem:[#allocation5 + $0x108] sm:$0xff] %vm1191, 0.0
          %1470 = vst.msk [vmem:[#allocation5 + $0x110] sm:$0xff] %vm1191, 0.0
          %1471 = vst.msk [vmem:[#allocation5 + $0x118] sm:$0xff] %vm1191, 0.0
          %1472 = vst.msk [vmem:[#allocation5 + $0x120] sm:$0xff] %vm1191, 0.0
          %1473 = vst.msk [vmem:[#allocation5 + $0x128] sm:$0xff] %vm1191, 0.0
          %1474 = vst.msk [vmem:[#allocation5 + $0x130] sm:$0xff] %vm1191, 0.0
          %1475 = vst.msk [vmem:[#allocation5 + $0x138] sm:$0xff] %vm1191, 0.0
          %1476 = vst.msk [vmem:[#allocation5 + $0x140] sm:$0xff] %vm1191, 0.0
          %1477 = vst.msk [vmem:[#allocation5 + $0x148] sm:$0xff] %vm1191, 0.0
          %1478 = vst.msk [vmem:[#allocation5 + $0x150] sm:$0xff] %vm1191, 0.0
          %1479 = vst.msk [vmem:[#allocation5 + $0x158] sm:$0xff] %vm1191, 0.0
          %1480 = vst.msk [vmem:[#allocation5 + $0x160] sm:$0xff] %vm1191, 0.0
          %1481 = vst.msk [vmem:[#allocation5 + $0x168] sm:$0xff] %vm1191, 0.0
          %1482 = vst.msk [vmem:[#allocation5 + $0x170] sm:$0xff] %vm1191, 0.0
          %1483 = vst.msk [vmem:[#allocation5 + $0x178] sm:$0xff] %vm1191, 0.0
          %1484 = vst.msk [vmem:[#allocation5 + $0x180] sm:$0xff] %vm1191, 0.0
          %1485 = vst.msk [vmem:[#allocation5 + $0x188] sm:$0xff] %vm1191, 0.0
          %1486 = vst.msk [vmem:[#allocation5 + $0x190] sm:$0xff] %vm1191, 0.0
          %1487 = vst.msk [vmem:[#allocation5 + $0x198] sm:$0xff] %vm1191, 0.0
          %1488 = vst.msk [vmem:[#allocation5 + $0x1a0] sm:$0xff] %vm1191, 0.0
          %1489 = vst.msk [vmem:[#allocation5 + $0x1a8] sm:$0xff] %vm1191, 0.0
          %1490 = vst.msk [vmem:[#allocation5 + $0x1b0] sm:$0xff] %vm1191, 0.0
          %1491 = vst.msk [vmem:[#allocation5 + $0x1b8] sm:$0xff] %vm1191, 0.0
          %1492 = vst.msk [vmem:[#allocation5 + $0x1c0] sm:$0xff] %vm1191, 0.0
          %1493 = vst.msk [vmem:[#allocation5 + $0x1c8] sm:$0xff] %vm1191, 0.0
          %1494 = vst.msk [vmem:[#allocation5 + $0x1d0] sm:$0xff] %vm1191, 0.0
          %1495 = vst.msk [vmem:[#allocation5 + $0x1d8] sm:$0xff] %vm1191, 0.0
          %1496 = vst.msk [vmem:[#allocation5 + $0x1e0] sm:$0xff] %vm1191, 0.0
          %1497 = vst.msk [vmem:[#allocation5 + $0x1e8] sm:$0xff] %vm1191, 0.0
          %1498 = vst.msk [vmem:[#allocation5 + $0x1f0] sm:$0xff] %vm1191, 0.0
          %1499 = vst.msk [vmem:[#allocation5 + $0x1f8] sm:$0xff] %vm1191, 0.0
        $region124: #{tpu_custom_call.1} parent=87 // pred_fallthru
          _
        %v1500 = vld [vmem:[%s664] sm:$0xff]
        %v1501 = vld [vmem:[%s664 + $0x8] sm:$0xff]
        %v1502 = vld [vmem:[%s664 + $0x10] sm:$0xff]
        %v1503 = vld [vmem:[%s664 + $0x18] sm:$0xff]
        %v1504 = vld [vmem:[%s664 + $0x20] sm:$0xff]
        %v1505 = vld [vmem:[%s664 + $0x28] sm:$0xff]
        %v1506 = vld [vmem:[%s664 + $0x30] sm:$0xff]
        %v1507 = vld [vmem:[%s664 + $0x38] sm:$0xff]
        %v1508 = vld [vmem:[%s664 + $0x40] sm:$0xff]
        %v1509 = vld [vmem:[%s664 + $0x48] sm:$0xff]
        %v1510 = vld [vmem:[%s664 + $0x50] sm:$0xff]
        %v1511 = vld [vmem:[%s664 + $0x58] sm:$0xff]
        %v1512 = vld [vmem:[%s664 + $0x60] sm:$0xff]
        %v1513 = vld [vmem:[%s664 + $0x68] sm:$0xff]
        %v1514 = vld [vmem:[%s664 + $0x70] sm:$0xff]
        %v1515 = vld [vmem:[%s664 + $0x78] sm:$0xff]
        %v1516 = vld [vmem:[%s3] sm:$0x1]
        %v1517 = vld [vmem:[%s4] sm:$0x1]
        %1518 = vadd.xlane.f32.xlu0 %v1500
        %v1519 = vpop.xlane.xlu0 %1518
        %1520 = vadd.xlane.f32.xlu0 %v1501
        %v1521 = vpop.xlane.xlu0 %1520
        %1522 = vadd.xlane.f32.xlu0 %v1502
        %v1523 = vpop.xlane.xlu0 %1522
        %1524 = vadd.xlane.f32.xlu0 %v1503
        %v1525 = vpop.xlane.xlu0 %1524
        %1526 = vadd.xlane.f32.xlu0 %v1504
        %v1527 = vpop.xlane.xlu0 %1526
        %1528 = vadd.xlane.f32.xlu0 %v1505
        %v1529 = vpop.xlane.xlu0 %1528
        %1530 = vadd.xlane.f32.xlu0 %v1506
        %v1531 = vpop.xlane.xlu0 %1530
        %1532 = vadd.xlane.f32.xlu0 %v1507
        %v1533 = vpop.xlane.xlu0 %1532
        %1534 = vadd.xlane.f32.xlu0 %v1508
        %v1535 = vpop.xlane.xlu0 %1534
        %1536 = vadd.xlane.f32.xlu0 %v1509
        %v1537 = vpop.xlane.xlu0 %1536
        %1538 = vadd.xlane.f32.xlu0 %v1510
        %v1539 = vpop.xlane.xlu0 %1538
        %1540 = vadd.xlane.f32.xlu0 %v1511
        %v1541 = vpop.xlane.xlu0 %1540
        %1542 = vadd.xlane.f32.xlu0 %v1512
        %v1543 = vpop.xlane.xlu0 %1542
        %1544 = vadd.xlane.f32.xlu0 %v1513
        %v1545 = vpop.xlane.xlu0 %1544
        %1546 = vadd.xlane.f32.xlu0 %v1514
        %v1547 = vpop.xlane.xlu0 %1546
        %1548 = vadd.xlane.f32.xlu0 %v1515
        %v1549 = vpop.xlane.xlu0 %1548
        %v1550 = vrcp.pop 128.0
        %v1551 = vmul.f32 %v1519, %v1550
        %v1552 = vmul.f32 %v1521, %v1550
        %v1553 = vmul.f32 %v1523, %v1550
        %v1554 = vmul.f32 %v1525, %v1550
        %v1555 = vmul.f32 %v1527, %v1550
        %v1556 = vmul.f32 %v1529, %v1550
        %v1557 = vmul.f32 %v1531, %v1550
        %v1558 = vmul.f32 %v1533, %v1550
        %v1559 = vmul.f32 %v1535, %v1550
        %v1560 = vmul.f32 %v1537, %v1550
        %v1561 = vmul.f32 %v1539, %v1550
        %v1562 = vmul.f32 %v1541, %v1550
        %v1563 = vmul.f32 %v1543, %v1550
        %v1564 = vmul.f32 %v1545, %v1550
        %v1565 = vmul.f32 %v1547, %v1550
        %v1566 = vmul.f32 %v1549, %v1550
        %v1567 = vsub.f32 %v1500, %v1551
        %v1568 = vsub.f32 %v1501, %v1552
        %v1569 = vsub.f32 %v1502, %v1553
        %v1570 = vsub.f32 %v1503, %v1554
        %v1571 = vsub.f32 %v1504, %v1555
        %v1572 = vsub.f32 %v1505, %v1556
        %v1573 = vsub.f32 %v1506, %v1557
        %v1574 = vsub.f32 %v1507, %v1558
        %v1575 = vsub.f32 %v1508, %v1559
        %v1576 = vsub.f32 %v1509, %v1560
        %v1577 = vsub.f32 %v1510, %v1561
        %v1578 = vsub.f32 %v1511, %v1562
        %v1579 = vsub.f32 %v1512, %v1563
        %v1580 = vsub.f32 %v1513, %v1564
        %v1581 = vsub.f32 %v1514, %v1565
        %v1582 = vsub.f32 %v1515, %v1566
        %v1583 = vmul.f32 %v1567, %v1567
        %v1584 = vmul.f32 %v1568, %v1568
        %v1585 = vmul.f32 %v1569, %v1569
        %v1586 = vmul.f32 %v1570, %v1570
        %v1587 = vmul.f32 %v1571, %v1571
        %v1588 = vmul.f32 %v1572, %v1572
        %v1589 = vmul.f32 %v1573, %v1573
        %v1590 = vmul.f32 %v1574, %v1574
        %v1591 = vmul.f32 %v1575, %v1575
        %v1592 = vmul.f32 %v1576, %v1576
        %v1593 = vmul.f32 %v1577, %v1577
        %v1594 = vmul.f32 %v1578, %v1578
        %v1595 = vmul.f32 %v1579, %v1579
        %v1596 = vmul.f32 %v1580, %v1580
        %v1597 = vmul.f32 %v1581, %v1581
        %v1598 = vmul.f32 %v1582, %v1582
        %1599 = vadd.xlane.f32.xlu0 %v1583
        %v1600 = vpop.xlane.xlu0 %1599
        %1601 = vadd.xlane.f32.xlu0 %v1584
        %v1602 = vpop.xlane.xlu0 %1601
        %1603 = vadd.xlane.f32.xlu0 %v1585
        %v1604 = vpop.xlane.xlu0 %1603
        %1605 = vadd.xlane.f32.xlu0 %v1586
        %v1606 = vpop.xlane.xlu0 %1605
        %1607 = vadd.xlane.f32.xlu0 %v1587
        %v1608 = vpop.xlane.xlu0 %1607
        %1609 = vadd.xlane.f32.xlu0 %v1588
        %v1610 = vpop.xlane.xlu0 %1609
        %1611 = vadd.xlane.f32.xlu0 %v1589
        %v1612 = vpop.xlane.xlu0 %1611
        %1613 = vadd.xlane.f32.xlu0 %v1590
        %v1614 = vpop.xlane.xlu0 %1613
        %1615 = vadd.xlane.f32.xlu0 %v1591
        %v1616 = vpop.xlane.xlu0 %1615
        %1617 = vadd.xlane.f32.xlu0 %v1592
        %v1618 = vpop.xlane.xlu0 %1617
        %1619 = vadd.xlane.f32.xlu0 %v1593
        %v1620 = vpop.xlane.xlu0 %1619
        %1621 = vadd.xlane.f32.xlu0 %v1594
        %v1622 = vpop.xlane.xlu0 %1621
        %1623 = vadd.xlane.f32.xlu0 %v1595
        %v1624 = vpop.xlane.xlu0 %1623
        %1625 = vadd.xlane.f32.xlu0 %v1596
        %v1626 = vpop.xlane.xlu0 %1625
        %1627 = vadd.xlane.f32.xlu0 %v1597
        %v1628 = vpop.xlane.xlu0 %1627
        %1629 = vadd.xlane.f32.xlu0 %v1598
        %v1630 = vpop.xlane.xlu0 %1629
        %v1631 = vmul.f32 %v1600, %v1550
        %v1632 = vmul.f32 %v1602, %v1550
        %v1633 = vmul.f32 %v1604, %v1550
        %v1634 = vmul.f32 %v1606, %v1550
        %v1635 = vmul.f32 %v1608, %v1550
        %v1636 = vmul.f32 %v1610, %v1550
        %v1637 = vmul.f32 %v1612, %v1550
        %v1638 = vmul.f32 %v1614, %v1550
        %v1639 = vmul.f32 %v1616, %v1550
        %v1640 = vmul.f32 %v1618, %v1550
        %v1641 = vmul.f32 %v1620, %v1550
        %v1642 = vmul.f32 %v1622, %v1550
        %v1643 = vmul.f32 %v1624, %v1550
        %v1644 = vmul.f32 %v1626, %v1550
        %v1645 = vmul.f32 %v1628, %v1550
        %v1646 = vmul.f32 %v1630, %v1550
        %v1647 = vadd.f32 %v1631, 1e-12
        %v1648 = vadd.f32 %v1632, 1e-12
        %v1649 = vadd.f32 %v1633, 1e-12
        %v1650 = vadd.f32 %v1634, 1e-12
        %v1651 = vadd.f32 %v1635, 1e-12
        %v1652 = vadd.f32 %v1636, 1e-12
        %v1653 = vadd.f32 %v1637, 1e-12
        %v1654 = vadd.f32 %v1638, 1e-12
        %v1655 = vadd.f32 %v1639, 1e-12
        %v1656 = vadd.f32 %v1640, 1e-12
        %v1657 = vadd.f32 %v1641, 1e-12
        %v1658 = vadd.f32 %v1642, 1e-12
        %v1659 = vadd.f32 %v1643, 1e-12
        %v1660 = vadd.f32 %v1644, 1e-12
        %v1661 = vadd.f32 %v1645, 1e-12
        %v1662 = vadd.f32 %v1646, 1e-12
        %v1663 = vrsqrt.pop %v1647
        %v1664 = vrsqrt.pop %v1648
        %v1665 = vrsqrt.pop %v1649
        %v1666 = vrsqrt.pop %v1650
        %v1667 = vrsqrt.pop %v1651
        %v1668 = vrsqrt.pop %v1652
        %v1669 = vrsqrt.pop %v1653
        %v1670 = vrsqrt.pop %v1654
        %v1671 = vrsqrt.pop %v1655
        %v1672 = vrsqrt.pop %v1656
        %v1673 = vrsqrt.pop %v1657
        %v1674 = vrsqrt.pop %v1658
        %v1675 = vrsqrt.pop %v1659
        %v1676 = vrsqrt.pop %v1660
        %v1677 = vrsqrt.pop %v1661
        %v1678 = vrsqrt.pop %v1662
        %v1679 = vmul.f32 %v1567, %v1663
        %v1680 = vmul.f32 %v1568, %v1664
        %v1681 = vmul.f32 %v1569, %v1665
        %v1682 = vmul.f32 %v1570, %v1666
        %v1683 = vmul.f32 %v1571, %v1667
        %v1684 = vmul.f32 %v1572, %v1668
        %v1685 = vmul.f32 %v1573, %v1669
        %v1686 = vmul.f32 %v1574, %v1670
        %v1687 = vmul.f32 %v1575, %v1671
        %v1688 = vmul.f32 %v1576, %v1672
        %v1689 = vmul.f32 %v1577, %v1673
        %v1690 = vmul.f32 %v1578, %v1674
        %v1691 = vmul.f32 %v1579, %v1675
        %v1692 = vmul.f32 %v1580, %v1676
        %v1693 = vmul.f32 %v1581, %v1677
        %v1694 = vmul.f32 %v1582, %v1678
        %v1696 = vlaneseq
        %v1697 = vshrl.u32 %v1696, 7
        %v1698 = vsub.s32 0, %v1697
        %v1699 = vrot.slane %v1516, %v1698
        %v1701 = vmul.f32 %v1679, %v1699
        %v1702 = vmul.f32 %v1680, %v1699
        %v1703 = vmul.f32 %v1681, %v1699
        %v1704 = vmul.f32 %v1682, %v1699
        %v1705 = vmul.f32 %v1683, %v1699
        %v1706 = vmul.f32 %v1684, %v1699
        %v1707 = vmul.f32 %v1685, %v1699
        %v1708 = vmul.f32 %v1686, %v1699
        %v1709 = vmul.f32 %v1687, %v1699
        %v1710 = vmul.f32 %v1688, %v1699
        %v1711 = vmul.f32 %v1689, %v1699
        %v1712 = vmul.f32 %v1690, %v1699
        %v1713 = vmul.f32 %v1691, %v1699
        %v1714 = vmul.f32 %v1692, %v1699
        %v1715 = vmul.f32 %v1693, %v1699
        %v1716 = vmul.f32 %v1694, %v1699
        %v1718 = vlaneseq
        %v1719 = vshrl.u32 %v1718, 7
        %v1720 = vsub.s32 0, %v1719
        %v1721 = vrot.slane %v1517, %v1720
        %v1723 = vadd.f32 %v1701, %v1721
        %v1724 = vadd.f32 %v1702, %v1721
        %v1725 = vadd.f32 %v1703, %v1721
        %v1726 = vadd.f32 %v1704, %v1721
        %v1727 = vadd.f32 %v1705, %v1721
        %v1728 = vadd.f32 %v1706, %v1721
        %v1729 = vadd.f32 %v1707, %v1721
        %v1730 = vadd.f32 %v1708, %v1721
        %v1731 = vadd.f32 %v1709, %v1721
        %v1732 = vadd.f32 %v1710, %v1721
        %v1733 = vadd.f32 %v1711, %v1721
        %v1734 = vadd.f32 %v1712, %v1721
        %v1735 = vadd.f32 %v1713, %v1721
        %v1736 = vadd.f32 %v1714, %v1721
        %v1737 = vadd.f32 %v1715, %v1721
        %v1738 = vadd.f32 %v1716, %v1721
        %v1739 = vpack.c.bf16 %v1724, %v1723
        %v1740 = vpack.c.bf16 %v1726, %v1725
        %v1741 = vpack.c.bf16 %v1728, %v1727
        %v1742 = vpack.c.bf16 %v1730, %v1729
        %v1743 = vpack.c.bf16 %v1732, %v1731
        %v1744 = vpack.c.bf16 %v1734, %v1733
        %v1745 = vpack.c.bf16 %v1736, %v1735
        %v1746 = vpack.c.bf16 %v1738, %v1737
        %v1747 = vld [vmem:[#allocation14] sm:$0xff]
        %v1748 = vld [vmem:[#allocation14 + $0x8] sm:$0xff]
        %v1749 = vld [vmem:[#allocation14 + $0x10] sm:$0xff]
        %v1750 = vld [vmem:[#allocation14 + $0x18] sm:$0xff]
        %v1751 = vld [vmem:[#allocation14 + $0x20] sm:$0xff]
        %v1752 = vld [vmem:[#allocation14 + $0x28] sm:$0xff]
        %v1753 = vld [vmem:[#allocation14 + $0x30] sm:$0xff]
        %v1754 = vld [vmem:[#allocation14 + $0x38] sm:$0xff]
        %v1755 = vld [vmem:[#allocation14 + $0x40] sm:$0xff]
        %v1756 = vld [vmem:[#allocation14 + $0x48] sm:$0xff]
        %v1757 = vld [vmem:[#allocation14 + $0x50] sm:$0xff]
        %v1758 = vld [vmem:[#allocation14 + $0x58] sm:$0xff]
        %v1759 = vld [vmem:[#allocation14 + $0x60] sm:$0xff]
        %v1760 = vld [vmem:[#allocation14 + $0x68] sm:$0xff]
        %v1761 = vld [vmem:[#allocation14 + $0x70] sm:$0xff]
        %v1762 = vld [vmem:[#allocation14 + $0x78] sm:$0xff]
        %v1763 = vld [vmem:[%s10] sm:$0x3]
        %v1765 = vlaneseq
        %v1766 = vshrl.u32 %v1765, 7
        %v1767 = vsub.s32 0, %v1766
        %v1768 = vrot.slane %v1763, %v1767
        %v1769 = vlaneseq
        %v1770 = vshrl.u32 %v1769, 7
        %v1771 = vsub.s32 1, %v1770
        %v1772 = vrot.slane %v1763, %v1771
        %v1791 = vunpack.c.l.b16 %v1747
        %v1792 = vunpack.c.h.b16 %v1747
        %v1793 = vunpack.c.l.b16 %v1748
        %v1794 = vunpack.c.h.b16 %v1748
        %v1795 = vunpack.c.l.b16 %v1749
        %v1796 = vunpack.c.h.b16 %v1749
        %v1797 = vunpack.c.l.b16 %v1750
        %v1798 = vunpack.c.h.b16 %v1750
        %v1799 = vunpack.c.l.b16 %v1751
        %v1800 = vunpack.c.h.b16 %v1751
        %v1801 = vunpack.c.l.b16 %v1752
        %v1802 = vunpack.c.h.b16 %v1752
        %v1803 = vunpack.c.l.b16 %v1753
        %v1804 = vunpack.c.h.b16 %v1753
        %v1805 = vunpack.c.l.b16 %v1754
        %v1806 = vunpack.c.h.b16 %v1754
        %v1807 = vunpack.c.l.b16 %v1755
        %v1808 = vunpack.c.h.b16 %v1755
        %v1809 = vunpack.c.l.b16 %v1756
        %v1810 = vunpack.c.h.b16 %v1756
        %v1811 = vunpack.c.l.b16 %v1757
        %v1812 = vunpack.c.h.b16 %v1757
        %v1813 = vunpack.c.l.b16 %v1758
        %v1814 = vunpack.c.h.b16 %v1758
        %v1815 = vunpack.c.l.b16 %v1759
        %v1816 = vunpack.c.h.b16 %v1759
        %v1817 = vunpack.c.l.b16 %v1760
        %v1818 = vunpack.c.h.b16 %v1760
        %v1819 = vunpack.c.l.b16 %v1761
        %v1820 = vunpack.c.h.b16 %v1761
        %v1821 = vunpack.c.l.b16 %v1762
        %v1822 = vunpack.c.h.b16 %v1762
        %v1823 = vpack.c.b16 %v1793, %v1791
        %v1824 = vpack.c.b16 %v1794, %v1792
        %v1825 = vpack.c.b16 %v1797, %v1795
        %v1826 = vpack.c.b16 %v1798, %v1796
        %v1827 = vpack.c.b16 %v1801, %v1799
        %v1828 = vpack.c.b16 %v1802, %v1800
        %v1829 = vpack.c.b16 %v1805, %v1803
        %v1830 = vpack.c.b16 %v1806, %v1804
        %v1831 = vpack.c.b16 %v1809, %v1807
        %v1832 = vpack.c.b16 %v1810, %v1808
        %v1833 = vpack.c.b16 %v1813, %v1811
        %v1834 = vpack.c.b16 %v1814, %v1812
        %v1835 = vpack.c.b16 %v1817, %v1815
        %v1836 = vpack.c.b16 %v1818, %v1816
        %v1837 = vpack.c.b16 %v1821, %v1819
        %v1838 = vpack.c.b16 %v1822, %v1820
        %1855 = vmatprep.subr.bf16.mxu0 %v1824
        %1856 = vmatpush1.bf16.msra.mxu0 %v1823
        %1857 = vmatprep.subr.bf16.mxu0 %v1826
        %1858 = vmatpush1.bf16.msra.mxu0 %v1825
        %1859 = vmatprep.subr.bf16.mxu0 %v1828
        %1860 = vmatpush1.bf16.msra.mxu0 %v1827
        %1861 = vmatprep.subr.bf16.mxu0 %v1830
        %1862 = vmatpush1.bf16.msra.mxu0 %v1829
        %1863 = vmatprep.subr.bf16.mxu0 %v1832
        %1864 = vmatpush1.bf16.msra.mxu0 %v1831
        %1865 = vmatprep.subr.bf16.mxu0 %v1834
        %1866 = vmatpush1.bf16.msra.mxu0 %v1833
        %1867 = vmatprep.subr.bf16.mxu0 %v1836
        %1868 = vmatpush1.bf16.msra.mxu0 %v1835
        %1869 = vmatprep.subr.bf16.mxu0 %v1838
        %1870 = vmatpush1.bf16.msra.mxu0 %v1837
        %1871 = vmatprep.subr.bf16.mxu0 0
        %1872 = vmatpush1.bf16.msra.mxu0 0
        %1873 = vmatprep.subr.bf16.mxu0 0
        %1874 = vmatpush1.bf16.msra.mxu0 0
        %1875 = vmatprep.subr.bf16.mxu0 0
        %1876 = vmatpush1.bf16.msra.mxu0 0
        %1877 = vmatprep.subr.bf16.mxu0 0
        %1878 = vmatpush1.bf16.msra.mxu0 0
        %1879 = vmatprep.subr.bf16.mxu0 0
        %1880 = vmatpush1.bf16.msra.mxu0 0
        %1881 = vmatprep.subr.bf16.mxu0 0
        %1882 = vmatpush1.bf16.msra.mxu0 0
        %1883 = vmatprep.subr.bf16.mxu0 0
        %1884 = vmatpush1.bf16.msra.mxu0 0
        %1885 = vmatprep.subr.bf16.mxu0 0
        %1886 = vmatpush1.bf16.msra.mxu0 0
        %1887 = vmatprep.mubr.bf16.mxu0 0
        %1888 = vmatmul.mubr.bf16.gmra.mrb[0].mxu0 %v1739
        %v1889 = vpop.f32.mrb[0].mxu0
        %v1890 = vadd.f32 %v1768, %v1889
        %v1891 = vpop.f32.mrb[0].mxu0
        %v1892 = vadd.f32 %v1772, %v1891
        %v1893 = vpop.f32.mrb[0].mxu0
        %v1894 = vadd.f32 %v1768, %v1893
        %v1895 = vpop.f32.mrb[0].mxu0
        %v1896 = vadd.f32 %v1772, %v1895
        %1897 = vmatprep.mubr.bf16.mxu0 0
        %1898 = vmatmul.mubr.bf16.gmra.mrb[0].mxu0 %v1740
        %v1899 = vpop.f32.mrb[0].mxu0
        %v1900 = vadd.f32 %v1768, %v1899
        %v1901 = vpop.f32.mrb[0].mxu0
        %v1902 = vadd.f32 %v1772, %v1901
        %v1903 = vpop.f32.mrb[0].mxu0
        %v1904 = vadd.f32 %v1768, %v1903
        %v1905 = vpop.f32.mrb[0].mxu0
        %v1906 = vadd.f32 %v1772, %v1905
        %1907 = vmatprep.mubr.bf16.mxu0 0
        %1908 = vmatmul.mubr.bf16.gmra.mrb[0].mxu0 %v1741
        %v1909 = vpop.f32.mrb[0].mxu0
        %v1910 = vadd.f32 %v1768, %v1909
        %v1911 = vpop.f32.mrb[0].mxu0
        %v1912 = vadd.f32 %v1772, %v1911
        %v1913 = vpop.f32.mrb[0].mxu0
        %v1914 = vadd.f32 %v1768, %v1913
        %v1915 = vpop.f32.mrb[0].mxu0
        %v1916 = vadd.f32 %v1772, %v1915
        %1917 = vmatprep.mubr.bf16.mxu0 0
        %1918 = vmatmul.mubr.bf16.gmra.mrb[0].mxu0 %v1742
        %v1919 = vpop.f32.mrb[0].mxu0
        %v1920 = vadd.f32 %v1768, %v1919
        %v1921 = vpop.f32.mrb[0].mxu0
        %v1922 = vadd.f32 %v1772, %v1921
        %v1923 = vpop.f32.mrb[0].mxu0
        %v1924 = vadd.f32 %v1768, %v1923
        %v1925 = vpop.f32.mrb[0].mxu0
        %v1926 = vadd.f32 %v1772, %v1925
        %1927 = vmatprep.mubr.bf16.mxu0 0
        %1928 = vmatmul.mubr.bf16.gmra.mrb[0].mxu0 %v1743
        %v1929 = vpop.f32.mrb[0].mxu0
        %v1930 = vadd.f32 %v1768, %v1929
        %v1931 = vpop.f32.mrb[0].mxu0
        %v1932 = vadd.f32 %v1772, %v1931
        %v1933 = vpop.f32.mrb[0].mxu0
        %v1934 = vadd.f32 %v1768, %v1933
        %v1935 = vpop.f32.mrb[0].mxu0
        %v1936 = vadd.f32 %v1772, %v1935
        %1937 = vmatprep.mubr.bf16.mxu0 0
        %1938 = vmatmul.mubr.bf16.gmra.mrb[0].mxu0 %v1744
        %v1939 = vpop.f32.mrb[0].mxu0
        %v1940 = vadd.f32 %v1768, %v1939
        %v1941 = vpop.f32.mrb[0].mxu0
        %v1942 = vadd.f32 %v1772, %v1941
        %v1943 = vpop.f32.mrb[0].mxu0
        %v1944 = vadd.f32 %v1768, %v1943
        %v1945 = vpop.f32.mrb[0].mxu0
        %v1946 = vadd.f32 %v1772, %v1945
        %1947 = vmatprep.mubr.bf16.mxu0 0
        %1948 = vmatmul.mubr.bf16.gmra.mrb[0].mxu0 %v1745
        %v1949 = vpop.f32.mrb[0].mxu0
        %v1950 = vadd.f32 %v1768, %v1949
        %v1951 = vpop.f32.mrb[0].mxu0
        %v1952 = vadd.f32 %v1772, %v1951
        %v1953 = vpop.f32.mrb[0].mxu0
        %v1954 = vadd.f32 %v1768, %v1953
        %v1955 = vpop.f32.mrb[0].mxu0
        %v1956 = vadd.f32 %v1772, %v1955
        %1957 = vmatprep.mubr.bf16.mxu0 0
        %1958 = vmatmul.mubr.bf16.gmra.mrb[0].mxu0 %v1746
        %v1959 = vpop.f32.mrb[0].mxu0
        %v1960 = vadd.f32 %v1768, %v1959
        %v1961 = vpop.f32.mrb[0].mxu0
        %v1962 = vadd.f32 %v1772, %v1961
        %v1963 = vpop.f32.mrb[0].mxu0
        %v1964 = vadd.f32 %v1768, %v1963
        %v1965 = vpop.f32.mrb[0].mxu0
        %v1966 = vadd.f32 %v1772, %v1965
        %1967 = vdwg.mxu0
        %v1968 = vpack.c.bf16 %v1894, %v1890
        %v1969 = vpack.c.bf16 %v1896, %v1892
        %v1970 = vpack.c.bf16 %v1904, %v1900
        %v1971 = vpack.c.bf16 %v1906, %v1902
        %v1972 = vpack.c.bf16 %v1914, %v1910
        %v1973 = vpack.c.bf16 %v1916, %v1912
        %v1974 = vpack.c.bf16 %v1924, %v1920
        %v1975 = vpack.c.bf16 %v1926, %v1922
        %v1976 = vpack.c.bf16 %v1934, %v1930
        %v1977 = vpack.c.bf16 %v1936, %v1932
        %v1978 = vpack.c.bf16 %v1944, %v1940
        %v1979 = vpack.c.bf16 %v1946, %v1942
        %v1980 = vpack.c.bf16 %v1954, %v1950
        %v1981 = vpack.c.bf16 %v1956, %v1952
        %v1982 = vpack.c.bf16 %v1964, %v1960
        %v1983 = vpack.c.bf16 %v1966, %v1962
        %v1984 = vld [vmem:[%s646] sm:$0x1]
        %vm1985 = vcmp.gt.f32.partialorder %v1984, 0.0
        %v1986 = vld [vmem:[#allocation2] sm:$0xff]
        %v1987 = vld [vmem:[#allocation2 + $0x8] sm:$0xff]
        %v1988 = vld [vmem:[#allocation2 + $0x10] sm:$0xff]
        %v1989 = vld [vmem:[#allocation2 + $0x18] sm:$0xff]
        %v1990 = vld [vmem:[#allocation2 + $0x20] sm:$0xff]
        %v1991 = vld [vmem:[#allocation2 + $0x28] sm:$0xff]
        %v1992 = vld [vmem:[#allocation2 + $0x30] sm:$0xff]
        %v1993 = vld [vmem:[#allocation2 + $0x38] sm:$0xff]
        %vm1994 = vcmask 261120
        %v1996 = vsel %vm1994, %v1986, 0
        %v1999 = vsel %vm1994, %v1987, 0
        %v2002 = vsel %vm1994, %v1988, 0
        %v2005 = vsel %vm1994, %v1989, 0
        %v2008 = vsel %vm1994, %v1990, 0
        %v2011 = vsel %vm1994, %v1991, 0
        %v2014 = vsel %vm1994, %v1992, 0
        %v2017 = vsel %vm1994, %v1993, 0
        %v2020 = vsel %vm1994, %v1968, 0
        %v2023 = vsel %vm1994, %v1970, 0
        %v2026 = vsel %vm1994, %v1972, 0
        %v2029 = vsel %vm1994, %v1974, 0
        %v2032 = vsel %vm1994, %v1976, 0
        %v2035 = vsel %vm1994, %v1978, 0
        %v2038 = vsel %vm1994, %v1980, 0
        %v2041 = vsel %vm1994, %v1982, 0
        %2043 = vmatprep.subr.bf16.mxu0 0
        %2044 = vmatpush1.bf16.xpose.msra.mxu0 %v2020
        %2045 = vmatprep.subr.bf16.mxu0 0
        %2046 = vmatpush1.bf16.xpose.msra.mxu0 %v2023
        %2047 = vmatprep.subr.bf16.mxu0 0
        %2048 = vmatpush1.bf16.xpose.msra.mxu0 %v2026
        %2049 = vmatprep.subr.bf16.mxu0 0
        %2050 = vmatpush1.bf16.xpose.msra.mxu0 %v2029
        %2051 = vmatprep.subr.bf16.mxu0 0
        %2052 = vmatpush1.bf16.xpose.msra.mxu0 %v2032
        %2053 = vmatprep.subr.bf16.mxu0 0
        %2054 = vmatpush1.bf16.xpose.msra.mxu0 %v2035
        %2055 = vmatprep.subr.bf16.mxu0 0
        %2056 = vmatpush1.bf16.xpose.msra.mxu0 %v2038
        %2057 = vmatprep.subr.bf16.mxu0 0
        %2058 = vmatpush1.bf16.xpose.msra.mxu0 %v2041
        %2059 = vmatprep.subr.bf16.mxu0 0
        %2060 = vmatpush1.bf16.xpose.msra.mxu0 0
        %2061 = vmatprep.subr.bf16.mxu0 0
        %2062 = vmatpush1.bf16.xpose.msra.mxu0 0
        %2063 = vmatprep.subr.bf16.mxu0 0
        %2064 = vmatpush1.bf16.xpose.msra.mxu0 0
        %2065 = vmatprep.subr.bf16.mxu0 0
        %2066 = vmatpush1.bf16.xpose.msra.mxu0 0
        %2067 = vmatprep.subr.bf16.mxu0 0
        %2068 = vmatpush1.bf16.xpose.msra.mxu0 0
        %2069 = vmatprep.subr.bf16.mxu0 0
        %2070 = vmatpush1.bf16.xpose.msra.mxu0 0
        %2071 = vmatprep.subr.bf16.mxu0 0
        %2072 = vmatpush1.bf16.xpose.msra.mxu0 0
        %2073 = vmatprep.subr.bf16.mxu0 0
        %2074 = vmatpush1.bf16.xpose.msra.mxu0 0
        %2075 = vmatprep.mubr.bf16.mxu0 0
        %2076 = vmatmul.mubr.bf16.gmra.mrb[0].mxu0 %v1996
        %v2077 = vpop.f32.mrb[0].mxu0
        %v2078 = vadd.f32 0.0, %v2077
        %v2079 = vpop.f32.mrb[0].mxu0
        %v2080 = vpop.f32.mrb[0].mxu0
        %v2081 = vadd.f32 0.0, %v2080
        %v2082 = vpop.f32.mrb[0].mxu0
        %2083 = vmatprep.mubr.bf16.mxu0 0
        %2084 = vmatmul.mubr.bf16.gmra.mrb[0].mxu0 %v1999
        %v2085 = vpop.f32.mrb[0].mxu0
        %v2086 = vadd.f32 0.0, %v2085
        %v2087 = vpop.f32.mrb[0].mxu0
        %v2088 = vpop.f32.mrb[0].mxu0
        %v2089 = vadd.f32 0.0, %v2088
        %v2090 = vpop.f32.mrb[0].mxu0
        %2091 = vmatprep.mubr.bf16.mxu0 0
        %2092 = vmatmul.mubr.bf16.gmra.mrb[0].mxu0 %v2002
        %v2093 = vpop.f32.mrb[0].mxu0
        %v2094 = vadd.f32 0.0, %v2093
        %v2095 = vpop.f32.mrb[0].mxu0
        %v2096 = vpop.f32.mrb[0].mxu0
        %v2097 = vadd.f32 0.0, %v2096
        %v2098 = vpop.f32.mrb[0].mxu0
        %2099 = vmatprep.mubr.bf16.mxu0 0
        %2100 = vmatmul.mubr.bf16.gmra.mrb[0].mxu0 %v2005
        %v2101 = vpop.f32.mrb[0].mxu0
        %v2102 = vadd.f32 0.0, %v2101
        %v2103 = vpop.f32.mrb[0].mxu0
        %v2104 = vpop.f32.mrb[0].mxu0
        %v2105 = vadd.f32 0.0, %v2104
        %v2106 = vpop.f32.mrb[0].mxu0
        %2107 = vmatprep.mubr.bf16.mxu0 0
        %2108 = vmatmul.mubr.bf16.gmra.mrb[0].mxu0 %v2008
        %v2109 = vpop.f32.mrb[0].mxu0
        %v2110 = vadd.f32 0.0, %v2109
        %v2111 = vpop.f32.mrb[0].mxu0
        %v2112 = vpop.f32.mrb[0].mxu0
        %v2113 = vadd.f32 0.0, %v2112
        %v2114 = vpop.f32.mrb[0].mxu0
        %2115 = vmatprep.mubr.bf16.mxu0 0
        %2116 = vmatmul.mubr.bf16.gmra.mrb[0].mxu0 %v2011
        %v2117 = vpop.f32.mrb[0].mxu0
        %v2118 = vadd.f32 0.0, %v2117
        %v2119 = vpop.f32.mrb[0].mxu0
        %v2120 = vpop.f32.mrb[0].mxu0
        %v2121 = vadd.f32 0.0, %v2120
        %v2122 = vpop.f32.mrb[0].mxu0
        %2123 = vmatprep.mubr.bf16.mxu0 0
        %2124 = vmatmul.mubr.bf16.gmra.mrb[0].mxu0 %v2014
        %v2125 = vpop.f32.mrb[0].mxu0
        %v2126 = vadd.f32 0.0, %v2125
        %v2127 = vpop.f32.mrb[0].mxu0
        %v2128 = vpop.f32.mrb[0].mxu0
        %v2129 = vadd.f32 0.0, %v2128
        %v2130 = vpop.f32.mrb[0].mxu0
        %2131 = vmatprep.mubr.bf16.mxu0 0
        %2132 = vmatmul.mubr.bf16.gmra.mrb[0].mxu0 %v2017
        %v2133 = vpop.f32.mrb[0].mxu0
        %v2134 = vadd.f32 0.0, %v2133
        %v2135 = vpop.f32.mrb[0].mxu0
        %v2136 = vpop.f32.mrb[0].mxu0
        %v2137 = vadd.f32 0.0, %v2136
        %v2138 = vpop.f32.mrb[0].mxu0
        %2139 = vdwg.mxu0
        %v2140 = vsel %vm1985, 1, 0
        %v2141 = vlaneseq
        %v2142 = vshrl.u32 %v2141, 7
        %v2143 = vsub.s32 0, %v2142
        %v2144 = vrot.slane %v2140, %v2143
        %vm2145 = vcmp.eq.s32.totalorder %v2144, 1
        %v2146 = vsel %vm2145, %v2078, -1e+30
        %v2147 = vsel %vm2145, %v2081, -1e+30
        %v2148 = vsel %vm2145, %v2086, -1e+30
        %v2149 = vsel %vm2145, %v2089, -1e+30
        %v2150 = vsel %vm2145, %v2094, -1e+30
        %v2151 = vsel %vm2145, %v2097, -1e+30
        %v2152 = vsel %vm2145, %v2102, -1e+30
        %v2153 = vsel %vm2145, %v2105, -1e+30
        %v2154 = vsel %vm2145, %v2110, -1e+30
        %v2155 = vsel %vm2145, %v2113, -1e+30
        %v2156 = vsel %vm2145, %v2118, -1e+30
        %v2157 = vsel %vm2145, %v2121, -1e+30
        %v2158 = vsel %vm2145, %v2126, -1e+30
        %v2159 = vsel %vm2145, %v2129, -1e+30
        %v2160 = vsel %vm2145, %v2134, -1e+30
        %v2161 = vsel %vm2145, %v2137, -1e+30
        %v2162 = vld [vmem:[#allocation3] sm:$0xff]
        %v2163 = vld [vmem:[#allocation3 + $0x8] sm:$0xff]
        %v2164 = vld [vmem:[#allocation3 + $0x10] sm:$0xff]
        %v2165 = vld [vmem:[#allocation3 + $0x18] sm:$0xff]
        %v2166 = vld [vmem:[#allocation3 + $0x20] sm:$0xff]
        %v2167 = vld [vmem:[#allocation3 + $0x28] sm:$0xff]
        %v2168 = vld [vmem:[#allocation3 + $0x30] sm:$0xff]
        %v2169 = vld [vmem:[#allocation3 + $0x38] sm:$0xff]
        %v2170 = vld [vmem:[#allocation3 + $0x40] sm:$0xff]
        %v2171 = vld [vmem:[#allocation3 + $0x48] sm:$0xff]
        %v2172 = vld [vmem:[#allocation3 + $0x50] sm:$0xff]
        %v2173 = vld [vmem:[#allocation3 + $0x58] sm:$0xff]
        %v2174 = vld [vmem:[#allocation3 + $0x60] sm:$0xff]
        %v2175 = vld [vmem:[#allocation3 + $0x68] sm:$0xff]
        %v2176 = vld [vmem:[#allocation3 + $0x70] sm:$0xff]
        %v2177 = vld [vmem:[#allocation3 + $0x78] sm:$0xff]
        %2178 = vmax.xlane.f32.xlu0 %v2146
        %v2179 = vpop.xlane.xlu0 %2178
        %2180 = vmax.xlane.f32.xlu0 %v2147
        %v2181 = vpop.xlane.xlu0 %2180
        %2182 = vmax.xlane.f32.xlu0 %v2148
        %v2183 = vpop.xlane.xlu0 %2182
        %2184 = vmax.xlane.f32.xlu0 %v2149
        %v2185 = vpop.xlane.xlu0 %2184
        %2186 = vmax.xlane.f32.xlu0 %v2150
        %v2187 = vpop.xlane.xlu0 %2186
        %2188 = vmax.xlane.f32.xlu0 %v2151
        %v2189 = vpop.xlane.xlu0 %2188
        %2190 = vmax.xlane.f32.xlu0 %v2152
        %v2191 = vpop.xlane.xlu0 %2190
        %2192 = vmax.xlane.f32.xlu0 %v2153
        %v2193 = vpop.xlane.xlu0 %2192
        %2194 = vmax.xlane.f32.xlu0 %v2154
        %v2195 = vpop.xlane.xlu0 %2194
        %2196 = vmax.xlane.f32.xlu0 %v2155
        %v2197 = vpop.xlane.xlu0 %2196
        %2198 = vmax.xlane.f32.xlu0 %v2156
        %v2199 = vpop.xlane.xlu0 %2198
        %2200 = vmax.xlane.f32.xlu0 %v2157
        %v2201 = vpop.xlane.xlu0 %2200
        %2202 = vmax.xlane.f32.xlu0 %v2158
        %v2203 = vpop.xlane.xlu0 %2202
        %2204 = vmax.xlane.f32.xlu0 %v2159
        %v2205 = vpop.xlane.xlu0 %2204
        %2206 = vmax.xlane.f32.xlu0 %v2160
        %v2207 = vpop.xlane.xlu0 %2206
        %2208 = vmax.xlane.f32.xlu0 %v2161
        %v2209 = vpop.xlane.xlu0 %2208
        %v2210 = vmax.f32 %v2162, %v2179
        %v2211 = vmax.f32 %v2163, %v2181
        %v2212 = vmax.f32 %v2164, %v2183
        %v2213 = vmax.f32 %v2165, %v2185
        %v2214 = vmax.f32 %v2166, %v2187
        %v2215 = vmax.f32 %v2167, %v2189
        %v2216 = vmax.f32 %v2168, %v2191
        %v2217 = vmax.f32 %v2169, %v2193
        %v2218 = vmax.f32 %v2170, %v2195
        %v2219 = vmax.f32 %v2171, %v2197
        %v2220 = vmax.f32 %v2172, %v2199
        %v2221 = vmax.f32 %v2173, %v2201
        %v2222 = vmax.f32 %v2174, %v2203
        %v2223 = vmax.f32 %v2175, %v2205
        %v2224 = vmax.f32 %v2176, %v2207
        %v2225 = vmax.f32 %v2177, %v2209
        %v2226 = vsub.f32 %v2162, %v2210
        %v2227 = vsub.f32 %v2163, %v2211
        %v2228 = vsub.f32 %v2164, %v2212
        %v2229 = vsub.f32 %v2165, %v2213
        %v2230 = vsub.f32 %v2166, %v2214
        %v2231 = vsub.f32 %v2167, %v2215
        %v2232 = vsub.f32 %v2168, %v2216
        %v2233 = vsub.f32 %v2169, %v2217
        %v2234 = vsub.f32 %v2170, %v2218
        %v2235 = vsub.f32 %v2171, %v2219
        %v2236 = vsub.f32 %v2172, %v2220
        %v2237 = vsub.f32 %v2173, %v2221
        %v2238 = vsub.f32 %v2174, %v2222
        %v2239 = vsub.f32 %v2175, %v2223
        %v2240 = vsub.f32 %v2176, %v2224
        %v2241 = vsub.f32 %v2177, %v2225
        %v2242 = vmul.f32 %v2226, 1.442695
        %v2243 = vpow.pop %v2242
        %v2244 = vmul.f32 %v2227, 1.442695
        %v2245 = vpow.pop %v2244
        %v2246 = vmul.f32 %v2228, 1.442695
        %v2247 = vpow.pop %v2246
        %v2248 = vmul.f32 %v2229, 1.442695
        %v2249 = vpow.pop %v2248
        %v2250 = vmul.f32 %v2230, 1.442695
        %v2251 = vpow.pop %v2250
        %v2252 = vmul.f32 %v2231, 1.442695
        %v2253 = vpow.pop %v2252
        %v2254 = vmul.f32 %v2232, 1.442695
        %v2255 = vpow.pop %v2254
        %v2256 = vmul.f32 %v2233, 1.442695
        %v2257 = vpow.pop %v2256
        %v2258 = vmul.f32 %v2234, 1.442695
        %v2259 = vpow.pop %v2258
        %v2260 = vmul.f32 %v2235, 1.442695
        %v2261 = vpow.pop %v2260
        %v2262 = vmul.f32 %v2236, 1.442695
        %v2263 = vpow.pop %v2262
        %v2264 = vmul.f32 %v2237, 1.442695
        %v2265 = vpow.pop %v2264
        %v2266 = vmul.f32 %v2238, 1.442695
        %v2267 = vpow.pop %v2266
        %v2268 = vmul.f32 %v2239, 1.442695
        %v2269 = vpow.pop %v2268
        %v2270 = vmul.f32 %v2240, 1.442695
        %v2271 = vpow.pop %v2270
        %v2272 = vmul.f32 %v2241, 1.442695
        %v2273 = vpow.pop %v2272
        %2275 = vset.pattern.permute.xlu0 0
        %2276 = vperm.xlu0 %2275, %v2210
        %v2277 = vpop.permute.xlu0 %2276
        %2280 = vset.pattern.permute.xlu0 0
        %2281 = vperm.xlu0 %2280, %v2211
        %v2282 = vpop.permute.xlu0 %2281
        %2285 = vset.pattern.permute.xlu0 0
        %2286 = vperm.xlu0 %2285, %v2212
        %v2287 = vpop.permute.xlu0 %2286
        %2290 = vset.pattern.permute.xlu0 0
        %2291 = vperm.xlu0 %2290, %v2213
        %v2292 = vpop.permute.xlu0 %2291
        %2295 = vset.pattern.permute.xlu0 0
        %2296 = vperm.xlu0 %2295, %v2214
        %v2297 = vpop.permute.xlu0 %2296
        %2300 = vset.pattern.permute.xlu0 0
        %2301 = vperm.xlu0 %2300, %v2215
        %v2302 = vpop.permute.xlu0 %2301
        %2305 = vset.pattern.permute.xlu0 0
        %2306 = vperm.xlu0 %2305, %v2216
        %v2307 = vpop.permute.xlu0 %2306
        %2310 = vset.pattern.permute.xlu0 0
        %2311 = vperm.xlu0 %2310, %v2217
        %v2312 = vpop.permute.xlu0 %2311
        %2315 = vset.pattern.permute.xlu0 0
        %2316 = vperm.xlu0 %2315, %v2218
        %v2317 = vpop.permute.xlu0 %2316
        %2320 = vset.pattern.permute.xlu0 0
        %2321 = vperm.xlu0 %2320, %v2219
        %v2322 = vpop.permute.xlu0 %2321
        %2325 = vset.pattern.permute.xlu0 0
        %2326 = vperm.xlu0 %2325, %v2220
        %v2327 = vpop.permute.xlu0 %2326
        %2330 = vset.pattern.permute.xlu0 0
        %2331 = vperm.xlu0 %2330, %v2221
        %v2332 = vpop.permute.xlu0 %2331
        %2335 = vset.pattern.permute.xlu0 0
        %2336 = vperm.xlu0 %2335, %v2222
        %v2337 = vpop.permute.xlu0 %2336
        %2340 = vset.pattern.permute.xlu0 0
        %2341 = vperm.xlu0 %2340, %v2223
        %v2342 = vpop.permute.xlu0 %2341
        %2345 = vset.pattern.permute.xlu0 0
        %2346 = vperm.xlu0 %2345, %v2224
        %v2347 = vpop.permute.xlu0 %2346
        %2350 = vset.pattern.permute.xlu0 0
        %2351 = vperm.xlu0 %2350, %v2225
        %v2352 = vpop.permute.xlu0 %2351
        %v2354 = vsub.f32 %v2146, %v2277
        %v2355 = vsub.f32 %v2147, %v2282
        %v2356 = vsub.f32 %v2148, %v2287
        %v2357 = vsub.f32 %v2149, %v2292
        %v2358 = vsub.f32 %v2150, %v2297
        %v2359 = vsub.f32 %v2151, %v2302
        %v2360 = vsub.f32 %v2152, %v2307
        %v2361 = vsub.f32 %v2153, %v2312
        %v2362 = vsub.f32 %v2154, %v2317
        %v2363 = vsub.f32 %v2155, %v2322
        %v2364 = vsub.f32 %v2156, %v2327
        %v2365 = vsub.f32 %v2157, %v2332
        %v2366 = vsub.f32 %v2158, %v2337
        %v2367 = vsub.f32 %v2159, %v2342
        %v2368 = vsub.f32 %v2160, %v2347
        %v2369 = vsub.f32 %v2161, %v2352
        %v2370 = vmul.f32 %v2354, 1.442695
        %v2371 = vpow.pop %v2370
        %v2372 = vmul.f32 %v2355, 1.442695
        %v2373 = vpow.pop %v2372
        %v2374 = vmul.f32 %v2356, 1.442695
        %v2375 = vpow.pop %v2374
        %v2376 = vmul.f32 %v2357, 1.442695
        %v2377 = vpow.pop %v2376
        %v2378 = vmul.f32 %v2358, 1.442695
        %v2379 = vpow.pop %v2378
        %v2380 = vmul.f32 %v2359, 1.442695
        %v2381 = vpow.pop %v2380
        %v2382 = vmul.f32 %v2360, 1.442695
        %v2383 = vpow.pop %v2382
        %v2384 = vmul.f32 %v2361, 1.442695
        %v2385 = vpow.pop %v2384
        %v2386 = vmul.f32 %v2362, 1.442695
        %v2387 = vpow.pop %v2386
        %v2388 = vmul.f32 %v2363, 1.442695
        %v2389 = vpow.pop %v2388
        %v2390 = vmul.f32 %v2364, 1.442695
        %v2391 = vpow.pop %v2390
        %v2392 = vmul.f32 %v2365, 1.442695
        %v2393 = vpow.pop %v2392
        %v2394 = vmul.f32 %v2366, 1.442695
        %v2395 = vpow.pop %v2394
        %v2396 = vmul.f32 %v2367, 1.442695
        %v2397 = vpow.pop %v2396
        %v2398 = vmul.f32 %v2368, 1.442695
        %v2399 = vpow.pop %v2398
        %v2400 = vmul.f32 %v2369, 1.442695
        %v2401 = vpow.pop %v2400
        %v2402 = vsel %vm2145, %v2371, 0.0
        %v2403 = vsel %vm2145, %v2373, 0.0
        %v2404 = vsel %vm2145, %v2375, 0.0
        %v2405 = vsel %vm2145, %v2377, 0.0
        %v2406 = vsel %vm2145, %v2379, 0.0
        %v2407 = vsel %vm2145, %v2381, 0.0
        %v2408 = vsel %vm2145, %v2383, 0.0
        %v2409 = vsel %vm2145, %v2385, 0.0
        %v2410 = vsel %vm2145, %v2387, 0.0
        %v2411 = vsel %vm2145, %v2389, 0.0
        %v2412 = vsel %vm2145, %v2391, 0.0
        %v2413 = vsel %vm2145, %v2393, 0.0
        %v2414 = vsel %vm2145, %v2395, 0.0
        %v2415 = vsel %vm2145, %v2397, 0.0
        %v2416 = vsel %vm2145, %v2399, 0.0
        %v2417 = vsel %vm2145, %v2401, 0.0
        %v2418 = vld [vmem:[#allocation4] sm:$0xff]
        %v2419 = vld [vmem:[#allocation4 + $0x8] sm:$0xff]
        %v2420 = vld [vmem:[#allocation4 + $0x10] sm:$0xff]
        %v2421 = vld [vmem:[#allocation4 + $0x18] sm:$0xff]
        %v2422 = vld [vmem:[#allocation4 + $0x20] sm:$0xff]
        %v2423 = vld [vmem:[#allocation4 + $0x28] sm:$0xff]
        %v2424 = vld [vmem:[#allocation4 + $0x30] sm:$0xff]
        %v2425 = vld [vmem:[#allocation4 + $0x38] sm:$0xff]
        %v2426 = vld [vmem:[#allocation4 + $0x40] sm:$0xff]
        %v2427 = vld [vmem:[#allocation4 + $0x48] sm:$0xff]
        %v2428 = vld [vmem:[#allocation4 + $0x50] sm:$0xff]
        %v2429 = vld [vmem:[#allocation4 + $0x58] sm:$0xff]
        %v2430 = vld [vmem:[#allocation4 + $0x60] sm:$0xff]
        %v2431 = vld [vmem:[#allocation4 + $0x68] sm:$0xff]
        %v2432 = vld [vmem:[#allocation4 + $0x70] sm:$0xff]
        %v2433 = vld [vmem:[#allocation4 + $0x78] sm:$0xff]
        %v2434 = vmul.f32 %v2243, %v2418
        %v2435 = vmul.f32 %v2245, %v2419
        %v2436 = vmul.f32 %v2247, %v2420
        %v2437 = vmul.f32 %v2249, %v2421
        %v2438 = vmul.f32 %v2251, %v2422
        %v2439 = vmul.f32 %v2253, %v2423
        %v2440 = vmul.f32 %v2255, %v2424
        %v2441 = vmul.f32 %v2257, %v2425
        %v2442 = vmul.f32 %v2259, %v2426
        %v2443 = vmul.f32 %v2261, %v2427
        %v2444 = vmul.f32 %v2263, %v2428
        %v2445 = vmul.f32 %v2265, %v2429
        %v2446 = vmul.f32 %v2267, %v2430
        %v2447 = vmul.f32 %v2269, %v2431
        %v2448 = vmul.f32 %v2271, %v2432
        %v2449 = vmul.f32 %v2273, %v2433
        %2450 = vadd.xlane.f32.xlu0 %v2402
        %v2451 = vpop.xlane.xlu0 %2450
        %2452 = vadd.xlane.f32.xlu0 %v2403
        %v2453 = vpop.xlane.xlu0 %2452
        %2454 = vadd.xlane.f32.xlu0 %v2404
        %v2455 = vpop.xlane.xlu0 %2454
        %2456 = vadd.xlane.f32.xlu0 %v2405
        %v2457 = vpop.xlane.xlu0 %2456
        %2458 = vadd.xlane.f32.xlu0 %v2406
        %v2459 = vpop.xlane.xlu0 %2458
        %2460 = vadd.xlane.f32.xlu0 %v2407
        %v2461 = vpop.xlane.xlu0 %2460
        %2462 = vadd.xlane.f32.xlu0 %v2408
        %v2463 = vpop.xlane.xlu0 %2462
        %2464 = vadd.xlane.f32.xlu0 %v2409
        %v2465 = vpop.xlane.xlu0 %2464
        %2466 = vadd.xlane.f32.xlu0 %v2410
        %v2467 = vpop.xlane.xlu0 %2466
        %2468 = vadd.xlane.f32.xlu0 %v2411
        %v2469 = vpop.xlane.xlu0 %2468
        %2470 = vadd.xlane.f32.xlu0 %v2412
        %v2471 = vpop.xlane.xlu0 %2470
        %2472 = vadd.xlane.f32.xlu0 %v2413
        %v2473 = vpop.xlane.xlu0 %2472
        %2474 = vadd.xlane.f32.xlu0 %v2414
        %v2475 = vpop.xlane.xlu0 %2474
        %2476 = vadd.xlane.f32.xlu0 %v2415
        %v2477 = vpop.xlane.xlu0 %2476
        %2478 = vadd.xlane.f32.xlu0 %v2416
        %v2479 = vpop.xlane.xlu0 %2478
        %2480 = vadd.xlane.f32.xlu0 %v2417
        %v2481 = vpop.xlane.xlu0 %2480
        %v2482 = vadd.f32 %v2434, %v2451
        %v2483 = vadd.f32 %v2435, %v2453
        %v2484 = vadd.f32 %v2436, %v2455
        %v2485 = vadd.f32 %v2437, %v2457
        %v2486 = vadd.f32 %v2438, %v2459
        %v2487 = vadd.f32 %v2439, %v2461
        %v2488 = vadd.f32 %v2440, %v2463
        %v2489 = vadd.f32 %v2441, %v2465
        %v2490 = vadd.f32 %v2442, %v2467
        %v2491 = vadd.f32 %v2443, %v2469
        %v2492 = vadd.f32 %v2444, %v2471
        %v2493 = vadd.f32 %v2445, %v2473
        %v2494 = vadd.f32 %v2446, %v2475
        %v2495 = vadd.f32 %v2447, %v2477
        %v2496 = vadd.f32 %v2448, %v2479
        %v2497 = vadd.f32 %v2449, %v2481
        %vm2498 = vcmask 7168
        %2499 = vst.msk [vmem:[#allocation4] sm:$0xff] %vm2498, %v2482
        %2500 = vst.msk [vmem:[#allocation4 + $0x8] sm:$0xff] %vm2498, %v2483
        %2501 = vst.msk [vmem:[#allocation4 + $0x10] sm:$0xff] %vm2498, %v2484
        %2502 = vst.msk [vmem:[#allocation4 + $0x18] sm:$0xff] %vm2498, %v2485
        %2503 = vst.msk [vmem:[#allocation4 + $0x20] sm:$0xff] %vm2498, %v2486
        %2504 = vst.msk [vmem:[#allocation4 + $0x28] sm:$0xff] %vm2498, %v2487
        %2505 = vst.msk [vmem:[#allocation4 + $0x30] sm:$0xff] %vm2498, %v2488
        %2506 = vst.msk [vmem:[#allocation4 + $0x38] sm:$0xff] %vm2498, %v2489
        %2507 = vst.msk [vmem:[#allocation4 + $0x40] sm:$0xff] %vm2498, %v2490
        %2508 = vst.msk [vmem:[#allocation4 + $0x48] sm:$0xff] %vm2498, %v2491
        %2509 = vst.msk [vmem:[#allocation4 + $0x50] sm:$0xff] %vm2498, %v2492
        %2510 = vst.msk [vmem:[#allocation4 + $0x58] sm:$0xff] %vm2498, %v2493
        %2511 = vst.msk [vmem:[#allocation4 + $0x60] sm:$0xff] %vm2498, %v2494
        %2512 = vst.msk [vmem:[#allocation4 + $0x68] sm:$0xff] %vm2498, %v2495
        %2513 = vst.msk [vmem:[#allocation4 + $0x70] sm:$0xff] %vm2498, %v2496
        %2514 = vst.msk [vmem:[#allocation4 + $0x78] sm:$0xff] %vm2498, %v2497
        %v2515 = vld [vmem:[#allocation5] sm:$0xff]
        %v2516 = vld [vmem:[#allocation5 + $0x8] sm:$0xff]
        %v2517 = vld [vmem:[#allocation5 + $0x10] sm:$0xff]
        %v2518 = vld [vmem:[#allocation5 + $0x18] sm:$0xff]
        %v2519 = vld [vmem:[#allocation5 + $0x20] sm:$0xff]
        %v2520 = vld [vmem:[#allocation5 + $0x28] sm:$0xff]
        %v2521 = vld [vmem:[#allocation5 + $0x30] sm:$0xff]
        %v2522 = vld [vmem:[#allocation5 + $0x38] sm:$0xff]
        %v2523 = vld [vmem:[#allocation5 + $0x40] sm:$0xff]
        %v2524 = vld [vmem:[#allocation5 + $0x48] sm:$0xff]
        %v2525 = vld [vmem:[#allocation5 + $0x50] sm:$0xff]
        %v2526 = vld [vmem:[#allocation5 + $0x58] sm:$0xff]
        %v2527 = vld [vmem:[#allocation5 + $0x60] sm:$0xff]
        %v2528 = vld [vmem:[#allocation5 + $0x68] sm:$0xff]
        %v2529 = vld [vmem:[#allocation5 + $0x70] sm:$0xff]
        %v2530 = vld [vmem:[#allocation5 + $0x78] sm:$0xff]
        %2532 = vset.pattern.permute.xlu0 0
        %2533 = vperm.xlu0 %2532, %v2243
        %v2534 = vpop.permute.xlu0 %2533
        %2537 = vset.pattern.permute.xlu0 0
        %2538 = vperm.xlu0 %2537, %v2245
        %v2539 = vpop.permute.xlu0 %2538
        %2542 = vset.pattern.permute.xlu0 0
        %2543 = vperm.xlu0 %2542, %v2247
        %v2544 = vpop.permute.xlu0 %2543
        %2547 = vset.pattern.permute.xlu0 0
        %2548 = vperm.xlu0 %2547, %v2249
        %v2549 = vpop.permute.xlu0 %2548
        %2552 = vset.pattern.permute.xlu0 0
        %2553 = vperm.xlu0 %2552, %v2251
        %v2554 = vpop.permute.xlu0 %2553
        %2557 = vset.pattern.permute.xlu0 0
        %2558 = vperm.xlu0 %2557, %v2253
        %v2559 = vpop.permute.xlu0 %2558
        %2562 = vset.pattern.permute.xlu0 0
        %2563 = vperm.xlu0 %2562, %v2255
        %v2564 = vpop.permute.xlu0 %2563
        %2567 = vset.pattern.permute.xlu0 0
        %2568 = vperm.xlu0 %2567, %v2257
        %v2569 = vpop.permute.xlu0 %2568
        %2572 = vset.pattern.permute.xlu0 0
        %2573 = vperm.xlu0 %2572, %v2259
        %v2574 = vpop.permute.xlu0 %2573
        %2577 = vset.pattern.permute.xlu0 0
        %2578 = vperm.xlu0 %2577, %v2261
        %v2579 = vpop.permute.xlu0 %2578
        %2582 = vset.pattern.permute.xlu0 0
        %2583 = vperm.xlu0 %2582, %v2263
        %v2584 = vpop.permute.xlu0 %2583
        %2587 = vset.pattern.permute.xlu0 0
        %2588 = vperm.xlu0 %2587, %v2265
        %v2589 = vpop.permute.xlu0 %2588
        %2592 = vset.pattern.permute.xlu0 0
        %2593 = vperm.xlu0 %2592, %v2267
        %v2594 = vpop.permute.xlu0 %2593
        %2597 = vset.pattern.permute.xlu0 0
        %2598 = vperm.xlu0 %2597, %v2269
        %v2599 = vpop.permute.xlu0 %2598
        %2602 = vset.pattern.permute.xlu0 0
        %2603 = vperm.xlu0 %2602, %v2271
        %v2604 = vpop.permute.xlu0 %2603
        %2607 = vset.pattern.permute.xlu0 0
        %2608 = vperm.xlu0 %2607, %v2273
        %v2609 = vpop.permute.xlu0 %2608
        %v2611 = vmul.f32 %v2534, %v2515
        %v2612 = vmul.f32 %v2539, %v2516
        %v2613 = vmul.f32 %v2544, %v2517
        %v2614 = vmul.f32 %v2549, %v2518
        %v2615 = vmul.f32 %v2554, %v2519
        %v2616 = vmul.f32 %v2559, %v2520
        %v2617 = vmul.f32 %v2564, %v2521
        %v2618 = vmul.f32 %v2569, %v2522
        %v2619 = vmul.f32 %v2574, %v2523
        %v2620 = vmul.f32 %v2579, %v2524
        %v2621 = vmul.f32 %v2584, %v2525
        %v2622 = vmul.f32 %v2589, %v2526
        %v2623 = vmul.f32 %v2594, %v2527
        %v2624 = vmul.f32 %v2599, %v2528
        %v2625 = vmul.f32 %v2604, %v2529
        %v2626 = vmul.f32 %v2609, %v2530
        %v2627 = vpack.c.bf16 %v2403, %v2402
        %v2628 = vpack.c.bf16 %v2405, %v2404
        %v2629 = vpack.c.bf16 %v2407, %v2406
        %v2630 = vpack.c.bf16 %v2409, %v2408
        %v2631 = vpack.c.bf16 %v2411, %v2410
        %v2632 = vpack.c.bf16 %v2413, %v2412
        %v2633 = vpack.c.bf16 %v2415, %v2414
        %v2634 = vpack.c.bf16 %v2417, %v2416
        %2635 = vmatprep.subr.bf16.mxu0 0
        %2636 = vmatpush1.bf16.msra.mxu0 %v1969
        %2637 = vmatprep.subr.bf16.mxu0 0
        %2638 = vmatpush1.bf16.msra.mxu0 %v1971
        %2639 = vmatprep.subr.bf16.mxu0 0
        %2640 = vmatpush1.bf16.msra.mxu0 %v1973
        %2641 = vmatprep.subr.bf16.mxu0 0
        %2642 = vmatpush1.bf16.msra.mxu0 %v1975
        %2643 = vmatprep.subr.bf16.mxu0 0
        %2644 = vmatpush1.bf16.msra.mxu0 %v1977
        %2645 = vmatprep.subr.bf16.mxu0 0
        %2646 = vmatpush1.bf16.msra.mxu0 %v1979
        %2647 = vmatprep.subr.bf16.mxu0 0
        %2648 = vmatpush1.bf16.msra.mxu0 %v1981
        %2649 = vmatprep.subr.bf16.mxu0 0
        %2650 = vmatpush1.bf16.msra.mxu0 %v1983
        %2651 = vmatprep.subr.bf16.mxu0 0
        %2652 = vmatpush1.bf16.msra.mxu0 0
        %2653 = vmatprep.subr.bf16.mxu0 0
        %2654 = vmatpush1.bf16.msra.mxu0 0
        %2655 = vmatprep.subr.bf16.mxu0 0
        %2656 = vmatpush1.bf16.msra.mxu0 0
        %2657 = vmatprep.subr.bf16.mxu0 0
        %2658 = vmatpush1.bf16.msra.mxu0 0
        %2659 = vmatprep.subr.bf16.mxu0 0
        %2660 = vmatpush1.bf16.msra.mxu0 0
        %2661 = vmatprep.subr.bf16.mxu0 0
        %2662 = vmatpush1.bf16.msra.mxu0 0
        %2663 = vmatprep.subr.bf16.mxu0 0
        %2664 = vmatpush1.bf16.msra.mxu0 0
        %2665 = vmatprep.subr.bf16.mxu0 0
        %2666 = vmatpush1.bf16.msra.mxu0 0
        %2667 = vmatprep.mubr.bf16.mxu0 0
        %2668 = vmatmul.mubr.bf16.gmra.mrb[0].mxu0 %v2627
        %v2669 = vpop.f32.mrb[0].mxu0
        %v2670 = vadd.f32 0.0, %v2669
        %v2671 = vpop.f32.mrb[0].mxu0
        %v2672 = vpop.f32.mrb[0].mxu0
        %v2673 = vadd.f32 0.0, %v2672
        %v2674 = vpop.f32.mrb[0].mxu0
        %2675 = vmatprep.mubr.bf16.mxu0 0
        %2676 = vmatmul.mubr.bf16.gmra.mrb[0].mxu0 %v2628
        %v2677 = vpop.f32.mrb[0].mxu0
        %v2678 = vadd.f32 0.0, %v2677
        %v2679 = vpop.f32.mrb[0].mxu0
        %v2680 = vpop.f32.mrb[0].mxu0
        %v2681 = vadd.f32 0.0, %v2680
        %v2682 = vpop.f32.mrb[0].mxu0
        %2683 = vmatprep.mubr.bf16.mxu0 0
        %2684 = vmatmul.mubr.bf16.gmra.mrb[0].mxu0 %v2629
        %v2685 = vpop.f32.mrb[0].mxu0
        %v2686 = vadd.f32 0.0, %v2685
        %v2687 = vpop.f32.mrb[0].mxu0
        %v2688 = vpop.f32.mrb[0].mxu0
        %v2689 = vadd.f32 0.0, %v2688
        %v2690 = vpop.f32.mrb[0].mxu0
        %2691 = vmatprep.mubr.bf16.mxu0 0
        %2692 = vmatmul.mubr.bf16.gmra.mrb[0].mxu0 %v2630
        %v2693 = vpop.f32.mrb[0].mxu0
        %v2694 = vadd.f32 0.0, %v2693
        %v2695 = vpop.f32.mrb[0].mxu0
        %v2696 = vpop.f32.mrb[0].mxu0
        %v2697 = vadd.f32 0.0, %v2696
        %v2698 = vpop.f32.mrb[0].mxu0
        %2699 = vmatprep.mubr.bf16.mxu0 0
        %2700 = vmatmul.mubr.bf16.gmra.mrb[0].mxu0 %v2631
        %v2701 = vpop.f32.mrb[0].mxu0
        %v2702 = vadd.f32 0.0, %v2701
        %v2703 = vpop.f32.mrb[0].mxu0
        %v2704 = vpop.f32.mrb[0].mxu0
        %v2705 = vadd.f32 0.0, %v2704
        %v2706 = vpop.f32.mrb[0].mxu0
        %2707 = vmatprep.mubr.bf16.mxu0 0
        %2708 = vmatmul.mubr.bf16.gmra.mrb[0].mxu0 %v2632
        %v2709 = vpop.f32.mrb[0].mxu0
        %v2710 = vadd.f32 0.0, %v2709
        %v2711 = vpop.f32.mrb[0].mxu0
        %v2712 = vpop.f32.mrb[0].mxu0
        %v2713 = vadd.f32 0.0, %v2712
        %v2714 = vpop.f32.mrb[0].mxu0
        %2715 = vmatprep.mubr.bf16.mxu0 0
        %2716 = vmatmul.mubr.bf16.gmra.mrb[0].mxu0 %v2633
        %v2717 = vpop.f32.mrb[0].mxu0
        %v2718 = vadd.f32 0.0, %v2717
        %v2719 = vpop.f32.mrb[0].mxu0
        %v2720 = vpop.f32.mrb[0].mxu0
        %v2721 = vadd.f32 0.0, %v2720
        %v2722 = vpop.f32.mrb[0].mxu0
        %2723 = vmatprep.mubr.bf16.mxu0 0
        %2724 = vmatmul.mubr.bf16.gmra.mrb[0].mxu0 %v2634
        %v2725 = vpop.f32.mrb[0].mxu0
        %v2726 = vadd.f32 0.0, %v2725
        %v2727 = vpop.f32.mrb[0].mxu0
        %v2728 = vpop.f32.mrb[0].mxu0
        %v2729 = vadd.f32 0.0, %v2728
        %v2730 = vpop.f32.mrb[0].mxu0
        %2731 = vdwg.mxu0
        %v2732 = vadd.f32 %v2611, %v2670
        %v2733 = vadd.f32 %v2612, %v2673
        %v2734 = vadd.f32 %v2613, %v2678
        %v2735 = vadd.f32 %v2614, %v2681
        %v2736 = vadd.f32 %v2615, %v2686
        %v2737 = vadd.f32 %v2616, %v2689
        %v2738 = vadd.f32 %v2617, %v2694
        %v2739 = vadd.f32 %v2618, %v2697
        %v2740 = vadd.f32 %v2619, %v2702
        %v2741 = vadd.f32 %v2620, %v2705
        %v2742 = vadd.f32 %v2621, %v2710
        %v2743 = vadd.f32 %v2622, %v2713
        %v2744 = vadd.f32 %v2623, %v2718
        %v2745 = vadd.f32 %v2624, %v2721
        %v2746 = vadd.f32 %v2625, %v2726
        %v2747 = vadd.f32 %v2626, %v2729
        %2748 = vst.msk [vmem:[#allocation5] sm:$0xff] %vm1994, %v2732
        %2749 = vst.msk [vmem:[#allocation5 + $0x8] sm:$0xff] %vm1994, %v2733
        %2750 = vst.msk [vmem:[#allocation5 + $0x10] sm:$0xff] %vm1994, %v2734
        %2751 = vst.msk [vmem:[#allocation5 + $0x18] sm:$0xff] %vm1994, %v2735
        %2752 = vst.msk [vmem:[#allocation5 + $0x20] sm:$0xff] %vm1994, %v2736
        %2753 = vst.msk [vmem:[#allocation5 + $0x28] sm:$0xff] %vm1994, %v2737
        %2754 = vst.msk [vmem:[#allocation5 + $0x30] sm:$0xff] %vm1994, %v2738
        %2755 = vst.msk [vmem:[#allocation5 + $0x38] sm:$0xff] %vm1994, %v2739
        %2756 = vst.msk [vmem:[#allocation5 + $0x40] sm:$0xff] %vm1994, %v2740
        %2757 = vst.msk [vmem:[#allocation5 + $0x48] sm:$0xff] %vm1994, %v2741
        %2758 = vst.msk [vmem:[#allocation5 + $0x50] sm:$0xff] %vm1994, %v2742
        %2759 = vst.msk [vmem:[#allocation5 + $0x58] sm:$0xff] %vm1994, %v2743
        %2760 = vst.msk [vmem:[#allocation5 + $0x60] sm:$0xff] %vm1994, %v2744
        %2761 = vst.msk [vmem:[#allocation5 + $0x68] sm:$0xff] %vm1994, %v2745
        %2762 = vst.msk [vmem:[#allocation5 + $0x70] sm:$0xff] %vm1994, %v2746
        %2763 = vst.msk [vmem:[#allocation5 + $0x78] sm:$0xff] %vm1994, %v2747
        %2764 = vst.msk [vmem:[#allocation3] sm:$0xff] %vm2498, %v2210
        %2765 = vst.msk [vmem:[#allocation3 + $0x8] sm:$0xff] %vm2498, %v2211
        %2766 = vst.msk [vmem:[#allocation3 + $0x10] sm:$0xff] %vm2498, %v2212
        %2767 = vst.msk [vmem:[#allocation3 + $0x18] sm:$0xff] %vm2498, %v2213
        %2768 = vst.msk [vmem:[#allocation3 + $0x20] sm:$0xff] %vm2498, %v2214
        %2769 = vst.msk [vmem:[#allocation3 + $0x28] sm:$0xff] %vm2498, %v2215
        %2770 = vst.msk [vmem:[#allocation3 + $0x30] sm:$0xff] %vm2498, %v2216
        %2771 = vst.msk [vmem:[#allocation3 + $0x38] sm:$0xff] %vm2498, %v2217
        %2772 = vst.msk [vmem:[#allocation3 + $0x40] sm:$0xff] %vm2498, %v2218
        %2773 = vst.msk [vmem:[#allocation3 + $0x48] sm:$0xff] %vm2498, %v2219
        %2774 = vst.msk [vmem:[#allocation3 + $0x50] sm:$0xff] %vm2498, %v2220
        %2775 = vst.msk [vmem:[#allocation3 + $0x58] sm:$0xff] %vm2498, %v2221
        %2776 = vst.msk [vmem:[#allocation3 + $0x60] sm:$0xff] %vm2498, %v2222
        %2777 = vst.msk [vmem:[#allocation3 + $0x68] sm:$0xff] %vm2498, %v2223
        %2778 = vst.msk [vmem:[#allocation3 + $0x70] sm:$0xff] %vm2498, %v2224
        %2779 = vst.msk [vmem:[#allocation3 + $0x78] sm:$0xff] %vm2498, %v2225
        %s2780 = scalar_lea.vmem [#allocation2], 64
        %v2781 = vld [vmem:[%s2780] sm:$0xff]
        %v2782 = vld [vmem:[%s2780 + $0x8] sm:$0xff]
        %v2783 = vld [vmem:[%s2780 + $0x10] sm:$0xff]
        %v2784 = vld [vmem:[%s2780 + $0x18] sm:$0xff]
        %v2785 = vld [vmem:[%s2780 + $0x20] sm:$0xff]
        %v2786 = vld [vmem:[%s2780 + $0x28] sm:$0xff]
        %v2787 = vld [vmem:[%s2780 + $0x30] sm:$0xff]
        %v2788 = vld [vmem:[%s2780 + $0x38] sm:$0xff]
        %2797 = vrot.lane.b32.xlu0 %v1968, 96
        %v2798 = vpop.permute.xlu0 %2797
        %2799 = vrot.lane.b32.xlu0 %v1970, 96
        %v2800 = vpop.permute.xlu0 %2799
        %2801 = vrot.lane.b32.xlu0 %v1972, 96
        %v2802 = vpop.permute.xlu0 %2801
        %2803 = vrot.lane.b32.xlu0 %v1974, 96
        %v2804 = vpop.permute.xlu0 %2803
        %2805 = vrot.lane.b32.xlu0 %v1976, 96
        %v2806 = vpop.permute.xlu0 %2805
        %2807 = vrot.lane.b32.xlu0 %v1978, 96
        %v2808 = vpop.permute.xlu0 %2807
        %2809 = vrot.lane.b32.xlu0 %v1980, 96
        %v2810 = vpop.permute.xlu0 %2809
        %2811 = vrot.lane.b32.xlu0 %v1982, 96
        %v2812 = vpop.permute.xlu0 %2811
        %v2814 = vsel %vm1994, %v2781, 0
        %v2817 = vsel %vm1994, %v2782, 0
        %v2820 = vsel %vm1994, %v2783, 0
        %v2823 = vsel %vm1994, %v2784, 0
        %v2826 = vsel %vm1994, %v2785, 0
        %v2829 = vsel %vm1994, %v2786, 0
        %v2832 = vsel %vm1994, %v2787, 0
        %v2835 = vsel %vm1994, %v2788, 0
        %v2838 = vsel %vm1994, %v2798, 0
        %v2841 = vsel %vm1994, %v2800, 0
        %v2844 = vsel %vm1994, %v2802, 0
        %v2847 = vsel %vm1994, %v2804, 0
        %v2850 = vsel %vm1994, %v2806, 0
        %v2853 = vsel %vm1994, %v2808, 0
        %v2856 = vsel %vm1994, %v2810, 0
        %v2859 = vsel %vm1994, %v2812, 0
        %2861 = vmatprep.subr.bf16.mxu0 0
        %2862 = vmatpush1.bf16.xpose.msra.mxu0 %v2838
        %2863 = vmatprep.subr.bf16.mxu0 0
        %2864 = vmatpush1.bf16.xpose.msra.mxu0 %v2841
        %2865 = vmatprep.subr.bf16.mxu0 0
        %2866 = vmatpush1.bf16.xpose.msra.mxu0 %v2844
        %2867 = vmatprep.subr.bf16.mxu0 0
        %2868 = vmatpush1.bf16.xpose.msra.mxu0 %v2847
        %2869 = vmatprep.subr.bf16.mxu0 0
        %2870 = vmatpush1.bf16.xpose.msra.mxu0 %v2850
        %2871 = vmatprep.subr.bf16.mxu0 0
        %2872 = vmatpush1.bf16.xpose.msra.mxu0 %v2853
        %2873 = vmatprep.subr.bf16.mxu0 0
        %2874 = vmatpush1.bf16.xpose.msra.mxu0 %v2856
        %2875 = vmatprep.subr.bf16.mxu0 0
        %2876 = vmatpush1.bf16.xpose.msra.mxu0 %v2859
        %2877 = vmatprep.subr.bf16.mxu0 0
        %2878 = vmatpush1.bf16.xpose.msra.mxu0 0
        %2879 = vmatprep.subr.bf16.mxu0 0
        %2880 = vmatpush1.bf16.xpose.msra.mxu0 0
        %2881 = vmatprep.subr.bf16.mxu0 0
        %2882 = vmatpush1.bf16.xpose.msra.mxu0 0
        %2883 = vmatprep.subr.bf16.mxu0 0
        %2884 = vmatpush1.bf16.xpose.msra.mxu0 0
        %2885 = vmatprep.subr.bf16.mxu0 0
        %2886 = vmatpush1.bf16.xpose.msra.mxu0 0
        %2887 = vmatprep.subr.bf16.mxu0 0
        %2888 = vmatpush1.bf16.xpose.msra.mxu0 0
        %2889 = vmatprep.subr.bf16.mxu0 0
        %2890 = vmatpush1.bf16.xpose.msra.mxu0 0
        %2891 = vmatprep.subr.bf16.mxu0 0
        %2892 = vmatpush1.bf16.xpose.msra.mxu0 0
        %2893 = vmatprep.mubr.bf16.mxu0 0
        %2894 = vmatmul.mubr.bf16.gmra.mrb[0].mxu0 %v2814
        %v2895 = vpop.f32.mrb[0].mxu0
        %v2896 = vadd.f32 0.0, %v2895
        %v2897 = vpop.f32.mrb[0].mxu0
        %v2898 = vpop.f32.mrb[0].mxu0
        %v2899 = vadd.f32 0.0, %v2898
        %v2900 = vpop.f32.mrb[0].mxu0
        %2901 = vmatprep.mubr.bf16.mxu0 0
        %2902 = vmatmul.mubr.bf16.gmra.mrb[0].mxu0 %v2817
        %v2903 = vpop.f32.mrb[0].mxu0
        %v2904 = vadd.f32 0.0, %v2903
        %v2905 = vpop.f32.mrb[0].mxu0
        %v2906 = vpop.f32.mrb[0].mxu0
        %v2907 = vadd.f32 0.0, %v2906
        %v2908 = vpop.f32.mrb[0].mxu0
        %2909 = vmatprep.mubr.bf16.mxu0 0
        %2910 = vmatmul.mubr.bf16.gmra.mrb[0].mxu0 %v2820
        %v2911 = vpop.f32.mrb[0].mxu0
        %v2912 = vadd.f32 0.0, %v2911
        %v2913 = vpop.f32.mrb[0].mxu0
        %v2914 = vpop.f32.mrb[0].mxu0
        %v2915 = vadd.f32 0.0, %v2914
        %v2916 = vpop.f32.mrb[0].mxu0
        %2917 = vmatprep.mubr.bf16.mxu0 0
        %2918 = vmatmul.mubr.bf16.gmra.mrb[0].mxu0 %v2823
        %v2919 = vpop.f32.mrb[0].mxu0
        %v2920 = vadd.f32 0.0, %v2919
        %v2921 = vpop.f32.mrb[0].mxu0
        %v2922 = vpop.f32.mrb[0].mxu0
        %v2923 = vadd.f32 0.0, %v2922
        %v2924 = vpop.f32.mrb[0].mxu0
        %2925 = vmatprep.mubr.bf16.mxu0 0
        %2926 = vmatmul.mubr.bf16.gmra.mrb[0].mxu0 %v2826
        %v2927 = vpop.f32.mrb[0].mxu0
        %v2928 = vadd.f32 0.0, %v2927
        %v2929 = vpop.f32.mrb[0].mxu0
        %v2930 = vpop.f32.mrb[0].mxu0
        %v2931 = vadd.f32 0.0, %v2930
        %v2932 = vpop.f32.mrb[0].mxu0
        %2933 = vmatprep.mubr.bf16.mxu0 0
        %2934 = vmatmul.mubr.bf16.gmra.mrb[0].mxu0 %v2829
        %v2935 = vpop.f32.mrb[0].mxu0
        %v2936 = vadd.f32 0.0, %v2935
        %v2937 = vpop.f32.mrb[0].mxu0
        %v2938 = vpop.f32.mrb[0].mxu0
        %v2939 = vadd.f32 0.0, %v2938
        %v2940 = vpop.f32.mrb[0].mxu0
        %2941 = vmatprep.mubr.bf16.mxu0 0
        %2942 = vmatmul.mubr.bf16.gmra.mrb[0].mxu0 %v2832
        %v2943 = vpop.f32.mrb[0].mxu0
        %v2944 = vadd.f32 0.0, %v2943
        %v2945 = vpop.f32.mrb[0].mxu0
        %v2946 = vpop.f32.mrb[0].mxu0
        %v2947 = vadd.f32 0.0, %v2946
        %v2948 = vpop.f32.mrb[0].mxu0
        %2949 = vmatprep.mubr.bf16.mxu0 0
        %2950 = vmatmul.mubr.bf16.gmra.mrb[0].mxu0 %v2835
        %v2951 = vpop.f32.mrb[0].mxu0
        %v2952 = vadd.f32 0.0, %v2951
        %v2953 = vpop.f32.mrb[0].mxu0
        %v2954 = vpop.f32.mrb[0].mxu0
        %v2955 = vadd.f32 0.0, %v2954
        %v2956 = vpop.f32.mrb[0].mxu0
        %2957 = vdwg.mxu0
        %v2958 = vsel %vm2145, %v2896, -1e+30
        %v2959 = vsel %vm2145, %v2899, -1e+30
        %v2960 = vsel %vm2145, %v2904, -1e+30
        %v2961 = vsel %vm2145, %v2907, -1e+30
        %v2962 = vsel %vm2145, %v2912, -1e+30
        %v2963 = vsel %vm2145, %v2915, -1e+30
        %v2964 = vsel %vm2145, %v2920, -1e+30
        %v2965 = vsel %vm2145, %v2923, -1e+30
        %v2966 = vsel %vm2145, %v2928, -1e+30
        %v2967 = vsel %vm2145, %v2931, -1e+30
        %v2968 = vsel %vm2145, %v2936, -1e+30
        %v2969 = vsel %vm2145, %v2939, -1e+30
        %v2970 = vsel %vm2145, %v2944, -1e+30
        %v2971 = vsel %vm2145, %v2947, -1e+30
        %v2972 = vsel %vm2145, %v2952, -1e+30
        %v2973 = vsel %vm2145, %v2955, -1e+30
        %s2974 = scalar_lea.vmem [#allocation3], 128
        %v2975 = vld [vmem:[%s2974] sm:$0xff]
        %v2976 = vld [vmem:[%s2974 + $0x8] sm:$0xff]
        %v2977 = vld [vmem:[%s2974 + $0x10] sm:$0xff]
        %v2978 = vld [vmem:[%s2974 + $0x18] sm:$0xff]
        %v2979 = vld [vmem:[%s2974 + $0x20] sm:$0xff]
        %v2980 = vld [vmem:[%s2974 + $0x28] sm:$0xff]
        %v2981 = vld [vmem:[%s2974 + $0x30] sm:$0xff]
        %v2982 = vld [vmem:[%s2974 + $0x38] sm:$0xff]
        %v2983 = vld [vmem:[%s2974 + $0x40] sm:$0xff]
        %v2984 = vld [vmem:[%s2974 + $0x48] sm:$0xff]
        %v2985 = vld [vmem:[%s2974 + $0x50] sm:$0xff]
        %v2986 = vld [vmem:[%s2974 + $0x58] sm:$0xff]
        %v2987 = vld [vmem:[%s2974 + $0x60] sm:$0xff]
        %v2988 = vld [vmem:[%s2974 + $0x68] sm:$0xff]
        %v2989 = vld [vmem:[%s2974 + $0x70] sm:$0xff]
        %v2990 = vld [vmem:[%s2974 + $0x78] sm:$0xff]
        %2991 = vmax.xlane.f32.xlu0 %v2958
        %v2992 = vpop.xlane.xlu0 %2991
        %2993 = vmax.xlane.f32.xlu0 %v2959
        %v2994 = vpop.xlane.xlu0 %2993
        %2995 = vmax.xlane.f32.xlu0 %v2960
        %v2996 = vpop.xlane.xlu0 %2995
        %2997 = vmax.xlane.f32.xlu0 %v2961
        %v2998 = vpop.xlane.xlu0 %2997
        %2999 = vmax.xlane.f32.xlu0 %v2962
        %v3000 = vpop.xlane.xlu0 %2999
        %3001 = vmax.xlane.f32.xlu0 %v2963
        %v3002 = vpop.xlane.xlu0 %3001
        %3003 = vmax.xlane.f32.xlu0 %v2964
        %v3004 = vpop.xlane.xlu0 %3003
        %3005 = vmax.xlane.f32.xlu0 %v2965
        %v3006 = vpop.xlane.xlu0 %3005
        %3007 = vmax.xlane.f32.xlu0 %v2966
        %v3008 = vpop.xlane.xlu0 %3007
        %3009 = vmax.xlane.f32.xlu0 %v2967
        %v3010 = vpop.xlane.xlu0 %3009
        %3011 = vmax.xlane.f32.xlu0 %v2968
        %v3012 = vpop.xlane.xlu0 %3011
        %3013 = vmax.xlane.f32.xlu0 %v2969
        %v3014 = vpop.xlane.xlu0 %3013
        %3015 = vmax.xlane.f32.xlu0 %v2970
        %v3016 = vpop.xlane.xlu0 %3015
        %3017 = vmax.xlane.f32.xlu0 %v2971
        %v3018 = vpop.xlane.xlu0 %3017
        %3019 = vmax.xlane.f32.xlu0 %v2972
        %v3020 = vpop.xlane.xlu0 %3019
        %3021 = vmax.xlane.f32.xlu0 %v2973
        %v3022 = vpop.xlane.xlu0 %3021
        %v3023 = vmax.f32 %v2975, %v2992
        %v3024 = vmax.f32 %v2976, %v2994
        %v3025 = vmax.f32 %v2977, %v2996
        %v3026 = vmax.f32 %v2978, %v2998
        %v3027 = vmax.f32 %v2979, %v3000
        %v3028 = vmax.f32 %v2980, %v3002
        %v3029 = vmax.f32 %v2981, %v3004
        %v3030 = vmax.f32 %v2982, %v3006
        %v3031 = vmax.f32 %v2983, %v3008
        %v3032 = vmax.f32 %v2984, %v3010
        %v3033 = vmax.f32 %v2985, %v3012
        %v3034 = vmax.f32 %v2986, %v3014
        %v3035 = vmax.f32 %v2987, %v3016
        %v3036 = vmax.f32 %v2988, %v3018
        %v3037 = vmax.f32 %v2989, %v3020
        %v3038 = vmax.f32 %v2990, %v3022
        %v3039 = vsub.f32 %v2975, %v3023
        %v3040 = vsub.f32 %v2976, %v3024
        %v3041 = vsub.f32 %v2977, %v3025
        %v3042 = vsub.f32 %v2978, %v3026
        %v3043 = vsub.f32 %v2979, %v3027
        %v3044 = vsub.f32 %v2980, %v3028
        %v3045 = vsub.f32 %v2981, %v3029
        %v3046 = vsub.f32 %v2982, %v3030
        %v3047 = vsub.f32 %v2983, %v3031
        %v3048 = vsub.f32 %v2984, %v3032
        %v3049 = vsub.f32 %v2985, %v3033
        %v3050 = vsub.f32 %v2986, %v3034
        %v3051 = vsub.f32 %v2987, %v3035
        %v3052 = vsub.f32 %v2988, %v3036
        %v3053 = vsub.f32 %v2989, %v3037
        %v3054 = vsub.f32 %v2990, %v3038
        %v3055 = vmul.f32 %v3039, 1.442695
        %v3056 = vpow.pop %v3055
        %v3057 = vmul.f32 %v3040, 1.442695
        %v3058 = vpow.pop %v3057
        %v3059 = vmul.f32 %v3041, 1.442695
        %v3060 = vpow.pop %v3059
        %v3061 = vmul.f32 %v3042, 1.442695
        %v3062 = vpow.pop %v3061
        %v3063 = vmul.f32 %v3043, 1.442695
        %v3064 = vpow.pop %v3063
        %v3065 = vmul.f32 %v3044, 1.442695
        %v3066 = vpow.pop %v3065
        %v3067 = vmul.f32 %v3045, 1.442695
        %v3068 = vpow.pop %v3067
        %v3069 = vmul.f32 %v3046, 1.442695
        %v3070 = vpow.pop %v3069
        %v3071 = vmul.f32 %v3047, 1.442695
        %v3072 = vpow.pop %v3071
        %v3073 = vmul.f32 %v3048, 1.442695
        %v3074 = vpow.pop %v3073
        %v3075 = vmul.f32 %v3049, 1.442695
        %v3076 = vpow.pop %v3075
        %v3077 = vmul.f32 %v3050, 1.442695
        %v3078 = vpow.pop %v3077
        %v3079 = vmul.f32 %v3051, 1.442695
        %v3080 = vpow.pop %v3079
        %v3081 = vmul.f32 %v3052, 1.442695
        %v3082 = vpow.pop %v3081
        %v3083 = vmul.f32 %v3053, 1.442695
        %v3084 = vpow.pop %v3083
        %v3085 = vmul.f32 %v3054, 1.442695
        %v3086 = vpow.pop %v3085
        %3088 = vset.pattern.permute.xlu0 0
        %3089 = vperm.xlu0 %3088, %v3023
        %v3090 = vpop.permute.xlu0 %3089
        %3093 = vset.pattern.permute.xlu0 0
        %3094 = vperm.xlu0 %3093, %v3024
        %v3095 = vpop.permute.xlu0 %3094
        %3098 = vset.pattern.permute.xlu0 0
        %3099 = vperm.xlu0 %3098, %v3025
        %v3100 = vpop.permute.xlu0 %3099
        %3103 = vset.pattern.permute.xlu0 0
        %3104 = vperm.xlu0 %3103, %v3026
        %v3105 = vpop.permute.xlu0 %3104
        %3108 = vset.pattern.permute.xlu0 0
        %3109 = vperm.xlu0 %3108, %v3027
        %v3110 = vpop.permute.xlu0 %3109
        %3113 = vset.pattern.permute.xlu0 0
        %3114 = vperm.xlu0 %3113, %v3028
        %v3115 = vpop.permute.xlu0 %3114
        %3118 = vset.pattern.permute.xlu0 0
        %3119 = vperm.xlu0 %3118, %v3029
        %v3120 = vpop.permute.xlu0 %3119
        %3123 = vset.pattern.permute.xlu0 0
        %3124 = vperm.xlu0 %3123, %v3030
        %v3125 = vpop.permute.xlu0 %3124
        %3128 = vset.pattern.permute.xlu0 0
        %3129 = vperm.xlu0 %3128, %v3031
        %v3130 = vpop.permute.xlu0 %3129
        %3133 = vset.pattern.permute.xlu0 0
        %3134 = vperm.xlu0 %3133, %v3032
        %v3135 = vpop.permute.xlu0 %3134
        %3138 = vset.pattern.permute.xlu0 0
        %3139 = vperm.xlu0 %3138, %v3033
        %v3140 = vpop.permute.xlu0 %3139
        %3143 = vset.pattern.permute.xlu0 0
        %3144 = vperm.xlu0 %3143, %v3034
        %v3145 = vpop.permute.xlu0 %3144
        %3148 = vset.pattern.permute.xlu0 0
        %3149 = vperm.xlu0 %3148, %v3035
        %v3150 = vpop.permute.xlu0 %3149
        %3153 = vset.pattern.permute.xlu0 0
        %3154 = vperm.xlu0 %3153, %v3036
        %v3155 = vpop.permute.xlu0 %3154
        %3158 = vset.pattern.permute.xlu0 0
        %3159 = vperm.xlu0 %3158, %v3037
        %v3160 = vpop.permute.xlu0 %3159
        %3163 = vset.pattern.permute.xlu0 0
        %3164 = vperm.xlu0 %3163, %v3038
        %v3165 = vpop.permute.xlu0 %3164
        %v3167 = vsub.f32 %v2958, %v3090
        %v3168 = vsub.f32 %v2959, %v3095
        %v3169 = vsub.f32 %v2960, %v3100
        %v3170 = vsub.f32 %v2961, %v3105
        %v3171 = vsub.f32 %v2962, %v3110
        %v3172 = vsub.f32 %v2963, %v3115
        %v3173 = vsub.f32 %v2964, %v3120
        %v3174 = vsub.f32 %v2965, %v3125
        %v3175 = vsub.f32 %v2966, %v3130
        %v3176 = vsub.f32 %v2967, %v3135
        %v3177 = vsub.f32 %v2968, %v3140
        %v3178 = vsub.f32 %v2969, %v3145
        %v3179 = vsub.f32 %v2970, %v3150
        %v3180 = vsub.f32 %v2971, %v3155
        %v3181 = vsub.f32 %v2972, %v3160
        %v3182 = vsub.f32 %v2973, %v3165
        %v3183 = vmul.f32 %v3167, 1.442695
        %v3184 = vpow.pop %v3183
        %v3185 = vmul.f32 %v3168, 1.442695
        %v3186 = vpow.pop %v3185
        %v3187 = vmul.f32 %v3169, 1.442695
        %v3188 = vpow.pop %v3187
        %v3189 = vmul.f32 %v3170, 1.442695
        %v3190 = vpow.pop %v3189
        %v3191 = vmul.f32 %v3171, 1.442695
        %v3192 = vpow.pop %v3191
        %v3193 = vmul.f32 %v3172, 1.442695
        %v3194 = vpow.pop %v3193
        %v3195 = vmul.f32 %v3173, 1.442695
        %v3196 = vpow.pop %v3195
        %v3197 = vmul.f32 %v3174, 1.442695
        %v3198 = vpow.pop %v3197
        %v3199 = vmul.f32 %v3175, 1.442695
        %v3200 = vpow.pop %v3199
        %v3201 = vmul.f32 %v3176, 1.442695
        %v3202 = vpow.pop %v3201
        %v3203 = vmul.f32 %v3177, 1.442695
        %v3204 = vpow.pop %v3203
        %v3205 = vmul.f32 %v3178, 1.442695
        %v3206 = vpow.pop %v3205
        %v3207 = vmul.f32 %v3179, 1.442695
        %v3208 = vpow.pop %v3207
        %v3209 = vmul.f32 %v3180, 1.442695
        %v3210 = vpow.pop %v3209
        %v3211 = vmul.f32 %v3181, 1.442695
        %v3212 = vpow.pop %v3211
        %v3213 = vmul.f32 %v3182, 1.442695
        %v3214 = vpow.pop %v3213
        %v3215 = vsel %vm2145, %v3184, 0.0
        %v3216 = vsel %vm2145, %v3186, 0.0
        %v3217 = vsel %vm2145, %v3188, 0.0
        %v3218 = vsel %vm2145, %v3190, 0.0
        %v3219 = vsel %vm2145, %v3192, 0.0
        %v3220 = vsel %vm2145, %v3194, 0.0
        %v3221 = vsel %vm2145, %v3196, 0.0
        %v3222 = vsel %vm2145, %v3198, 0.0
        %v3223 = vsel %vm2145, %v3200, 0.0
        %v3224 = vsel %vm2145, %v3202, 0.0
        %v3225 = vsel %vm2145, %v3204, 0.0
        %v3226 = vsel %vm2145, %v3206, 0.0
        %v3227 = vsel %vm2145, %v3208, 0.0
        %v3228 = vsel %vm2145, %v3210, 0.0
        %v3229 = vsel %vm2145, %v3212, 0.0
        %v3230 = vsel %vm2145, %v3214, 0.0
        %s3231 = scalar_lea.vmem [#allocation4], 128
        %v3232 = vld [vmem:[%s3231] sm:$0xff]
        %v3233 = vld [vmem:[%s3231 + $0x8] sm:$0xff]
        %v3234 = vld [vmem:[%s3231 + $0x10] sm:$0xff]
        %v3235 = vld [vmem:[%s3231 + $0x18] sm:$0xff]
        %v3236 = vld [vmem:[%s3231 + $0x20] sm:$0xff]
        %v3237 = vld [vmem:[%s3231 + $0x28] sm:$0xff]
        %v3238 = vld [vmem:[%s3231 + $0x30] sm:$0xff]
        %v3239 = vld [vmem:[%s3231 + $0x38] sm:$0xff]
        %v3240 = vld [vmem:[%s3231 + $0x40] sm:$0xff]
        %v3241 = vld [vmem:[%s3231 + $0x48] sm:$0xff]
        %v3242 = vld [vmem:[%s3231 + $0x50] sm:$0xff]
        %v3243 = vld [vmem:[%s3231 + $0x58] sm:$0xff]
        %v3244 = vld [vmem:[%s3231 + $0x60] sm:$0xff]
        %v3245 = vld [vmem:[%s3231 + $0x68] sm:$0xff]
        %v3246 = vld [vmem:[%s3231 + $0x70] sm:$0xff]
        %v3247 = vld [vmem:[%s3231 + $0x78] sm:$0xff]
        %v3248 = vmul.f32 %v3056, %v3232
        %v3249 = vmul.f32 %v3058, %v3233
        %v3250 = vmul.f32 %v3060, %v3234
        %v3251 = vmul.f32 %v3062, %v3235
        %v3252 = vmul.f32 %v3064, %v3236
        %v3253 = vmul.f32 %v3066, %v3237
        %v3254 = vmul.f32 %v3068, %v3238
        %v3255 = vmul.f32 %v3070, %v3239
        %v3256 = vmul.f32 %v3072, %v3240
        %v3257 = vmul.f32 %v3074, %v3241
        %v3258 = vmul.f32 %v3076, %v3242
        %v3259 = vmul.f32 %v3078, %v3243
        %v3260 = vmul.f32 %v3080, %v3244
        %v3261 = vmul.f32 %v3082, %v3245
        %v3262 = vmul.f32 %v3084, %v3246
        %v3263 = vmul.f32 %v3086, %v3247
        %3264 = vadd.xlane.f32.xlu0 %v3215
        %v3265 = vpop.xlane.xlu0 %3264
        %3266 = vadd.xlane.f32.xlu0 %v3216
        %v3267 = vpop.xlane.xlu0 %3266
        %3268 = vadd.xlane.f32.xlu0 %v3217
        %v3269 = vpop.xlane.xlu0 %3268
        %3270 = vadd.xlane.f32.xlu0 %v3218
        %v3271 = vpop.xlane.xlu0 %3270
        %3272 = vadd.xlane.f32.xlu0 %v3219
        %v3273 = vpop.xlane.xlu0 %3272
        %3274 = vadd.xlane.f32.xlu0 %v3220
        %v3275 = vpop.xlane.xlu0 %3274
        %3276 = vadd.xlane.f32.xlu0 %v3221
        %v3277 = vpop.xlane.xlu0 %3276
        %3278 = vadd.xlane.f32.xlu0 %v3222
        %v3279 = vpop.xlane.xlu0 %3278
        %3280 = vadd.xlane.f32.xlu0 %v3223
        %v3281 = vpop.xlane.xlu0 %3280
        %3282 = vadd.xlane.f32.xlu0 %v3224
        %v3283 = vpop.xlane.xlu0 %3282
        %3284 = vadd.xlane.f32.xlu0 %v3225
        %v3285 = vpop.xlane.xlu0 %3284
        %3286 = vadd.xlane.f32.xlu0 %v3226
        %v3287 = vpop.xlane.xlu0 %3286
        %3288 = vadd.xlane.f32.xlu0 %v3227
        %v3289 = vpop.xlane.xlu0 %3288
        %3290 = vadd.xlane.f32.xlu0 %v3228
        %v3291 = vpop.xlane.xlu0 %3290
        %3292 = vadd.xlane.f32.xlu0 %v3229
        %v3293 = vpop.xlane.xlu0 %3292
        %3294 = vadd.xlane.f32.xlu0 %v3230
        %v3295 = vpop.xlane.xlu0 %3294
        %v3296 = vadd.f32 %v3248, %v3265
        %v3297 = vadd.f32 %v3249, %v3267
        %v3298 = vadd.f32 %v3250, %v3269
        %v3299 = vadd.f32 %v3251, %v3271
        %v3300 = vadd.f32 %v3252, %v3273
        %v3301 = vadd.f32 %v3253, %v3275
        %v3302 = vadd.f32 %v3254, %v3277
        %v3303 = vadd.f32 %v3255, %v3279
        %v3304 = vadd.f32 %v3256, %v3281
        %v3305 = vadd.f32 %v3257, %v3283
        %v3306 = vadd.f32 %v3258, %v3285
        %v3307 = vadd.f32 %v3259, %v3287
        %v3308 = vadd.f32 %v3260, %v3289
        %v3309 = vadd.f32 %v3261, %v3291
        %v3310 = vadd.f32 %v3262, %v3293
        %v3311 = vadd.f32 %v3263, %v3295
        %3312 = vst.msk [vmem:[%s3231] sm:$0xff] %vm2498, %v3296
        %3313 = vst.msk [vmem:[%s3231 + $0x8] sm:$0xff] %vm2498, %v3297
        %3314 = vst.msk [vmem:[%s3231 + $0x10] sm:$0xff] %vm2498, %v3298
        %3315 = vst.msk [vmem:[%s3231 + $0x18] sm:$0xff] %vm2498, %v3299
        %3316 = vst.msk [vmem:[%s3231 + $0x20] sm:$0xff] %vm2498, %v3300
        %3317 = vst.msk [vmem:[%s3231 + $0x28] sm:$0xff] %vm2498, %v3301
        %3318 = vst.msk [vmem:[%s3231 + $0x30] sm:$0xff] %vm2498, %v3302
        %3319 = vst.msk [vmem:[%s3231 + $0x38] sm:$0xff] %vm2498, %v3303
        %3320 = vst.msk [vmem:[%s3231 + $0x40] sm:$0xff] %vm2498, %v3304
        %3321 = vst.msk [vmem:[%s3231 + $0x48] sm:$0xff] %vm2498, %v3305
        %3322 = vst.msk [vmem:[%s3231 + $0x50] sm:$0xff] %vm2498, %v3306
        %3323 = vst.msk [vmem:[%s3231 + $0x58] sm:$0xff] %vm2498, %v3307
        %3324 = vst.msk [vmem:[%s3231 + $0x60] sm:$0xff] %vm2498, %v3308
        %3325 = vst.msk [vmem:[%s3231 + $0x68] sm:$0xff] %vm2498, %v3309
        %3326 = vst.msk [vmem:[%s3231 + $0x70] sm:$0xff] %vm2498, %v3310
        %3327 = vst.msk [vmem:[%s3231 + $0x78] sm:$0xff] %vm2498, %v3311
        %s3328 = scalar_lea.vmem [#allocation5], 128
        %v3329 = vld [vmem:[%s3328] sm:$0xff]
        %v3330 = vld [vmem:[%s3328 + $0x8] sm:$0xff]
        %v3331 = vld [vmem:[%s3328 + $0x10] sm:$0xff]
        %v3332 = vld [vmem:[%s3328 + $0x18] sm:$0xff]
        %v3333 = vld [vmem:[%s3328 + $0x20] sm:$0xff]
        %v3334 = vld [vmem:[%s3328 + $0x28] sm:$0xff]
        %v3335 = vld [vmem:[%s3328 + $0x30] sm:$0xff]
        %v3336 = vld [vmem:[%s3328 + $0x38] sm:$0xff]
        %v3337 = vld [vmem:[%s3328 + $0x40] sm:$0xff]
        %v3338 = vld [vmem:[%s3328 + $0x48] sm:$0xff]
        %v3339 = vld [vmem:[%s3328 + $0x50] sm:$0xff]
        %v3340 = vld [vmem:[%s3328 + $0x58] sm:$0xff]
        %v3341 = vld [vmem:[%s3328 + $0x60] sm:$0xff]
        %v3342 = vld [vmem:[%s3328 + $0x68] sm:$0xff]
        %v3343 = vld [vmem:[%s3328 + $0x70] sm:$0xff]
        %v3344 = vld [vmem:[%s3328 + $0x78] sm:$0xff]
        %3346 = vset.pattern.permute.xlu0 0
        %3347 = vperm.xlu0 %3346, %v3056
        %v3348 = vpop.permute.xlu0 %3347
        %3351 = vset.pattern.permute.xlu0 0
        %3352 = vperm.xlu0 %3351, %v3058
        %v3353 = vpop.permute.xlu0 %3352
        %3356 = vset.pattern.permute.xlu0 0
        %3357 = vperm.xlu0 %3356, %v3060
        %v3358 = vpop.permute.xlu0 %3357
        %3361 = vset.pattern.permute.xlu0 0
        %3362 = vperm.xlu0 %3361, %v3062
        %v3363 = vpop.permute.xlu0 %3362
        %3366 = vset.pattern.permute.xlu0 0
        %3367 = vperm.xlu0 %3366, %v3064
        %v3368 = vpop.permute.xlu0 %3367
        %3371 = vset.pattern.permute.xlu0 0
        %3372 = vperm.xlu0 %3371, %v3066
        %v3373 = vpop.permute.xlu0 %3372
        %3376 = vset.pattern.permute.xlu0 0
        %3377 = vperm.xlu0 %3376, %v3068
        %v3378 = vpop.permute.xlu0 %3377
        %3381 = vset.pattern.permute.xlu0 0
        %3382 = vperm.xlu0 %3381, %v3070
        %v3383 = vpop.permute.xlu0 %3382
        %3386 = vset.pattern.permute.xlu0 0
        %3387 = vperm.xlu0 %3386, %v3072
        %v3388 = vpop.permute.xlu0 %3387
        %3391 = vset.pattern.permute.xlu0 0
        %3392 = vperm.xlu0 %3391, %v3074
        %v3393 = vpop.permute.xlu0 %3392
        %3396 = vset.pattern.permute.xlu0 0
        %3397 = vperm.xlu0 %3396, %v3076
        %v3398 = vpop.permute.xlu0 %3397
        %3401 = vset.pattern.permute.xlu0 0
        %3402 = vperm.xlu0 %3401, %v3078
        %v3403 = vpop.permute.xlu0 %3402
        %3406 = vset.pattern.permute.xlu0 0
        %3407 = vperm.xlu0 %3406, %v3080
        %v3408 = vpop.permute.xlu0 %3407
        %3411 = vset.pattern.permute.xlu0 0
        %3412 = vperm.xlu0 %3411, %v3082
        %v3413 = vpop.permute.xlu0 %3412
        %3416 = vset.pattern.permute.xlu0 0
        %3417 = vperm.xlu0 %3416, %v3084
        %v3418 = vpop.permute.xlu0 %3417
        %3421 = vset.pattern.permute.xlu0 0
        %3422 = vperm.xlu0 %3421, %v3086
        %v3423 = vpop.permute.xlu0 %3422
        %v3425 = vmul.f32 %v3348, %v3329
        %v3426 = vmul.f32 %v3353, %v3330
        %v3427 = vmul.f32 %v3358, %v3331
        %v3428 = vmul.f32 %v3363, %v3332
        %v3429 = vmul.f32 %v3368, %v3333
        %v3430 = vmul.f32 %v3373, %v3334
        %v3431 = vmul.f32 %v3378, %v3335
        %v3432 = vmul.f32 %v3383, %v3336
        %v3433 = vmul.f32 %v3388, %v3337
        %v3434 = vmul.f32 %v3393, %v3338
        %v3435 = vmul.f32 %v3398, %v3339
        %v3436 = vmul.f32 %v3403, %v3340
        %v3437 = vmul.f32 %v3408, %v3341
        %v3438 = vmul.f32 %v3413, %v3342
        %v3439 = vmul.f32 %v3418, %v3343
        %v3440 = vmul.f32 %v3423, %v3344
        %v3441 = vpack.c.bf16 %v3216, %v3215
        %v3442 = vpack.c.bf16 %v3218, %v3217
        %v3443 = vpack.c.bf16 %v3220, %v3219
        %v3444 = vpack.c.bf16 %v3222, %v3221
        %v3445 = vpack.c.bf16 %v3224, %v3223
        %v3446 = vpack.c.bf16 %v3226, %v3225
        %v3447 = vpack.c.bf16 %v3228, %v3227
        %v3448 = vpack.c.bf16 %v3230, %v3229
        %3457 = vrot.lane.b32.xlu0 %v1969, 96
        %v3458 = vpop.permute.xlu0 %3457
        %3459 = vrot.lane.b32.xlu0 %v1971, 96
        %v3460 = vpop.permute.xlu0 %3459
        %3461 = vrot.lane.b32.xlu0 %v1973, 96
        %v3462 = vpop.permute.xlu0 %3461
        %3463 = vrot.lane.b32.xlu0 %v1975, 96
        %v3464 = vpop.permute.xlu0 %3463
        %3465 = vrot.lane.b32.xlu0 %v1977, 96
        %v3466 = vpop.permute.xlu0 %3465
        %3467 = vrot.lane.b32.xlu0 %v1979, 96
        %v3468 = vpop.permute.xlu0 %3467
        %3469 = vrot.lane.b32.xlu0 %v1981, 96
        %v3470 = vpop.permute.xlu0 %3469
        %3471 = vrot.lane.b32.xlu0 %v1983, 96
        %v3472 = vpop.permute.xlu0 %3471
        %3481 = vmatprep.subr.bf16.mxu0 0
        %3482 = vmatpush1.bf16.msra.mxu0 %v3458
        %3483 = vmatprep.subr.bf16.mxu0 0
        %3484 = vmatpush1.bf16.msra.mxu0 %v3460
        %3485 = vmatprep.subr.bf16.mxu0 0
        %3486 = vmatpush1.bf16.msra.mxu0 %v3462
        %3487 = vmatprep.subr.bf16.mxu0 0
        %3488 = vmatpush1.bf16.msra.mxu0 %v3464
        %3489 = vmatprep.subr.bf16.mxu0 0
        %3490 = vmatpush1.bf16.msra.mxu0 %v3466
        %3491 = vmatprep.subr.bf16.mxu0 0
        %3492 = vmatpush1.bf16.msra.mxu0 %v3468
        %3493 = vmatprep.subr.bf16.mxu0 0
        %3494 = vmatpush1.bf16.msra.mxu0 %v3470
        %3495 = vmatprep.subr.bf16.mxu0 0
        %3496 = vmatpush1.bf16.msra.mxu0 %v3472
        %3497 = vmatprep.subr.bf16.mxu0 0
        %3498 = vmatpush1.bf16.msra.mxu0 0
        %3499 = vmatprep.subr.bf16.mxu0 0
        %3500 = vmatpush1.bf16.msra.mxu0 0
        %3501 = vmatprep.subr.bf16.mxu0 0
        %3502 = vmatpush1.bf16.msra.mxu0 0
        %3503 = vmatprep.subr.bf16.mxu0 0
        %3504 = vmatpush1.bf16.msra.mxu0 0
        %3505 = vmatprep.subr.bf16.mxu0 0
        %3506 = vmatpush1.bf16.msra.mxu0 0
        %3507 = vmatprep.subr.bf16.mxu0 0
        %3508 = vmatpush1.bf16.msra.mxu0 0
        %3509 = vmatprep.subr.bf16.mxu0 0
        %3510 = vmatpush1.bf16.msra.mxu0 0
        %3511 = vmatprep.subr.bf16.mxu0 0
        %3512 = vmatpush1.bf16.msra.mxu0 0
        %3513 = vmatprep.mubr.bf16.mxu0 0
        %3514 = vmatmul.mubr.bf16.gmra.mrb[0].mxu0 %v3441
        %v3515 = vpop.f32.mrb[0].mxu0
        %v3516 = vadd.f32 0.0, %v3515
        %v3517 = vpop.f32.mrb[0].mxu0
        %v3518 = vpop.f32.mrb[0].mxu0
        %v3519 = vadd.f32 0.0, %v3518
        %v3520 = vpop.f32.mrb[0].mxu0
        %3521 = vmatprep.mubr.bf16.mxu0 0
        %3522 = vmatmul.mubr.bf16.gmra.mrb[0].mxu0 %v3442
        %v3523 = vpop.f32.mrb[0].mxu0
        %v3524 = vadd.f32 0.0, %v3523
        %v3525 = vpop.f32.mrb[0].mxu0
        %v3526 = vpop.f32.mrb[0].mxu0
        %v3527 = vadd.f32 0.0, %v3526
        %v3528 = vpop.f32.mrb[0].mxu0
        %3529 = vmatprep.mubr.bf16.mxu0 0
        %3530 = vmatmul.mubr.bf16.gmra.mrb[0].mxu0 %v3443
        %v3531 = vpop.f32.mrb[0].mxu0
        %v3532 = vadd.f32 0.0, %v3531
        %v3533 = vpop.f32.mrb[0].mxu0
        %v3534 = vpop.f32.mrb[0].mxu0
        %v3535 = vadd.f32 0.0, %v3534
        %v3536 = vpop.f32.mrb[0].mxu0
        %3537 = vmatprep.mubr.bf16.mxu0 0
        %3538 = vmatmul.mubr.bf16.gmra.mrb[0].mxu0 %v3444
        %v3539 = vpop.f32.mrb[0].mxu0
        %v3540 = vadd.f32 0.0, %v3539
        %v3541 = vpop.f32.mrb[0].mxu0
        %v3542 = vpop.f32.mrb[0].mxu0
        %v3543 = vadd.f32 0.0, %v3542
        %v3544 = vpop.f32.mrb[0].mxu0
        %3545 = vmatprep.mubr.bf16.mxu0 0
        %3546 = vmatmul.mubr.bf16.gmra.mrb[0].mxu0 %v3445
        %v3547 = vpop.f32.mrb[0].mxu0
        %v3548 = vadd.f32 0.0, %v3547
        %v3549 = vpop.f32.mrb[0].mxu0
        %v3550 = vpop.f32.mrb[0].mxu0
        %v3551 = vadd.f32 0.0, %v3550
        %v3552 = vpop.f32.mrb[0].mxu0
        %3553 = vmatprep.mubr.bf16.mxu0 0
        %3554 = vmatmul.mubr.bf16.gmra.mrb[0].mxu0 %v3446
        %v3555 = vpop.f32.mrb[0].mxu0
        %v3556 = vadd.f32 0.0, %v3555
        %v3557 = vpop.f32.mrb[0].mxu0
        %v3558 = vpop.f32.mrb[0].mxu0
        %v3559 = vadd.f32 0.0, %v3558
        %v3560 = vpop.f32.mrb[0].mxu0
        %3561 = vmatprep.mubr.bf16.mxu0 0
        %3562 = vmatmul.mubr.bf16.gmra.mrb[0].mxu0 %v3447
        %v3563 = vpop.f32.mrb[0].mxu0
        %v3564 = vadd.f32 0.0, %v3563
        %v3565 = vpop.f32.mrb[0].mxu0
        %v3566 = vpop.f32.mrb[0].mxu0
        %v3567 = vadd.f32 0.0, %v3566
        %v3568 = vpop.f32.mrb[0].mxu0
        %3569 = vmatprep.mubr.bf16.mxu0 0
        %3570 = vmatmul.mubr.bf16.gmra.mrb[0].mxu0 %v3448
        %v3571 = vpop.f32.mrb[0].mxu0
        %v3572 = vadd.f32 0.0, %v3571
        %v3573 = vpop.f32.mrb[0].mxu0
        %v3574 = vpop.f32.mrb[0].mxu0
        %v3575 = vadd.f32 0.0, %v3574
        %v3576 = vpop.f32.mrb[0].mxu0
        %3577 = vdwg.mxu0
        %v3578 = vadd.f32 %v3425, %v3516
        %v3579 = vadd.f32 %v3426, %v3519
        %v3580 = vadd.f32 %v3427, %v3524
        %v3581 = vadd.f32 %v3428, %v3527
        %v3582 = vadd.f32 %v3429, %v3532
        %v3583 = vadd.f32 %v3430, %v3535
        %v3584 = vadd.f32 %v3431, %v3540
        %v3585 = vadd.f32 %v3432, %v3543
        %v3586 = vadd.f32 %v3433, %v3548
        %v3587 = vadd.f32 %v3434, %v3551
        %v3588 = vadd.f32 %v3435, %v3556
        %v3589 = vadd.f32 %v3436, %v3559
        %v3590 = vadd.f32 %v3437, %v3564
        %v3591 = vadd.f32 %v3438, %v3567
        %v3592 = vadd.f32 %v3439, %v3572
        %v3593 = vadd.f32 %v3440, %v3575
        %3594 = vst.msk [vmem:[%s3328] sm:$0xff] %vm1994, %v3578
        %3595 = vst.msk [vmem:[%s3328 + $0x8] sm:$0xff] %vm1994, %v3579
        %3596 = vst.msk [vmem:[%s3328 + $0x10] sm:$0xff] %vm1994, %v3580
        %3597 = vst.msk [vmem:[%s3328 + $0x18] sm:$0xff] %vm1994, %v3581
        %3598 = vst.msk [vmem:[%s3328 + $0x20] sm:$0xff] %vm1994, %v3582
        %3599 = vst.msk [vmem:[%s3328 + $0x28] sm:$0xff] %vm1994, %v3583
        %3600 = vst.msk [vmem:[%s3328 + $0x30] sm:$0xff] %vm1994, %v3584
        %3601 = vst.msk [vmem:[%s3328 + $0x38] sm:$0xff] %vm1994, %v3585
        %3602 = vst.msk [vmem:[%s3328 + $0x40] sm:$0xff] %vm1994, %v3586
        %3603 = vst.msk [vmem:[%s3328 + $0x48] sm:$0xff] %vm1994, %v3587
        %3604 = vst.msk [vmem:[%s3328 + $0x50] sm:$0xff] %vm1994, %v3588
        %3605 = vst.msk [vmem:[%s3328 + $0x58] sm:$0xff] %vm1994, %v3589
        %3606 = vst.msk [vmem:[%s3328 + $0x60] sm:$0xff] %vm1994, %v3590
        %3607 = vst.msk [vmem:[%s3328 + $0x68] sm:$0xff] %vm1994, %v3591
        %3608 = vst.msk [vmem:[%s3328 + $0x70] sm:$0xff] %vm1994, %v3592
        %3609 = vst.msk [vmem:[%s3328 + $0x78] sm:$0xff] %vm1994, %v3593
        %3610 = vst.msk [vmem:[%s2974] sm:$0xff] %vm2498, %v3023
        %3611 = vst.msk [vmem:[%s2974 + $0x8] sm:$0xff] %vm2498, %v3024
        %3612 = vst.msk [vmem:[%s2974 + $0x10] sm:$0xff] %vm2498, %v3025
        %3613 = vst.msk [vmem:[%s2974 + $0x18] sm:$0xff] %vm2498, %v3026
        %3614 = vst.msk [vmem:[%s2974 + $0x20] sm:$0xff] %vm2498, %v3027
        %3615 = vst.msk [vmem:[%s2974 + $0x28] sm:$0xff] %vm2498, %v3028
        %3616 = vst.msk [vmem:[%s2974 + $0x30] sm:$0xff] %vm2498, %v3029
        %3617 = vst.msk [vmem:[%s2974 + $0x38] sm:$0xff] %vm2498, %v3030
        %3618 = vst.msk [vmem:[%s2974 + $0x40] sm:$0xff] %vm2498, %v3031
        %3619 = vst.msk [vmem:[%s2974 + $0x48] sm:$0xff] %vm2498, %v3032
        %3620 = vst.msk [vmem:[%s2974 + $0x50] sm:$0xff] %vm2498, %v3033
        %3621 = vst.msk [vmem:[%s2974 + $0x58] sm:$0xff] %vm2498, %v3034
        %3622 = vst.msk [vmem:[%s2974 + $0x60] sm:$0xff] %vm2498, %v3035
        %3623 = vst.msk [vmem:[%s2974 + $0x68] sm:$0xff] %vm2498, %v3036
        %3624 = vst.msk [vmem:[%s2974 + $0x70] sm:$0xff] %vm2498, %v3037
        %3625 = vst.msk [vmem:[%s2974 + $0x78] sm:$0xff] %vm2498, %v3038
        %s3626 = scalar_lea.vmem [#allocation2], 128
        %v3627 = vld [vmem:[%s3626] sm:$0xff]
        %v3628 = vld [vmem:[%s3626 + $0x8] sm:$0xff]
        %v3629 = vld [vmem:[%s3626 + $0x10] sm:$0xff]
        %v3630 = vld [vmem:[%s3626 + $0x18] sm:$0xff]
        %v3631 = vld [vmem:[%s3626 + $0x20] sm:$0xff]
        %v3632 = vld [vmem:[%s3626 + $0x28] sm:$0xff]
        %v3633 = vld [vmem:[%s3626 + $0x30] sm:$0xff]
        %v3634 = vld [vmem:[%s3626 + $0x38] sm:$0xff]
        %3635 = vrot.lane.b32.xlu0 %v1968, 64
        %v3636 = vpop.permute.xlu0 %3635
        %3637 = vrot.lane.b32.xlu0 %v1970, 64
        %v3638 = vpop.permute.xlu0 %3637
        %3639 = vrot.lane.b32.xlu0 %v1972, 64
        %v3640 = vpop.permute.xlu0 %3639
        %3641 = vrot.lane.b32.xlu0 %v1974, 64
        %v3642 = vpop.permute.xlu0 %3641
        %3643 = vrot.lane.b32.xlu0 %v1976, 64
        %v3644 = vpop.permute.xlu0 %3643
        %3645 = vrot.lane.b32.xlu0 %v1978, 64
        %v3646 = vpop.permute.xlu0 %3645
        %3647 = vrot.lane.b32.xlu0 %v1980, 64
        %v3648 = vpop.permute.xlu0 %3647
        %3649 = vrot.lane.b32.xlu0 %v1982, 64
        %v3650 = vpop.permute.xlu0 %3649
        %v3652 = vsel %vm1994, %v3627, 0
        %v3655 = vsel %vm1994, %v3628, 0
        %v3658 = vsel %vm1994, %v3629, 0
        %v3661 = vsel %vm1994, %v3630, 0
        %v3664 = vsel %vm1994, %v3631, 0
        %v3667 = vsel %vm1994, %v3632, 0
        %v3670 = vsel %vm1994, %v3633, 0
        %v3673 = vsel %vm1994, %v3634, 0
        %v3676 = vsel %vm1994, %v3636, 0
        %v3679 = vsel %vm1994, %v3638, 0
        %v3682 = vsel %vm1994, %v3640, 0
        %v3685 = vsel %vm1994, %v3642, 0
        %v3688 = vsel %vm1994, %v3644, 0
        %v3691 = vsel %vm1994, %v3646, 0
        %v3694 = vsel %vm1994, %v3648, 0
        %v3697 = vsel %vm1994, %v3650, 0
        %3699 = vmatprep.subr.bf16.mxu0 0
        %3700 = vmatpush1.bf16.xpose.msra.mxu0 %v3676
        %3701 = vmatprep.subr.bf16.mxu0 0
        %3702 = vmatpush1.bf16.xpose.msra.mxu0 %v3679
        %3703 = vmatprep.subr.bf16.mxu0 0
        %3704 = vmatpush1.bf16.xpose.msra.mxu0 %v3682
        %3705 = vmatprep.subr.bf16.mxu0 0
        %3706 = vmatpush1.bf16.xpose.msra.mxu0 %v3685
        %3707 = vmatprep.subr.bf16.mxu0 0
        %3708 = vmatpush1.bf16.xpose.msra.mxu0 %v3688
        %3709 = vmatprep.subr.bf16.mxu0 0
        %3710 = vmatpush1.bf16.xpose.msra.mxu0 %v3691
        %3711 = vmatprep.subr.bf16.mxu0 0
        %3712 = vmatpush1.bf16.xpose.msra.mxu0 %v3694
        %3713 = vmatprep.subr.bf16.mxu0 0
        %3714 = vmatpush1.bf16.xpose.msra.mxu0 %v3697
        %3715 = vmatprep.subr.bf16.mxu0 0
        %3716 = vmatpush1.bf16.xpose.msra.mxu0 0
        %3717 = vmatprep.subr.bf16.mxu0 0
        %3718 = vmatpush1.bf16.xpose.msra.mxu0 0
        %3719 = vmatprep.subr.bf16.mxu0 0
        %3720 = vmatpush1.bf16.xpose.msra.mxu0 0
        %3721 = vmatprep.subr.bf16.mxu0 0
        %3722 = vmatpush1.bf16.xpose.msra.mxu0 0
        %3723 = vmatprep.subr.bf16.mxu0 0
        %3724 = vmatpush1.bf16.xpose.msra.mxu0 0
        %3725 = vmatprep.subr.bf16.mxu0 0
        %3726 = vmatpush1.bf16.xpose.msra.mxu0 0
        %3727 = vmatprep.subr.bf16.mxu0 0
        %3728 = vmatpush1.bf16.xpose.msra.mxu0 0
        %3729 = vmatprep.subr.bf16.mxu0 0
        %3730 = vmatpush1.bf16.xpose.msra.mxu0 0
        %3731 = vmatprep.mubr.bf16.mxu0 0
        %3732 = vmatmul.mubr.bf16.gmra.mrb[0].mxu0 %v3652
        %v3733 = vpop.f32.mrb[0].mxu0
        %v3734 = vadd.f32 0.0, %v3733
        %v3735 = vpop.f32.mrb[0].mxu0
        %v3736 = vpop.f32.mrb[0].mxu0
        %v3737 = vadd.f32 0.0, %v3736
        %v3738 = vpop.f32.mrb[0].mxu0
        %3739 = vmatprep.mubr.bf16.mxu0 0
        %3740 = vmatmul.mubr.bf16.gmra.mrb[0].mxu0 %v3655
        %v3741 = vpop.f32.mrb[0].mxu0
        %v3742 = vadd.f32 0.0, %v3741
        %v3743 = vpop.f32.mrb[0].mxu0
        %v3744 = vpop.f32.mrb[0].mxu0
        %v3745 = vadd.f32 0.0, %v3744
        %v3746 = vpop.f32.mrb[0].mxu0
        %3747 = vmatprep.mubr.bf16.mxu0 0
        %3748 = vmatmul.mubr.bf16.gmra.mrb[0].mxu0 %v3658
        %v3749 = vpop.f32.mrb[0].mxu0
        %v3750 = vadd.f32 0.0, %v3749
        %v3751 = vpop.f32.mrb[0].mxu0
        %v3752 = vpop.f32.mrb[0].mxu0
        %v3753 = vadd.f32 0.0, %v3752
        %v3754 = vpop.f32.mrb[0].mxu0
        %3755 = vmatprep.mubr.bf16.mxu0 0
        %3756 = vmatmul.mubr.bf16.gmra.mrb[0].mxu0 %v3661
        %v3757 = vpop.f32.mrb[0].mxu0
        %v3758 = vadd.f32 0.0, %v3757
        %v3759 = vpop.f32.mrb[0].mxu0
        %v3760 = vpop.f32.mrb[0].mxu0
        %v3761 = vadd.f32 0.0, %v3760
        %v3762 = vpop.f32.mrb[0].mxu0
        %3763 = vmatprep.mubr.bf16.mxu0 0
        %3764 = vmatmul.mubr.bf16.gmra.mrb[0].mxu0 %v3664
        %v3765 = vpop.f32.mrb[0].mxu0
        %v3766 = vadd.f32 0.0, %v3765
        %v3767 = vpop.f32.mrb[0].mxu0
        %v3768 = vpop.f32.mrb[0].mxu0
        %v3769 = vadd.f32 0.0, %v3768
        %v3770 = vpop.f32.mrb[0].mxu0
        %3771 = vmatprep.mubr.bf16.mxu0 0
        %3772 = vmatmul.mubr.bf16.gmra.mrb[0].mxu0 %v3667
        %v3773 = vpop.f32.mrb[0].mxu0
        %v3774 = vadd.f32 0.0, %v3773
        %v3775 = vpop.f32.mrb[0].mxu0
        %v3776 = vpop.f32.mrb[0].mxu0
        %v3777 = vadd.f32 0.0, %v3776
        %v3778 = vpop.f32.mrb[0].mxu0
        %3779 = vmatprep.mubr.bf16.mxu0 0
        %3780 = vmatmul.mubr.bf16.gmra.mrb[0].mxu0 %v3670
        %v3781 = vpop.f32.mrb[0].mxu0
        %v3782 = vadd.f32 0.0, %v3781
        %v3783 = vpop.f32.mrb[0].mxu0
        %v3784 = vpop.f32.mrb[0].mxu0
        %v3785 = vadd.f32 0.0, %v3784
        %v3786 = vpop.f32.mrb[0].mxu0
        %3787 = vmatprep.mubr.bf16.mxu0 0
        %3788 = vmatmul.mubr.bf16.gmra.mrb[0].mxu0 %v3673
        %v3789 = vpop.f32.mrb[0].mxu0
        %v3790 = vadd.f32 0.0, %v3789
        %v3791 = vpop.f32.mrb[0].mxu0
        %v3792 = vpop.f32.mrb[0].mxu0
        %v3793 = vadd.f32 0.0, %v3792
        %v3794 = vpop.f32.mrb[0].mxu0
        %3795 = vdwg.mxu0
        %v3796 = vsel %vm2145, %v3734, -1e+30
        %v3797 = vsel %vm2145, %v3737, -1e+30
        %v3798 = vsel %vm2145, %v3742, -1e+30
        %v3799 = vsel %vm2145, %v3745, -1e+30
        %v3800 = vsel %vm2145, %v3750, -1e+30
        %v3801 = vsel %vm2145, %v3753, -1e+30
        %v3802 = vsel %vm2145, %v3758, -1e+30
        %v3803 = vsel %vm2145, %v3761, -1e+30
        %v3804 = vsel %vm2145, %v3766, -1e+30
        %v3805 = vsel %vm2145, %v3769, -1e+30
        %v3806 = vsel %vm2145, %v3774, -1e+30
        %v3807 = vsel %vm2145, %v3777, -1e+30
        %v3808 = vsel %vm2145, %v3782, -1e+30
        %v3809 = vsel %vm2145, %v3785, -1e+30
        %v3810 = vsel %vm2145, %v3790, -1e+30
        %v3811 = vsel %vm2145, %v3793, -1e+30
        %s3812 = scalar_lea.vmem [#allocation3], 256
        %v3813 = vld [vmem:[%s3812] sm:$0xff]
        %v3814 = vld [vmem:[%s3812 + $0x8] sm:$0xff]
        %v3815 = vld [vmem:[%s3812 + $0x10] sm:$0xff]
        %v3816 = vld [vmem:[%s3812 + $0x18] sm:$0xff]
        %v3817 = vld [vmem:[%s3812 + $0x20] sm:$0xff]
        %v3818 = vld [vmem:[%s3812 + $0x28] sm:$0xff]
        %v3819 = vld [vmem:[%s3812 + $0x30] sm:$0xff]
        %v3820 = vld [vmem:[%s3812 + $0x38] sm:$0xff]
        %v3821 = vld [vmem:[%s3812 + $0x40] sm:$0xff]
        %v3822 = vld [vmem:[%s3812 + $0x48] sm:$0xff]
        %v3823 = vld [vmem:[%s3812 + $0x50] sm:$0xff]
        %v3824 = vld [vmem:[%s3812 + $0x58] sm:$0xff]
        %v3825 = vld [vmem:[%s3812 + $0x60] sm:$0xff]
        %v3826 = vld [vmem:[%s3812 + $0x68] sm:$0xff]
        %v3827 = vld [vmem:[%s3812 + $0x70] sm:$0xff]
        %v3828 = vld [vmem:[%s3812 + $0x78] sm:$0xff]
        %3829 = vmax.xlane.f32.xlu0 %v3796
        %v3830 = vpop.xlane.xlu0 %3829
        %3831 = vmax.xlane.f32.xlu0 %v3797
        %v3832 = vpop.xlane.xlu0 %3831
        %3833 = vmax.xlane.f32.xlu0 %v3798
        %v3834 = vpop.xlane.xlu0 %3833
        %3835 = vmax.xlane.f32.xlu0 %v3799
        %v3836 = vpop.xlane.xlu0 %3835
        %3837 = vmax.xlane.f32.xlu0 %v3800
        %v3838 = vpop.xlane.xlu0 %3837
        %3839 = vmax.xlane.f32.xlu0 %v3801
        %v3840 = vpop.xlane.xlu0 %3839
        %3841 = vmax.xlane.f32.xlu0 %v3802
        %v3842 = vpop.xlane.xlu0 %3841
        %3843 = vmax.xlane.f32.xlu0 %v3803
        %v3844 = vpop.xlane.xlu0 %3843
        %3845 = vmax.xlane.f32.xlu0 %v3804
        %v3846 = vpop.xlane.xlu0 %3845
        %3847 = vmax.xlane.f32.xlu0 %v3805
        %v3848 = vpop.xlane.xlu0 %3847
        %3849 = vmax.xlane.f32.xlu0 %v3806
        %v3850 = vpop.xlane.xlu0 %3849
        %3851 = vmax.xlane.f32.xlu0 %v3807
        %v3852 = vpop.xlane.xlu0 %3851
        %3853 = vmax.xlane.f32.xlu0 %v3808
        %v3854 = vpop.xlane.xlu0 %3853
        %3855 = vmax.xlane.f32.xlu0 %v3809
        %v3856 = vpop.xlane.xlu0 %3855
        %3857 = vmax.xlane.f32.xlu0 %v3810
        %v3858 = vpop.xlane.xlu0 %3857
        %3859 = vmax.xlane.f32.xlu0 %v3811
        %v3860 = vpop.xlane.xlu0 %3859
        %v3861 = vmax.f32 %v3813, %v3830
        %v3862 = vmax.f32 %v3814, %v3832
        %v3863 = vmax.f32 %v3815, %v3834
        %v3864 = vmax.f32 %v3816, %v3836
        %v3865 = vmax.f32 %v3817, %v3838
        %v3866 = vmax.f32 %v3818, %v3840
        %v3867 = vmax.f32 %v3819, %v3842
        %v3868 = vmax.f32 %v3820, %v3844
        %v3869 = vmax.f32 %v3821, %v3846
        %v3870 = vmax.f32 %v3822, %v3848
        %v3871 = vmax.f32 %v3823, %v3850
        %v3872 = vmax.f32 %v3824, %v3852
        %v3873 = vmax.f32 %v3825, %v3854
        %v3874 = vmax.f32 %v3826, %v3856
        %v3875 = vmax.f32 %v3827, %v3858
        %v3876 = vmax.f32 %v3828, %v3860
        %v3877 = vsub.f32 %v3813, %v3861
        %v3878 = vsub.f32 %v3814, %v3862
        %v3879 = vsub.f32 %v3815, %v3863
        %v3880 = vsub.f32 %v3816, %v3864
        %v3881 = vsub.f32 %v3817, %v3865
        %v3882 = vsub.f32 %v3818, %v3866
        %v3883 = vsub.f32 %v3819, %v3867
        %v3884 = vsub.f32 %v3820, %v3868
        %v3885 = vsub.f32 %v3821, %v3869
        %v3886 = vsub.f32 %v3822, %v3870
        %v3887 = vsub.f32 %v3823, %v3871
        %v3888 = vsub.f32 %v3824, %v3872
        %v3889 = vsub.f32 %v3825, %v3873
        %v3890 = vsub.f32 %v3826, %v3874
        %v3891 = vsub.f32 %v3827, %v3875
        %v3892 = vsub.f32 %v3828, %v3876
        %v3893 = vmul.f32 %v3877, 1.442695
        %v3894 = vpow.pop %v3893
        %v3895 = vmul.f32 %v3878, 1.442695
        %v3896 = vpow.pop %v3895
        %v3897 = vmul.f32 %v3879, 1.442695
        %v3898 = vpow.pop %v3897
        %v3899 = vmul.f32 %v3880, 1.442695
        %v3900 = vpow.pop %v3899
        %v3901 = vmul.f32 %v3881, 1.442695
        %v3902 = vpow.pop %v3901
        %v3903 = vmul.f32 %v3882, 1.442695
        %v3904 = vpow.pop %v3903
        %v3905 = vmul.f32 %v3883, 1.442695
        %v3906 = vpow.pop %v3905
        %v3907 = vmul.f32 %v3884, 1.442695
        %v3908 = vpow.pop %v3907
        %v3909 = vmul.f32 %v3885, 1.442695
        %v3910 = vpow.pop %v3909
        %v3911 = vmul.f32 %v3886, 1.442695
        %v3912 = vpow.pop %v3911
        %v3913 = vmul.f32 %v3887, 1.442695
        %v3914 = vpow.pop %v3913
        %v3915 = vmul.f32 %v3888, 1.442695
        %v3916 = vpow.pop %v3915
        %v3917 = vmul.f32 %v3889, 1.442695
        %v3918 = vpow.pop %v3917
        %v3919 = vmul.f32 %v3890, 1.442695
        %v3920 = vpow.pop %v3919
        %v3921 = vmul.f32 %v3891, 1.442695
        %v3922 = vpow.pop %v3921
        %v3923 = vmul.f32 %v3892, 1.442695
        %v3924 = vpow.pop %v3923
        %3926 = vset.pattern.permute.xlu0 0
        %3927 = vperm.xlu0 %3926, %v3861
        %v3928 = vpop.permute.xlu0 %3927
        %3931 = vset.pattern.permute.xlu0 0
        %3932 = vperm.xlu0 %3931, %v3862
        %v3933 = vpop.permute.xlu0 %3932
        %3936 = vset.pattern.permute.xlu0 0
        %3937 = vperm.xlu0 %3936, %v3863
        %v3938 = vpop.permute.xlu0 %3937
        %3941 = vset.pattern.permute.xlu0 0
        %3942 = vperm.xlu0 %3941, %v3864
        %v3943 = vpop.permute.xlu0 %3942
        %3946 = vset.pattern.permute.xlu0 0
        %3947 = vperm.xlu0 %3946, %v3865
        %v3948 = vpop.permute.xlu0 %3947
        %3951 = vset.pattern.permute.xlu0 0
        %3952 = vperm.xlu0 %3951, %v3866
        %v3953 = vpop.permute.xlu0 %3952
        %3956 = vset.pattern.permute.xlu0 0
        %3957 = vperm.xlu0 %3956, %v3867
        %v3958 = vpop.permute.xlu0 %3957
        %3961 = vset.pattern.permute.xlu0 0
        %3962 = vperm.xlu0 %3961, %v3868
        %v3963 = vpop.permute.xlu0 %3962
        %3966 = vset.pattern.permute.xlu0 0
        %3967 = vperm.xlu0 %3966, %v3869
        %v3968 = vpop.permute.xlu0 %3967
        %3971 = vset.pattern.permute.xlu0 0
        %3972 = vperm.xlu0 %3971, %v3870
        %v3973 = vpop.permute.xlu0 %3972
        %3976 = vset.pattern.permute.xlu0 0
        %3977 = vperm.xlu0 %3976, %v3871
        %v3978 = vpop.permute.xlu0 %3977
        %3981 = vset.pattern.permute.xlu0 0
        %3982 = vperm.xlu0 %3981, %v3872
        %v3983 = vpop.permute.xlu0 %3982
        %3986 = vset.pattern.permute.xlu0 0
        %3987 = vperm.xlu0 %3986, %v3873
        %v3988 = vpop.permute.xlu0 %3987
        %3991 = vset.pattern.permute.xlu0 0
        %3992 = vperm.xlu0 %3991, %v3874
        %v3993 = vpop.permute.xlu0 %3992
        %3996 = vset.pattern.permute.xlu0 0
        %3997 = vperm.xlu0 %3996, %v3875
        %v3998 = vpop.permute.xlu0 %3997
        %4001 = vset.pattern.permute.xlu0 0
        %4002 = vperm.xlu0 %4001, %v3876
        %v4003 = vpop.permute.xlu0 %4002
        %v4005 = vsub.f32 %v3796, %v3928
        %v4006 = vsub.f32 %v3797, %v3933
        %v4007 = vsub.f32 %v3798, %v3938
        %v4008 = vsub.f32 %v3799, %v3943
        %v4009 = vsub.f32 %v3800, %v3948
        %v4010 = vsub.f32 %v3801, %v3953
        %v4011 = vsub.f32 %v3802, %v3958
        %v4012 = vsub.f32 %v3803, %v3963
        %v4013 = vsub.f32 %v3804, %v3968
        %v4014 = vsub.f32 %v3805, %v3973
        %v4015 = vsub.f32 %v3806, %v3978
        %v4016 = vsub.f32 %v3807, %v3983
        %v4017 = vsub.f32 %v3808, %v3988
        %v4018 = vsub.f32 %v3809, %v3993
        %v4019 = vsub.f32 %v3810, %v3998
        %v4020 = vsub.f32 %v3811, %v4003
        %v4021 = vmul.f32 %v4005, 1.442695
        %v4022 = vpow.pop %v4021
        %v4023 = vmul.f32 %v4006, 1.442695
        %v4024 = vpow.pop %v4023
        %v4025 = vmul.f32 %v4007, 1.442695
        %v4026 = vpow.pop %v4025
        %v4027 = vmul.f32 %v4008, 1.442695
        %v4028 = vpow.pop %v4027
        %v4029 = vmul.f32 %v4009, 1.442695
        %v4030 = vpow.pop %v4029
        %v4031 = vmul.f32 %v4010, 1.442695
        %v4032 = vpow.pop %v4031
        %v4033 = vmul.f32 %v4011, 1.442695
        %v4034 = vpow.pop %v4033
        %v4035 = vmul.f32 %v4012, 1.442695
        %v4036 = vpow.pop %v4035
        %v4037 = vmul.f32 %v4013, 1.442695
        %v4038 = vpow.pop %v4037
        %v4039 = vmul.f32 %v4014, 1.442695
        %v4040 = vpow.pop %v4039
        %v4041 = vmul.f32 %v4015, 1.442695
        %v4042 = vpow.pop %v4041
        %v4043 = vmul.f32 %v4016, 1.442695
        %v4044 = vpow.pop %v4043
        %v4045 = vmul.f32 %v4017, 1.442695
        %v4046 = vpow.pop %v4045
        %v4047 = vmul.f32 %v4018, 1.442695
        %v4048 = vpow.pop %v4047
        %v4049 = vmul.f32 %v4019, 1.442695
        %v4050 = vpow.pop %v4049
        %v4051 = vmul.f32 %v4020, 1.442695
        %v4052 = vpow.pop %v4051
        %v4053 = vsel %vm2145, %v4022, 0.0
        %v4054 = vsel %vm2145, %v4024, 0.0
        %v4055 = vsel %vm2145, %v4026, 0.0
        %v4056 = vsel %vm2145, %v4028, 0.0
        %v4057 = vsel %vm2145, %v4030, 0.0
        %v4058 = vsel %vm2145, %v4032, 0.0
        %v4059 = vsel %vm2145, %v4034, 0.0
        %v4060 = vsel %vm2145, %v4036, 0.0
        %v4061 = vsel %vm2145, %v4038, 0.0
        %v4062 = vsel %vm2145, %v4040, 0.0
        %v4063 = vsel %vm2145, %v4042, 0.0
        %v4064 = vsel %vm2145, %v4044, 0.0
        %v4065 = vsel %vm2145, %v4046, 0.0
        %v4066 = vsel %vm2145, %v4048, 0.0
        %v4067 = vsel %vm2145, %v4050, 0.0
        %v4068 = vsel %vm2145, %v4052, 0.0
        %s4069 = scalar_lea.vmem [#allocation4], 256
        %v4070 = vld [vmem:[%s4069] sm:$0xff]
        %v4071 = vld [vmem:[%s4069 + $0x8] sm:$0xff]
        %v4072 = vld [vmem:[%s4069 + $0x10] sm:$0xff]
        %v4073 = vld [vmem:[%s4069 + $0x18] sm:$0xff]
        %v4074 = vld [vmem:[%s4069 + $0x20] sm:$0xff]
        %v4075 = vld [vmem:[%s4069 + $0x28] sm:$0xff]
        %v4076 = vld [vmem:[%s4069 + $0x30] sm:$0xff]
        %v4077 = vld [vmem:[%s4069 + $0x38] sm:$0xff]
        %v4078 = vld [vmem:[%s4069 + $0x40] sm:$0xff]
        %v4079 = vld [vmem:[%s4069 + $0x48] sm:$0xff]
        %v4080 = vld [vmem:[%s4069 + $0x50] sm:$0xff]
        %v4081 = vld [vmem:[%s4069 + $0x58] sm:$0xff]
        %v4082 = vld [vmem:[%s4069 + $0x60] sm:$0xff]
        %v4083 = vld [vmem:[%s4069 + $0x68] sm:$0xff]
        %v4084 = vld [vmem:[%s4069 + $0x70] sm:$0xff]
        %v4085 = vld [vmem:[%s4069 + $0x78] sm:$0xff]
        %v4086 = vmul.f32 %v3894, %v4070
        %v4087 = vmul.f32 %v3896, %v4071
        %v4088 = vmul.f32 %v3898, %v4072
        %v4089 = vmul.f32 %v3900, %v4073
        %v4090 = vmul.f32 %v3902, %v4074
        %v4091 = vmul.f32 %v3904, %v4075
        %v4092 = vmul.f32 %v3906, %v4076
        %v4093 = vmul.f32 %v3908, %v4077
        %v4094 = vmul.f32 %v3910, %v4078
        %v4095 = vmul.f32 %v3912, %v4079
        %v4096 = vmul.f32 %v3914, %v4080
        %v4097 = vmul.f32 %v3916, %v4081
        %v4098 = vmul.f32 %v3918, %v4082
        %v4099 = vmul.f32 %v3920, %v4083
        %v4100 = vmul.f32 %v3922, %v4084
        %v4101 = vmul.f32 %v3924, %v4085
        %4102 = vadd.xlane.f32.xlu0 %v4053
        %v4103 = vpop.xlane.xlu0 %4102
        %4104 = vadd.xlane.f32.xlu0 %v4054
        %v4105 = vpop.xlane.xlu0 %4104
        %4106 = vadd.xlane.f32.xlu0 %v4055
        %v4107 = vpop.xlane.xlu0 %4106
        %4108 = vadd.xlane.f32.xlu0 %v4056
        %v4109 = vpop.xlane.xlu0 %4108
        %4110 = vadd.xlane.f32.xlu0 %v4057
        %v4111 = vpop.xlane.xlu0 %4110
        %4112 = vadd.xlane.f32.xlu0 %v4058
        %v4113 = vpop.xlane.xlu0 %4112
        %4114 = vadd.xlane.f32.xlu0 %v4059
        %v4115 = vpop.xlane.xlu0 %4114
        %4116 = vadd.xlane.f32.xlu0 %v4060
        %v4117 = vpop.xlane.xlu0 %4116
        %4118 = vadd.xlane.f32.xlu0 %v4061
        %v4119 = vpop.xlane.xlu0 %4118
        %4120 = vadd.xlane.f32.xlu0 %v4062
        %v4121 = vpop.xlane.xlu0 %4120
        %4122 = vadd.xlane.f32.xlu0 %v4063
        %v4123 = vpop.xlane.xlu0 %4122
        %4124 = vadd.xlane.f32.xlu0 %v4064
        %v4125 = vpop.xlane.xlu0 %4124
        %4126 = vadd.xlane.f32.xlu0 %v4065
        %v4127 = vpop.xlane.xlu0 %4126
        %4128 = vadd.xlane.f32.xlu0 %v4066
        %v4129 = vpop.xlane.xlu0 %4128
        %4130 = vadd.xlane.f32.xlu0 %v4067
        %v4131 = vpop.xlane.xlu0 %4130
        %4132 = vadd.xlane.f32.xlu0 %v4068
        %v4133 = vpop.xlane.xlu0 %4132
        %v4134 = vadd.f32 %v4086, %v4103
        %v4135 = vadd.f32 %v4087, %v4105
        %v4136 = vadd.f32 %v4088, %v4107
        %v4137 = vadd.f32 %v4089, %v4109
        %v4138 = vadd.f32 %v4090, %v4111
        %v4139 = vadd.f32 %v4091, %v4113
        %v4140 = vadd.f32 %v4092, %v4115
        %v4141 = vadd.f32 %v4093, %v4117
        %v4142 = vadd.f32 %v4094, %v4119
        %v4143 = vadd.f32 %v4095, %v4121
        %v4144 = vadd.f32 %v4096, %v4123
        %v4145 = vadd.f32 %v4097, %v4125
        %v4146 = vadd.f32 %v4098, %v4127
        %v4147 = vadd.f32 %v4099, %v4129
        %v4148 = vadd.f32 %v4100, %v4131
        %v4149 = vadd.f32 %v4101, %v4133
        %4150 = vst.msk [vmem:[%s4069] sm:$0xff] %vm2498, %v4134
        %4151 = vst.msk [vmem:[%s4069 + $0x8] sm:$0xff] %vm2498, %v4135
        %4152 = vst.msk [vmem:[%s4069 + $0x10] sm:$0xff] %vm2498, %v4136
        %4153 = vst.msk [vmem:[%s4069 + $0x18] sm:$0xff] %vm2498, %v4137
        %4154 = vst.msk [vmem:[%s4069 + $0x20] sm:$0xff] %vm2498, %v4138
        %4155 = vst.msk [vmem:[%s4069 + $0x28] sm:$0xff] %vm2498, %v4139
        %4156 = vst.msk [vmem:[%s4069 + $0x30] sm:$0xff] %vm2498, %v4140
        %4157 = vst.msk [vmem:[%s4069 + $0x38] sm:$0xff] %vm2498, %v4141
        %4158 = vst.msk [vmem:[%s4069 + $0x40] sm:$0xff] %vm2498, %v4142
        %4159 = vst.msk [vmem:[%s4069 + $0x48] sm:$0xff] %vm2498, %v4143
        %4160 = vst.msk [vmem:[%s4069 + $0x50] sm:$0xff] %vm2498, %v4144
        %4161 = vst.msk [vmem:[%s4069 + $0x58] sm:$0xff] %vm2498, %v4145
        %4162 = vst.msk [vmem:[%s4069 + $0x60] sm:$0xff] %vm2498, %v4146
        %4163 = vst.msk [vmem:[%s4069 + $0x68] sm:$0xff] %vm2498, %v4147
        %4164 = vst.msk [vmem:[%s4069 + $0x70] sm:$0xff] %vm2498, %v4148
        %4165 = vst.msk [vmem:[%s4069 + $0x78] sm:$0xff] %vm2498, %v4149
        %s4166 = scalar_lea.vmem [#allocation5], 256
        %v4167 = vld [vmem:[%s4166] sm:$0xff]
        %v4168 = vld [vmem:[%s4166 + $0x8] sm:$0xff]
        %v4169 = vld [vmem:[%s4166 + $0x10] sm:$0xff]
        %v4170 = vld [vmem:[%s4166 + $0x18] sm:$0xff]
        %v4171 = vld [vmem:[%s4166 + $0x20] sm:$0xff]
        %v4172 = vld [vmem:[%s4166 + $0x28] sm:$0xff]
        %v4173 = vld [vmem:[%s4166 + $0x30] sm:$0xff]
        %v4174 = vld [vmem:[%s4166 + $0x38] sm:$0xff]
        %v4175 = vld [vmem:[%s4166 + $0x40] sm:$0xff]
        %v4176 = vld [vmem:[%s4166 + $0x48] sm:$0xff]
        %v4177 = vld [vmem:[%s4166 + $0x50] sm:$0xff]
        %v4178 = vld [vmem:[%s4166 + $0x58] sm:$0xff]
        %v4179 = vld [vmem:[%s4166 + $0x60] sm:$0xff]
        %v4180 = vld [vmem:[%s4166 + $0x68] sm:$0xff]
        %v4181 = vld [vmem:[%s4166 + $0x70] sm:$0xff]
        %v4182 = vld [vmem:[%s4166 + $0x78] sm:$0xff]
        %4184 = vset.pattern.permute.xlu0 0
        %4185 = vperm.xlu0 %4184, %v3894
        %v4186 = vpop.permute.xlu0 %4185
        %4189 = vset.pattern.permute.xlu0 0
        %4190 = vperm.xlu0 %4189, %v3896
        %v4191 = vpop.permute.xlu0 %4190
        %4194 = vset.pattern.permute.xlu0 0
        %4195 = vperm.xlu0 %4194, %v3898
        %v4196 = vpop.permute.xlu0 %4195
        %4199 = vset.pattern.permute.xlu0 0
        %4200 = vperm.xlu0 %4199, %v3900
        %v4201 = vpop.permute.xlu0 %4200
        %4204 = vset.pattern.permute.xlu0 0
        %4205 = vperm.xlu0 %4204, %v3902
        %v4206 = vpop.permute.xlu0 %4205
        %4209 = vset.pattern.permute.xlu0 0
        %4210 = vperm.xlu0 %4209, %v3904
        %v4211 = vpop.permute.xlu0 %4210
        %4214 = vset.pattern.permute.xlu0 0
        %4215 = vperm.xlu0 %4214, %v3906
        %v4216 = vpop.permute.xlu0 %4215
        %4219 = vset.pattern.permute.xlu0 0
        %4220 = vperm.xlu0 %4219, %v3908
        %v4221 = vpop.permute.xlu0 %4220
        %4224 = vset.pattern.permute.xlu0 0
        %4225 = vperm.xlu0 %4224, %v3910
        %v4226 = vpop.permute.xlu0 %4225
        %4229 = vset.pattern.permute.xlu0 0
        %4230 = vperm.xlu0 %4229, %v3912
        %v4231 = vpop.permute.xlu0 %4230
        %4234 = vset.pattern.permute.xlu0 0
        %4235 = vperm.xlu0 %4234, %v3914
        %v4236 = vpop.permute.xlu0 %4235
        %4239 = vset.pattern.permute.xlu0 0
        %4240 = vperm.xlu0 %4239, %v3916
        %v4241 = vpop.permute.xlu0 %4240
        %4244 = vset.pattern.permute.xlu0 0
        %4245 = vperm.xlu0 %4244, %v3918
        %v4246 = vpop.permute.xlu0 %4245
        %4249 = vset.pattern.permute.xlu0 0
        %4250 = vperm.xlu0 %4249, %v3920
        %v4251 = vpop.permute.xlu0 %4250
        %4254 = vset.pattern.permute.xlu0 0
        %4255 = vperm.xlu0 %4254, %v3922
        %v4256 = vpop.permute.xlu0 %4255
        %4259 = vset.pattern.permute.xlu0 0
        %4260 = vperm.xlu0 %4259, %v3924
        %v4261 = vpop.permute.xlu0 %4260
        %v4263 = vmul.f32 %v4186, %v4167
        %v4264 = vmul.f32 %v4191, %v4168
        %v4265 = vmul.f32 %v4196, %v4169
        %v4266 = vmul.f32 %v4201, %v4170
        %v4267 = vmul.f32 %v4206, %v4171
        %v4268 = vmul.f32 %v4211, %v4172
        %v4269 = vmul.f32 %v4216, %v4173
        %v4270 = vmul.f32 %v4221, %v4174
        %v4271 = vmul.f32 %v4226, %v4175
        %v4272 = vmul.f32 %v4231, %v4176
        %v4273 = vmul.f32 %v4236, %v4177
        %v4274 = vmul.f32 %v4241, %v4178
        %v4275 = vmul.f32 %v4246, %v4179
        %v4276 = vmul.f32 %v4251, %v4180
        %v4277 = vmul.f32 %v4256, %v4181
        %v4278 = vmul.f32 %v4261, %v4182
        %v4279 = vpack.c.bf16 %v4054, %v4053
        %v4280 = vpack.c.bf16 %v4056, %v4055
        %v4281 = vpack.c.bf16 %v4058, %v4057
        %v4282 = vpack.c.bf16 %v4060, %v4059
        %v4283 = vpack.c.bf16 %v4062, %v4061
        %v4284 = vpack.c.bf16 %v4064, %v4063
        %v4285 = vpack.c.bf16 %v4066, %v4065
        %v4286 = vpack.c.bf16 %v4068, %v4067
        %4287 = vrot.lane.b32.xlu0 %v1969, 64
        %v4288 = vpop.permute.xlu0 %4287
        %4289 = vrot.lane.b32.xlu0 %v1971, 64
        %v4290 = vpop.permute.xlu0 %4289
        %4291 = vrot.lane.b32.xlu0 %v1973, 64
        %v4292 = vpop.permute.xlu0 %4291
        %4293 = vrot.lane.b32.xlu0 %v1975, 64
        %v4294 = vpop.permute.xlu0 %4293
        %4295 = vrot.lane.b32.xlu0 %v1977, 64
        %v4296 = vpop.permute.xlu0 %4295
        %4297 = vrot.lane.b32.xlu0 %v1979, 64
        %v4298 = vpop.permute.xlu0 %4297
        %4299 = vrot.lane.b32.xlu0 %v1981, 64
        %v4300 = vpop.permute.xlu0 %4299
        %4301 = vrot.lane.b32.xlu0 %v1983, 64
        %v4302 = vpop.permute.xlu0 %4301
        %4311 = vmatprep.subr.bf16.mxu0 0
        %4312 = vmatpush1.bf16.msra.mxu0 %v4288
        %4313 = vmatprep.subr.bf16.mxu0 0
        %4314 = vmatpush1.bf16.msra.mxu0 %v4290
        %4315 = vmatprep.subr.bf16.mxu0 0
        %4316 = vmatpush1.bf16.msra.mxu0 %v4292
        %4317 = vmatprep.subr.bf16.mxu0 0
        %4318 = vmatpush1.bf16.msra.mxu0 %v4294
        %4319 = vmatprep.subr.bf16.mxu0 0
        %4320 = vmatpush1.bf16.msra.mxu0 %v4296
        %4321 = vmatprep.subr.bf16.mxu0 0
        %4322 = vmatpush1.bf16.msra.mxu0 %v4298
        %4323 = vmatprep.subr.bf16.mxu0 0
        %4324 = vmatpush1.bf16.msra.mxu0 %v4300
        %4325 = vmatprep.subr.bf16.mxu0 0
        %4326 = vmatpush1.bf16.msra.mxu0 %v4302
        %4327 = vmatprep.subr.bf16.mxu0 0
        %4328 = vmatpush1.bf16.msra.mxu0 0
        %4329 = vmatprep.subr.bf16.mxu0 0
        %4330 = vmatpush1.bf16.msra.mxu0 0
        %4331 = vmatprep.subr.bf16.mxu0 0
        %4332 = vmatpush1.bf16.msra.mxu0 0
        %4333 = vmatprep.subr.bf16.mxu0 0
        %4334 = vmatpush1.bf16.msra.mxu0 0
        %4335 = vmatprep.subr.bf16.mxu0 0
        %4336 = vmatpush1.bf16.msra.mxu0 0
        %4337 = vmatprep.subr.bf16.mxu0 0
        %4338 = vmatpush1.bf16.msra.mxu0 0
        %4339 = vmatprep.subr.bf16.mxu0 0
        %4340 = vmatpush1.bf16.msra.mxu0 0
        %4341 = vmatprep.subr.bf16.mxu0 0
        %4342 = vmatpush1.bf16.msra.mxu0 0
        %4343 = vmatprep.mubr.bf16.mxu0 0
        %4344 = vmatmul.mubr.bf16.gmra.mrb[0].mxu0 %v4279
        %v4345 = vpop.f32.mrb[0].mxu0
        %v4346 = vadd.f32 0.0, %v4345
        %v4347 = vpop.f32.mrb[0].mxu0
        %v4348 = vpop.f32.mrb[0].mxu0
        %v4349 = vadd.f32 0.0, %v4348
        %v4350 = vpop.f32.mrb[0].mxu0
        %4351 = vmatprep.mubr.bf16.mxu0 0
        %4352 = vmatmul.mubr.bf16.gmra.mrb[0].mxu0 %v4280
        %v4353 = vpop.f32.mrb[0].mxu0
        %v4354 = vadd.f32 0.0, %v4353
        %v4355 = vpop.f32.mrb[0].mxu0
        %v4356 = vpop.f32.mrb[0].mxu0
        %v4357 = vadd.f32 0.0, %v4356
        %v4358 = vpop.f32.mrb[0].mxu0
        %4359 = vmatprep.mubr.bf16.mxu0 0
        %4360 = vmatmul.mubr.bf16.gmra.mrb[0].mxu0 %v4281
        %v4361 = vpop.f32.mrb[0].mxu0
        %v4362 = vadd.f32 0.0, %v4361
        %v4363 = vpop.f32.mrb[0].mxu0
        %v4364 = vpop.f32.mrb[0].mxu0
        %v4365 = vadd.f32 0.0, %v4364
        %v4366 = vpop.f32.mrb[0].mxu0
        %4367 = vmatprep.mubr.bf16.mxu0 0
        %4368 = vmatmul.mubr.bf16.gmra.mrb[0].mxu0 %v4282
        %v4369 = vpop.f32.mrb[0].mxu0
        %v4370 = vadd.f32 0.0, %v4369
        %v4371 = vpop.f32.mrb[0].mxu0
        %v4372 = vpop.f32.mrb[0].mxu0
        %v4373 = vadd.f32 0.0, %v4372
        %v4374 = vpop.f32.mrb[0].mxu0
        %4375 = vmatprep.mubr.bf16.mxu0 0
        %4376 = vmatmul.mubr.bf16.gmra.mrb[0].mxu0 %v4283
        %v4377 = vpop.f32.mrb[0].mxu0
        %v4378 = vadd.f32 0.0, %v4377
        %v4379 = vpop.f32.mrb[0].mxu0
        %v4380 = vpop.f32.mrb[0].mxu0
        %v4381 = vadd.f32 0.0, %v4380
        %v4382 = vpop.f32.mrb[0].mxu0
        %4383 = vmatprep.mubr.bf16.mxu0 0
        %4384 = vmatmul.mubr.bf16.gmra.mrb[0].mxu0 %v4284
        %v4385 = vpop.f32.mrb[0].mxu0
        %v4386 = vadd.f32 0.0, %v4385
        %v4387 = vpop.f32.mrb[0].mxu0
        %v4388 = vpop.f32.mrb[0].mxu0
        %v4389 = vadd.f32 0.0, %v4388
        %v4390 = vpop.f32.mrb[0].mxu0
        %4391 = vmatprep.mubr.bf16.mxu0 0
        %4392 = vmatmul.mubr.bf16.gmra.mrb[0].mxu0 %v4285
        %v4393 = vpop.f32.mrb[0].mxu0
        %v4394 = vadd.f32 0.0, %v4393
        %v4395 = vpop.f32.mrb[0].mxu0
        %v4396 = vpop.f32.mrb[0].mxu0
        %v4397 = vadd.f32 0.0, %v4396
        %v4398 = vpop.f32.mrb[0].mxu0
        %4399 = vmatprep.mubr.bf16.mxu0 0
        %4400 = vmatmul.mubr.bf16.gmra.mrb[0].mxu0 %v4286
        %v4401 = vpop.f32.mrb[0].mxu0
        %v4402 = vadd.f32 0.0, %v4401
        %v4403 = vpop.f32.mrb[0].mxu0
        %v4404 = vpop.f32.mrb[0].mxu0
        %v4405 = vadd.f32 0.0, %v4404
        %v4406 = vpop.f32.mrb[0].mxu0
        %4407 = vdwg.mxu0
        %v4408 = vadd.f32 %v4263, %v4346
        %v4409 = vadd.f32 %v4264, %v4349
        %v4410 = vadd.f32 %v4265, %v4354
        %v4411 = vadd.f32 %v4266, %v4357
        %v4412 = vadd.f32 %v4267, %v4362
        %v4413 = vadd.f32 %v4268, %v4365
        %v4414 = vadd.f32 %v4269, %v4370
        %v4415 = vadd.f32 %v4270, %v4373
        %v4416 = vadd.f32 %v4271, %v4378
        %v4417 = vadd.f32 %v4272, %v4381
        %v4418 = vadd.f32 %v4273, %v4386
        %v4419 = vadd.f32 %v4274, %v4389
        %v4420 = vadd.f32 %v4275, %v4394
        %v4421 = vadd.f32 %v4276, %v4397
        %v4422 = vadd.f32 %v4277, %v4402
        %v4423 = vadd.f32 %v4278, %v4405
        %4424 = vst.msk [vmem:[%s4166] sm:$0xff] %vm1994, %v4408
        %4425 = vst.msk [vmem:[%s4166 + $0x8] sm:$0xff] %vm1994, %v4409
        %4426 = vst.msk [vmem:[%s4166 + $0x10] sm:$0xff] %vm1994, %v4410
        %4427 = vst.msk [vmem:[%s4166 + $0x18] sm:$0xff] %vm1994, %v4411
        %4428 = vst.msk [vmem:[%s4166 + $0x20] sm:$0xff] %vm1994, %v4412
        %4429 = vst.msk [vmem:[%s4166 + $0x28] sm:$0xff] %vm1994, %v4413
        %4430 = vst.msk [vmem:[%s4166 + $0x30] sm:$0xff] %vm1994, %v4414
        %4431 = vst.msk [vmem:[%s4166 + $0x38] sm:$0xff] %vm1994, %v4415
        %4432 = vst.msk [vmem:[%s4166 + $0x40] sm:$0xff] %vm1994, %v4416
        %4433 = vst.msk [vmem:[%s4166 + $0x48] sm:$0xff] %vm1994, %v4417
        %4434 = vst.msk [vmem:[%s4166 + $0x50] sm:$0xff] %vm1994, %v4418
        %4435 = vst.msk [vmem:[%s4166 + $0x58] sm:$0xff] %vm1994, %v4419
        %4436 = vst.msk [vmem:[%s4166 + $0x60] sm:$0xff] %vm1994, %v4420
        %4437 = vst.msk [vmem:[%s4166 + $0x68] sm:$0xff] %vm1994, %v4421
        %4438 = vst.msk [vmem:[%s4166 + $0x70] sm:$0xff] %vm1994, %v4422
        %4439 = vst.msk [vmem:[%s4166 + $0x78] sm:$0xff] %vm1994, %v4423
        %4440 = vst.msk [vmem:[%s3812] sm:$0xff] %vm2498, %v3861
        %4441 = vst.msk [vmem:[%s3812 + $0x8] sm:$0xff] %vm2498, %v3862
        %4442 = vst.msk [vmem:[%s3812 + $0x10] sm:$0xff] %vm2498, %v3863
        %4443 = vst.msk [vmem:[%s3812 + $0x18] sm:$0xff] %vm2498, %v3864
        %4444 = vst.msk [vmem:[%s3812 + $0x20] sm:$0xff] %vm2498, %v3865
        %4445 = vst.msk [vmem:[%s3812 + $0x28] sm:$0xff] %vm2498, %v3866
        %4446 = vst.msk [vmem:[%s3812 + $0x30] sm:$0xff] %vm2498, %v3867
        %4447 = vst.msk [vmem:[%s3812 + $0x38] sm:$0xff] %vm2498, %v3868
        %4448 = vst.msk [vmem:[%s3812 + $0x40] sm:$0xff] %vm2498, %v3869
        %4449 = vst.msk [vmem:[%s3812 + $0x48] sm:$0xff] %vm2498, %v3870
        %4450 = vst.msk [vmem:[%s3812 + $0x50] sm:$0xff] %vm2498, %v3871
        %4451 = vst.msk [vmem:[%s3812 + $0x58] sm:$0xff] %vm2498, %v3872
        %4452 = vst.msk [vmem:[%s3812 + $0x60] sm:$0xff] %vm2498, %v3873
        %4453 = vst.msk [vmem:[%s3812 + $0x68] sm:$0xff] %vm2498, %v3874
        %4454 = vst.msk [vmem:[%s3812 + $0x70] sm:$0xff] %vm2498, %v3875
        %4455 = vst.msk [vmem:[%s3812 + $0x78] sm:$0xff] %vm2498, %v3876
        %s4456 = scalar_lea.vmem [#allocation2], 192
        %v4457 = vld [vmem:[%s4456] sm:$0xff]
        %v4458 = vld [vmem:[%s4456 + $0x8] sm:$0xff]
        %v4459 = vld [vmem:[%s4456 + $0x10] sm:$0xff]
        %v4460 = vld [vmem:[%s4456 + $0x18] sm:$0xff]
        %v4461 = vld [vmem:[%s4456 + $0x20] sm:$0xff]
        %v4462 = vld [vmem:[%s4456 + $0x28] sm:$0xff]
        %v4463 = vld [vmem:[%s4456 + $0x30] sm:$0xff]
        %v4464 = vld [vmem:[%s4456 + $0x38] sm:$0xff]
        %4465 = vrot.lane.b32.xlu0 %v1968, 32
        %v4466 = vpop.permute.xlu0 %4465
        %4467 = vrot.lane.b32.xlu0 %v1970, 32
        %v4468 = vpop.permute.xlu0 %4467
        %4469 = vrot.lane.b32.xlu0 %v1972, 32
        %v4470 = vpop.permute.xlu0 %4469
        %4471 = vrot.lane.b32.xlu0 %v1974, 32
        %v4472 = vpop.permute.xlu0 %4471
        %4473 = vrot.lane.b32.xlu0 %v1976, 32
        %v4474 = vpop.permute.xlu0 %4473
        %4475 = vrot.lane.b32.xlu0 %v1978, 32
        %v4476 = vpop.permute.xlu0 %4475
        %4477 = vrot.lane.b32.xlu0 %v1980, 32
        %v4478 = vpop.permute.xlu0 %4477
        %4479 = vrot.lane.b32.xlu0 %v1982, 32
        %v4480 = vpop.permute.xlu0 %4479
        %v4482 = vsel %vm1994, %v4457, 0
        %v4485 = vsel %vm1994, %v4458, 0
        %v4488 = vsel %vm1994, %v4459, 0
        %v4491 = vsel %vm1994, %v4460, 0
        %v4494 = vsel %vm1994, %v4461, 0
        %v4497 = vsel %vm1994, %v4462, 0
        %v4500 = vsel %vm1994, %v4463, 0
        %v4503 = vsel %vm1994, %v4464, 0
        %v4506 = vsel %vm1994, %v4466, 0
        %v4509 = vsel %vm1994, %v4468, 0
        %v4512 = vsel %vm1994, %v4470, 0
        %v4515 = vsel %vm1994, %v4472, 0
        %v4518 = vsel %vm1994, %v4474, 0
        %v4521 = vsel %vm1994, %v4476, 0
        %v4524 = vsel %vm1994, %v4478, 0
        %v4527 = vsel %vm1994, %v4480, 0
        %4529 = vmatprep.subr.bf16.mxu0 0
        %4530 = vmatpush1.bf16.xpose.msra.mxu0 %v4506
        %4531 = vmatprep.subr.bf16.mxu0 0
        %4532 = vmatpush1.bf16.xpose.msra.mxu0 %v4509
        %4533 = vmatprep.subr.bf16.mxu0 0
        %4534 = vmatpush1.bf16.xpose.msra.mxu0 %v4512
        %4535 = vmatprep.subr.bf16.mxu0 0
        %4536 = vmatpush1.bf16.xpose.msra.mxu0 %v4515
        %4537 = vmatprep.subr.bf16.mxu0 0
        %4538 = vmatpush1.bf16.xpose.msra.mxu0 %v4518
        %4539 = vmatprep.subr.bf16.mxu0 0
        %4540 = vmatpush1.bf16.xpose.msra.mxu0 %v4521
        %4541 = vmatprep.subr.bf16.mxu0 0
        %4542 = vmatpush1.bf16.xpose.msra.mxu0 %v4524
        %4543 = vmatprep.subr.bf16.mxu0 0
        %4544 = vmatpush1.bf16.xpose.msra.mxu0 %v4527
        %4545 = vmatprep.subr.bf16.mxu0 0
        %4546 = vmatpush1.bf16.xpose.msra.mxu0 0
        %4547 = vmatprep.subr.bf16.mxu0 0
        %4548 = vmatpush1.bf16.xpose.msra.mxu0 0
        %4549 = vmatprep.subr.bf16.mxu0 0
        %4550 = vmatpush1.bf16.xpose.msra.mxu0 0
        %4551 = vmatprep.subr.bf16.mxu0 0
        %4552 = vmatpush1.bf16.xpose.msra.mxu0 0
        %4553 = vmatprep.subr.bf16.mxu0 0
        %4554 = vmatpush1.bf16.xpose.msra.mxu0 0
        %4555 = vmatprep.subr.bf16.mxu0 0
        %4556 = vmatpush1.bf16.xpose.msra.mxu0 0
        %4557 = vmatprep.subr.bf16.mxu0 0
        %4558 = vmatpush1.bf16.xpose.msra.mxu0 0
        %4559 = vmatprep.subr.bf16.mxu0 0
        %4560 = vmatpush1.bf16.xpose.msra.mxu0 0
        %4561 = vmatprep.mubr.bf16.mxu0 0
        %4562 = vmatmul.mubr.bf16.gmra.mrb[0].mxu0 %v4482
        %v4563 = vpop.f32.mrb[0].mxu0
        %v4564 = vadd.f32 0.0, %v4563
        %v4565 = vpop.f32.mrb[0].mxu0
        %v4566 = vpop.f32.mrb[0].mxu0
        %v4567 = vadd.f32 0.0, %v4566
        %v4568 = vpop.f32.mrb[0].mxu0
        %4569 = vmatprep.mubr.bf16.mxu0 0
        %4570 = vmatmul.mubr.bf16.gmra.mrb[0].mxu0 %v4485
        %v4571 = vpop.f32.mrb[0].mxu0
        %v4572 = vadd.f32 0.0, %v4571
        %v4573 = vpop.f32.mrb[0].mxu0
        %v4574 = vpop.f32.mrb[0].mxu0
        %v4575 = vadd.f32 0.0, %v4574
        %v4576 = vpop.f32.mrb[0].mxu0
        %4577 = vmatprep.mubr.bf16.mxu0 0
        %4578 = vmatmul.mubr.bf16.gmra.mrb[0].mxu0 %v4488
        %v4579 = vpop.f32.mrb[0].mxu0
        %v4580 = vadd.f32 0.0, %v4579
        %v4581 = vpop.f32.mrb[0].mxu0
        %v4582 = vpop.f32.mrb[0].mxu0
        %v4583 = vadd.f32 0.0, %v4582
        %v4584 = vpop.f32.mrb[0].mxu0
        %4585 = vmatprep.mubr.bf16.mxu0 0
        %4586 = vmatmul.mubr.bf16.gmra.mrb[0].mxu0 %v4491
        %v4587 = vpop.f32.mrb[0].mxu0
        %v4588 = vadd.f32 0.0, %v4587
        %v4589 = vpop.f32.mrb[0].mxu0
        %v4590 = vpop.f32.mrb[0].mxu0
        %v4591 = vadd.f32 0.0, %v4590
        %v4592 = vpop.f32.mrb[0].mxu0
        %4593 = vmatprep.mubr.bf16.mxu0 0
        %4594 = vmatmul.mubr.bf16.gmra.mrb[0].mxu0 %v4494
        %v4595 = vpop.f32.mrb[0].mxu0
        %v4596 = vadd.f32 0.0, %v4595
        %v4597 = vpop.f32.mrb[0].mxu0
        %v4598 = vpop.f32.mrb[0].mxu0
        %v4599 = vadd.f32 0.0, %v4598
        %v4600 = vpop.f32.mrb[0].mxu0
        %4601 = vmatprep.mubr.bf16.mxu0 0
        %4602 = vmatmul.mubr.bf16.gmra.mrb[0].mxu0 %v4497
        %v4603 = vpop.f32.mrb[0].mxu0
        %v4604 = vadd.f32 0.0, %v4603
        %v4605 = vpop.f32.mrb[0].mxu0
        %v4606 = vpop.f32.mrb[0].mxu0
        %v4607 = vadd.f32 0.0, %v4606
        %v4608 = vpop.f32.mrb[0].mxu0
        %4609 = vmatprep.mubr.bf16.mxu0 0
        %4610 = vmatmul.mubr.bf16.gmra.mrb[0].mxu0 %v4500
        %v4611 = vpop.f32.mrb[0].mxu0
        %v4612 = vadd.f32 0.0, %v4611
        %v4613 = vpop.f32.mrb[0].mxu0
        %v4614 = vpop.f32.mrb[0].mxu0
        %v4615 = vadd.f32 0.0, %v4614
        %v4616 = vpop.f32.mrb[0].mxu0
        %4617 = vmatprep.mubr.bf16.mxu0 0
        %4618 = vmatmul.mubr.bf16.gmra.mrb[0].mxu0 %v4503
        %v4619 = vpop.f32.mrb[0].mxu0
        %v4620 = vadd.f32 0.0, %v4619
        %v4621 = vpop.f32.mrb[0].mxu0
        %v4622 = vpop.f32.mrb[0].mxu0
        %v4623 = vadd.f32 0.0, %v4622
        %v4624 = vpop.f32.mrb[0].mxu0
        %4625 = vdwg.mxu0
        %v4626 = vsel %vm2145, %v4564, -1e+30
        %v4627 = vsel %vm2145, %v4567, -1e+30
        %v4628 = vsel %vm2145, %v4572, -1e+30
        %v4629 = vsel %vm2145, %v4575, -1e+30
        %v4630 = vsel %vm2145, %v4580, -1e+30
        %v4631 = vsel %vm2145, %v4583, -1e+30
        %v4632 = vsel %vm2145, %v4588, -1e+30
        %v4633 = vsel %vm2145, %v4591, -1e+30
        %v4634 = vsel %vm2145, %v4596, -1e+30
        %v4635 = vsel %vm2145, %v4599, -1e+30
        %v4636 = vsel %vm2145, %v4604, -1e+30
        %v4637 = vsel %vm2145, %v4607, -1e+30
        %v4638 = vsel %vm2145, %v4612, -1e+30
        %v4639 = vsel %vm2145, %v4615, -1e+30
        %v4640 = vsel %vm2145, %v4620, -1e+30
        %v4641 = vsel %vm2145, %v4623, -1e+30
        %s4642 = scalar_lea.vmem [#allocation3], 384
        %v4643 = vld [vmem:[%s4642] sm:$0xff]
        %v4644 = vld [vmem:[%s4642 + $0x8] sm:$0xff]
        %v4645 = vld [vmem:[%s4642 + $0x10] sm:$0xff]
        %v4646 = vld [vmem:[%s4642 + $0x18] sm:$0xff]
        %v4647 = vld [vmem:[%s4642 + $0x20] sm:$0xff]
        %v4648 = vld [vmem:[%s4642 + $0x28] sm:$0xff]
        %v4649 = vld [vmem:[%s4642 + $0x30] sm:$0xff]
        %v4650 = vld [vmem:[%s4642 + $0x38] sm:$0xff]
        %v4651 = vld [vmem:[%s4642 + $0x40] sm:$0xff]
        %v4652 = vld [vmem:[%s4642 + $0x48] sm:$0xff]
        %v4653 = vld [vmem:[%s4642 + $0x50] sm:$0xff]
        %v4654 = vld [vmem:[%s4642 + $0x58] sm:$0xff]
        %v4655 = vld [vmem:[%s4642 + $0x60] sm:$0xff]
        %v4656 = vld [vmem:[%s4642 + $0x68] sm:$0xff]
        %v4657 = vld [vmem:[%s4642 + $0x70] sm:$0xff]
        %v4658 = vld [vmem:[%s4642 + $0x78] sm:$0xff]
        %4659 = vmax.xlane.f32.xlu0 %v4626
        %v4660 = vpop.xlane.xlu0 %4659
        %4661 = vmax.xlane.f32.xlu0 %v4627
        %v4662 = vpop.xlane.xlu0 %4661
        %4663 = vmax.xlane.f32.xlu0 %v4628
        %v4664 = vpop.xlane.xlu0 %4663
        %4665 = vmax.xlane.f32.xlu0 %v4629
        %v4666 = vpop.xlane.xlu0 %4665
        %4667 = vmax.xlane.f32.xlu0 %v4630
        %v4668 = vpop.xlane.xlu0 %4667
        %4669 = vmax.xlane.f32.xlu0 %v4631
        %v4670 = vpop.xlane.xlu0 %4669
        %4671 = vmax.xlane.f32.xlu0 %v4632
        %v4672 = vpop.xlane.xlu0 %4671
        %4673 = vmax.xlane.f32.xlu0 %v4633
        %v4674 = vpop.xlane.xlu0 %4673
        %4675 = vmax.xlane.f32.xlu0 %v4634
        %v4676 = vpop.xlane.xlu0 %4675
        %4677 = vmax.xlane.f32.xlu0 %v4635
        %v4678 = vpop.xlane.xlu0 %4677
        %4679 = vmax.xlane.f32.xlu0 %v4636
        %v4680 = vpop.xlane.xlu0 %4679
        %4681 = vmax.xlane.f32.xlu0 %v4637
        %v4682 = vpop.xlane.xlu0 %4681
        %4683 = vmax.xlane.f32.xlu0 %v4638
        %v4684 = vpop.xlane.xlu0 %4683
        %4685 = vmax.xlane.f32.xlu0 %v4639
        %v4686 = vpop.xlane.xlu0 %4685
        %4687 = vmax.xlane.f32.xlu0 %v4640
        %v4688 = vpop.xlane.xlu0 %4687
        %4689 = vmax.xlane.f32.xlu0 %v4641
        %v4690 = vpop.xlane.xlu0 %4689
        %v4691 = vmax.f32 %v4643, %v4660
        %v4692 = vmax.f32 %v4644, %v4662
        %v4693 = vmax.f32 %v4645, %v4664
        %v4694 = vmax.f32 %v4646, %v4666
        %v4695 = vmax.f32 %v4647, %v4668
        %v4696 = vmax.f32 %v4648, %v4670
        %v4697 = vmax.f32 %v4649, %v4672
        %v4698 = vmax.f32 %v4650, %v4674
        %v4699 = vmax.f32 %v4651, %v4676
        %v4700 = vmax.f32 %v4652, %v4678
        %v4701 = vmax.f32 %v4653, %v4680
        %v4702 = vmax.f32 %v4654, %v4682
        %v4703 = vmax.f32 %v4655, %v4684
        %v4704 = vmax.f32 %v4656, %v4686
        %v4705 = vmax.f32 %v4657, %v4688
        %v4706 = vmax.f32 %v4658, %v4690
        %v4707 = vsub.f32 %v4643, %v4691
        %v4708 = vsub.f32 %v4644, %v4692
        %v4709 = vsub.f32 %v4645, %v4693
        %v4710 = vsub.f32 %v4646, %v4694
        %v4711 = vsub.f32 %v4647, %v4695
        %v4712 = vsub.f32 %v4648, %v4696
        %v4713 = vsub.f32 %v4649, %v4697
        %v4714 = vsub.f32 %v4650, %v4698
        %v4715 = vsub.f32 %v4651, %v4699
        %v4716 = vsub.f32 %v4652, %v4700
        %v4717 = vsub.f32 %v4653, %v4701
        %v4718 = vsub.f32 %v4654, %v4702
        %v4719 = vsub.f32 %v4655, %v4703
        %v4720 = vsub.f32 %v4656, %v4704
        %v4721 = vsub.f32 %v4657, %v4705
        %v4722 = vsub.f32 %v4658, %v4706
        %v4723 = vmul.f32 %v4707, 1.442695
        %v4724 = vpow.pop %v4723
        %v4725 = vmul.f32 %v4708, 1.442695
        %v4726 = vpow.pop %v4725
        %v4727 = vmul.f32 %v4709, 1.442695
        %v4728 = vpow.pop %v4727
        %v4729 = vmul.f32 %v4710, 1.442695
        %v4730 = vpow.pop %v4729
        %v4731 = vmul.f32 %v4711, 1.442695
        %v4732 = vpow.pop %v4731
        %v4733 = vmul.f32 %v4712, 1.442695
        %v4734 = vpow.pop %v4733
        %v4735 = vmul.f32 %v4713, 1.442695
        %v4736 = vpow.pop %v4735
        %v4737 = vmul.f32 %v4714, 1.442695
        %v4738 = vpow.pop %v4737
        %v4739 = vmul.f32 %v4715, 1.442695
        %v4740 = vpow.pop %v4739
        %v4741 = vmul.f32 %v4716, 1.442695
        %v4742 = vpow.pop %v4741
        %v4743 = vmul.f32 %v4717, 1.442695
        %v4744 = vpow.pop %v4743
        %v4745 = vmul.f32 %v4718, 1.442695
        %v4746 = vpow.pop %v4745
        %v4747 = vmul.f32 %v4719, 1.442695
        %v4748 = vpow.pop %v4747
        %v4749 = vmul.f32 %v4720, 1.442695
        %v4750 = vpow.pop %v4749
        %v4751 = vmul.f32 %v4721, 1.442695
        %v4752 = vpow.pop %v4751
        %v4753 = vmul.f32 %v4722, 1.442695
        %v4754 = vpow.pop %v4753
        %4756 = vset.pattern.permute.xlu0 0
        %4757 = vperm.xlu0 %4756, %v4691
        %v4758 = vpop.permute.xlu0 %4757
        %4761 = vset.pattern.permute.xlu0 0
        %4762 = vperm.xlu0 %4761, %v4692
        %v4763 = vpop.permute.xlu0 %4762
        %4766 = vset.pattern.permute.xlu0 0
        %4767 = vperm.xlu0 %4766, %v4693
        %v4768 = vpop.permute.xlu0 %4767
        %4771 = vset.pattern.permute.xlu0 0
        %4772 = vperm.xlu0 %4771, %v4694
        %v4773 = vpop.permute.xlu0 %4772
        %4776 = vset.pattern.permute.xlu0 0
        %4777 = vperm.xlu0 %4776, %v4695
        %v4778 = vpop.permute.xlu0 %4777
        %4781 = vset.pattern.permute.xlu0 0
        %4782 = vperm.xlu0 %4781, %v4696
        %v4783 = vpop.permute.xlu0 %4782
        %4786 = vset.pattern.permute.xlu0 0
        %4787 = vperm.xlu0 %4786, %v4697
        %v4788 = vpop.permute.xlu0 %4787
        %4791 = vset.pattern.permute.xlu0 0
        %4792 = vperm.xlu0 %4791, %v4698
        %v4793 = vpop.permute.xlu0 %4792
        %4796 = vset.pattern.permute.xlu0 0
        %4797 = vperm.xlu0 %4796, %v4699
        %v4798 = vpop.permute.xlu0 %4797
        %4801 = vset.pattern.permute.xlu0 0
        %4802 = vperm.xlu0 %4801, %v4700
        %v4803 = vpop.permute.xlu0 %4802
        %4806 = vset.pattern.permute.xlu0 0
        %4807 = vperm.xlu0 %4806, %v4701
        %v4808 = vpop.permute.xlu0 %4807
        %4811 = vset.pattern.permute.xlu0 0
        %4812 = vperm.xlu0 %4811, %v4702
        %v4813 = vpop.permute.xlu0 %4812
        %4816 = vset.pattern.permute.xlu0 0
        %4817 = vperm.xlu0 %4816, %v4703
        %v4818 = vpop.permute.xlu0 %4817
        %4821 = vset.pattern.permute.xlu0 0
        %4822 = vperm.xlu0 %4821, %v4704
        %v4823 = vpop.permute.xlu0 %4822
        %4826 = vset.pattern.permute.xlu0 0
        %4827 = vperm.xlu0 %4826, %v4705
        %v4828 = vpop.permute.xlu0 %4827
        %4831 = vset.pattern.permute.xlu0 0
        %4832 = vperm.xlu0 %4831, %v4706
        %v4833 = vpop.permute.xlu0 %4832
        %v4835 = vsub.f32 %v4626, %v4758
        %v4836 = vsub.f32 %v4627, %v4763
        %v4837 = vsub.f32 %v4628, %v4768
        %v4838 = vsub.f32 %v4629, %v4773
        %v4839 = vsub.f32 %v4630, %v4778
        %v4840 = vsub.f32 %v4631, %v4783
        %v4841 = vsub.f32 %v4632, %v4788
        %v4842 = vsub.f32 %v4633, %v4793
        %v4843 = vsub.f32 %v4634, %v4798
        %v4844 = vsub.f32 %v4635, %v4803
        %v4845 = vsub.f32 %v4636, %v4808
        %v4846 = vsub.f32 %v4637, %v4813
        %v4847 = vsub.f32 %v4638, %v4818
        %v4848 = vsub.f32 %v4639, %v4823
        %v4849 = vsub.f32 %v4640, %v4828
        %v4850 = vsub.f32 %v4641, %v4833
        %v4851 = vmul.f32 %v4835, 1.442695
        %v4852 = vpow.pop %v4851
        %v4853 = vmul.f32 %v4836, 1.442695
        %v4854 = vpow.pop %v4853
        %v4855 = vmul.f32 %v4837, 1.442695
        %v4856 = vpow.pop %v4855
        %v4857 = vmul.f32 %v4838, 1.442695
        %v4858 = vpow.pop %v4857
        %v4859 = vmul.f32 %v4839, 1.442695
        %v4860 = vpow.pop %v4859
        %v4861 = vmul.f32 %v4840, 1.442695
        %v4862 = vpow.pop %v4861
        %v4863 = vmul.f32 %v4841, 1.442695
        %v4864 = vpow.pop %v4863
        %v4865 = vmul.f32 %v4842, 1.442695
        %v4866 = vpow.pop %v4865
        %v4867 = vmul.f32 %v4843, 1.442695
        %v4868 = vpow.pop %v4867
        %v4869 = vmul.f32 %v4844, 1.442695
        %v4870 = vpow.pop %v4869
        %v4871 = vmul.f32 %v4845, 1.442695
        %v4872 = vpow.pop %v4871
        %v4873 = vmul.f32 %v4846, 1.442695
        %v4874 = vpow.pop %v4873
        %v4875 = vmul.f32 %v4847, 1.442695
        %v4876 = vpow.pop %v4875
        %v4877 = vmul.f32 %v4848, 1.442695
        %v4878 = vpow.pop %v4877
        %v4879 = vmul.f32 %v4849, 1.442695
        %v4880 = vpow.pop %v4879
        %v4881 = vmul.f32 %v4850, 1.442695
        %v4882 = vpow.pop %v4881
        %v4883 = vsel %vm2145, %v4852, 0.0
        %v4884 = vsel %vm2145, %v4854, 0.0
        %v4885 = vsel %vm2145, %v4856, 0.0
        %v4886 = vsel %vm2145, %v4858, 0.0
        %v4887 = vsel %vm2145, %v4860, 0.0
        %v4888 = vsel %vm2145, %v4862, 0.0
        %v4889 = vsel %vm2145, %v4864, 0.0
        %v4890 = vsel %vm2145, %v4866, 0.0
        %v4891 = vsel %vm2145, %v4868, 0.0
        %v4892 = vsel %vm2145, %v4870, 0.0
        %v4893 = vsel %vm2145, %v4872, 0.0
        %v4894 = vsel %vm2145, %v4874, 0.0
        %v4895 = vsel %vm2145, %v4876, 0.0
        %v4896 = vsel %vm2145, %v4878, 0.0
        %v4897 = vsel %vm2145, %v4880, 0.0
        %v4898 = vsel %vm2145, %v4882, 0.0
        %s4899 = scalar_lea.vmem [#allocation4], 384
        %v4900 = vld [vmem:[%s4899] sm:$0xff]
        %v4901 = vld [vmem:[%s4899 + $0x8] sm:$0xff]
        %v4902 = vld [vmem:[%s4899 + $0x10] sm:$0xff]
        %v4903 = vld [vmem:[%s4899 + $0x18] sm:$0xff]
        %v4904 = vld [vmem:[%s4899 + $0x20] sm:$0xff]
        %v4905 = vld [vmem:[%s4899 + $0x28] sm:$0xff]
        %v4906 = vld [vmem:[%s4899 + $0x30] sm:$0xff]
        %v4907 = vld [vmem:[%s4899 + $0x38] sm:$0xff]
        %v4908 = vld [vmem:[%s4899 + $0x40] sm:$0xff]
        %v4909 = vld [vmem:[%s4899 + $0x48] sm:$0xff]
        %v4910 = vld [vmem:[%s4899 + $0x50] sm:$0xff]
        %v4911 = vld [vmem:[%s4899 + $0x58] sm:$0xff]
        %v4912 = vld [vmem:[%s4899 + $0x60] sm:$0xff]
        %v4913 = vld [vmem:[%s4899 + $0x68] sm:$0xff]
        %v4914 = vld [vmem:[%s4899 + $0x70] sm:$0xff]
        %v4915 = vld [vmem:[%s4899 + $0x78] sm:$0xff]
        %v4916 = vmul.f32 %v4724, %v4900
        %v4917 = vmul.f32 %v4726, %v4901
        %v4918 = vmul.f32 %v4728, %v4902
        %v4919 = vmul.f32 %v4730, %v4903
        %v4920 = vmul.f32 %v4732, %v4904
        %v4921 = vmul.f32 %v4734, %v4905
        %v4922 = vmul.f32 %v4736, %v4906
        %v4923 = vmul.f32 %v4738, %v4907
        %v4924 = vmul.f32 %v4740, %v4908
        %v4925 = vmul.f32 %v4742, %v4909
        %v4926 = vmul.f32 %v4744, %v4910
        %v4927 = vmul.f32 %v4746, %v4911
        %v4928 = vmul.f32 %v4748, %v4912
        %v4929 = vmul.f32 %v4750, %v4913
        %v4930 = vmul.f32 %v4752, %v4914
        %v4931 = vmul.f32 %v4754, %v4915
        %4932 = vadd.xlane.f32.xlu0 %v4883
        %v4933 = vpop.xlane.xlu0 %4932
        %4934 = vadd.xlane.f32.xlu0 %v4884
        %v4935 = vpop.xlane.xlu0 %4934
        %4936 = vadd.xlane.f32.xlu0 %v4885
        %v4937 = vpop.xlane.xlu0 %4936
        %4938 = vadd.xlane.f32.xlu0 %v4886
        %v4939 = vpop.xlane.xlu0 %4938
        %4940 = vadd.xlane.f32.xlu0 %v4887
        %v4941 = vpop.xlane.xlu0 %4940
        %4942 = vadd.xlane.f32.xlu0 %v4888
        %v4943 = vpop.xlane.xlu0 %4942
        %4944 = vadd.xlane.f32.xlu0 %v4889
        %v4945 = vpop.xlane.xlu0 %4944
        %4946 = vadd.xlane.f32.xlu0 %v4890
        %v4947 = vpop.xlane.xlu0 %4946
        %4948 = vadd.xlane.f32.xlu0 %v4891
        %v4949 = vpop.xlane.xlu0 %4948
        %4950 = vadd.xlane.f32.xlu0 %v4892
        %v4951 = vpop.xlane.xlu0 %4950
        %4952 = vadd.xlane.f32.xlu0 %v4893
        %v4953 = vpop.xlane.xlu0 %4952
        %4954 = vadd.xlane.f32.xlu0 %v4894
        %v4955 = vpop.xlane.xlu0 %4954
        %4956 = vadd.xlane.f32.xlu0 %v4895
        %v4957 = vpop.xlane.xlu0 %4956
        %4958 = vadd.xlane.f32.xlu0 %v4896
        %v4959 = vpop.xlane.xlu0 %4958
        %4960 = vadd.xlane.f32.xlu0 %v4897
        %v4961 = vpop.xlane.xlu0 %4960
        %4962 = vadd.xlane.f32.xlu0 %v4898
        %v4963 = vpop.xlane.xlu0 %4962
        %v4964 = vadd.f32 %v4916, %v4933
        %v4965 = vadd.f32 %v4917, %v4935
        %v4966 = vadd.f32 %v4918, %v4937
        %v4967 = vadd.f32 %v4919, %v4939
        %v4968 = vadd.f32 %v4920, %v4941
        %v4969 = vadd.f32 %v4921, %v4943
        %v4970 = vadd.f32 %v4922, %v4945
        %v4971 = vadd.f32 %v4923, %v4947
        %v4972 = vadd.f32 %v4924, %v4949
        %v4973 = vadd.f32 %v4925, %v4951
        %v4974 = vadd.f32 %v4926, %v4953
        %v4975 = vadd.f32 %v4927, %v4955
        %v4976 = vadd.f32 %v4928, %v4957
        %v4977 = vadd.f32 %v4929, %v4959
        %v4978 = vadd.f32 %v4930, %v4961
        %v4979 = vadd.f32 %v4931, %v4963
        %4980 = vst.msk [vmem:[%s4899] sm:$0xff] %vm2498, %v4964
        %4981 = vst.msk [vmem:[%s4899 + $0x8] sm:$0xff] %vm2498, %v4965
        %4982 = vst.msk [vmem:[%s4899 + $0x10] sm:$0xff] %vm2498, %v4966
        %4983 = vst.msk [vmem:[%s4899 + $0x18] sm:$0xff] %vm2498, %v4967
        %4984 = vst.msk [vmem:[%s4899 + $0x20] sm:$0xff] %vm2498, %v4968
        %4985 = vst.msk [vmem:[%s4899 + $0x28] sm:$0xff] %vm2498, %v4969
        %4986 = vst.msk [vmem:[%s4899 + $0x30] sm:$0xff] %vm2498, %v4970
        %4987 = vst.msk [vmem:[%s4899 + $0x38] sm:$0xff] %vm2498, %v4971
        %4988 = vst.msk [vmem:[%s4899 + $0x40] sm:$0xff] %vm2498, %v4972
        %4989 = vst.msk [vmem:[%s4899 + $0x48] sm:$0xff] %vm2498, %v4973
        %4990 = vst.msk [vmem:[%s4899 + $0x50] sm:$0xff] %vm2498, %v4974
        %4991 = vst.msk [vmem:[%s4899 + $0x58] sm:$0xff] %vm2498, %v4975
        %4992 = vst.msk [vmem:[%s4899 + $0x60] sm:$0xff] %vm2498, %v4976
        %4993 = vst.msk [vmem:[%s4899 + $0x68] sm:$0xff] %vm2498, %v4977
        %4994 = vst.msk [vmem:[%s4899 + $0x70] sm:$0xff] %vm2498, %v4978
        %4995 = vst.msk [vmem:[%s4899 + $0x78] sm:$0xff] %vm2498, %v4979
        %s4996 = scalar_lea.vmem [#allocation5], 384
        %v4997 = vld [vmem:[%s4996] sm:$0xff]
        %v4998 = vld [vmem:[%s4996 + $0x8] sm:$0xff]
        %v4999 = vld [vmem:[%s4996 + $0x10] sm:$0xff]
        %v5000 = vld [vmem:[%s4996 + $0x18] sm:$0xff]
        %v5001 = vld [vmem:[%s4996 + $0x20] sm:$0xff]
        %v5002 = vld [vmem:[%s4996 + $0x28] sm:$0xff]
        %v5003 = vld [vmem:[%s4996 + $0x30] sm:$0xff]
        %v5004 = vld [vmem:[%s4996 + $0x38] sm:$0xff]
        %v5005 = vld [vmem:[%s4996 + $0x40] sm:$0xff]
        %v5006 = vld [vmem:[%s4996 + $0x48] sm:$0xff]
        %v5007 = vld [vmem:[%s4996 + $0x50] sm:$0xff]
        %v5008 = vld [vmem:[%s4996 + $0x58] sm:$0xff]
        %v5009 = vld [vmem:[%s4996 + $0x60] sm:$0xff]
        %v5010 = vld [vmem:[%s4996 + $0x68] sm:$0xff]
        %v5011 = vld [vmem:[%s4996 + $0x70] sm:$0xff]
        %v5012 = vld [vmem:[%s4996 + $0x78] sm:$0xff]
        %5014 = vset.pattern.permute.xlu0 0
        %5015 = vperm.xlu0 %5014, %v4724
        %v5016 = vpop.permute.xlu0 %5015
        %5019 = vset.pattern.permute.xlu0 0
        %5020 = vperm.xlu0 %5019, %v4726
        %v5021 = vpop.permute.xlu0 %5020
        %5024 = vset.pattern.permute.xlu0 0
        %5025 = vperm.xlu0 %5024, %v4728
        %v5026 = vpop.permute.xlu0 %5025
        %5029 = vset.pattern.permute.xlu0 0
        %5030 = vperm.xlu0 %5029, %v4730
        %v5031 = vpop.permute.xlu0 %5030
        %5034 = vset.pattern.permute.xlu0 0
        %5035 = vperm.xlu0 %5034, %v4732
        %v5036 = vpop.permute.xlu0 %5035
        %5039 = vset.pattern.permute.xlu0 0
        %5040 = vperm.xlu0 %5039, %v4734
        %v5041 = vpop.permute.xlu0 %5040
        %5044 = vset.pattern.permute.xlu0 0
        %5045 = vperm.xlu0 %5044, %v4736
        %v5046 = vpop.permute.xlu0 %5045
        %5049 = vset.pattern.permute.xlu0 0
        %5050 = vperm.xlu0 %5049, %v4738
        %v5051 = vpop.permute.xlu0 %5050
        %5054 = vset.pattern.permute.xlu0 0
        %5055 = vperm.xlu0 %5054, %v4740
        %v5056 = vpop.permute.xlu0 %5055
        %5059 = vset.pattern.permute.xlu0 0
        %5060 = vperm.xlu0 %5059, %v4742
        %v5061 = vpop.permute.xlu0 %5060
        %5064 = vset.pattern.permute.xlu0 0
        %5065 = vperm.xlu0 %5064, %v4744
        %v5066 = vpop.permute.xlu0 %5065
        %5069 = vset.pattern.permute.xlu0 0
        %5070 = vperm.xlu0 %5069, %v4746
        %v5071 = vpop.permute.xlu0 %5070
        %5074 = vset.pattern.permute.xlu0 0
        %5075 = vperm.xlu0 %5074, %v4748
        %v5076 = vpop.permute.xlu0 %5075
        %5079 = vset.pattern.permute.xlu0 0
        %5080 = vperm.xlu0 %5079, %v4750
        %v5081 = vpop.permute.xlu0 %5080
        %5084 = vset.pattern.permute.xlu0 0
        %5085 = vperm.xlu0 %5084, %v4752
        %v5086 = vpop.permute.xlu0 %5085
        %5089 = vset.pattern.permute.xlu0 0
        %5090 = vperm.xlu0 %5089, %v4754
        %v5091 = vpop.permute.xlu0 %5090
        %v5093 = vmul.f32 %v5016, %v4997
        %v5094 = vmul.f32 %v5021, %v4998
        %v5095 = vmul.f32 %v5026, %v4999
        %v5096 = vmul.f32 %v5031, %v5000
        %v5097 = vmul.f32 %v5036, %v5001
        %v5098 = vmul.f32 %v5041, %v5002
        %v5099 = vmul.f32 %v5046, %v5003
        %v5100 = vmul.f32 %v5051, %v5004
        %v5101 = vmul.f32 %v5056, %v5005
        %v5102 = vmul.f32 %v5061, %v5006
        %v5103 = vmul.f32 %v5066, %v5007
        %v5104 = vmul.f32 %v5071, %v5008
        %v5105 = vmul.f32 %v5076, %v5009
        %v5106 = vmul.f32 %v5081, %v5010
        %v5107 = vmul.f32 %v5086, %v5011
        %v5108 = vmul.f32 %v5091, %v5012
        %v5109 = vpack.c.bf16 %v4884, %v4883
        %v5110 = vpack.c.bf16 %v4886, %v4885
        %v5111 = vpack.c.bf16 %v4888, %v4887
        %v5112 = vpack.c.bf16 %v4890, %v4889
        %v5113 = vpack.c.bf16 %v4892, %v4891
        %v5114 = vpack.c.bf16 %v4894, %v4893
        %v5115 = vpack.c.bf16 %v4896, %v4895
        %v5116 = vpack.c.bf16 %v4898, %v4897
        %5117 = vrot.lane.b32.xlu0 %v1969, 32
        %v5118 = vpop.permute.xlu0 %5117
        %5119 = vrot.lane.b32.xlu0 %v1971, 32
        %v5120 = vpop.permute.xlu0 %5119
        %5121 = vrot.lane.b32.xlu0 %v1973, 32
        %v5122 = vpop.permute.xlu0 %5121
        %5123 = vrot.lane.b32.xlu0 %v1975, 32
        %v5124 = vpop.permute.xlu0 %5123
        %5125 = vrot.lane.b32.xlu0 %v1977, 32
        %v5126 = vpop.permute.xlu0 %5125
        %5127 = vrot.lane.b32.xlu0 %v1979, 32
        %v5128 = vpop.permute.xlu0 %5127
        %5129 = vrot.lane.b32.xlu0 %v1981, 32
        %v5130 = vpop.permute.xlu0 %5129
        %5131 = vrot.lane.b32.xlu0 %v1983, 32
        %v5132 = vpop.permute.xlu0 %5131
        %5141 = vmatprep.subr.bf16.mxu0 0
        %5142 = vmatpush1.bf16.msra.mxu0 %v5118
        %5143 = vmatprep.subr.bf16.mxu0 0
        %5144 = vmatpush1.bf16.msra.mxu0 %v5120
        %5145 = vmatprep.subr.bf16.mxu0 0
        %5146 = vmatpush1.bf16.msra.mxu0 %v5122
        %5147 = vmatprep.subr.bf16.mxu0 0
        %5148 = vmatpush1.bf16.msra.mxu0 %v5124
        %5149 = vmatprep.subr.bf16.mxu0 0
        %5150 = vmatpush1.bf16.msra.mxu0 %v5126
        %5151 = vmatprep.subr.bf16.mxu0 0
        %5152 = vmatpush1.bf16.msra.mxu0 %v5128
        %5153 = vmatprep.subr.bf16.mxu0 0
        %5154 = vmatpush1.bf16.msra.mxu0 %v5130
        %5155 = vmatprep.subr.bf16.mxu0 0
        %5156 = vmatpush1.bf16.msra.mxu0 %v5132
        %5157 = vmatprep.subr.bf16.mxu0 0
        %5158 = vmatpush1.bf16.msra.mxu0 0
        %5159 = vmatprep.subr.bf16.mxu0 0
        %5160 = vmatpush1.bf16.msra.mxu0 0
        %5161 = vmatprep.subr.bf16.mxu0 0
        %5162 = vmatpush1.bf16.msra.mxu0 0
        %5163 = vmatprep.subr.bf16.mxu0 0
        %5164 = vmatpush1.bf16.msra.mxu0 0
        %5165 = vmatprep.subr.bf16.mxu0 0
        %5166 = vmatpush1.bf16.msra.mxu0 0
        %5167 = vmatprep.subr.bf16.mxu0 0
        %5168 = vmatpush1.bf16.msra.mxu0 0
        %5169 = vmatprep.subr.bf16.mxu0 0
        %5170 = vmatpush1.bf16.msra.mxu0 0
        %5171 = vmatprep.subr.bf16.mxu0 0
        %5172 = vmatpush1.bf16.msra.mxu0 0
        %5173 = vmatprep.mubr.bf16.mxu0 0
        %5174 = vmatmul.mubr.bf16.gmra.mrb[0].mxu0 %v5109
        %v5175 = vpop.f32.mrb[0].mxu0
        %v5176 = vadd.f32 0.0, %v5175
        %v5177 = vpop.f32.mrb[0].mxu0
        %v5178 = vpop.f32.mrb[0].mxu0
        %v5179 = vadd.f32 0.0, %v5178
        %v5180 = vpop.f32.mrb[0].mxu0
        %5181 = vmatprep.mubr.bf16.mxu0 0
        %5182 = vmatmul.mubr.bf16.gmra.mrb[0].mxu0 %v5110
        %v5183 = vpop.f32.mrb[0].mxu0
        %v5184 = vadd.f32 0.0, %v5183
        %v5185 = vpop.f32.mrb[0].mxu0
        %v5186 = vpop.f32.mrb[0].mxu0
        %v5187 = vadd.f32 0.0, %v5186
        %v5188 = vpop.f32.mrb[0].mxu0
        %5189 = vmatprep.mubr.bf16.mxu0 0
        %5190 = vmatmul.mubr.bf16.gmra.mrb[0].mxu0 %v5111
        %v5191 = vpop.f32.mrb[0].mxu0
        %v5192 = vadd.f32 0.0, %v5191
        %v5193 = vpop.f32.mrb[0].mxu0
        %v5194 = vpop.f32.mrb[0].mxu0
        %v5195 = vadd.f32 0.0, %v5194
        %v5196 = vpop.f32.mrb[0].mxu0
        %5197 = vmatprep.mubr.bf16.mxu0 0
        %5198 = vmatmul.mubr.bf16.gmra.mrb[0].mxu0 %v5112
        %v5199 = vpop.f32.mrb[0].mxu0
        %v5200 = vadd.f32 0.0, %v5199
        %v5201 = vpop.f32.mrb[0].mxu0
        %v5202 = vpop.f32.mrb[0].mxu0
        %v5203 = vadd.f32 0.0, %v5202
        %v5204 = vpop.f32.mrb[0].mxu0
        %5205 = vmatprep.mubr.bf16.mxu0 0
        %5206 = vmatmul.mubr.bf16.gmra.mrb[0].mxu0 %v5113
        %v5207 = vpop.f32.mrb[0].mxu0
        %v5208 = vadd.f32 0.0, %v5207
        %v5209 = vpop.f32.mrb[0].mxu0
        %v5210 = vpop.f32.mrb[0].mxu0
        %v5211 = vadd.f32 0.0, %v5210
        %v5212 = vpop.f32.mrb[0].mxu0
        %5213 = vmatprep.mubr.bf16.mxu0 0
        %5214 = vmatmul.mubr.bf16.gmra.mrb[0].mxu0 %v5114
        %v5215 = vpop.f32.mrb[0].mxu0
        %v5216 = vadd.f32 0.0, %v5215
        %v5217 = vpop.f32.mrb[0].mxu0
        %v5218 = vpop.f32.mrb[0].mxu0
        %v5219 = vadd.f32 0.0, %v5218
        %v5220 = vpop.f32.mrb[0].mxu0
        %5221 = vmatprep.mubr.bf16.mxu0 0
        %5222 = vmatmul.mubr.bf16.gmra.mrb[0].mxu0 %v5115
        %v5223 = vpop.f32.mrb[0].mxu0
        %v5224 = vadd.f32 0.0, %v5223
        %v5225 = vpop.f32.mrb[0].mxu0
        %v5226 = vpop.f32.mrb[0].mxu0
        %v5227 = vadd.f32 0.0, %v5226
        %v5228 = vpop.f32.mrb[0].mxu0
        %5229 = vmatprep.mubr.bf16.mxu0 0
        %5230 = vmatmul.mubr.bf16.gmra.mrb[0].mxu0 %v5116
        %v5231 = vpop.f32.mrb[0].mxu0
        %v5232 = vadd.f32 0.0, %v5231
        %v5233 = vpop.f32.mrb[0].mxu0
        %v5234 = vpop.f32.mrb[0].mxu0
        %v5235 = vadd.f32 0.0, %v5234
        %v5236 = vpop.f32.mrb[0].mxu0
        %5237 = vdwg.mxu0
        %v5238 = vadd.f32 %v5093, %v5176
        %v5239 = vadd.f32 %v5094, %v5179
        %v5240 = vadd.f32 %v5095, %v5184
        %v5241 = vadd.f32 %v5096, %v5187
        %v5242 = vadd.f32 %v5097, %v5192
        %v5243 = vadd.f32 %v5098, %v5195
        %v5244 = vadd.f32 %v5099, %v5200
        %v5245 = vadd.f32 %v5100, %v5203
        %v5246 = vadd.f32 %v5101, %v5208
        %v5247 = vadd.f32 %v5102, %v5211
        %v5248 = vadd.f32 %v5103, %v5216
        %v5249 = vadd.f32 %v5104, %v5219
        %v5250 = vadd.f32 %v5105, %v5224
        %v5251 = vadd.f32 %v5106, %v5227
        %v5252 = vadd.f32 %v5107, %v5232
        %v5253 = vadd.f32 %v5108, %v5235
        %5254 = vst.msk [vmem:[%s4996] sm:$0xff] %vm1994, %v5238
        %5255 = vst.msk [vmem:[%s4996 + $0x8] sm:$0xff] %vm1994, %v5239
        %5256 = vst.msk [vmem:[%s4996 + $0x10] sm:$0xff] %vm1994, %v5240
        %5257 = vst.msk [vmem:[%s4996 + $0x18] sm:$0xff] %vm1994, %v5241
        %5258 = vst.msk [vmem:[%s4996 + $0x20] sm:$0xff] %vm1994, %v5242
        %5259 = vst.msk [vmem:[%s4996 + $0x28] sm:$0xff] %vm1994, %v5243
        %5260 = vst.msk [vmem:[%s4996 + $0x30] sm:$0xff] %vm1994, %v5244
        %5261 = vst.msk [vmem:[%s4996 + $0x38] sm:$0xff] %vm1994, %v5245
        %5262 = vst.msk [vmem:[%s4996 + $0x40] sm:$0xff] %vm1994, %v5246
        %5263 = vst.msk [vmem:[%s4996 + $0x48] sm:$0xff] %vm1994, %v5247
        %5264 = vst.msk [vmem:[%s4996 + $0x50] sm:$0xff] %vm1994, %v5248
        %5265 = vst.msk [vmem:[%s4996 + $0x58] sm:$0xff] %vm1994, %v5249
        %5266 = vst.msk [vmem:[%s4996 + $0x60] sm:$0xff] %vm1994, %v5250
        %5267 = vst.msk [vmem:[%s4996 + $0x68] sm:$0xff] %vm1994, %v5251
        %5268 = vst.msk [vmem:[%s4996 + $0x70] sm:$0xff] %vm1994, %v5252
        %5269 = vst.msk [vmem:[%s4996 + $0x78] sm:$0xff] %vm1994, %v5253
        %5270 = vst.msk [vmem:[%s4642] sm:$0xff] %vm2498, %v4691
        %5271 = vst.msk [vmem:[%s4642 + $0x8] sm:$0xff] %vm2498, %v4692
        %5272 = vst.msk [vmem:[%s4642 + $0x10] sm:$0xff] %vm2498, %v4693
        %5273 = vst.msk [vmem:[%s4642 + $0x18] sm:$0xff] %vm2498, %v4694
        %5274 = vst.msk [vmem:[%s4642 + $0x20] sm:$0xff] %vm2498, %v4695
        %5275 = vst.msk [vmem:[%s4642 + $0x28] sm:$0xff] %vm2498, %v4696
        %5276 = vst.msk [vmem:[%s4642 + $0x30] sm:$0xff] %vm2498, %v4697
        %5277 = vst.msk [vmem:[%s4642 + $0x38] sm:$0xff] %vm2498, %v4698
        %5278 = vst.msk [vmem:[%s4642 + $0x40] sm:$0xff] %vm2498, %v4699
        %5279 = vst.msk [vmem:[%s4642 + $0x48] sm:$0xff] %vm2498, %v4700
        %5280 = vst.msk [vmem:[%s4642 + $0x50] sm:$0xff] %vm2498, %v4701
        %5281 = vst.msk [vmem:[%s4642 + $0x58] sm:$0xff] %vm2498, %v4702
        %5282 = vst.msk [vmem:[%s4642 + $0x60] sm:$0xff] %vm2498, %v4703
        %5283 = vst.msk [vmem:[%s4642 + $0x68] sm:$0xff] %vm2498, %v4704
        %5284 = vst.msk [vmem:[%s4642 + $0x70] sm:$0xff] %vm2498, %v4705
        %5285 = vst.msk [vmem:[%s4642 + $0x78] sm:$0xff] %vm2498, %v4706
        %p5286 = scmp.eq.s32.totalorder %s47, 1
        // Predicated region
        $region125: #{tpu_custom_call.1} parent=87 // pred_check
          %p5287 = pneg %p5286
        $region126: #{tpu_custom_call.1} parent=87 // pred_check_branch
          %5289 = sbr.rel (%p5287) target = $region128
        $region127: #{tpu_custom_call.1} parent=87 // pred_region
          %v5290 = vld [vmem:[%s655] sm:$0xff]
          %v5291 = vld [vmem:[%s655 + $0x8] sm:$0xff]
          %v5292 = vld [vmem:[%s655 + $0x10] sm:$0xff]
          %v5293 = vld [vmem:[%s655 + $0x18] sm:$0xff]
          %v5294 = vld [vmem:[%s655 + $0x20] sm:$0xff]
          %v5295 = vld [vmem:[%s655 + $0x28] sm:$0xff]
          %v5296 = vld [vmem:[%s655 + $0x30] sm:$0xff]
          %v5297 = vld [vmem:[%s655 + $0x38] sm:$0xff]
          %v5298 = vld [vmem:[%s655 + $0x40] sm:$0xff]
          %v5299 = vld [vmem:[%s655 + $0x48] sm:$0xff]
          %v5300 = vld [vmem:[%s655 + $0x50] sm:$0xff]
          %v5301 = vld [vmem:[%s655 + $0x58] sm:$0xff]
          %v5302 = vld [vmem:[%s655 + $0x60] sm:$0xff]
          %v5303 = vld [vmem:[%s655 + $0x68] sm:$0xff]
          %v5304 = vld [vmem:[%s655 + $0x70] sm:$0xff]
          %v5305 = vld [vmem:[%s655 + $0x78] sm:$0xff]
          %v5306 = vld [vmem:[%s12] sm:$0x1]
          %v5308 = vlaneseq
          %v5309 = vshrl.u32 %v5308, 7
          %v5310 = vsub.s32 0, %v5309
          %v5311 = vrot.slane %v5306, %v5310
          %v5313 = vld [vmem:[#allocation4] sm:$0xff]
          %v5314 = vld [vmem:[#allocation4 + $0x8] sm:$0xff]
          %v5315 = vld [vmem:[#allocation4 + $0x10] sm:$0xff]
          %v5316 = vld [vmem:[#allocation4 + $0x18] sm:$0xff]
          %v5317 = vld [vmem:[#allocation4 + $0x20] sm:$0xff]
          %v5318 = vld [vmem:[#allocation4 + $0x28] sm:$0xff]
          %v5319 = vld [vmem:[#allocation4 + $0x30] sm:$0xff]
          %v5320 = vld [vmem:[#allocation4 + $0x38] sm:$0xff]
          %v5321 = vld [vmem:[#allocation4 + $0x40] sm:$0xff]
          %v5322 = vld [vmem:[#allocation4 + $0x48] sm:$0xff]
          %v5323 = vld [vmem:[#allocation4 + $0x50] sm:$0xff]
          %v5324 = vld [vmem:[#allocation4 + $0x58] sm:$0xff]
          %v5325 = vld [vmem:[#allocation4 + $0x60] sm:$0xff]
          %v5326 = vld [vmem:[#allocation4 + $0x68] sm:$0xff]
          %v5327 = vld [vmem:[#allocation4 + $0x70] sm:$0xff]
          %v5328 = vld [vmem:[#allocation4 + $0x78] sm:$0xff]
          %v5329 = vmax.f32 %v5313, 1e-30
          %v5330 = vmax.f32 %v5314, 1e-30
          %v5331 = vmax.f32 %v5315, 1e-30
          %v5332 = vmax.f32 %v5316, 1e-30
          %v5333 = vmax.f32 %v5317, 1e-30
          %v5334 = vmax.f32 %v5318, 1e-30
          %v5335 = vmax.f32 %v5319, 1e-30
          %v5336 = vmax.f32 %v5320, 1e-30
          %v5337 = vmax.f32 %v5321, 1e-30
          %v5338 = vmax.f32 %v5322, 1e-30
          %v5339 = vmax.f32 %v5323, 1e-30
          %v5340 = vmax.f32 %v5324, 1e-30
          %v5341 = vmax.f32 %v5325, 1e-30
          %v5342 = vmax.f32 %v5326, 1e-30
          %v5343 = vmax.f32 %v5327, 1e-30
          %v5344 = vmax.f32 %v5328, 1e-30
          %v5345 = vrcp.pop %v5329
          %v5346 = vrcp.pop %v5330
          %v5347 = vrcp.pop %v5331
          %v5348 = vrcp.pop %v5332
          %v5349 = vrcp.pop %v5333
          %v5350 = vrcp.pop %v5334
          %v5351 = vrcp.pop %v5335
          %v5352 = vrcp.pop %v5336
          %v5353 = vrcp.pop %v5337
          %v5354 = vrcp.pop %v5338
          %v5355 = vrcp.pop %v5339
          %v5356 = vrcp.pop %v5340
          %v5357 = vrcp.pop %v5341
          %v5358 = vrcp.pop %v5342
          %v5359 = vrcp.pop %v5343
          %v5360 = vrcp.pop %v5344
          %v5361 = vld [vmem:[#allocation5] sm:$0xff]
          %v5362 = vld [vmem:[#allocation5 + $0x8] sm:$0xff]
          %v5363 = vld [vmem:[#allocation5 + $0x10] sm:$0xff]
          %v5364 = vld [vmem:[#allocation5 + $0x18] sm:$0xff]
          %v5365 = vld [vmem:[#allocation5 + $0x20] sm:$0xff]
          %v5366 = vld [vmem:[#allocation5 + $0x28] sm:$0xff]
          %v5367 = vld [vmem:[#allocation5 + $0x30] sm:$0xff]
          %v5368 = vld [vmem:[#allocation5 + $0x38] sm:$0xff]
          %v5369 = vld [vmem:[#allocation5 + $0x40] sm:$0xff]
          %v5370 = vld [vmem:[#allocation5 + $0x48] sm:$0xff]
          %v5371 = vld [vmem:[#allocation5 + $0x50] sm:$0xff]
          %v5372 = vld [vmem:[#allocation5 + $0x58] sm:$0xff]
          %v5373 = vld [vmem:[#allocation5 + $0x60] sm:$0xff]
          %v5374 = vld [vmem:[#allocation5 + $0x68] sm:$0xff]
          %v5375 = vld [vmem:[#allocation5 + $0x70] sm:$0xff]
          %v5376 = vld [vmem:[#allocation5 + $0x78] sm:$0xff]
          %5378 = vset.pattern.permute.xlu0 0
          %5379 = vperm.xlu0 %5378, %v5345
          %v5380 = vpop.permute.xlu0 %5379
          %5383 = vset.pattern.permute.xlu0 0
          %5384 = vperm.xlu0 %5383, %v5346
          %v5385 = vpop.permute.xlu0 %5384
          %5388 = vset.pattern.permute.xlu0 0
          %5389 = vperm.xlu0 %5388, %v5347
          %v5390 = vpop.permute.xlu0 %5389
          %5393 = vset.pattern.permute.xlu0 0
          %5394 = vperm.xlu0 %5393, %v5348
          %v5395 = vpop.permute.xlu0 %5394
          %5398 = vset.pattern.permute.xlu0 0
          %5399 = vperm.xlu0 %5398, %v5349
          %v5400 = vpop.permute.xlu0 %5399
          %5403 = vset.pattern.permute.xlu0 0
          %5404 = vperm.xlu0 %5403, %v5350
          %v5405 = vpop.permute.xlu0 %5404
          %5408 = vset.pattern.permute.xlu0 0
          %5409 = vperm.xlu0 %5408, %v5351
          %v5410 = vpop.permute.xlu0 %5409
          %5413 = vset.pattern.permute.xlu0 0
          %5414 = vperm.xlu0 %5413, %v5352
          %v5415 = vpop.permute.xlu0 %5414
          %5418 = vset.pattern.permute.xlu0 0
          %5419 = vperm.xlu0 %5418, %v5353
          %v5420 = vpop.permute.xlu0 %5419
          %5423 = vset.pattern.permute.xlu0 0
          %5424 = vperm.xlu0 %5423, %v5354
          %v5425 = vpop.permute.xlu0 %5424
          %5428 = vset.pattern.permute.xlu0 0
          %5429 = vperm.xlu0 %5428, %v5355
          %v5430 = vpop.permute.xlu0 %5429
          %5433 = vset.pattern.permute.xlu0 0
          %5434 = vperm.xlu0 %5433, %v5356
          %v5435 = vpop.permute.xlu0 %5434
          %5438 = vset.pattern.permute.xlu0 0
          %5439 = vperm.xlu0 %5438, %v5357
          %v5440 = vpop.permute.xlu0 %5439
          %5443 = vset.pattern.permute.xlu0 0
          %5444 = vperm.xlu0 %5443, %v5358
          %v5445 = vpop.permute.xlu0 %5444
          %5448 = vset.pattern.permute.xlu0 0
          %5449 = vperm.xlu0 %5448, %v5359
          %v5450 = vpop.permute.xlu0 %5449
          %5453 = vset.pattern.permute.xlu0 0
          %5454 = vperm.xlu0 %5453, %v5360
          %v5455 = vpop.permute.xlu0 %5454
          %v5457 = vmul.f32 %v5361, %v5380
          %v5458 = vmul.f32 %v5362, %v5385
          %v5459 = vmul.f32 %v5363, %v5390
          %v5460 = vmul.f32 %v5364, %v5395
          %v5461 = vmul.f32 %v5365, %v5400
          %v5462 = vmul.f32 %v5366, %v5405
          %v5463 = vmul.f32 %v5367, %v5410
          %v5464 = vmul.f32 %v5368, %v5415
          %v5465 = vmul.f32 %v5369, %v5420
          %v5466 = vmul.f32 %v5370, %v5425
          %v5467 = vmul.f32 %v5371, %v5430
          %v5468 = vmul.f32 %v5372, %v5435
          %v5469 = vmul.f32 %v5373, %v5440
          %v5470 = vmul.f32 %v5374, %v5445
          %v5471 = vmul.f32 %v5375, %v5450
          %v5472 = vmul.f32 %v5376, %v5455
          %v5473 = vpack.c.bf16 %v5458, %v5457
          %v5474 = vpack.c.bf16 %v5460, %v5459
          %v5475 = vpack.c.bf16 %v5462, %v5461
          %v5476 = vpack.c.bf16 %v5464, %v5463
          %v5477 = vpack.c.bf16 %v5466, %v5465
          %v5478 = vpack.c.bf16 %v5468, %v5467
          %v5479 = vpack.c.bf16 %v5470, %v5469
          %v5480 = vpack.c.bf16 %v5472, %v5471
          %v5481 = vld [vmem:[#allocation15] sm:$0xf]
          %v5482 = vld [vmem:[#allocation15 + $0x4] sm:$0xf]
          %v5483 = vld [vmem:[#allocation15 + $0x8] sm:$0xf]
          %v5484 = vld [vmem:[#allocation15 + $0xc] sm:$0xf]
          %v5489 = vunpack.c.l.b16 %v5481
          %v5490 = vunpack.c.l.b16 %v5482
          %v5491 = vunpack.c.l.b16 %v5483
          %v5492 = vunpack.c.l.b16 %v5484
          %v5493 = vpack.c.b16 %v5490, %v5489
          %v5494 = vpack.c.b16 %v5492, %v5491
          %v5498 = vsel %vm1994, %v5473, 0
          %v5501 = vsel %vm1994, %v5474, 0
          %v5504 = vsel %vm1994, %v5475, 0
          %v5507 = vsel %vm1994, %v5476, 0
          %v5510 = vsel %vm1994, %v5477, 0
          %v5513 = vsel %vm1994, %v5478, 0
          %v5516 = vsel %vm1994, %v5479, 0
          %v5519 = vsel %vm1994, %v5480, 0
          %5521 = vmatprep.subr.bf16.mxu0 0
          %5522 = vmatpush1.bf16.msra.mxu0 %v5493
          %5523 = vmatprep.subr.bf16.mxu0 0
          %5524 = vmatpush1.bf16.msra.mxu0 %v5494
          %5525 = vmatprep.subr.bf16.mxu0 0
          %5526 = vmatpush1.bf16.msra.mxu0 0
          %5527 = vmatprep.subr.bf16.mxu0 0
          %5528 = vmatpush1.bf16.msra.mxu0 0
          %5529 = vmatprep.subr.bf16.mxu0 0
          %5530 = vmatpush1.bf16.msra.mxu0 0
          %5531 = vmatprep.subr.bf16.mxu0 0
          %5532 = vmatpush1.bf16.msra.mxu0 0
          %5533 = vmatprep.subr.bf16.mxu0 0
          %5534 = vmatpush1.bf16.msra.mxu0 0
          %5535 = vmatprep.subr.bf16.mxu0 0
          %5536 = vmatpush1.bf16.msra.mxu0 0
          %5537 = vmatprep.subr.bf16.mxu0 0
          %5538 = vmatpush1.bf16.msra.mxu0 0
          %5539 = vmatprep.subr.bf16.mxu0 0
          %5540 = vmatpush1.bf16.msra.mxu0 0
          %5541 = vmatprep.subr.bf16.mxu0 0
          %5542 = vmatpush1.bf16.msra.mxu0 0
          %5543 = vmatprep.subr.bf16.mxu0 0
          %5544 = vmatpush1.bf16.msra.mxu0 0
          %5545 = vmatprep.subr.bf16.mxu0 0
          %5546 = vmatpush1.bf16.msra.mxu0 0
          %5547 = vmatprep.subr.bf16.mxu0 0
          %5548 = vmatpush1.bf16.msra.mxu0 0
          %5549 = vmatprep.subr.bf16.mxu0 0
          %5550 = vmatpush1.bf16.msra.mxu0 0
          %5551 = vmatprep.subr.bf16.mxu0 0
          %5552 = vmatpush1.bf16.msra.mxu0 0
          %5553 = vmatprep.mubr.bf16.mxu0 0
          %5554 = vmatmul.mubr.bf16.gmra.mrb[0].mxu0 %v5498
          %v5555 = vpop.f32.mrb[0].mxu0
          %v5556 = vadd.f32 0.0, %v5555
          %v5557 = vpop.f32.mrb[0].mxu0
          %v5558 = vpop.f32.mrb[0].mxu0
          %v5559 = vadd.f32 0.0, %v5558
          %v5560 = vpop.f32.mrb[0].mxu0
          %5561 = vmatprep.mubr.bf16.mxu0 0
          %5562 = vmatmul.mubr.bf16.gmra.mrb[0].mxu0 %v5501
          %v5563 = vpop.f32.mrb[0].mxu0
          %v5564 = vadd.f32 0.0, %v5563
          %v5565 = vpop.f32.mrb[0].mxu0
          %v5566 = vpop.f32.mrb[0].mxu0
          %v5567 = vadd.f32 0.0, %v5566
          %v5568 = vpop.f32.mrb[0].mxu0
          %5569 = vmatprep.mubr.bf16.mxu0 0
          %5570 = vmatmul.mubr.bf16.gmra.mrb[0].mxu0 %v5504
          %v5571 = vpop.f32.mrb[0].mxu0
          %v5572 = vadd.f32 0.0, %v5571
          %v5573 = vpop.f32.mrb[0].mxu0
          %v5574 = vpop.f32.mrb[0].mxu0
          %v5575 = vadd.f32 0.0, %v5574
          %v5576 = vpop.f32.mrb[0].mxu0
          %5577 = vmatprep.mubr.bf16.mxu0 0
          %5578 = vmatmul.mubr.bf16.gmra.mrb[0].mxu0 %v5507
          %v5579 = vpop.f32.mrb[0].mxu0
          %v5580 = vadd.f32 0.0, %v5579
          %v5581 = vpop.f32.mrb[0].mxu0
          %v5582 = vpop.f32.mrb[0].mxu0
          %v5583 = vadd.f32 0.0, %v5582
          %v5584 = vpop.f32.mrb[0].mxu0
          %5585 = vmatprep.mubr.bf16.mxu0 0
          %5586 = vmatmul.mubr.bf16.gmra.mrb[0].mxu0 %v5510
          %v5587 = vpop.f32.mrb[0].mxu0
          %v5588 = vadd.f32 0.0, %v5587
          %v5589 = vpop.f32.mrb[0].mxu0
          %v5590 = vpop.f32.mrb[0].mxu0
          %v5591 = vadd.f32 0.0, %v5590
          %v5592 = vpop.f32.mrb[0].mxu0
          %5593 = vmatprep.mubr.bf16.mxu0 0
          %5594 = vmatmul.mubr.bf16.gmra.mrb[0].mxu0 %v5513
          %v5595 = vpop.f32.mrb[0].mxu0
          %v5596 = vadd.f32 0.0, %v5595
          %v5597 = vpop.f32.mrb[0].mxu0
          %v5598 = vpop.f32.mrb[0].mxu0
          %v5599 = vadd.f32 0.0, %v5598
          %v5600 = vpop.f32.mrb[0].mxu0
          %5601 = vmatprep.mubr.bf16.mxu0 0
          %5602 = vmatmul.mubr.bf16.gmra.mrb[0].mxu0 %v5516
          %v5603 = vpop.f32.mrb[0].mxu0
          %v5604 = vadd.f32 0.0, %v5603
          %v5605 = vpop.f32.mrb[0].mxu0
          %v5606 = vpop.f32.mrb[0].mxu0
          %v5607 = vadd.f32 0.0, %v5606
          %v5608 = vpop.f32.mrb[0].mxu0
          %5609 = vmatprep.mubr.bf16.mxu0 0
          %5610 = vmatmul.mubr.bf16.gmra.mrb[0].mxu0 %v5519
          %v5611 = vpop.f32.mrb[0].mxu0
          %v5612 = vadd.f32 0.0, %v5611
          %v5613 = vpop.f32.mrb[0].mxu0
          %v5614 = vpop.f32.mrb[0].mxu0
          %v5615 = vadd.f32 0.0, %v5614
          %v5616 = vpop.f32.mrb[0].mxu0
          %5617 = vdwg.mxu0
          %v5618 = vadd.f32 %v5311, %v5556
          %v5619 = vadd.f32 %v5311, %v5559
          %v5620 = vadd.f32 %v5311, %v5564
          %v5621 = vadd.f32 %v5311, %v5567
          %v5622 = vadd.f32 %v5311, %v5572
          %v5623 = vadd.f32 %v5311, %v5575
          %v5624 = vadd.f32 %v5311, %v5580
          %v5625 = vadd.f32 %v5311, %v5583
          %v5626 = vadd.f32 %v5311, %v5588
          %v5627 = vadd.f32 %v5311, %v5591
          %v5628 = vadd.f32 %v5311, %v5596
          %v5629 = vadd.f32 %v5311, %v5599
          %v5630 = vadd.f32 %v5311, %v5604
          %v5631 = vadd.f32 %v5311, %v5607
          %v5632 = vadd.f32 %v5311, %v5612
          %v5633 = vadd.f32 %v5311, %v5615
          %v5634 = vld [vmem:[%s3231] sm:$0xff]
          %v5635 = vld [vmem:[%s3231 + $0x8] sm:$0xff]
          %v5636 = vld [vmem:[%s3231 + $0x10] sm:$0xff]
          %v5637 = vld [vmem:[%s3231 + $0x18] sm:$0xff]
          %v5638 = vld [vmem:[%s3231 + $0x20] sm:$0xff]
          %v5639 = vld [vmem:[%s3231 + $0x28] sm:$0xff]
          %v5640 = vld [vmem:[%s3231 + $0x30] sm:$0xff]
          %v5641 = vld [vmem:[%s3231 + $0x38] sm:$0xff]
          %v5642 = vld [vmem:[%s3231 + $0x40] sm:$0xff]
          %v5643 = vld [vmem:[%s3231 + $0x48] sm:$0xff]
          %v5644 = vld [vmem:[%s3231 + $0x50] sm:$0xff]
          %v5645 = vld [vmem:[%s3231 + $0x58] sm:$0xff]
          %v5646 = vld [vmem:[%s3231 + $0x60] sm:$0xff]
          %v5647 = vld [vmem:[%s3231 + $0x68] sm:$0xff]
          %v5648 = vld [vmem:[%s3231 + $0x70] sm:$0xff]
          %v5649 = vld [vmem:[%s3231 + $0x78] sm:$0xff]
          %v5650 = vmax.f32 %v5634, 1e-30
          %v5651 = vmax.f32 %v5635, 1e-30
          %v5652 = vmax.f32 %v5636, 1e-30
          %v5653 = vmax.f32 %v5637, 1e-30
          %v5654 = vmax.f32 %v5638, 1e-30
          %v5655 = vmax.f32 %v5639, 1e-30
          %v5656 = vmax.f32 %v5640, 1e-30
          %v5657 = vmax.f32 %v5641, 1e-30
          %v5658 = vmax.f32 %v5642, 1e-30
          %v5659 = vmax.f32 %v5643, 1e-30
          %v5660 = vmax.f32 %v5644, 1e-30
          %v5661 = vmax.f32 %v5645, 1e-30
          %v5662 = vmax.f32 %v5646, 1e-30
          %v5663 = vmax.f32 %v5647, 1e-30
          %v5664 = vmax.f32 %v5648, 1e-30
          %v5665 = vmax.f32 %v5649, 1e-30
          %v5666 = vrcp.pop %v5650
          %v5667 = vrcp.pop %v5651
          %v5668 = vrcp.pop %v5652
          %v5669 = vrcp.pop %v5653
          %v5670 = vrcp.pop %v5654
          %v5671 = vrcp.pop %v5655
          %v5672 = vrcp.pop %v5656
          %v5673 = vrcp.pop %v5657
          %v5674 = vrcp.pop %v5658
          %v5675 = vrcp.pop %v5659
          %v5676 = vrcp.pop %v5660
          %v5677 = vrcp.pop %v5661
          %v5678 = vrcp.pop %v5662
          %v5679 = vrcp.pop %v5663
          %v5680 = vrcp.pop %v5664
          %v5681 = vrcp.pop %v5665
          %v5682 = vld [vmem:[%s3328] sm:$0xff]
          %v5683 = vld [vmem:[%s3328 + $0x8] sm:$0xff]
          %v5684 = vld [vmem:[%s3328 + $0x10] sm:$0xff]
          %v5685 = vld [vmem:[%s3328 + $0x18] sm:$0xff]
          %v5686 = vld [vmem:[%s3328 + $0x20] sm:$0xff]
          %v5687 = vld [vmem:[%s3328 + $0x28] sm:$0xff]
          %v5688 = vld [vmem:[%s3328 + $0x30] sm:$0xff]
          %v5689 = vld [vmem:[%s3328 + $0x38] sm:$0xff]
          %v5690 = vld [vmem:[%s3328 + $0x40] sm:$0xff]
          %v5691 = vld [vmem:[%s3328 + $0x48] sm:$0xff]
          %v5692 = vld [vmem:[%s3328 + $0x50] sm:$0xff]
          %v5693 = vld [vmem:[%s3328 + $0x58] sm:$0xff]
          %v5694 = vld [vmem:[%s3328 + $0x60] sm:$0xff]
          %v5695 = vld [vmem:[%s3328 + $0x68] sm:$0xff]
          %v5696 = vld [vmem:[%s3328 + $0x70] sm:$0xff]
          %v5697 = vld [vmem:[%s3328 + $0x78] sm:$0xff]
          %5699 = vset.pattern.permute.xlu0 0
          %5700 = vperm.xlu0 %5699, %v5666
          %v5701 = vpop.permute.xlu0 %5700
          %5704 = vset.pattern.permute.xlu0 0
          %5705 = vperm.xlu0 %5704, %v5667
          %v5706 = vpop.permute.xlu0 %5705
          %5709 = vset.pattern.permute.xlu0 0
          %5710 = vperm.xlu0 %5709, %v5668
          %v5711 = vpop.permute.xlu0 %5710
          %5714 = vset.pattern.permute.xlu0 0
          %5715 = vperm.xlu0 %5714, %v5669
          %v5716 = vpop.permute.xlu0 %5715
          %5719 = vset.pattern.permute.xlu0 0
          %5720 = vperm.xlu0 %5719, %v5670
          %v5721 = vpop.permute.xlu0 %5720
          %5724 = vset.pattern.permute.xlu0 0
          %5725 = vperm.xlu0 %5724, %v5671
          %v5726 = vpop.permute.xlu0 %5725
          %5729 = vset.pattern.permute.xlu0 0
          %5730 = vperm.xlu0 %5729, %v5672
          %v5731 = vpop.permute.xlu0 %5730
          %5734 = vset.pattern.permute.xlu0 0
          %5735 = vperm.xlu0 %5734, %v5673
          %v5736 = vpop.permute.xlu0 %5735
          %5739 = vset.pattern.permute.xlu0 0
          %5740 = vperm.xlu0 %5739, %v5674
          %v5741 = vpop.permute.xlu0 %5740
          %5744 = vset.pattern.permute.xlu0 0
          %5745 = vperm.xlu0 %5744, %v5675
          %v5746 = vpop.permute.xlu0 %5745
          %5749 = vset.pattern.permute.xlu0 0
          %5750 = vperm.xlu0 %5749, %v5676
          %v5751 = vpop.permute.xlu0 %5750
          %5754 = vset.pattern.permute.xlu0 0
          %5755 = vperm.xlu0 %5754, %v5677
          %v5756 = vpop.permute.xlu0 %5755
          %5759 = vset.pattern.permute.xlu0 0
          %5760 = vperm.xlu0 %5759, %v5678
          %v5761 = vpop.permute.xlu0 %5760
          %5764 = vset.pattern.permute.xlu0 0
          %5765 = vperm.xlu0 %5764, %v5679
          %v5766 = vpop.permute.xlu0 %5765
          %5769 = vset.pattern.permute.xlu0 0
          %5770 = vperm.xlu0 %5769, %v5680
          %v5771 = vpop.permute.xlu0 %5770
          %5774 = vset.pattern.permute.xlu0 0
          %5775 = vperm.xlu0 %5774, %v5681
          %v5776 = vpop.permute.xlu0 %5775
          %v5778 = vmul.f32 %v5682, %v5701
          %v5779 = vmul.f32 %v5683, %v5706
          %v5780 = vmul.f32 %v5684, %v5711
          %v5781 = vmul.f32 %v5685, %v5716
          %v5782 = vmul.f32 %v5686, %v5721
          %v5783 = vmul.f32 %v5687, %v5726
          %v5784 = vmul.f32 %v5688, %v5731
          %v5785 = vmul.f32 %v5689, %v5736
          %v5786 = vmul.f32 %v5690, %v5741
          %v5787 = vmul.f32 %v5691, %v5746
          %v5788 = vmul.f32 %v5692, %v5751
          %v5789 = vmul.f32 %v5693, %v5756
          %v5790 = vmul.f32 %v5694, %v5761
          %v5791 = vmul.f32 %v5695, %v5766
          %v5792 = vmul.f32 %v5696, %v5771
          %v5793 = vmul.f32 %v5697, %v5776
          %v5794 = vpack.c.bf16 %v5779, %v5778
          %v5795 = vpack.c.bf16 %v5781, %v5780
          %v5796 = vpack.c.bf16 %v5783, %v5782
          %v5797 = vpack.c.bf16 %v5785, %v5784
          %v5798 = vpack.c.bf16 %v5787, %v5786
          %v5799 = vpack.c.bf16 %v5789, %v5788
          %v5800 = vpack.c.bf16 %v5791, %v5790
          %v5801 = vpack.c.bf16 %v5793, %v5792
          %s5802 = scalar_lea.vmem [#allocation15], 16
          %v5803 = vld [vmem:[%s5802] sm:$0xf]
          %v5804 = vld [vmem:[%s5802 + $0x4] sm:$0xf]
          %v5805 = vld [vmem:[%s5802 + $0x8] sm:$0xf]
          %v5806 = vld [vmem:[%s5802 + $0xc] sm:$0xf]
          %v5811 = vunpack.c.l.b16 %v5803
          %v5812 = vunpack.c.l.b16 %v5804
          %v5813 = vunpack.c.l.b16 %v5805
          %v5814 = vunpack.c.l.b16 %v5806
          %v5815 = vpack.c.b16 %v5812, %v5811
          %v5816 = vpack.c.b16 %v5814, %v5813
          %v5820 = vsel %vm1994, %v5794, 0
          %v5823 = vsel %vm1994, %v5795, 0
          %v5826 = vsel %vm1994, %v5796, 0
          %v5829 = vsel %vm1994, %v5797, 0
          %v5832 = vsel %vm1994, %v5798, 0
          %v5835 = vsel %vm1994, %v5799, 0
          %v5838 = vsel %vm1994, %v5800, 0
          %v5841 = vsel %vm1994, %v5801, 0
          %5843 = vmatprep.subr.bf16.mxu0 0
          %5844 = vmatpush1.bf16.msra.mxu0 %v5815
          %5845 = vmatprep.subr.bf16.mxu0 0
          %5846 = vmatpush1.bf16.msra.mxu0 %v5816
          %5847 = vmatprep.subr.bf16.mxu0 0
          %5848 = vmatpush1.bf16.msra.mxu0 0
          %5849 = vmatprep.subr.bf16.mxu0 0
          %5850 = vmatpush1.bf16.msra.mxu0 0
          %5851 = vmatprep.subr.bf16.mxu0 0
          %5852 = vmatpush1.bf16.msra.mxu0 0
          %5853 = vmatprep.subr.bf16.mxu0 0
          %5854 = vmatpush1.bf16.msra.mxu0 0
          %5855 = vmatprep.subr.bf16.mxu0 0
          %5856 = vmatpush1.bf16.msra.mxu0 0
          %5857 = vmatprep.subr.bf16.mxu0 0
          %5858 = vmatpush1.bf16.msra.mxu0 0
          %5859 = vmatprep.subr.bf16.mxu0 0
          %5860 = vmatpush1.bf16.msra.mxu0 0
          %5861 = vmatprep.subr.bf16.mxu0 0
          %5862 = vmatpush1.bf16.msra.mxu0 0
          %5863 = vmatprep.subr.bf16.mxu0 0
          %5864 = vmatpush1.bf16.msra.mxu0 0
          %5865 = vmatprep.subr.bf16.mxu0 0
          %5866 = vmatpush1.bf16.msra.mxu0 0
          %5867 = vmatprep.subr.bf16.mxu0 0
          %5868 = vmatpush1.bf16.msra.mxu0 0
          %5869 = vmatprep.subr.bf16.mxu0 0
          %5870 = vmatpush1.bf16.msra.mxu0 0
          %5871 = vmatprep.subr.bf16.mxu0 0
          %5872 = vmatpush1.bf16.msra.mxu0 0
          %5873 = vmatprep.subr.bf16.mxu0 0
          %5874 = vmatpush1.bf16.msra.mxu0 0
          %5875 = vmatprep.mubr.bf16.mxu0 0
          %5876 = vmatmul.mubr.bf16.gmra.mrb[0].mxu0 %v5820
          %v5877 = vpop.f32.mrb[0].mxu0
          %v5878 = vadd.f32 0.0, %v5877
          %v5879 = vpop.f32.mrb[0].mxu0
          %v5880 = vpop.f32.mrb[0].mxu0
          %v5881 = vadd.f32 0.0, %v5880
          %v5882 = vpop.f32.mrb[0].mxu0
          %5883 = vmatprep.mubr.bf16.mxu0 0
          %5884 = vmatmul.mubr.bf16.gmra.mrb[0].mxu0 %v5823
          %v5885 = vpop.f32.mrb[0].mxu0
          %v5886 = vadd.f32 0.0, %v5885
          %v5887 = vpop.f32.mrb[0].mxu0
          %v5888 = vpop.f32.mrb[0].mxu0
          %v5889 = vadd.f32 0.0, %v5888
          %v5890 = vpop.f32.mrb[0].mxu0
          %5891 = vmatprep.mubr.bf16.mxu0 0
          %5892 = vmatmul.mubr.bf16.gmra.mrb[0].mxu0 %v5826
          %v5893 = vpop.f32.mrb[0].mxu0
          %v5894 = vadd.f32 0.0, %v5893
          %v5895 = vpop.f32.mrb[0].mxu0
          %v5896 = vpop.f32.mrb[0].mxu0
          %v5897 = vadd.f32 0.0, %v5896
          %v5898 = vpop.f32.mrb[0].mxu0
          %5899 = vmatprep.mubr.bf16.mxu0 0
          %5900 = vmatmul.mubr.bf16.gmra.mrb[0].mxu0 %v5829
          %v5901 = vpop.f32.mrb[0].mxu0
          %v5902 = vadd.f32 0.0, %v5901
          %v5903 = vpop.f32.mrb[0].mxu0
          %v5904 = vpop.f32.mrb[0].mxu0
          %v5905 = vadd.f32 0.0, %v5904
          %v5906 = vpop.f32.mrb[0].mxu0
          %5907 = vmatprep.mubr.bf16.mxu0 0
          %5908 = vmatmul.mubr.bf16.gmra.mrb[0].mxu0 %v5832
          %v5909 = vpop.f32.mrb[0].mxu0
          %v5910 = vadd.f32 0.0, %v5909
          %v5911 = vpop.f32.mrb[0].mxu0
          %v5912 = vpop.f32.mrb[0].mxu0
          %v5913 = vadd.f32 0.0, %v5912
          %v5914 = vpop.f32.mrb[0].mxu0
          %5915 = vmatprep.mubr.bf16.mxu0 0
          %5916 = vmatmul.mubr.bf16.gmra.mrb[0].mxu0 %v5835
          %v5917 = vpop.f32.mrb[0].mxu0
          %v5918 = vadd.f32 0.0, %v5917
          %v5919 = vpop.f32.mrb[0].mxu0
          %v5920 = vpop.f32.mrb[0].mxu0
          %v5921 = vadd.f32 0.0, %v5920
          %v5922 = vpop.f32.mrb[0].mxu0
          %5923 = vmatprep.mubr.bf16.mxu0 0
          %5924 = vmatmul.mubr.bf16.gmra.mrb[0].mxu0 %v5838
          %v5925 = vpop.f32.mrb[0].mxu0
          %v5926 = vadd.f32 0.0, %v5925
          %v5927 = vpop.f32.mrb[0].mxu0
          %v5928 = vpop.f32.mrb[0].mxu0
          %v5929 = vadd.f32 0.0, %v5928
          %v5930 = vpop.f32.mrb[0].mxu0
          %5931 = vmatprep.mubr.bf16.mxu0 0
          %5932 = vmatmul.mubr.bf16.gmra.mrb[0].mxu0 %v5841
          %v5933 = vpop.f32.mrb[0].mxu0
          %v5934 = vadd.f32 0.0, %v5933
          %v5935 = vpop.f32.mrb[0].mxu0
          %v5936 = vpop.f32.mrb[0].mxu0
          %v5937 = vadd.f32 0.0, %v5936
          %v5938 = vpop.f32.mrb[0].mxu0
          %5939 = vdwg.mxu0
          %v5940 = vadd.f32 %v5618, %v5878
          %v5941 = vadd.f32 %v5619, %v5881
          %v5942 = vadd.f32 %v5620, %v5886
          %v5943 = vadd.f32 %v5621, %v5889
          %v5944 = vadd.f32 %v5622, %v5894
          %v5945 = vadd.f32 %v5623, %v5897
          %v5946 = vadd.f32 %v5624, %v5902
          %v5947 = vadd.f32 %v5625, %v5905
          %v5948 = vadd.f32 %v5626, %v5910
          %v5949 = vadd.f32 %v5627, %v5913
          %v5950 = vadd.f32 %v5628, %v5918
          %v5951 = vadd.f32 %v5629, %v5921
          %v5952 = vadd.f32 %v5630, %v5926
          %v5953 = vadd.f32 %v5631, %v5929
          %v5954 = vadd.f32 %v5632, %v5934
          %v5955 = vadd.f32 %v5633, %v5937
          %v5956 = vld [vmem:[%s4069] sm:$0xff]
          %v5957 = vld [vmem:[%s4069 + $0x8] sm:$0xff]
          %v5958 = vld [vmem:[%s4069 + $0x10] sm:$0xff]
          %v5959 = vld [vmem:[%s4069 + $0x18] sm:$0xff]
          %v5960 = vld [vmem:[%s4069 + $0x20] sm:$0xff]
          %v5961 = vld [vmem:[%s4069 + $0x28] sm:$0xff]
          %v5962 = vld [vmem:[%s4069 + $0x30] sm:$0xff]
          %v5963 = vld [vmem:[%s4069 + $0x38] sm:$0xff]
          %v5964 = vld [vmem:[%s4069 + $0x40] sm:$0xff]
          %v5965 = vld [vmem:[%s4069 + $0x48] sm:$0xff]
          %v5966 = vld [vmem:[%s4069 + $0x50] sm:$0xff]
          %v5967 = vld [vmem:[%s4069 + $0x58] sm:$0xff]
          %v5968 = vld [vmem:[%s4069 + $0x60] sm:$0xff]
          %v5969 = vld [vmem:[%s4069 + $0x68] sm:$0xff]
          %v5970 = vld [vmem:[%s4069 + $0x70] sm:$0xff]
          %v5971 = vld [vmem:[%s4069 + $0x78] sm:$0xff]
          %v5972 = vmax.f32 %v5956, 1e-30
          %v5973 = vmax.f32 %v5957, 1e-30
          %v5974 = vmax.f32 %v5958, 1e-30
          %v5975 = vmax.f32 %v5959, 1e-30
          %v5976 = vmax.f32 %v5960, 1e-30
          %v5977 = vmax.f32 %v5961, 1e-30
          %v5978 = vmax.f32 %v5962, 1e-30
          %v5979 = vmax.f32 %v5963, 1e-30
          %v5980 = vmax.f32 %v5964, 1e-30
          %v5981 = vmax.f32 %v5965, 1e-30
          %v5982 = vmax.f32 %v5966, 1e-30
          %v5983 = vmax.f32 %v5967, 1e-30
          %v5984 = vmax.f32 %v5968, 1e-30
          %v5985 = vmax.f32 %v5969, 1e-30
          %v5986 = vmax.f32 %v5970, 1e-30
          %v5987 = vmax.f32 %v5971, 1e-30
          %v5988 = vrcp.pop %v5972
          %v5989 = vrcp.pop %v5973
          %v5990 = vrcp.pop %v5974
          %v5991 = vrcp.pop %v5975
          %v5992 = vrcp.pop %v5976
          %v5993 = vrcp.pop %v5977
          %v5994 = vrcp.pop %v5978
          %v5995 = vrcp.pop %v5979
          %v5996 = vrcp.pop %v5980
          %v5997 = vrcp.pop %v5981
          %v5998 = vrcp.pop %v5982
          %v5999 = vrcp.pop %v5983
          %v6000 = vrcp.pop %v5984
          %v6001 = vrcp.pop %v5985
          %v6002 = vrcp.pop %v5986
          %v6003 = vrcp.pop %v5987
          %v6004 = vld [vmem:[%s4166] sm:$0xff]
          %v6005 = vld [vmem:[%s4166 + $0x8] sm:$0xff]
          %v6006 = vld [vmem:[%s4166 + $0x10] sm:$0xff]
          %v6007 = vld [vmem:[%s4166 + $0x18] sm:$0xff]
          %v6008 = vld [vmem:[%s4166 + $0x20] sm:$0xff]
          %v6009 = vld [vmem:[%s4166 + $0x28] sm:$0xff]
          %v6010 = vld [vmem:[%s4166 + $0x30] sm:$0xff]
          %v6011 = vld [vmem:[%s4166 + $0x38] sm:$0xff]
          %v6012 = vld [vmem:[%s4166 + $0x40] sm:$0xff]
          %v6013 = vld [vmem:[%s4166 + $0x48] sm:$0xff]
          %v6014 = vld [vmem:[%s4166 + $0x50] sm:$0xff]
          %v6015 = vld [vmem:[%s4166 + $0x58] sm:$0xff]
          %v6016 = vld [vmem:[%s4166 + $0x60] sm:$0xff]
          %v6017 = vld [vmem:[%s4166 + $0x68] sm:$0xff]
          %v6018 = vld [vmem:[%s4166 + $0x70] sm:$0xff]
          %v6019 = vld [vmem:[%s4166 + $0x78] sm:$0xff]
          %6021 = vset.pattern.permute.xlu0 0
          %6022 = vperm.xlu0 %6021, %v5988
          %v6023 = vpop.permute.xlu0 %6022
          %6026 = vset.pattern.permute.xlu0 0
          %6027 = vperm.xlu0 %6026, %v5989
          %v6028 = vpop.permute.xlu0 %6027
          %6031 = vset.pattern.permute.xlu0 0
          %6032 = vperm.xlu0 %6031, %v5990
          %v6033 = vpop.permute.xlu0 %6032
          %6036 = vset.pattern.permute.xlu0 0
          %6037 = vperm.xlu0 %6036, %v5991
          %v6038 = vpop.permute.xlu0 %6037
          %6041 = vset.pattern.permute.xlu0 0
          %6042 = vperm.xlu0 %6041, %v5992
          %v6043 = vpop.permute.xlu0 %6042
          %6046 = vset.pattern.permute.xlu0 0
          %6047 = vperm.xlu0 %6046, %v5993
          %v6048 = vpop.permute.xlu0 %6047
          %6051 = vset.pattern.permute.xlu0 0
          %6052 = vperm.xlu0 %6051, %v5994
          %v6053 = vpop.permute.xlu0 %6052
          %6056 = vset.pattern.permute.xlu0 0
          %6057 = vperm.xlu0 %6056, %v5995
          %v6058 = vpop.permute.xlu0 %6057
          %6061 = vset.pattern.permute.xlu0 0
          %6062 = vperm.xlu0 %6061, %v5996
          %v6063 = vpop.permute.xlu0 %6062
          %6066 = vset.pattern.permute.xlu0 0
          %6067 = vperm.xlu0 %6066, %v5997
          %v6068 = vpop.permute.xlu0 %6067
          %6071 = vset.pattern.permute.xlu0 0
          %6072 = vperm.xlu0 %6071, %v5998
          %v6073 = vpop.permute.xlu0 %6072
          %6076 = vset.pattern.permute.xlu0 0
          %6077 = vperm.xlu0 %6076, %v5999
          %v6078 = vpop.permute.xlu0 %6077
          %6081 = vset.pattern.permute.xlu0 0
          %6082 = vperm.xlu0 %6081, %v6000
          %v6083 = vpop.permute.xlu0 %6082
          %6086 = vset.pattern.permute.xlu0 0
          %6087 = vperm.xlu0 %6086, %v6001
          %v6088 = vpop.permute.xlu0 %6087
          %6091 = vset.pattern.permute.xlu0 0
          %6092 = vperm.xlu0 %6091, %v6002
          %v6093 = vpop.permute.xlu0 %6092
          %6096 = vset.pattern.permute.xlu0 0
          %6097 = vperm.xlu0 %6096, %v6003
          %v6098 = vpop.permute.xlu0 %6097
          %v6100 = vmul.f32 %v6004, %v6023
          %v6101 = vmul.f32 %v6005, %v6028
          %v6102 = vmul.f32 %v6006, %v6033
          %v6103 = vmul.f32 %v6007, %v6038
          %v6104 = vmul.f32 %v6008, %v6043
          %v6105 = vmul.f32 %v6009, %v6048
          %v6106 = vmul.f32 %v6010, %v6053
          %v6107 = vmul.f32 %v6011, %v6058
          %v6108 = vmul.f32 %v6012, %v6063
          %v6109 = vmul.f32 %v6013, %v6068
          %v6110 = vmul.f32 %v6014, %v6073
          %v6111 = vmul.f32 %v6015, %v6078
          %v6112 = vmul.f32 %v6016, %v6083
          %v6113 = vmul.f32 %v6017, %v6088
          %v6114 = vmul.f32 %v6018, %v6093
          %v6115 = vmul.f32 %v6019, %v6098
          %v6116 = vpack.c.bf16 %v6101, %v6100
          %v6117 = vpack.c.bf16 %v6103, %v6102
          %v6118 = vpack.c.bf16 %v6105, %v6104
          %v6119 = vpack.c.bf16 %v6107, %v6106
          %v6120 = vpack.c.bf16 %v6109, %v6108
          %v6121 = vpack.c.bf16 %v6111, %v6110
          %v6122 = vpack.c.bf16 %v6113, %v6112
          %v6123 = vpack.c.bf16 %v6115, %v6114
          %s6124 = scalar_lea.vmem [#allocation15], 32
          %v6125 = vld [vmem:[%s6124] sm:$0xf]
          %v6126 = vld [vmem:[%s6124 + $0x4] sm:$0xf]
          %v6127 = vld [vmem:[%s6124 + $0x8] sm:$0xf]
          %v6128 = vld [vmem:[%s6124 + $0xc] sm:$0xf]
          %v6133 = vunpack.c.l.b16 %v6125
          %v6134 = vunpack.c.l.b16 %v6126
          %v6135 = vunpack.c.l.b16 %v6127
          %v6136 = vunpack.c.l.b16 %v6128
          %v6137 = vpack.c.b16 %v6134, %v6133
          %v6138 = vpack.c.b16 %v6136, %v6135
          %v6142 = vsel %vm1994, %v6116, 0
          %v6145 = vsel %vm1994, %v6117, 0
          %v6148 = vsel %vm1994, %v6118, 0
          %v6151 = vsel %vm1994, %v6119, 0
          %v6154 = vsel %vm1994, %v6120, 0
          %v6157 = vsel %vm1994, %v6121, 0
          %v6160 = vsel %vm1994, %v6122, 0
          %v6163 = vsel %vm1994, %v6123, 0
          %6165 = vmatprep.subr.bf16.mxu0 0
          %6166 = vmatpush1.bf16.msra.mxu0 %v6137
          %6167 = vmatprep.subr.bf16.mxu0 0
          %6168 = vmatpush1.bf16.msra.mxu0 %v6138
          %6169 = vmatprep.subr.bf16.mxu0 0
          %6170 = vmatpush1.bf16.msra.mxu0 0
          %6171 = vmatprep.subr.bf16.mxu0 0
          %6172 = vmatpush1.bf16.msra.mxu0 0
          %6173 = vmatprep.subr.bf16.mxu0 0
          %6174 = vmatpush1.bf16.msra.mxu0 0
          %6175 = vmatprep.subr.bf16.mxu0 0
          %6176 = vmatpush1.bf16.msra.mxu0 0
          %6177 = vmatprep.subr.bf16.mxu0 0
          %6178 = vmatpush1.bf16.msra.mxu0 0
          %6179 = vmatprep.subr.bf16.mxu0 0
          %6180 = vmatpush1.bf16.msra.mxu0 0
          %6181 = vmatprep.subr.bf16.mxu0 0
          %6182 = vmatpush1.bf16.msra.mxu0 0
          %6183 = vmatprep.subr.bf16.mxu0 0
          %6184 = vmatpush1.bf16.msra.mxu0 0
          %6185 = vmatprep.subr.bf16.mxu0 0
          %6186 = vmatpush1.bf16.msra.mxu0 0
          %6187 = vmatprep.subr.bf16.mxu0 0
          %6188 = vmatpush1.bf16.msra.mxu0 0
          %6189 = vmatprep.subr.bf16.mxu0 0
          %6190 = vmatpush1.bf16.msra.mxu0 0
          %6191 = vmatprep.subr.bf16.mxu0 0
          %6192 = vmatpush1.bf16.msra.mxu0 0
          %6193 = vmatprep.subr.bf16.mxu0 0
          %6194 = vmatpush1.bf16.msra.mxu0 0
          %6195 = vmatprep.subr.bf16.mxu0 0
          %6196 = vmatpush1.bf16.msra.mxu0 0
          %6197 = vmatprep.mubr.bf16.mxu0 0
          %6198 = vmatmul.mubr.bf16.gmra.mrb[0].mxu0 %v6142
          %v6199 = vpop.f32.mrb[0].mxu0
          %v6200 = vadd.f32 0.0, %v6199
          %v6201 = vpop.f32.mrb[0].mxu0
          %v6202 = vpop.f32.mrb[0].mxu0
          %v6203 = vadd.f32 0.0, %v6202
          %v6204 = vpop.f32.mrb[0].mxu0
          %6205 = vmatprep.mubr.bf16.mxu0 0
          %6206 = vmatmul.mubr.bf16.gmra.mrb[0].mxu0 %v6145
          %v6207 = vpop.f32.mrb[0].mxu0
          %v6208 = vadd.f32 0.0, %v6207
          %v6209 = vpop.f32.mrb[0].mxu0
          %v6210 = vpop.f32.mrb[0].mxu0
          %v6211 = vadd.f32 0.0, %v6210
          %v6212 = vpop.f32.mrb[0].mxu0
          %6213 = vmatprep.mubr.bf16.mxu0 0
          %6214 = vmatmul.mubr.bf16.gmra.mrb[0].mxu0 %v6148
          %v6215 = vpop.f32.mrb[0].mxu0
          %v6216 = vadd.f32 0.0, %v6215
          %v6217 = vpop.f32.mrb[0].mxu0
          %v6218 = vpop.f32.mrb[0].mxu0
          %v6219 = vadd.f32 0.0, %v6218
          %v6220 = vpop.f32.mrb[0].mxu0
          %6221 = vmatprep.mubr.bf16.mxu0 0
          %6222 = vmatmul.mubr.bf16.gmra.mrb[0].mxu0 %v6151
          %v6223 = vpop.f32.mrb[0].mxu0
          %v6224 = vadd.f32 0.0, %v6223
          %v6225 = vpop.f32.mrb[0].mxu0
          %v6226 = vpop.f32.mrb[0].mxu0
          %v6227 = vadd.f32 0.0, %v6226
          %v6228 = vpop.f32.mrb[0].mxu0
          %6229 = vmatprep.mubr.bf16.mxu0 0
          %6230 = vmatmul.mubr.bf16.gmra.mrb[0].mxu0 %v6154
          %v6231 = vpop.f32.mrb[0].mxu0
          %v6232 = vadd.f32 0.0, %v6231
          %v6233 = vpop.f32.mrb[0].mxu0
          %v6234 = vpop.f32.mrb[0].mxu0
          %v6235 = vadd.f32 0.0, %v6234
          %v6236 = vpop.f32.mrb[0].mxu0
          %6237 = vmatprep.mubr.bf16.mxu0 0
          %6238 = vmatmul.mubr.bf16.gmra.mrb[0].mxu0 %v6157
          %v6239 = vpop.f32.mrb[0].mxu0
          %v6240 = vadd.f32 0.0, %v6239
          %v6241 = vpop.f32.mrb[0].mxu0
          %v6242 = vpop.f32.mrb[0].mxu0
          %v6243 = vadd.f32 0.0, %v6242
          %v6244 = vpop.f32.mrb[0].mxu0
          %6245 = vmatprep.mubr.bf16.mxu0 0
          %6246 = vmatmul.mubr.bf16.gmra.mrb[0].mxu0 %v6160
          %v6247 = vpop.f32.mrb[0].mxu0
          %v6248 = vadd.f32 0.0, %v6247
          %v6249 = vpop.f32.mrb[0].mxu0
          %v6250 = vpop.f32.mrb[0].mxu0
          %v6251 = vadd.f32 0.0, %v6250
          %v6252 = vpop.f32.mrb[0].mxu0
          %6253 = vmatprep.mubr.bf16.mxu0 0
          %6254 = vmatmul.mubr.bf16.gmra.mrb[0].mxu0 %v6163
          %v6255 = vpop.f32.mrb[0].mxu0
          %v6256 = vadd.f32 0.0, %v6255
          %v6257 = vpop.f32.mrb[0].mxu0
          %v6258 = vpop.f32.mrb[0].mxu0
          %v6259 = vadd.f32 0.0, %v6258
          %v6260 = vpop.f32.mrb[0].mxu0
          %6261 = vdwg.mxu0
          %v6262 = vadd.f32 %v5940, %v6200
          %v6263 = vadd.f32 %v5941, %v6203
          %v6264 = vadd.f32 %v5942, %v6208
          %v6265 = vadd.f32 %v5943, %v6211
          %v6266 = vadd.f32 %v5944, %v6216
          %v6267 = vadd.f32 %v5945, %v6219
          %v6268 = vadd.f32 %v5946, %v6224
          %v6269 = vadd.f32 %v5947, %v6227
          %v6270 = vadd.f32 %v5948, %v6232
          %v6271 = vadd.f32 %v5949, %v6235
          %v6272 = vadd.f32 %v5950, %v6240
          %v6273 = vadd.f32 %v5951, %v6243
          %v6274 = vadd.f32 %v5952, %v6248
          %v6275 = vadd.f32 %v5953, %v6251
          %v6276 = vadd.f32 %v5954, %v6256
          %v6277 = vadd.f32 %v5955, %v6259
          %v6278 = vld [vmem:[%s4899] sm:$0xff]
          %v6279 = vld [vmem:[%s4899 + $0x8] sm:$0xff]
          %v6280 = vld [vmem:[%s4899 + $0x10] sm:$0xff]
          %v6281 = vld [vmem:[%s4899 + $0x18] sm:$0xff]
          %v6282 = vld [vmem:[%s4899 + $0x20] sm:$0xff]
          %v6283 = vld [vmem:[%s4899 + $0x28] sm:$0xff]
          %v6284 = vld [vmem:[%s4899 + $0x30] sm:$0xff]
          %v6285 = vld [vmem:[%s4899 + $0x38] sm:$0xff]
          %v6286 = vld [vmem:[%s4899 + $0x40] sm:$0xff]
          %v6287 = vld [vmem:[%s4899 + $0x48] sm:$0xff]
          %v6288 = vld [vmem:[%s4899 + $0x50] sm:$0xff]
          %v6289 = vld [vmem:[%s4899 + $0x58] sm:$0xff]
          %v6290 = vld [vmem:[%s4899 + $0x60] sm:$0xff]
          %v6291 = vld [vmem:[%s4899 + $0x68] sm:$0xff]
          %v6292 = vld [vmem:[%s4899 + $0x70] sm:$0xff]
          %v6293 = vld [vmem:[%s4899 + $0x78] sm:$0xff]
          %v6294 = vmax.f32 %v6278, 1e-30
          %v6295 = vmax.f32 %v6279, 1e-30
          %v6296 = vmax.f32 %v6280, 1e-30
          %v6297 = vmax.f32 %v6281, 1e-30
          %v6298 = vmax.f32 %v6282, 1e-30
          %v6299 = vmax.f32 %v6283, 1e-30
          %v6300 = vmax.f32 %v6284, 1e-30
          %v6301 = vmax.f32 %v6285, 1e-30
          %v6302 = vmax.f32 %v6286, 1e-30
          %v6303 = vmax.f32 %v6287, 1e-30
          %v6304 = vmax.f32 %v6288, 1e-30
          %v6305 = vmax.f32 %v6289, 1e-30
          %v6306 = vmax.f32 %v6290, 1e-30
          %v6307 = vmax.f32 %v6291, 1e-30
          %v6308 = vmax.f32 %v6292, 1e-30
          %v6309 = vmax.f32 %v6293, 1e-30
          %v6310 = vrcp.pop %v6294
          %v6311 = vrcp.pop %v6295
          %v6312 = vrcp.pop %v6296
          %v6313 = vrcp.pop %v6297
          %v6314 = vrcp.pop %v6298
          %v6315 = vrcp.pop %v6299
          %v6316 = vrcp.pop %v6300
          %v6317 = vrcp.pop %v6301
          %v6318 = vrcp.pop %v6302
          %v6319 = vrcp.pop %v6303
          %v6320 = vrcp.pop %v6304
          %v6321 = vrcp.pop %v6305
          %v6322 = vrcp.pop %v6306
          %v6323 = vrcp.pop %v6307
          %v6324 = vrcp.pop %v6308
          %v6325 = vrcp.pop %v6309
          %v6326 = vld [vmem:[%s4996] sm:$0xff]
          %v6327 = vld [vmem:[%s4996 + $0x8] sm:$0xff]
          %v6328 = vld [vmem:[%s4996 + $0x10] sm:$0xff]
          %v6329 = vld [vmem:[%s4996 + $0x18] sm:$0xff]
          %v6330 = vld [vmem:[%s4996 + $0x20] sm:$0xff]
          %v6331 = vld [vmem:[%s4996 + $0x28] sm:$0xff]
          %v6332 = vld [vmem:[%s4996 + $0x30] sm:$0xff]
          %v6333 = vld [vmem:[%s4996 + $0x38] sm:$0xff]
          %v6334 = vld [vmem:[%s4996 + $0x40] sm:$0xff]
          %v6335 = vld [vmem:[%s4996 + $0x48] sm:$0xff]
          %v6336 = vld [vmem:[%s4996 + $0x50] sm:$0xff]
          %v6337 = vld [vmem:[%s4996 + $0x58] sm:$0xff]
          %v6338 = vld [vmem:[%s4996 + $0x60] sm:$0xff]
          %v6339 = vld [vmem:[%s4996 + $0x68] sm:$0xff]
          %v6340 = vld [vmem:[%s4996 + $0x70] sm:$0xff]
          %v6341 = vld [vmem:[%s4996 + $0x78] sm:$0xff]
          %6343 = vset.pattern.permute.xlu0 0
          %6344 = vperm.xlu0 %6343, %v6310
          %v6345 = vpop.permute.xlu0 %6344
          %6348 = vset.pattern.permute.xlu0 0
          %6349 = vperm.xlu0 %6348, %v6311
          %v6350 = vpop.permute.xlu0 %6349
          %6353 = vset.pattern.permute.xlu0 0
          %6354 = vperm.xlu0 %6353, %v6312
          %v6355 = vpop.permute.xlu0 %6354
          %6358 = vset.pattern.permute.xlu0 0
          %6359 = vperm.xlu0 %6358, %v6313
          %v6360 = vpop.permute.xlu0 %6359
          %6363 = vset.pattern.permute.xlu0 0
          %6364 = vperm.xlu0 %6363, %v6314
          %v6365 = vpop.permute.xlu0 %6364
          %6368 = vset.pattern.permute.xlu0 0
          %6369 = vperm.xlu0 %6368, %v6315
          %v6370 = vpop.permute.xlu0 %6369
          %6373 = vset.pattern.permute.xlu0 0
          %6374 = vperm.xlu0 %6373, %v6316
          %v6375 = vpop.permute.xlu0 %6374
          %6378 = vset.pattern.permute.xlu0 0
          %6379 = vperm.xlu0 %6378, %v6317
          %v6380 = vpop.permute.xlu0 %6379
          %6383 = vset.pattern.permute.xlu0 0
          %6384 = vperm.xlu0 %6383, %v6318
          %v6385 = vpop.permute.xlu0 %6384
          %6388 = vset.pattern.permute.xlu0 0
          %6389 = vperm.xlu0 %6388, %v6319
          %v6390 = vpop.permute.xlu0 %6389
          %6393 = vset.pattern.permute.xlu0 0
          %6394 = vperm.xlu0 %6393, %v6320
          %v6395 = vpop.permute.xlu0 %6394
          %6398 = vset.pattern.permute.xlu0 0
          %6399 = vperm.xlu0 %6398, %v6321
          %v6400 = vpop.permute.xlu0 %6399
          %6403 = vset.pattern.permute.xlu0 0
          %6404 = vperm.xlu0 %6403, %v6322
          %v6405 = vpop.permute.xlu0 %6404
          %6408 = vset.pattern.permute.xlu0 0
          %6409 = vperm.xlu0 %6408, %v6323
          %v6410 = vpop.permute.xlu0 %6409
          %6413 = vset.pattern.permute.xlu0 0
          %6414 = vperm.xlu0 %6413, %v6324
          %v6415 = vpop.permute.xlu0 %6414
          %6418 = vset.pattern.permute.xlu0 0
          %6419 = vperm.xlu0 %6418, %v6325
          %v6420 = vpop.permute.xlu0 %6419
          %v6422 = vmul.f32 %v6326, %v6345
          %v6423 = vmul.f32 %v6327, %v6350
          %v6424 = vmul.f32 %v6328, %v6355
          %v6425 = vmul.f32 %v6329, %v6360
          %v6426 = vmul.f32 %v6330, %v6365
          %v6427 = vmul.f32 %v6331, %v6370
          %v6428 = vmul.f32 %v6332, %v6375
          %v6429 = vmul.f32 %v6333, %v6380
          %v6430 = vmul.f32 %v6334, %v6385
          %v6431 = vmul.f32 %v6335, %v6390
          %v6432 = vmul.f32 %v6336, %v6395
          %v6433 = vmul.f32 %v6337, %v6400
          %v6434 = vmul.f32 %v6338, %v6405
          %v6435 = vmul.f32 %v6339, %v6410
          %v6436 = vmul.f32 %v6340, %v6415
          %v6437 = vmul.f32 %v6341, %v6420
          %v6438 = vpack.c.bf16 %v6423, %v6422
          %v6439 = vpack.c.bf16 %v6425, %v6424
          %v6440 = vpack.c.bf16 %v6427, %v6426
          %v6441 = vpack.c.bf16 %v6429, %v6428
          %v6442 = vpack.c.bf16 %v6431, %v6430
          %v6443 = vpack.c.bf16 %v6433, %v6432
          %v6444 = vpack.c.bf16 %v6435, %v6434
          %v6445 = vpack.c.bf16 %v6437, %v6436
          %s6446 = scalar_lea.vmem [#allocation15], 48
          %v6447 = vld [vmem:[%s6446] sm:$0xf]
          %v6448 = vld [vmem:[%s6446 + $0x4] sm:$0xf]
          %v6449 = vld [vmem:[%s6446 + $0x8] sm:$0xf]
          %v6450 = vld [vmem:[%s6446 + $0xc] sm:$0xf]
          %v6455 = vunpack.c.l.b16 %v6447
          %v6456 = vunpack.c.l.b16 %v6448
          %v6457 = vunpack.c.l.b16 %v6449
          %v6458 = vunpack.c.l.b16 %v6450
          %v6459 = vpack.c.b16 %v6456, %v6455
          %v6460 = vpack.c.b16 %v6458, %v6457
          %v6464 = vsel %vm1994, %v6438, 0
          %v6467 = vsel %vm1994, %v6439, 0
          %v6470 = vsel %vm1994, %v6440, 0
          %v6473 = vsel %vm1994, %v6441, 0
          %v6476 = vsel %vm1994, %v6442, 0
          %v6479 = vsel %vm1994, %v6443, 0
          %v6482 = vsel %vm1994, %v6444, 0
          %v6485 = vsel %vm1994, %v6445, 0
          %6487 = vmatprep.subr.bf16.mxu0 0
          %6488 = vmatpush1.bf16.msra.mxu0 %v6459
          %6489 = vmatprep.subr.bf16.mxu0 0
          %6490 = vmatpush1.bf16.msra.mxu0 %v6460
          %6491 = vmatprep.subr.bf16.mxu0 0
          %6492 = vmatpush1.bf16.msra.mxu0 0
          %6493 = vmatprep.subr.bf16.mxu0 0
          %6494 = vmatpush1.bf16.msra.mxu0 0
          %6495 = vmatprep.subr.bf16.mxu0 0
          %6496 = vmatpush1.bf16.msra.mxu0 0
          %6497 = vmatprep.subr.bf16.mxu0 0
          %6498 = vmatpush1.bf16.msra.mxu0 0
          %6499 = vmatprep.subr.bf16.mxu0 0
          %6500 = vmatpush1.bf16.msra.mxu0 0
          %6501 = vmatprep.subr.bf16.mxu0 0
          %6502 = vmatpush1.bf16.msra.mxu0 0
          %6503 = vmatprep.subr.bf16.mxu0 0
          %6504 = vmatpush1.bf16.msra.mxu0 0
          %6505 = vmatprep.subr.bf16.mxu0 0
          %6506 = vmatpush1.bf16.msra.mxu0 0
          %6507 = vmatprep.subr.bf16.mxu0 0
          %6508 = vmatpush1.bf16.msra.mxu0 0
          %6509 = vmatprep.subr.bf16.mxu0 0
          %6510 = vmatpush1.bf16.msra.mxu0 0
          %6511 = vmatprep.subr.bf16.mxu0 0
          %6512 = vmatpush1.bf16.msra.mxu0 0
          %6513 = vmatprep.subr.bf16.mxu0 0
          %6514 = vmatpush1.bf16.msra.mxu0 0
          %6515 = vmatprep.subr.bf16.mxu0 0
          %6516 = vmatpush1.bf16.msra.mxu0 0
          %6517 = vmatprep.subr.bf16.mxu0 0
          %6518 = vmatpush1.bf16.msra.mxu0 0
          %6519 = vmatprep.mubr.bf16.mxu0 0
          %6520 = vmatmul.mubr.bf16.gmra.mrb[0].mxu0 %v6464
          %v6521 = vpop.f32.mrb[0].mxu0
          %v6522 = vadd.f32 0.0, %v6521
          %v6523 = vpop.f32.mrb[0].mxu0
          %v6524 = vpop.f32.mrb[0].mxu0
          %v6525 = vadd.f32 0.0, %v6524
          %v6526 = vpop.f32.mrb[0].mxu0
          %6527 = vmatprep.mubr.bf16.mxu0 0
          %6528 = vmatmul.mubr.bf16.gmra.mrb[0].mxu0 %v6467
          %v6529 = vpop.f32.mrb[0].mxu0
          %v6530 = vadd.f32 0.0, %v6529
          %v6531 = vpop.f32.mrb[0].mxu0
          %v6532 = vpop.f32.mrb[0].mxu0
          %v6533 = vadd.f32 0.0, %v6532
          %v6534 = vpop.f32.mrb[0].mxu0
          %6535 = vmatprep.mubr.bf16.mxu0 0
          %6536 = vmatmul.mubr.bf16.gmra.mrb[0].mxu0 %v6470
          %v6537 = vpop.f32.mrb[0].mxu0
          %v6538 = vadd.f32 0.0, %v6537
          %v6539 = vpop.f32.mrb[0].mxu0
          %v6540 = vpop.f32.mrb[0].mxu0
          %v6541 = vadd.f32 0.0, %v6540
          %v6542 = vpop.f32.mrb[0].mxu0
          %6543 = vmatprep.mubr.bf16.mxu0 0
          %6544 = vmatmul.mubr.bf16.gmra.mrb[0].mxu0 %v6473
          %v6545 = vpop.f32.mrb[0].mxu0
          %v6546 = vadd.f32 0.0, %v6545
          %v6547 = vpop.f32.mrb[0].mxu0
          %v6548 = vpop.f32.mrb[0].mxu0
          %v6549 = vadd.f32 0.0, %v6548
          %v6550 = vpop.f32.mrb[0].mxu0
          %6551 = vmatprep.mubr.bf16.mxu0 0
          %6552 = vmatmul.mubr.bf16.gmra.mrb[0].mxu0 %v6476
          %v6553 = vpop.f32.mrb[0].mxu0
          %v6554 = vadd.f32 0.0, %v6553
          %v6555 = vpop.f32.mrb[0].mxu0
          %v6556 = vpop.f32.mrb[0].mxu0
          %v6557 = vadd.f32 0.0, %v6556
          %v6558 = vpop.f32.mrb[0].mxu0
          %6559 = vmatprep.mubr.bf16.mxu0 0
          %6560 = vmatmul.mubr.bf16.gmra.mrb[0].mxu0 %v6479
          %v6561 = vpop.f32.mrb[0].mxu0
          %v6562 = vadd.f32 0.0, %v6561
          %v6563 = vpop.f32.mrb[0].mxu0
          %v6564 = vpop.f32.mrb[0].mxu0
          %v6565 = vadd.f32 0.0, %v6564
          %v6566 = vpop.f32.mrb[0].mxu0
          %6567 = vmatprep.mubr.bf16.mxu0 0
          %6568 = vmatmul.mubr.bf16.gmra.mrb[0].mxu0 %v6482
          %v6569 = vpop.f32.mrb[0].mxu0
          %v6570 = vadd.f32 0.0, %v6569
          %v6571 = vpop.f32.mrb[0].mxu0
          %v6572 = vpop.f32.mrb[0].mxu0
          %v6573 = vadd.f32 0.0, %v6572
          %v6574 = vpop.f32.mrb[0].mxu0
          %6575 = vmatprep.mubr.bf16.mxu0 0
          %6576 = vmatmul.mubr.bf16.gmra.mrb[0].mxu0 %v6485
          %v6577 = vpop.f32.mrb[0].mxu0
          %v6578 = vadd.f32 0.0, %v6577
          %v6579 = vpop.f32.mrb[0].mxu0
          %v6580 = vpop.f32.mrb[0].mxu0
          %v6581 = vadd.f32 0.0, %v6580
          %v6582 = vpop.f32.mrb[0].mxu0
          %6583 = vdwg.mxu0
          %v6584 = vadd.f32 %v6262, %v6522
          %v6585 = vadd.f32 %v6263, %v6525
          %v6586 = vadd.f32 %v6264, %v6530
          %v6587 = vadd.f32 %v6265, %v6533
          %v6588 = vadd.f32 %v6266, %v6538
          %v6589 = vadd.f32 %v6267, %v6541
          %v6590 = vadd.f32 %v6268, %v6546
          %v6591 = vadd.f32 %v6269, %v6549
          %v6592 = vadd.f32 %v6270, %v6554
          %v6593 = vadd.f32 %v6271, %v6557
          %v6594 = vadd.f32 %v6272, %v6562
          %v6595 = vadd.f32 %v6273, %v6565
          %v6596 = vadd.f32 %v6274, %v6570
          %v6597 = vadd.f32 %v6275, %v6573
          %v6598 = vadd.f32 %v6276, %v6578
          %v6599 = vadd.f32 %v6277, %v6581
          %v6600 = vadd.f32 %v5290, %v6584
          %v6601 = vadd.f32 %v5291, %v6585
          %v6602 = vadd.f32 %v5292, %v6586
          %v6603 = vadd.f32 %v5293, %v6587
          %v6604 = vadd.f32 %v5294, %v6588
          %v6605 = vadd.f32 %v5295, %v6589
          %v6606 = vadd.f32 %v5296, %v6590
          %v6607 = vadd.f32 %v5297, %v6591
          %v6608 = vadd.f32 %v5298, %v6592
          %v6609 = vadd.f32 %v5299, %v6593
          %v6610 = vadd.f32 %v5300, %v6594
          %v6611 = vadd.f32 %v5301, %v6595
          %v6612 = vadd.f32 %v5302, %v6596
          %v6613 = vadd.f32 %v5303, %v6597
          %v6614 = vadd.f32 %v5304, %v6598
          %v6615 = vadd.f32 %v5305, %v6599
          %v6616 = vld [vmem:[%s5] sm:$0x1]
          %v6617 = vld [vmem:[%s6] sm:$0x1]
          %6618 = vadd.xlane.f32.xlu0 %v6600
          %v6619 = vpop.xlane.xlu0 %6618
          %6620 = vadd.xlane.f32.xlu0 %v6601
          %v6621 = vpop.xlane.xlu0 %6620
          %6622 = vadd.xlane.f32.xlu0 %v6602
          %v6623 = vpop.xlane.xlu0 %6622
          %6624 = vadd.xlane.f32.xlu0 %v6603
          %v6625 = vpop.xlane.xlu0 %6624
          %6626 = vadd.xlane.f32.xlu0 %v6604
          %v6627 = vpop.xlane.xlu0 %6626
          %6628 = vadd.xlane.f32.xlu0 %v6605
          %v6629 = vpop.xlane.xlu0 %6628
          %6630 = vadd.xlane.f32.xlu0 %v6606
          %v6631 = vpop.xlane.xlu0 %6630
          %6632 = vadd.xlane.f32.xlu0 %v6607
          %v6633 = vpop.xlane.xlu0 %6632
          %6634 = vadd.xlane.f32.xlu0 %v6608
          %v6635 = vpop.xlane.xlu0 %6634
          %6636 = vadd.xlane.f32.xlu0 %v6609
          %v6637 = vpop.xlane.xlu0 %6636
          %6638 = vadd.xlane.f32.xlu0 %v6610
          %v6639 = vpop.xlane.xlu0 %6638
          %6640 = vadd.xlane.f32.xlu0 %v6611
          %v6641 = vpop.xlane.xlu0 %6640
          %6642 = vadd.xlane.f32.xlu0 %v6612
          %v6643 = vpop.xlane.xlu0 %6642
          %6644 = vadd.xlane.f32.xlu0 %v6613
          %v6645 = vpop.xlane.xlu0 %6644
          %6646 = vadd.xlane.f32.xlu0 %v6614
          %v6647 = vpop.xlane.xlu0 %6646
          %6648 = vadd.xlane.f32.xlu0 %v6615
          %v6649 = vpop.xlane.xlu0 %6648
          %v6650 = vmul.f32 %v6619, %v1550
          %v6651 = vmul.f32 %v6621, %v1550
          %v6652 = vmul.f32 %v6623, %v1550
          %v6653 = vmul.f32 %v6625, %v1550
          %v6654 = vmul.f32 %v6627, %v1550
          %v6655 = vmul.f32 %v6629, %v1550
          %v6656 = vmul.f32 %v6631, %v1550
          %v6657 = vmul.f32 %v6633, %v1550
          %v6658 = vmul.f32 %v6635, %v1550
          %v6659 = vmul.f32 %v6637, %v1550
          %v6660 = vmul.f32 %v6639, %v1550
          %v6661 = vmul.f32 %v6641, %v1550
          %v6662 = vmul.f32 %v6643, %v1550
          %v6663 = vmul.f32 %v6645, %v1550
          %v6664 = vmul.f32 %v6647, %v1550
          %v6665 = vmul.f32 %v6649, %v1550
          %v6666 = vsub.f32 %v6600, %v6650
          %v6667 = vsub.f32 %v6601, %v6651
          %v6668 = vsub.f32 %v6602, %v6652
          %v6669 = vsub.f32 %v6603, %v6653
          %v6670 = vsub.f32 %v6604, %v6654
          %v6671 = vsub.f32 %v6605, %v6655
          %v6672 = vsub.f32 %v6606, %v6656
          %v6673 = vsub.f32 %v6607, %v6657
          %v6674 = vsub.f32 %v6608, %v6658
          %v6675 = vsub.f32 %v6609, %v6659
          %v6676 = vsub.f32 %v6610, %v6660
          %v6677 = vsub.f32 %v6611, %v6661
          %v6678 = vsub.f32 %v6612, %v6662
          %v6679 = vsub.f32 %v6613, %v6663
          %v6680 = vsub.f32 %v6614, %v6664
          %v6681 = vsub.f32 %v6615, %v6665
          %v6682 = vmul.f32 %v6666, %v6666
          %v6683 = vmul.f32 %v6667, %v6667
          %v6684 = vmul.f32 %v6668, %v6668
          %v6685 = vmul.f32 %v6669, %v6669
          %v6686 = vmul.f32 %v6670, %v6670
          %v6687 = vmul.f32 %v6671, %v6671
          %v6688 = vmul.f32 %v6672, %v6672
          %v6689 = vmul.f32 %v6673, %v6673
          %v6690 = vmul.f32 %v6674, %v6674
          %v6691 = vmul.f32 %v6675, %v6675
          %v6692 = vmul.f32 %v6676, %v6676
          %v6693 = vmul.f32 %v6677, %v6677
          %v6694 = vmul.f32 %v6678, %v6678
          %v6695 = vmul.f32 %v6679, %v6679
          %v6696 = vmul.f32 %v6680, %v6680
          %v6697 = vmul.f32 %v6681, %v6681
          %6698 = vadd.xlane.f32.xlu0 %v6682
          %v6699 = vpop.xlane.xlu0 %6698
          %6700 = vadd.xlane.f32.xlu0 %v6683
          %v6701 = vpop.xlane.xlu0 %6700
          %6702 = vadd.xlane.f32.xlu0 %v6684
          %v6703 = vpop.xlane.xlu0 %6702
          %6704 = vadd.xlane.f32.xlu0 %v6685
          %v6705 = vpop.xlane.xlu0 %6704
          %6706 = vadd.xlane.f32.xlu0 %v6686
          %v6707 = vpop.xlane.xlu0 %6706
          %6708 = vadd.xlane.f32.xlu0 %v6687
          %v6709 = vpop.xlane.xlu0 %6708
          %6710 = vadd.xlane.f32.xlu0 %v6688
          %v6711 = vpop.xlane.xlu0 %6710
          %6712 = vadd.xlane.f32.xlu0 %v6689
          %v6713 = vpop.xlane.xlu0 %6712
          %6714 = vadd.xlane.f32.xlu0 %v6690
          %v6715 = vpop.xlane.xlu0 %6714
          %6716 = vadd.xlane.f32.xlu0 %v6691
          %v6717 = vpop.xlane.xlu0 %6716
          %6718 = vadd.xlane.f32.xlu0 %v6692
          %v6719 = vpop.xlane.xlu0 %6718
          %6720 = vadd.xlane.f32.xlu0 %v6693
          %v6721 = vpop.xlane.xlu0 %6720
          %6722 = vadd.xlane.f32.xlu0 %v6694
          %v6723 = vpop.xlane.xlu0 %6722
          %6724 = vadd.xlane.f32.xlu0 %v6695
          %v6725 = vpop.xlane.xlu0 %6724
          %6726 = vadd.xlane.f32.xlu0 %v6696
          %v6727 = vpop.xlane.xlu0 %6726
          %6728 = vadd.xlane.f32.xlu0 %v6697
          %v6729 = vpop.xlane.xlu0 %6728
          %v6730 = vmul.f32 %v6699, %v1550
          %v6731 = vmul.f32 %v6701, %v1550
          %v6732 = vmul.f32 %v6703, %v1550
          %v6733 = vmul.f32 %v6705, %v1550
          %v6734 = vmul.f32 %v6707, %v1550
          %v6735 = vmul.f32 %v6709, %v1550
          %v6736 = vmul.f32 %v6711, %v1550
          %v6737 = vmul.f32 %v6713, %v1550
          %v6738 = vmul.f32 %v6715, %v1550
          %v6739 = vmul.f32 %v6717, %v1550
          %v6740 = vmul.f32 %v6719, %v1550
          %v6741 = vmul.f32 %v6721, %v1550
          %v6742 = vmul.f32 %v6723, %v1550
          %v6743 = vmul.f32 %v6725, %v1550
          %v6744 = vmul.f32 %v6727, %v1550
          %v6745 = vmul.f32 %v6729, %v1550
          %v6746 = vadd.f32 %v6730, 1e-12
          %v6747 = vadd.f32 %v6731, 1e-12
          %v6748 = vadd.f32 %v6732, 1e-12
          %v6749 = vadd.f32 %v6733, 1e-12
          %v6750 = vadd.f32 %v6734, 1e-12
          %v6751 = vadd.f32 %v6735, 1e-12
          %v6752 = vadd.f32 %v6736, 1e-12
          %v6753 = vadd.f32 %v6737, 1e-12
          %v6754 = vadd.f32 %v6738, 1e-12
          %v6755 = vadd.f32 %v6739, 1e-12
          %v6756 = vadd.f32 %v6740, 1e-12
          %v6757 = vadd.f32 %v6741, 1e-12
          %v6758 = vadd.f32 %v6742, 1e-12
          %v6759 = vadd.f32 %v6743, 1e-12
          %v6760 = vadd.f32 %v6744, 1e-12
          %v6761 = vadd.f32 %v6745, 1e-12
          %v6762 = vrsqrt.pop %v6746
          %v6763 = vrsqrt.pop %v6747
          %v6764 = vrsqrt.pop %v6748
          %v6765 = vrsqrt.pop %v6749
          %v6766 = vrsqrt.pop %v6750
          %v6767 = vrsqrt.pop %v6751
          %v6768 = vrsqrt.pop %v6752
          %v6769 = vrsqrt.pop %v6753
          %v6770 = vrsqrt.pop %v6754
          %v6771 = vrsqrt.pop %v6755
          %v6772 = vrsqrt.pop %v6756
          %v6773 = vrsqrt.pop %v6757
          %v6774 = vrsqrt.pop %v6758
          %v6775 = vrsqrt.pop %v6759
          %v6776 = vrsqrt.pop %v6760
          %v6777 = vrsqrt.pop %v6761
          %v6778 = vmul.f32 %v6666, %v6762
          %v6779 = vmul.f32 %v6667, %v6763
          %v6780 = vmul.f32 %v6668, %v6764
          %v6781 = vmul.f32 %v6669, %v6765
          %v6782 = vmul.f32 %v6670, %v6766
          %v6783 = vmul.f32 %v6671, %v6767
          %v6784 = vmul.f32 %v6672, %v6768
          %v6785 = vmul.f32 %v6673, %v6769
          %v6786 = vmul.f32 %v6674, %v6770
          %v6787 = vmul.f32 %v6675, %v6771
          %v6788 = vmul.f32 %v6676, %v6772
          %v6789 = vmul.f32 %v6677, %v6773
          %v6790 = vmul.f32 %v6678, %v6774
          %v6791 = vmul.f32 %v6679, %v6775
          %v6792 = vmul.f32 %v6680, %v6776
          %v6793 = vmul.f32 %v6681, %v6777
          %v6795 = vlaneseq
          %v6796 = vshrl.u32 %v6795, 7
          %v6797 = vsub.s32 0, %v6796
          %v6798 = vrot.slane %v6616, %v6797
          %v6800 = vmul.f32 %v6778, %v6798
          %v6801 = vmul.f32 %v6779, %v6798
          %v6802 = vmul.f32 %v6780, %v6798
          %v6803 = vmul.f32 %v6781, %v6798
          %v6804 = vmul.f32 %v6782, %v6798
          %v6805 = vmul.f32 %v6783, %v6798
          %v6806 = vmul.f32 %v6784, %v6798
          %v6807 = vmul.f32 %v6785, %v6798
          %v6808 = vmul.f32 %v6786, %v6798
          %v6809 = vmul.f32 %v6787, %v6798
          %v6810 = vmul.f32 %v6788, %v6798
          %v6811 = vmul.f32 %v6789, %v6798
          %v6812 = vmul.f32 %v6790, %v6798
          %v6813 = vmul.f32 %v6791, %v6798
          %v6814 = vmul.f32 %v6792, %v6798
          %v6815 = vmul.f32 %v6793, %v6798
          %v6817 = vlaneseq
          %v6818 = vshrl.u32 %v6817, 7
          %v6819 = vsub.s32 0, %v6818
          %v6820 = vrot.slane %v6617, %v6819
          %v6822 = vadd.f32 %v6800, %v6820
          %v6823 = vadd.f32 %v6801, %v6820
          %v6824 = vadd.f32 %v6802, %v6820
          %v6825 = vadd.f32 %v6803, %v6820
          %v6826 = vadd.f32 %v6804, %v6820
          %v6827 = vadd.f32 %v6805, %v6820
          %v6828 = vadd.f32 %v6806, %v6820
          %v6829 = vadd.f32 %v6807, %v6820
          %v6830 = vadd.f32 %v6808, %v6820
          %v6831 = vadd.f32 %v6809, %v6820
          %v6832 = vadd.f32 %v6810, %v6820
          %v6833 = vadd.f32 %v6811, %v6820
          %v6834 = vadd.f32 %v6812, %v6820
          %v6835 = vadd.f32 %v6813, %v6820
          %v6836 = vadd.f32 %v6814, %v6820
          %v6837 = vadd.f32 %v6815, %v6820
          %v6838 = vpack.c.bf16 %v6823, %v6822
          %v6839 = vpack.c.bf16 %v6825, %v6824
          %v6840 = vpack.c.bf16 %v6827, %v6826
          %v6841 = vpack.c.bf16 %v6829, %v6828
          %v6842 = vpack.c.bf16 %v6831, %v6830
          %v6843 = vpack.c.bf16 %v6833, %v6832
          %v6844 = vpack.c.bf16 %v6835, %v6834
          %v6845 = vpack.c.bf16 %v6837, %v6836
          %v6846 = vld [vmem:[#allocation17] sm:$0xff]
          %v6847 = vld [vmem:[#allocation17 + $0x8] sm:$0xff]
          %v6848 = vld [vmem:[#allocation17 + $0x10] sm:$0xff]
          %v6849 = vld [vmem:[#allocation17 + $0x18] sm:$0xff]
          %v6850 = vld [vmem:[#allocation17 + $0x20] sm:$0xff]
          %v6851 = vld [vmem:[#allocation17 + $0x28] sm:$0xff]
          %v6852 = vld [vmem:[#allocation17 + $0x30] sm:$0xff]
          %v6853 = vld [vmem:[#allocation17 + $0x38] sm:$0xff]
          %v6854 = vld [vmem:[#allocation17 + $0x40] sm:$0xff]
          %v6855 = vld [vmem:[#allocation17 + $0x48] sm:$0xff]
          %v6856 = vld [vmem:[#allocation17 + $0x50] sm:$0xff]
          %v6857 = vld [vmem:[#allocation17 + $0x58] sm:$0xff]
          %v6858 = vld [vmem:[#allocation17 + $0x60] sm:$0xff]
          %v6859 = vld [vmem:[#allocation17 + $0x68] sm:$0xff]
          %v6860 = vld [vmem:[#allocation17 + $0x70] sm:$0xff]
          %v6861 = vld [vmem:[#allocation17 + $0x78] sm:$0xff]
          %v6862 = vld [vmem:[%s14] sm:$0x3]
          %v6864 = vlaneseq
          %v6865 = vshrl.u32 %v6864, 7
          %v6866 = vsub.s32 0, %v6865
          %v6867 = vrot.slane %v6862, %v6866
          %v6868 = vlaneseq
          %v6869 = vshrl.u32 %v6868, 7
          %v6870 = vsub.s32 1, %v6869
          %v6871 = vrot.slane %v6862, %v6870
          %v6890 = vunpack.c.l.b16 %v6846
          %v6891 = vunpack.c.h.b16 %v6846
          %v6892 = vunpack.c.l.b16 %v6847
          %v6893 = vunpack.c.h.b16 %v6847
          %v6894 = vunpack.c.l.b16 %v6848
          %v6895 = vunpack.c.h.b16 %v6848
          %v6896 = vunpack.c.l.b16 %v6849
          %v6897 = vunpack.c.h.b16 %v6849
          %v6898 = vunpack.c.l.b16 %v6850
          %v6899 = vunpack.c.h.b16 %v6850
          %v6900 = vunpack.c.l.b16 %v6851
          %v6901 = vunpack.c.h.b16 %v6851
          %v6902 = vunpack.c.l.b16 %v6852
          %v6903 = vunpack.c.h.b16 %v6852
          %v6904 = vunpack.c.l.b16 %v6853
          %v6905 = vunpack.c.h.b16 %v6853
          %v6906 = vunpack.c.l.b16 %v6854
          %v6907 = vunpack.c.h.b16 %v6854
          %v6908 = vunpack.c.l.b16 %v6855
          %v6909 = vunpack.c.h.b16 %v6855
          %v6910 = vunpack.c.l.b16 %v6856
          %v6911 = vunpack.c.h.b16 %v6856
          %v6912 = vunpack.c.l.b16 %v6857
          %v6913 = vunpack.c.h.b16 %v6857
          %v6914 = vunpack.c.l.b16 %v6858
          %v6915 = vunpack.c.h.b16 %v6858
          %v6916 = vunpack.c.l.b16 %v6859
          %v6917 = vunpack.c.h.b16 %v6859
          %v6918 = vunpack.c.l.b16 %v6860
          %v6919 = vunpack.c.h.b16 %v6860
          %v6920 = vunpack.c.l.b16 %v6861
          %v6921 = vunpack.c.h.b16 %v6861
          %v6922 = vpack.c.b16 %v6892, %v6890
          %v6923 = vpack.c.b16 %v6893, %v6891
          %v6924 = vpack.c.b16 %v6896, %v6894
          %v6925 = vpack.c.b16 %v6897, %v6895
          %v6926 = vpack.c.b16 %v6900, %v6898
          %v6927 = vpack.c.b16 %v6901, %v6899
          %v6928 = vpack.c.b16 %v6904, %v6902
          %v6929 = vpack.c.b16 %v6905, %v6903
          %v6930 = vpack.c.b16 %v6908, %v6906
          %v6931 = vpack.c.b16 %v6909, %v6907
          %v6932 = vpack.c.b16 %v6912, %v6910
          %v6933 = vpack.c.b16 %v6913, %v6911
          %v6934 = vpack.c.b16 %v6916, %v6914
          %v6935 = vpack.c.b16 %v6917, %v6915
          %v6936 = vpack.c.b16 %v6920, %v6918
          %v6937 = vpack.c.b16 %v6921, %v6919
          %6954 = vmatprep.subr.bf16.mxu0 %v6923
          %6955 = vmatpush1.bf16.msra.mxu0 %v6922
          %6956 = vmatprep.subr.bf16.mxu0 %v6925
          %6957 = vmatpush1.bf16.msra.mxu0 %v6924
          %6958 = vmatprep.subr.bf16.mxu0 %v6927
          %6959 = vmatpush1.bf16.msra.mxu0 %v6926
          %6960 = vmatprep.subr.bf16.mxu0 %v6929
          %6961 = vmatpush1.bf16.msra.mxu0 %v6928
          %6962 = vmatprep.subr.bf16.mxu0 %v6931
          %6963 = vmatpush1.bf16.msra.mxu0 %v6930
          %6964 = vmatprep.subr.bf16.mxu0 %v6933
          %6965 = vmatpush1.bf16.msra.mxu0 %v6932
          %6966 = vmatprep.subr.bf16.mxu0 %v6935
          %6967 = vmatpush1.bf16.msra.mxu0 %v6934
          %6968 = vmatprep.subr.bf16.mxu0 %v6937
          %6969 = vmatpush1.bf16.msra.mxu0 %v6936
          %6970 = vmatprep.subr.bf16.mxu0 0
          %6971 = vmatpush1.bf16.msra.mxu0 0
          %6972 = vmatprep.subr.bf16.mxu0 0
          %6973 = vmatpush1.bf16.msra.mxu0 0
          %6974 = vmatprep.subr.bf16.mxu0 0
          %6975 = vmatpush1.bf16.msra.mxu0 0
          %6976 = vmatprep.subr.bf16.mxu0 0
          %6977 = vmatpush1.bf16.msra.mxu0 0
          %6978 = vmatprep.subr.bf16.mxu0 0
          %6979 = vmatpush1.bf16.msra.mxu0 0
          %6980 = vmatprep.subr.bf16.mxu0 0
          %6981 = vmatpush1.bf16.msra.mxu0 0
          %6982 = vmatprep.subr.bf16.mxu0 0
          %6983 = vmatpush1.bf16.msra.mxu0 0
          %6984 = vmatprep.subr.bf16.mxu0 0
          %6985 = vmatpush1.bf16.msra.mxu0 0
          %6986 = vmatprep.mubr.bf16.mxu0 0
          %6987 = vmatmul.mubr.bf16.gmra.mrb[0].mxu0 %v6838
          %v6988 = vpop.f32.mrb[0].mxu0
          %v6989 = vadd.f32 %v6867, %v6988
          %v6990 = vpop.f32.mrb[0].mxu0
          %v6991 = vadd.f32 %v6871, %v6990
          %v6992 = vpop.f32.mrb[0].mxu0
          %v6993 = vadd.f32 %v6867, %v6992
          %v6994 = vpop.f32.mrb[0].mxu0
          %v6995 = vadd.f32 %v6871, %v6994
          %6996 = vmatprep.mubr.bf16.mxu0 0
          %6997 = vmatmul.mubr.bf16.gmra.mrb[0].mxu0 %v6839
          %v6998 = vpop.f32.mrb[0].mxu0
          %v6999 = vadd.f32 %v6867, %v6998
          %v7000 = vpop.f32.mrb[0].mxu0
          %v7001 = vadd.f32 %v6871, %v7000
          %v7002 = vpop.f32.mrb[0].mxu0
          %v7003 = vadd.f32 %v6867, %v7002
          %v7004 = vpop.f32.mrb[0].mxu0
          %v7005 = vadd.f32 %v6871, %v7004
          %7006 = vmatprep.mubr.bf16.mxu0 0
          %7007 = vmatmul.mubr.bf16.gmra.mrb[0].mxu0 %v6840
          %v7008 = vpop.f32.mrb[0].mxu0
          %v7009 = vadd.f32 %v6867, %v7008
          %v7010 = vpop.f32.mrb[0].mxu0
          %v7011 = vadd.f32 %v6871, %v7010
          %v7012 = vpop.f32.mrb[0].mxu0
          %v7013 = vadd.f32 %v6867, %v7012
          %v7014 = vpop.f32.mrb[0].mxu0
          %v7015 = vadd.f32 %v6871, %v7014
          %7016 = vmatprep.mubr.bf16.mxu0 0
          %7017 = vmatmul.mubr.bf16.gmra.mrb[0].mxu0 %v6841
          %v7018 = vpop.f32.mrb[0].mxu0
          %v7019 = vadd.f32 %v6867, %v7018
          %v7020 = vpop.f32.mrb[0].mxu0
          %v7021 = vadd.f32 %v6871, %v7020
          %v7022 = vpop.f32.mrb[0].mxu0
          %v7023 = vadd.f32 %v6867, %v7022
          %v7024 = vpop.f32.mrb[0].mxu0
          %v7025 = vadd.f32 %v6871, %v7024
          %7026 = vmatprep.mubr.bf16.mxu0 0
          %7027 = vmatmul.mubr.bf16.gmra.mrb[0].mxu0 %v6842
          %v7028 = vpop.f32.mrb[0].mxu0
          %v7029 = vadd.f32 %v6867, %v7028
          %v7030 = vpop.f32.mrb[0].mxu0
          %v7031 = vadd.f32 %v6871, %v7030
          %v7032 = vpop.f32.mrb[0].mxu0
          %v7033 = vadd.f32 %v6867, %v7032
          %v7034 = vpop.f32.mrb[0].mxu0
          %v7035 = vadd.f32 %v6871, %v7034
          %7036 = vmatprep.mubr.bf16.mxu0 0
          %7037 = vmatmul.mubr.bf16.gmra.mrb[0].mxu0 %v6843
          %v7038 = vpop.f32.mrb[0].mxu0
          %v7039 = vadd.f32 %v6867, %v7038
          %v7040 = vpop.f32.mrb[0].mxu0
          %v7041 = vadd.f32 %v6871, %v7040
          %v7042 = vpop.f32.mrb[0].mxu0
          %v7043 = vadd.f32 %v6867, %v7042
          %v7044 = vpop.f32.mrb[0].mxu0
          %v7045 = vadd.f32 %v6871, %v7044
          %7046 = vmatprep.mubr.bf16.mxu0 0
          %7047 = vmatmul.mubr.bf16.gmra.mrb[0].mxu0 %v6844
          %v7048 = vpop.f32.mrb[0].mxu0
          %v7049 = vadd.f32 %v6867, %v7048
          %v7050 = vpop.f32.mrb[0].mxu0
          %v7051 = vadd.f32 %v6871, %v7050
          %v7052 = vpop.f32.mrb[0].mxu0
          %v7053 = vadd.f32 %v6867, %v7052
          %v7054 = vpop.f32.mrb[0].mxu0
          %v7055 = vadd.f32 %v6871, %v7054
          %7056 = vmatprep.mubr.bf16.mxu0 0
          %7057 = vmatmul.mubr.bf16.gmra.mrb[0].mxu0 %v6845
          %v7058 = vpop.f32.mrb[0].mxu0
          %v7059 = vadd.f32 %v6867, %v7058
          %v7060 = vpop.f32.mrb[0].mxu0
          %v7061 = vadd.f32 %v6871, %v7060
          %v7062 = vpop.f32.mrb[0].mxu0
          %v7063 = vadd.f32 %v6867, %v7062
          %v7064 = vpop.f32.mrb[0].mxu0
          %v7065 = vadd.f32 %v6871, %v7064
          %7066 = vdwg.mxu0
          %v7067 = vmax.f32 %v6989, 0.0
          %v7068 = vmax.f32 %v6991, 0.0
          %v7069 = vmax.f32 %v6993, 0.0
          %v7070 = vmax.f32 %v6995, 0.0
          %v7071 = vmax.f32 %v6999, 0.0
          %v7072 = vmax.f32 %v7001, 0.0
          %v7073 = vmax.f32 %v7003, 0.0
          %v7074 = vmax.f32 %v7005, 0.0
          %v7075 = vmax.f32 %v7009, 0.0
          %v7076 = vmax.f32 %v7011, 0.0
          %v7077 = vmax.f32 %v7013, 0.0
          %v7078 = vmax.f32 %v7015, 0.0
          %v7079 = vmax.f32 %v7019, 0.0
          %v7080 = vmax.f32 %v7021, 0.0
          %v7081 = vmax.f32 %v7023, 0.0
          %v7082 = vmax.f32 %v7025, 0.0
          %v7083 = vmax.f32 %v7029, 0.0
          %v7084 = vmax.f32 %v7031, 0.0
          %v7085 = vmax.f32 %v7033, 0.0
          %v7086 = vmax.f32 %v7035, 0.0
          %v7087 = vmax.f32 %v7039, 0.0
          %v7088 = vmax.f32 %v7041, 0.0
          %v7089 = vmax.f32 %v7043, 0.0
          %v7090 = vmax.f32 %v7045, 0.0
          %v7091 = vmax.f32 %v7049, 0.0
          %v7092 = vmax.f32 %v7051, 0.0
          %v7093 = vmax.f32 %v7053, 0.0
          %v7094 = vmax.f32 %v7055, 0.0
          %v7095 = vmax.f32 %v7059, 0.0
          %v7096 = vmax.f32 %v7061, 0.0
          %v7097 = vmax.f32 %v7063, 0.0
          %v7098 = vmax.f32 %v7065, 0.0
          %v7099 = vpack.c.bf16 %v7069, %v7067
          %v7100 = vpack.c.bf16 %v7070, %v7068
          %v7101 = vpack.c.bf16 %v7073, %v7071
          %v7102 = vpack.c.bf16 %v7074, %v7072
          %v7103 = vpack.c.bf16 %v7077, %v7075
          %v7104 = vpack.c.bf16 %v7078, %v7076
          %v7105 = vpack.c.bf16 %v7081, %v7079
          %v7106 = vpack.c.bf16 %v7082, %v7080
          %v7107 = vpack.c.bf16 %v7085, %v7083
          %v7108 = vpack.c.bf16 %v7086, %v7084
          %v7109 = vpack.c.bf16 %v7089, %v7087
          %v7110 = vpack.c.bf16 %v7090, %v7088
          %v7111 = vpack.c.bf16 %v7093, %v7091
          %v7112 = vpack.c.bf16 %v7094, %v7092
          %v7113 = vpack.c.bf16 %v7097, %v7095
          %v7114 = vpack.c.bf16 %v7098, %v7096
          %v7115 = vld [vmem:[#allocation18] sm:$0xf]
          %v7116 = vld [vmem:[#allocation18 + $0x4] sm:$0xf]
          %v7117 = vld [vmem:[#allocation18 + $0x8] sm:$0xf]
          %v7118 = vld [vmem:[#allocation18 + $0xc] sm:$0xf]
          %v7119 = vld [vmem:[#allocation18 + $0x10] sm:$0xf]
          %v7120 = vld [vmem:[#allocation18 + $0x14] sm:$0xf]
          %v7121 = vld [vmem:[#allocation18 + $0x18] sm:$0xf]
          %v7122 = vld [vmem:[#allocation18 + $0x1c] sm:$0xf]
          %v7123 = vld [vmem:[#allocation18 + $0x20] sm:$0xf]
          %v7124 = vld [vmem:[#allocation18 + $0x24] sm:$0xf]
          %v7125 = vld [vmem:[#allocation18 + $0x28] sm:$0xf]
          %v7126 = vld [vmem:[#allocation18 + $0x2c] sm:$0xf]
          %v7127 = vld [vmem:[#allocation18 + $0x30] sm:$0xf]
          %v7128 = vld [vmem:[#allocation18 + $0x34] sm:$0xf]
          %v7129 = vld [vmem:[#allocation18 + $0x38] sm:$0xf]
          %v7130 = vld [vmem:[#allocation18 + $0x3c] sm:$0xf]
          %v7131 = vld [vmem:[#allocation18 + $0x40] sm:$0xf]
          %v7132 = vld [vmem:[#allocation18 + $0x44] sm:$0xf]
          %v7133 = vld [vmem:[#allocation18 + $0x48] sm:$0xf]
          %v7134 = vld [vmem:[#allocation18 + $0x4c] sm:$0xf]
          %v7135 = vld [vmem:[#allocation18 + $0x50] sm:$0xf]
          %v7136 = vld [vmem:[#allocation18 + $0x54] sm:$0xf]
          %v7137 = vld [vmem:[#allocation18 + $0x58] sm:$0xf]
          %v7138 = vld [vmem:[#allocation18 + $0x5c] sm:$0xf]
          %v7139 = vld [vmem:[#allocation18 + $0x60] sm:$0xf]
          %v7140 = vld [vmem:[#allocation18 + $0x64] sm:$0xf]
          %v7141 = vld [vmem:[#allocation18 + $0x68] sm:$0xf]
          %v7142 = vld [vmem:[#allocation18 + $0x6c] sm:$0xf]
          %v7143 = vld [vmem:[#allocation18 + $0x70] sm:$0xf]
          %v7144 = vld [vmem:[#allocation18 + $0x74] sm:$0xf]
          %v7145 = vld [vmem:[#allocation18 + $0x78] sm:$0xf]
          %v7146 = vld [vmem:[#allocation18 + $0x7c] sm:$0xf]
          %v7147 = vld [vmem:[%s16] sm:$0x1]
          %v7149 = vlaneseq
          %v7150 = vshrl.u32 %v7149, 7
          %v7151 = vsub.s32 0, %v7150
          %v7152 = vrot.slane %v7147, %v7151
          %v7186 = vunpack.c.l.b16 %v7115
          %v7187 = vunpack.c.l.b16 %v7116
          %v7188 = vunpack.c.l.b16 %v7117
          %v7189 = vunpack.c.l.b16 %v7118
          %v7190 = vunpack.c.l.b16 %v7119
          %v7191 = vunpack.c.l.b16 %v7120
          %v7192 = vunpack.c.l.b16 %v7121
          %v7193 = vunpack.c.l.b16 %v7122
          %v7194 = vunpack.c.l.b16 %v7123
          %v7195 = vunpack.c.l.b16 %v7124
          %v7196 = vunpack.c.l.b16 %v7125
          %v7197 = vunpack.c.l.b16 %v7126
          %v7198 = vunpack.c.l.b16 %v7127
          %v7199 = vunpack.c.l.b16 %v7128
          %v7200 = vunpack.c.l.b16 %v7129
          %v7201 = vunpack.c.l.b16 %v7130
          %v7202 = vunpack.c.l.b16 %v7131
          %v7203 = vunpack.c.l.b16 %v7132
          %v7204 = vunpack.c.l.b16 %v7133
          %v7205 = vunpack.c.l.b16 %v7134
          %v7206 = vunpack.c.l.b16 %v7135
          %v7207 = vunpack.c.l.b16 %v7136
          %v7208 = vunpack.c.l.b16 %v7137
          %v7209 = vunpack.c.l.b16 %v7138
          %v7210 = vunpack.c.l.b16 %v7139
          %v7211 = vunpack.c.l.b16 %v7140
          %v7212 = vunpack.c.l.b16 %v7141
          %v7213 = vunpack.c.l.b16 %v7142
          %v7214 = vunpack.c.l.b16 %v7143
          %v7215 = vunpack.c.l.b16 %v7144
          %v7216 = vunpack.c.l.b16 %v7145
          %v7217 = vunpack.c.l.b16 %v7146
          %v7218 = vpack.c.b16 %v7187, %v7186
          %v7219 = vpack.c.b16 %v7189, %v7188
          %v7220 = vpack.c.b16 %v7191, %v7190
          %v7221 = vpack.c.b16 %v7193, %v7192
          %v7222 = vpack.c.b16 %v7195, %v7194
          %v7223 = vpack.c.b16 %v7197, %v7196
          %v7224 = vpack.c.b16 %v7199, %v7198
          %v7225 = vpack.c.b16 %v7201, %v7200
          %v7226 = vpack.c.b16 %v7203, %v7202
          %v7227 = vpack.c.b16 %v7205, %v7204
          %v7228 = vpack.c.b16 %v7207, %v7206
          %v7229 = vpack.c.b16 %v7209, %v7208
          %v7230 = vpack.c.b16 %v7211, %v7210
          %v7231 = vpack.c.b16 %v7213, %v7212
          %v7232 = vpack.c.b16 %v7215, %v7214
          %v7233 = vpack.c.b16 %v7217, %v7216
          %7250 = vmatprep.subr.bf16.mxu0 0
          %7251 = vmatpush1.bf16.msra.mxu0 %v7218
          %7252 = vmatprep.subr.bf16.mxu0 0
          %7253 = vmatpush1.bf16.msra.mxu0 %v7219
          %7254 = vmatprep.subr.bf16.mxu0 0
          %7255 = vmatpush1.bf16.msra.mxu0 %v7220
          %7256 = vmatprep.subr.bf16.mxu0 0
          %7257 = vmatpush1.bf16.msra.mxu0 %v7221
          %7258 = vmatprep.subr.bf16.mxu0 0
          %7259 = vmatpush1.bf16.msra.mxu0 %v7222
          %7260 = vmatprep.subr.bf16.mxu0 0
          %7261 = vmatpush1.bf16.msra.mxu0 %v7223
          %7262 = vmatprep.subr.bf16.mxu0 0
          %7263 = vmatpush1.bf16.msra.mxu0 %v7224
          %7264 = vmatprep.subr.bf16.mxu0 0
          %7265 = vmatpush1.bf16.msra.mxu0 %v7225
          %7266 = vmatprep.subr.bf16.mxu0 0
          %7267 = vmatpush1.bf16.msra.mxu0 %v7226
          %7268 = vmatprep.subr.bf16.mxu0 0
          %7269 = vmatpush1.bf16.msra.mxu0 %v7227
          %7270 = vmatprep.subr.bf16.mxu0 0
          %7271 = vmatpush1.bf16.msra.mxu0 %v7228
          %7272 = vmatprep.subr.bf16.mxu0 0
          %7273 = vmatpush1.bf16.msra.mxu0 %v7229
          %7274 = vmatprep.subr.bf16.mxu0 0
          %7275 = vmatpush1.bf16.msra.mxu0 %v7230
          %7276 = vmatprep.subr.bf16.mxu0 0
          %7277 = vmatpush1.bf16.msra.mxu0 %v7231
          %7278 = vmatprep.subr.bf16.mxu0 0
          %7279 = vmatpush1.bf16.msra.mxu0 %v7232
          %7280 = vmatprep.subr.bf16.mxu0 0
          %7281 = vmatpush1.bf16.msra.mxu0 %v7233
          %7282 = vmatprep.mubr.bf16.mxu0 %v7100
          %7283 = vmatmul.mubr.bf16.gmra.mrb[0].mxu0 %v7099
          %v7284 = vpop.f32.mrb[0].mxu0
          %v7285 = vadd.f32 %v7152, %v7284
          %v7286 = vpop.f32.mrb[0].mxu0
          %v7287 = vpop.f32.mrb[0].mxu0
          %v7288 = vadd.f32 %v7152, %v7287
          %v7289 = vpop.f32.mrb[0].mxu0
          %7290 = vmatprep.mubr.bf16.mxu0 %v7102
          %7291 = vmatmul.mubr.bf16.gmra.mrb[0].mxu0 %v7101
          %v7292 = vpop.f32.mrb[0].mxu0
          %v7293 = vadd.f32 %v7152, %v7292
          %v7294 = vpop.f32.mrb[0].mxu0
          %v7295 = vpop.f32.mrb[0].mxu0
          %v7296 = vadd.f32 %v7152, %v7295
          %v7297 = vpop.f32.mrb[0].mxu0
          %7298 = vmatprep.mubr.bf16.mxu0 %v7104
          %7299 = vmatmul.mubr.bf16.gmra.mrb[0].mxu0 %v7103
          %v7300 = vpop.f32.mrb[0].mxu0
          %v7301 = vadd.f32 %v7152, %v7300
          %v7302 = vpop.f32.mrb[0].mxu0
          %v7303 = vpop.f32.mrb[0].mxu0
          %v7304 = vadd.f32 %v7152, %v7303
          %v7305 = vpop.f32.mrb[0].mxu0
          %7306 = vmatprep.mubr.bf16.mxu0 %v7106
          %7307 = vmatmul.mubr.bf16.gmra.mrb[0].mxu0 %v7105
          %v7308 = vpop.f32.mrb[0].mxu0
          %v7309 = vadd.f32 %v7152, %v7308
          %v7310 = vpop.f32.mrb[0].mxu0
          %v7311 = vpop.f32.mrb[0].mxu0
          %v7312 = vadd.f32 %v7152, %v7311
          %v7313 = vpop.f32.mrb[0].mxu0
          %7314 = vmatprep.mubr.bf16.mxu0 %v7108
          %7315 = vmatmul.mubr.bf16.gmra.mrb[0].mxu0 %v7107
          %v7316 = vpop.f32.mrb[0].mxu0
          %v7317 = vadd.f32 %v7152, %v7316
          %v7318 = vpop.f32.mrb[0].mxu0
          %v7319 = vpop.f32.mrb[0].mxu0
          %v7320 = vadd.f32 %v7152, %v7319
          %v7321 = vpop.f32.mrb[0].mxu0
          %7322 = vmatprep.mubr.bf16.mxu0 %v7110
          %7323 = vmatmul.mubr.bf16.gmra.mrb[0].mxu0 %v7109
          %v7324 = vpop.f32.mrb[0].mxu0
          %v7325 = vadd.f32 %v7152, %v7324
          %v7326 = vpop.f32.mrb[0].mxu0
          %v7327 = vpop.f32.mrb[0].mxu0
          %v7328 = vadd.f32 %v7152, %v7327
          %v7329 = vpop.f32.mrb[0].mxu0
          %7330 = vmatprep.mubr.bf16.mxu0 %v7112
          %7331 = vmatmul.mubr.bf16.gmra.mrb[0].mxu0 %v7111
          %v7332 = vpop.f32.mrb[0].mxu0
          %v7333 = vadd.f32 %v7152, %v7332
          %v7334 = vpop.f32.mrb[0].mxu0
          %v7335 = vpop.f32.mrb[0].mxu0
          %v7336 = vadd.f32 %v7152, %v7335
          %v7337 = vpop.f32.mrb[0].mxu0
          %7338 = vmatprep.mubr.bf16.mxu0 %v7114
          %7339 = vmatmul.mubr.bf16.gmra.mrb[0].mxu0 %v7113
          %v7340 = vpop.f32.mrb[0].mxu0
          %v7341 = vadd.f32 %v7152, %v7340
          %v7342 = vpop.f32.mrb[0].mxu0
          %v7343 = vpop.f32.mrb[0].mxu0
          %v7344 = vadd.f32 %v7152, %v7343
          %v7345 = vpop.f32.mrb[0].mxu0
          %7346 = vdwg.mxu0
          %v7347 = vadd.f32 %v6600, %v7285
          %v7348 = vadd.f32 %v6601, %v7288
          %v7349 = vadd.f32 %v6602, %v7293
          %v7350 = vadd.f32 %v6603, %v7296
          %v7351 = vadd.f32 %v6604, %v7301
          %v7352 = vadd.f32 %v6605, %v7304
          %v7353 = vadd.f32 %v6606, %v7309
          %v7354 = vadd.f32 %v6607, %v7312
          %v7355 = vadd.f32 %v6608, %v7317
          %v7356 = vadd.f32 %v6609, %v7320
          %v7357 = vadd.f32 %v6610, %v7325
          %v7358 = vadd.f32 %v6611, %v7328
          %v7359 = vadd.f32 %v6612, %v7333
          %v7360 = vadd.f32 %v6613, %v7336
          %v7361 = vadd.f32 %v6614, %v7341
          %v7362 = vadd.f32 %v6615, %v7344
          %7363 = vst [vmem:[%s743] sm:$0xff] %v7347
          %7364 = vst [vmem:[%s743 + $0x8] sm:$0xff] %v7348
          %7365 = vst [vmem:[%s743 + $0x10] sm:$0xff] %v7349
          %7366 = vst [vmem:[%s743 + $0x18] sm:$0xff] %v7350
          %7367 = vst [vmem:[%s743 + $0x20] sm:$0xff] %v7351
          %7368 = vst [vmem:[%s743 + $0x28] sm:$0xff] %v7352
          %7369 = vst [vmem:[%s743 + $0x30] sm:$0xff] %v7353
          %7370 = vst [vmem:[%s743 + $0x38] sm:$0xff] %v7354
          %7371 = vst [vmem:[%s743 + $0x40] sm:$0xff] %v7355
          %7372 = vst [vmem:[%s743 + $0x48] sm:$0xff] %v7356
          %7373 = vst [vmem:[%s743 + $0x50] sm:$0xff] %v7357
          %7374 = vst [vmem:[%s743 + $0x58] sm:$0xff] %v7358
          %7375 = vst [vmem:[%s743 + $0x60] sm:$0xff] %v7359
          %7376 = vst [vmem:[%s743 + $0x68] sm:$0xff] %v7360
          %7377 = vst [vmem:[%s743 + $0x70] sm:$0xff] %v7361
          %7378 = vst [vmem:[%s743 + $0x78] sm:$0xff] %v7362
        $region128: #{tpu_custom_call.1} parent=87 // pred_fallthru
          _
        %s7379 = sand.u32 %s447, 1
        %s7380 = scalar_lea.sflag [#allocation8], %s7379
        %s7381 = sand.u32 %s447, 1
        %s7382 = smul.addr %s7381, 128
        %s7383 = scalar_lea.vmem [#allocation20], %s7382
        // Predicated region
        $region129: #{tpu_custom_call.1} parent=87 // pred_check
          %p7384 = pneg %p457
        $region130: #{tpu_custom_call.1} parent=87 // pred_check_branch
          %7386 = sbr.rel (%p7384) target = $region132
        $region131: #{tpu_custom_call.1} parent=87 // pred_region
          %s7387 = smul.u32 16, %s46
          %s7389 = ssub.s32 2048, 2048
          %7390 = vsyncadd %s7380, %s7389
          %s7391 = smul.addr %s45, 32
          %s7392 = sadd.s32 %s7387, %s7391
          %s7393 = smul.addr %s7392, 128
          %s7394 = scalar_lea.hbm %s17, %s7393
          %s7395 = sshll.u32 %s7383, 4
          %s7396 = int_to_ptr.vmem [resolvable:$true] %s7395
          %7401 = dma.vmem_to_hbm [thread:$0]  %s7396, 2048, %s7394, %s7380, 128, 128, 8
        $region132: #{tpu_custom_call.1} parent=87 // pred_fallthru
          _
      $region88: #{tpu_custom_call.1} parent=5 // pred_fallthru
        _
      %p7402 = scmp.le.s32.totalorder 2, %s35
      // Predicated region
      $region133: #{tpu_custom_call.1} parent=5 // pred_check
        %p7403 = pneg %p7402
      $region134: #{tpu_custom_call.1} parent=5 // pred_check_branch
        %7405 = sbr.rel (%p7403) target = $region136
      $region135: #{tpu_custom_call.1} parent=5 // pred_region
        %s7406 = ssub.s32 %s35, 2
        // Predicated region
        $region137: #{tpu_custom_call.1} parent=135 // pred_check
          %p7407 = pneg %p463
        $region138: #{tpu_custom_call.1} parent=135 // pred_check_branch
          %7409 = sbr.rel (%p7407) target = $region140
        $region139: #{tpu_custom_call.1} parent=135 // pred_region
          %s7410 = sand.u32 %s448, 1
          %s7411 = scalar_lea.sflag [#allocation8], %s7410
          %s7412 = sand.u32 %s448, 1
          %s7413 = smul.addr %s7412, 128
          %s7414 = scalar_lea.vmem [#allocation20], %s7413
          %7415 = dma.done %s7411, 2048
        $region140: #{tpu_custom_call.1} parent=135 // pred_fallthru
          _
      $region136: #{tpu_custom_call.1} parent=5 // pred_fallthru
        _
    $region6: #{tpu_custom_call.1} parent=1 // loop_footer
      %s39 = sadd.s32 1, %s35
    $region7: #{tpu_custom_call.1} parent=1 // loop_footer_branch
      %34 = sbr.rel target = $region3
    $region8: #{tpu_custom_call.1} parent=1 // loop_exit
      _
    %7416 = vsyncpa [#allocation7], 1
    %s7417 = scalar_lea.sflag [#allocation7], 1
    %7418 = vsyncpa %s7417, 1
    %7419 = vsyncpa [#allocation10], 1
    %s7420 = scalar_lea.sflag [#allocation10], 1
    %7421 = vsyncpa %s7420, 1
    %7422 = vsyncpa [#allocation13], 1
    %7423 = vsyncpa [#allocation16], 1
    %7424 = vsyncpa [#allocation19], 1
    %7425 = vsyncpa [#allocation8], 1
    %s7426 = scalar_lea.sflag [#allocation8], 1
    %7427 = vsyncpa %s7426, 1

</llo_original>
